<compile_context>
chip_gen: v7x
topology: tpu7x:2x2x1
jax: 0.10.0
libtpu: 0.0.40
codegen_flags: <defaults>
</compile_context>

<pallas_src>
import functools

import jax
import jax.numpy as jnp
from jax.experimental import pallas as pl
from jax.experimental.pallas import tpu as pltpu

LRELU_SLOPE = 0.1
BN_EPS = 1e-5
_TM_MAX = 512                      # safe for v7x (64 MiB VMEM); 1024+ ok on v5e/v6e
_VMEM_LIMIT = 32 * 1024 * 1024     # <= scoped default on v6e, below v7x physical


def _round_up(x, m):
    return (x + m - 1) // m * m


def _tiles(m):
    """Pick (Mpad, TM, grid_m) so TM | Mpad, TM % 8 == 0, TM <= _TM_MAX."""
    mpad = _round_up(max(m, 8), 8)
    if mpad > _TM_MAX:
        mpad = _round_up(mpad, _TM_MAX)
        tm = _TM_MAX
    else:
        tm = mpad
    return mpad, tm, mpad // tm


# ----------------------------------------------------------------------------
# Pallas kernels
# ----------------------------------------------------------------------------
def _matmul_kernel(*refs, add_bias, do_lrelu, do_stats):
    """Fused tile kernel: y = x @ w [+ b] [+ LeakyReLU]; optional BN stats."""
    if add_bias:
        x_ref, w_ref, b_ref = refs[:3]
        out_refs = refs[3:]
    else:
        x_ref, w_ref = refs[:2]
        b_ref = None
        out_refs = refs[2:]

    # bf16 x bf16 -> f32 accumulation on the MXU.
    y = jnp.dot(x_ref[0], w_ref[0], preferred_element_type=jnp.float32)
    if add_bias:
        y = y + b_ref[0]                         # (TM, N) + (1, N)
    if do_lrelu:
        y = jnp.maximum(y, LRELU_SLOPE * y)      # single VPU op (no cmp+select)
    out_refs[0][0] = y

    if do_stats:
        # Per-tile per-channel sum and sum of squares (padded rows are exactly
        # zero because no bias is added on the BN path, so they do not bias the
        # statistics; the divisor used later is the real row count).
        s = jnp.concatenate(
            [jnp.sum(y, axis=0, keepdims=True),
             jnp.sum(y * y, axis=0, keepdims=True)], axis=0)   # (2, N)
        out_refs[1][0, 0] = s


def _bn_lrelu_kernel(y_ref, scale_ref, shift_ref, o_ref):
    """Second cheap pass: y_hat = (y - mean) * rsqrt(var+eps), then LeakyReLU."""
    z = y_ref[...] * scale_ref[...] + shift_ref[...]
    o_ref[...] = jnp.maximum(z, LRELU_SLOPE * z)


# ----------------------------------------------------------------------------
# Pallas wrappers
# ----------------------------------------------------------------------------
def fused_matmul(x, w, b=None, *, do_lrelu=False, do_stats=False):
    """x: (B, M, Kp) bf16; w: (B, Kp, Np) bf16; b: (B, Np) f32 or None.

    Returns y (B, Mpad, Np) f32, plus per-tile stats (B, Gm, 2, Np) if
    do_stats.  Kp/Np must already be multiples of 128 (done at weight prep).
    """
    bsz, m, kp = x.shape
    np_ = w.shape[-1]
    mpad, tm, gm = _tiles(m)
    if mpad != m:
        x = jnp.pad(x, ((0, 0), (0, mpad - m), (0, 0)))

    in_specs = [
        pl.BlockSpec((1, tm, kp), lambda bb, mi: (bb, mi, 0)),
        pl.BlockSpec((1, kp, np_), lambda bb, mi: (bb, 0, 0)),
    ]
    args = [x, w]
    if b is not None:
        in_specs.append(pl.BlockSpec((1, 1, np_), lambda bb, mi: (bb, 0, 0)))
        args.append(b.reshape(bsz, 1, np_))

    y_spec = pl.BlockSpec((1, tm, np_), lambda bb, mi: (bb, mi, 0))
    y_shape = jax.ShapeDtypeStruct((bsz, mpad, np_), jnp.float32)

    kernel = functools.partial(_matmul_kernel, add_bias=b is not None,
                               do_lrelu=do_lrelu, do_stats=do_stats)
    cp = pltpu.CompilerParams(
        dimension_semantics=("parallel", "parallel"),
        vmem_limit_bytes=_VMEM_LIMIT)

    if do_stats:
        out_shape = (y_shape,
                     jax.ShapeDtypeStruct((bsz, gm, 2, np_), jnp.float32))
        out_specs = (y_spec,
                     pl.BlockSpec((1, 1, 2, np_), lambda bb, mi: (bb, mi, 0, 0)))
        return pl.pallas_call(kernel, grid=(bsz, gm), in_specs=in_specs,
                              out_specs=out_specs, out_shape=out_shape,
                              compiler_params=cp)(*args)

    return pl.pallas_call(kernel, grid=(bsz, gm), in_specs=in_specs,
                          out_specs=y_spec, out_shape=y_shape,
                          compiler_params=cp)(*args)


def bn_lrelu(y, scale, shift):
    """y: (Mpad, Np) f32 pre-BN activations; scale/shift: (Np,) f32."""
    mpad, np_ = y.shape
    _, tm, gm = _tiles(mpad)
    return pl.pallas_call(
        _bn_lrelu_kernel,
        grid=(gm,),
        in_specs=[pl.BlockSpec((tm, np_), lambda i: (i, 0)),
                  pl.BlockSpec((1, np_), lambda i: (0, 0)),
                  pl.BlockSpec((1, np_), lambda i: (0, 0))],
        out_specs=pl.BlockSpec((tm, np_), lambda i: (i, 0)),
        out_shape=jax.ShapeDtypeStruct((mpad, np_), jnp.float32),
        compiler_params=pltpu.CompilerParams(
            dimension_semantics=("parallel",),
            vmem_limit_bytes=_VMEM_LIMIT),
    )(y, scale.reshape(1, np_), shift.reshape(1, np_))


# ----------------------------------------------------------------------------
# Conv / ConvTranspose wrappers (bf16 im2col glue in plain JAX)
# ----------------------------------------------------------------------------
def _im2col(x, k, stride, pad, kpad):
    """x: (N, H, W, C) f32 -> bf16 patch matrix (N*Ho*Wo, kpad)."""
    n, h, w, c = x.shape
    xp = jnp.pad(x.astype(jnp.bfloat16), ((0, 0), (pad, pad), (pad, pad), (0, 0)))
    ho = (h + 2 * pad - k) // stride + 1
    wo = (w + 2 * pad - k) // stride + 1
    cols = [xp[:, i:i + stride * ho:stride, j:j + stride * wo:stride, :]
            for i in range(k) for j in range(k)]
    patches = jnp.stack(cols, axis=3).reshape(n * ho * wo, k * k * c)
    if kpad > k * k * c:
        patches = jnp.pad(patches, ((0, 0), (0, kpad - k * k * c)))
    return patches, (n, ho, wo)


def conv2d(x, w_mat, bias, cout, stride, pad, k, *, do_bn, do_lrelu):
    """x NHWC f32; w_mat (1, Kpad, Npad) bf16; bias (1, Npad) f32 or None."""
    kpad = w_mat.shape[1]
    patches, (n, ho, wo) = _im2col(x, k, stride, pad, kpad)
    m = patches.shape[0]
    xb = patches[None]                                   # (1, M, Kpad)

    if do_bn:
        # Pass A: tiled matmul + per-tile stats.  Bias skipped (BN cancels it).
        y, stats = fused_matmul(xb, w_mat, None, do_lrelu=False, do_stats=True)
        s = jnp.sum(stats, axis=(0, 1))                  # (2, Npad)
        mean = s[0] / m
        var = jnp.maximum(s[1] / m - mean * mean, 0.0)   # biased var (train BN)
        scale = jax.lax.rsqrt(var + BN_EPS)              # gamma = 1
        shift = -mean * scale                            # beta  = 0
        # Pass B: tiled normalize + LeakyReLU.
        out = bn_lrelu(y[0], scale, shift)
    else:
        y = fused_matmul(xb, w_mat, bias, do_lrelu=do_lrelu, do_stats=False)
        out = y[0]

    return out[:m, :cout].reshape(n, ho, wo, cout)


def conv_transpose2d(x, w_phase, b_phase, cout):
    """ConvTranspose2d(k=4, s=2, p=1) + LeakyReLU via subpixel decomposition.

    w_phase: (4, Kpad=4*Cin padded, Npad) bf16 phase sub-kernels (precomputed);
    b_phase: (4, Npad) f32.  Output spatial = 2x input.
    """
    n, h, w_, cin = x.shape
    xp = jnp.pad(x.astype(jnp.bfloat16), ((0, 0), (1, 1), (1, 1), (0, 0)))
    m = n * h * w_
    phases = []
    for a in (0, 1):                       # output-row phase
        for bph in (0, 1):                 # output-col phase
            win = xp[:, a:a + h + 1, bph:bph + w_ + 1, :]
            cols = [win[:, dh:dh + h, dw:dw + w_, :]
                    for dh in (0, 1) for dw in (0, 1)]
            phases.append(jnp.stack(cols, axis=3).reshape(m, 4 * cin))
    xph = jnp.stack(phases, axis=0)                      # (4, M, 4*Cin)
    kpad = w_phase.shape[1]
    if kpad > 4 * cin:
        xph = jnp.pad(xph, ((0, 0), (0, 0), (0, kpad - 4 * cin)))

    y = fused_matmul(xph, w_phase, b_phase, do_lrelu=True, do_stats=False)
    y = y[:, :m, :cout].reshape(2, 2, n, h, w_, cout)    # (a, b, n, q, r, c)
    y = jnp.transpose(y, (2, 3, 0, 4, 1, 5)).reshape(n, 2 * h, 2 * w_, cout)
    return y


# ----------------------------------------------------------------------------
# Parameter init: PyTorch-layout random weights -> precomputed matmul layout
# ----------------------------------------------------------------------------
def _prep_conv(w_pt, bias):
    """(Cout, Cin, k, k) -> (1, Kpad, Npad) bf16, (1, Npad) f32 (or None)."""
    cout, cin, kh, kw = w_pt.shape
    m = jnp.transpose(w_pt, (2, 3, 1, 0)).reshape(kh * kw * cin, cout)
    kp = _round_up(kh * kw * cin, 128)
    np_ = _round_up(cout, 128)
    m = jnp.pad(m, ((0, kp - kh * kw * cin), (0, np_ - cout))).astype(jnp.bfloat16)
    b = None
    if bias is not None:
        b = jnp.pad(bias, (0, np_ - cout)).reshape(1, np_).astype(jnp.float32)
    return m[None], b


def _prep_deconv(w_pt, bias):
    """(Cin, Cout, 4, 4) -> four 2x2 phase sub-kernels as (4, Kpad, Npad) bf16."""
    cin, cout = w_pt.shape[:2]
    mats = []
    for a in (0, 1):
        for bph in (0, 1):
            # phase (a,b) taps: kernel index (3-a-2*dh, 3-b-2*dw), dh/dw in {0,1}
            sub = jnp.stack(
                [jnp.stack([w_pt[:, :, 3 - a - 2 * dh, 3 - bph - 2 * dw]
                            for dw in (0, 1)], axis=0)
                 for dh in (0, 1)], axis=0)              # (dh, dw, cin, cout)
            mats.append(sub.reshape(4 * cin, cout))
    kp = _round_up(4 * cin, 128)
    np_ = _round_up(cout, 128)
    w4 = jnp.stack(mats, axis=0)
    w4 = jnp.pad(w4, ((0, 0), (0, kp - 4 * cin), (0, np_ - cout))).astype(jnp.bfloat16)
    b4 = jnp.tile(jnp.pad(bias, (0, np_ - cout)).reshape(1, np_),
                  (4, 1)).astype(jnp.float32)
    return w4, b4


def init_params(key, pruning_size, kernel=3):
    keys = jax.random.split(key, 16)
    params = {}

    # Encoder convs: weight ~ N(0, 0.002/n), bias zero (and cancelled by BN).
    enc = [(pruning_size, 64), (64, 128), (128, 256), (256, 512)]
    for idx, (ci, co) in enumerate(enc, start=1):
        n_ = kernel * kernel * co
        w_pt = jax.random.normal(keys[idx - 1], (co, ci, kernel, kernel),
                                 jnp.float32) * (0.002 / n_)
        wmat, _ = _prep_conv(w_pt, None)
        params[f"conv{idx}_w"] = wmat

    # Decoder ConvTranspose2d layers -> precomputed phase sub-kernels.
    dec = [("deconv3", 512, 256), ("deconv2", 256, 128),
           ("deconv1", 128, 64), ("deconv0", 64, 32)]
    for i, (name, ci, co) in enumerate(dec):
        w_pt = jax.random.normal(keys[4 + 2 * i], (ci, co, 4, 4), jnp.float32) * 0.02
        b = jax.random.normal(keys[5 + 2 * i], (co,), jnp.float32) * 0.01
        w4, b4 = _prep_deconv(w_pt, b)
        params[f"{name}_w"] = w4
        params[f"{name}_b"] = b4

    # Output layer: Conv2d(32 + pruning_size, pruning_size, k=3, pad=1).
    w_pt = jax.random.normal(keys[12], (pruning_size, 32 + pruning_size, 3, 3),
                             jnp.float32) * 0.02
    b = jax.random.normal(keys[13], (pruning_size,), jnp.float32) * 0.01
    wmat, bm = _prep_conv(w_pt, b)
    params["out_w"] = wmat
    params["out_b"] = bm
    return params


# ----------------------------------------------------------------------------
# TransitionPruner forward
# ----------------------------------------------------------------------------
def transition_pruner_forward(params, prune_nchw, pruning_size, kernel=3):
    x = jnp.transpose(prune_nchw, (0, 2, 3, 1))          # NCHW -> NHWC
    pad = (kernel - 1) // 2

    # Encoder: conv + BN(train) + LeakyReLU(0.1) + Dropout(0) == identity.
    c1 = conv2d(x,  params["conv1_w"], None, 64,  2, pad, kernel, do_bn=True, do_lrelu=True)
    c2 = conv2d(c1, params["conv2_w"], None, 128, 2, pad, kernel, do_bn=True, do_lrelu=True)
    c3 = conv2d(c2, params["conv3_w"], None, 256, 2, pad, kernel, do_bn=True, do_lrelu=True)
    c4 = conv2d(c3, params["conv4_w"], None, 512, 2, pad, kernel, do_bn=True, do_lrelu=True)

    # Decoder with skip additions (elementwise adds fuse into the next im2col).
    d3 = conv_transpose2d(c4,      params["deconv3_w"], params["deconv3_b"], 256)
    d2 = conv_transpose2d(c3 + d3, params["deconv2_w"], params["deconv2_b"], 128)
    d1 = conv_transpose2d(c2 + d2, params["deconv1_w"], params["deconv1_b"], 64)
    d0 = conv_transpose2d(c1 + d1, params["deconv0_w"], params["deconv0_b"], 32)

    # cat along channels + output conv (no BN, no activation).
    cat0 = jnp.concatenate([x, d0], axis=-1)
    out = conv2d(cat0, params["out_w"], params["out_b"], pruning_size, 1, 1, 3,
                 do_bn=False, do_lrelu=False)
    return jnp.transpose(out, (0, 3, 1, 2))              # NHWC -> NCHW


if __name__ == "__main__":
    pruning_size = 4
    batch, spatial = 2, 16

    key = jax.random.PRNGKey(0)
    pkey, xkey = jax.random.split(key)
    params = init_params(pkey, pruning_size, kernel=3)
    prune = jax.random.normal(xkey, (batch, pruning_size, spatial, spatial),
                              jnp.float32)

    fwd = jax.jit(functools.partial(transition_pruner_forward,
                                    pruning_size=pruning_size, kernel=3))
    out = jax.block_until_ready(fwd(params, prune))

    assert out.shape == (batch, pruning_size, spatial, spatial), out.shape
    assert bool(jnp.all(jnp.isfinite(out)))
    print("KERNEL_OK")
</pallas_src>

<mosaic_0001>
module attributes {stable_mosaic.version = 11 : i64} {
  func.func @_matmul_kernel(%arg0: i32, %arg1: i32, %arg2: memref<1x128x128xbf16, #tpu.memory_space<vmem>>, %arg3: memref<1x128x128xbf16, #tpu.memory_space<vmem>>, %arg4: memref<1x128x128xf32, #tpu.memory_space<vmem>>, %arg5: memref<1x1x2x128xf32, #tpu.memory_space<vmem>>) attributes {dimension_semantics = [#tpu.dimension_semantics<parallel>, #tpu.dimension_semantics<parallel>], iteration_bounds = array<i64: 1, 1>, scalar_prefetch = 0 : i64, scratch_operands = 0 : i64, tpu.core_type = #tpu.core_type<tc>, window_params = [{transform_indices = @transform_0, window_bounds = array<i64: 1, 128, 128>}, {transform_indices = @transform_1, window_bounds = array<i64: 1, 128, 128>}, {transform_indices = @transform_2, window_bounds = array<i64: 1, 128, 128>}, {transform_indices = @transform_3, window_bounds = array<i64: 1, 1, 2, 128>}]} {
    %c0 = arith.constant 0 : index
    %c0_0 = arith.constant 0 : index
    %c0_1 = arith.constant 0 : index
    %0 = vector.load %arg2[%c0, %c0_0, %c0_1] : memref<1x128x128xbf16, #tpu.memory_space<vmem>>, vector<1x128x128xbf16>
    %1 = vector.shape_cast %0 : vector<1x128x128xbf16> to vector<128x128xbf16>
    %c0_2 = arith.constant 0 : index
    %c0_3 = arith.constant 0 : index
    %c0_4 = arith.constant 0 : index
    %2 = vector.load %arg3[%c0_2, %c0_3, %c0_4] : memref<1x128x128xbf16, #tpu.memory_space<vmem>>, vector<1x128x128xbf16>
    %3 = vector.shape_cast %2 : vector<1x128x128xbf16> to vector<128x128xbf16>
    %cst = arith.constant dense<0.000000e+00> : vector<128x128xf32>
    %4 = tpu.matmul %1, %3, %cst {dimension_numbers = #tpu.dot_dimension_numbers<[1], [0], [0], [1], [0, 0, 1, 1], [], []>} : vector<128x128xbf16>, vector<128x128xbf16>, vector<128x128xf32> -> vector<128x128xf32>
    %c0_5 = arith.constant 0 : index
    %c0_6 = arith.constant 0 : index
    %c0_7 = arith.constant 0 : index
    %5 = vector.load %arg4[%c0_5, %c0_6, %c0_7] : memref<1x128x128xf32, #tpu.memory_space<vmem>>, vector<1x128x128xf32>
    %6 = vector.shape_cast %5 : vector<1x128x128xf32> to vector<128x128xf32>
    %7 = vector.shape_cast %4 : vector<128x128xf32> to vector<1x128x128xf32>
    tpu.vector_store %arg4[%c0_5, %c0_6, %c0_7], %7 {strides = array<i32>} : memref<1x128x128xf32, #tpu.memory_space<vmem>>, vector<1x128x128xf32>,
    %cst_8 = arith.constant dense<0.000000e+00> : vector<128xf32>
    %8 = vector.multi_reduction <add>, %4, %cst_8 [0] : vector<128x128xf32> to vector<128xf32>
    %9 = vector.shape_cast %8 : vector<128xf32> to vector<1x128xf32>
    %10 = arith.mulf %4, %4 : vector<128x128xf32>
    %cst_9 = arith.constant dense<0.000000e+00> : vector<128xf32>
    %11 = vector.multi_reduction <add>, %10, %cst_9 [0] : vector<128x128xf32> to vector<128xf32>
    %12 = vector.shape_cast %11 : vector<128xf32> to vector<1x128xf32>
    %13 = tpu.concatenate %9, %12 in 0 : vector<1x128xf32>, vector<1x128xf32> -> vector<2x128xf32>
    %c0_10 = arith.constant 0 : index
    %c0_11 = arith.constant 0 : index
    %c0_12 = arith.constant 0 : index
    %c0_13 = arith.constant 0 : index
    %14 = vector.load %arg5[%c0_10, %c0_11, %c0_12, %c0_13] : memref<1x1x2x128xf32, #tpu.memory_space<vmem>>, vector<1x1x2x128xf32>
    %15 = vector.shape_cast %14 : vector<1x1x2x128xf32> to vector<2x128xf32>
    %16 = vector.shape_cast %13 : vector<2x128xf32> to vector<1x1x2x128xf32>
    tpu.vector_store %arg5[%c0_10, %c0_11, %c0_12, %c0_13], %16 {strides = array<i32>} : memref<1x1x2x128xf32, #tpu.memory_space<vmem>>, vector<1x1x2x128xf32>,
    return
  }
  func.func @transform_0(%arg0: i32, %arg1: i32) -> (i32, i32, i32) {
    %c0_i32 = arith.constant 0 : i32
    %c0_i32_0 = arith.constant 0 : i32
    return %arg0, %arg1, %c0_i32 : i32, i32, i32
  }
  func.func @transform_1(%arg0: i32, %arg1: i32) -> (i32, i32, i32) {
    %c0_i32 = arith.constant 0 : i32
    %c0_i32_0 = arith.constant 0 : i32
    %c0_i32_1 = arith.constant 0 : i32
    return %arg0, %c0_i32, %c0_i32_0 : i32, i32, i32
  }
  func.func @transform_2(%arg0: i32, %arg1: i32) -> (i32, i32, i32) {
    %c0_i32 = arith.constant 0 : i32
    %c0_i32_0 = arith.constant 0 : i32
    return %arg0, %arg1, %c0_i32 : i32, i32, i32
  }
  func.func @transform_3(%arg0: i32, %arg1: i32) -> (i32, i32, i32, i32) {
    %c0_i32 = arith.constant 0 : i32
    %c0_i32_0 = arith.constant 0 : i32
    %c0_i32_1 = arith.constant 0 : i32
    return %arg0, %arg1, %c0_i32, %c0_i32_0 : i32, i32, i32, i32
  }
}

module attributes {stable_mosaic.version = 11 : i64} {
  func.func @_bn_lrelu_kernel(%arg0: i32, %arg1: memref<128x128xf32, #tpu.memory_space<vmem>>, %arg2: memref<1x128xf32, #tpu.memory_space<vmem>>, %arg3: memref<1x128xf32, #tpu.memory_space<vmem>>, %arg4: memref<128x128xf32, #tpu.memory_space<vmem>>) attributes {dimension_semantics = [#tpu.dimension_semantics<parallel>], iteration_bounds = array<i64: 1>, scalar_prefetch = 0 : i64, scratch_operands = 0 : i64, tpu.core_type = #tpu.core_type<tc>, window_params = [{transform_indices = @transform_0, window_bounds = array<i64: 128, 128>}, {pipeline_mode = #tpu.pipeline_mode<synchronous>, transform_indices = @transform_1, window_bounds = array<i64: 1, 128>}, {pipeline_mode = #tpu.pipeline_mode<synchronous>, transform_indices = @transform_2, window_bounds = array<i64: 1, 128>}, {transform_indices = @transform_3, window_bounds = array<i64: 128, 128>}]} {
    %c0 = arith.constant 0 : index
    %c0_0 = arith.constant 0 : index
    %0 = vector.load %arg1[%c0, %c0_0] : memref<128x128xf32, #tpu.memory_space<vmem>>, vector<128x128xf32>
    %c0_1 = arith.constant 0 : index
    %c0_2 = arith.constant 0 : index
    %1 = vector.load %arg2[%c0_1, %c0_2] : memref<1x128xf32, #tpu.memory_space<vmem>>, vector<1x128xf32>
    %2 = vector.broadcast %1 : vector<1x128xf32> to vector<128x128xf32>
    %3 = arith.mulf %0, %2 : vector<128x128xf32>
    %c0_3 = arith.constant 0 : index
    %c0_4 = arith.constant 0 : index
    %4 = vector.load %arg3[%c0_3, %c0_4] : memref<1x128xf32, #tpu.memory_space<vmem>>, vector<1x128xf32>
    %5 = vector.broadcast %4 : vector<1x128xf32> to vector<128x128xf32>
    %6 = arith.addf %3, %5 : vector<128x128xf32>
    %cst = arith.constant 1.000000e-01 : f32
    %7 = vector.broadcast %cst : f32 to vector<128x128xf32>
    %8 = arith.mulf %7, %6 : vector<128x128xf32>
    %9 = arith.maximumf %6, %8 : vector<128x128xf32>
    %c0_5 = arith.constant 0 : index
    %c0_6 = arith.constant 0 : index
    %10 = vector.load %arg4[%c0_5, %c0_6] : memref<128x128xf32, #tpu.memory_space<vmem>>, vector<128x128xf32>
    tpu.vector_store %arg4[%c0_5, %c0_6], %9 {strides = array<i32>} : memref<128x128xf32, #tpu.memory_space<vmem>>, vector<128x128xf32>,
    return
  }
  func.func @transform_0(%arg0: i32) -> (i32, i32) {
    %c0_i32 = arith.constant 0 : i32
    %c0_i32_0 = arith.constant 0 : i32
    return %arg0, %c0_i32 : i32, i32
  }
  func.func @transform_1(%arg0: i32) -> (i32, i32) {
    %c0_i32 = arith.constant 0 : i32
    %c0_i32_0 = arith.constant 0 : i32
    %c0_i32_1 = arith.constant 0 : i32
    return %c0_i32, %c0_i32_0 : i32, i32
  }
  func.func @transform_2(%arg0: i32) -> (i32, i32) {
    %c0_i32 = arith.constant 0 : i32
    %c0_i32_0 = arith.constant 0 : i32
    %c0_i32_1 = arith.constant 0 : i32
    return %c0_i32, %c0_i32_0 : i32, i32
  }
  func.func @transform_3(%arg0: i32) -> (i32, i32) {
    %c0_i32 = arith.constant 0 : i32
    %c0_i32_0 = arith.constant 0 : i32
    return %arg0, %c0_i32 : i32, i32
  }
}

module attributes {stable_mosaic.version = 11 : i64} {
  func.func @_matmul_kernel(%arg0: i32, %arg1: i32, %arg2: memref<1x32x640xbf16, #tpu.memory_space<vmem>>, %arg3: memref<1x640x128xbf16, #tpu.memory_space<vmem>>, %arg4: memref<1x32x128xf32, #tpu.memory_space<vmem>>, %arg5: memref<1x1x2x128xf32, #tpu.memory_space<vmem>>) attributes {dimension_semantics = [#tpu.dimension_semantics<parallel>, #tpu.dimension_semantics<parallel>], iteration_bounds = array<i64: 1, 1>, scalar_prefetch = 0 : i64, scratch_operands = 0 : i64, tpu.core_type = #tpu.core_type<tc>, window_params = [{transform_indices = @transform_0, window_bounds = array<i64: 1, 32, 640>}, {transform_indices = @transform_1, window_bounds = array<i64: 1, 640, 128>}, {transform_indices = @transform_2, window_bounds = array<i64: 1, 32, 128>}, {transform_indices = @transform_3, window_bounds = array<i64: 1, 1, 2, 128>}]} {
    %c0 = arith.constant 0 : index
    %c0_0 = arith.constant 0 : index
    %c0_1 = arith.constant 0 : index
    %0 = vector.load %arg2[%c0, %c0_0, %c0_1] : memref<1x32x640xbf16, #tpu.memory_space<vmem>>, vector<1x32x640xbf16>
    %1 = vector.shape_cast %0 : vector<1x32x640xbf16> to vector<32x640xbf16>
    %c0_2 = arith.constant 0 : index
    %c0_3 = arith.constant 0 : index
    %c0_4 = arith.constant 0 : index
    %2 = vector.load %arg3[%c0_2, %c0_3, %c0_4] : memref<1x640x128xbf16, #tpu.memory_space<vmem>>, vector<1x640x128xbf16>
    %3 = vector.shape_cast %2 : vector<1x640x128xbf16> to vector<640x128xbf16>
    %cst = arith.constant dense<0.000000e+00> : vector<32x128xf32>
    %4 = tpu.matmul %1, %3, %cst {dimension_numbers = #tpu.dot_dimension_numbers<[1], [0], [0], [1], [0, 0, 1, 1], [], []>} : vector<32x640xbf16>, vector<640x128xbf16>, vector<32x128xf32> -> vector<32x128xf32>
    %c0_5 = arith.constant 0 : index
    %c0_6 = arith.constant 0 : index
    %c0_7 = arith.constant 0 : index
    %5 = vector.load %arg4[%c0_5, %c0_6, %c0_7] : memref<1x32x128xf32, #tpu.memory_space<vmem>>, vector<1x32x128xf32>
    %6 = vector.shape_cast %5 : vector<1x32x128xf32> to vector<32x128xf32>
    %7 = vector.shape_cast %4 : vector<32x128xf32> to vector<1x32x128xf32>
    tpu.vector_store %arg4[%c0_5, %c0_6, %c0_7], %7 {strides = array<i32>} : memref<1x32x128xf32, #tpu.memory_space<vmem>>, vector<1x32x128xf32>,
    %cst_8 = arith.constant dense<0.000000e+00> : vector<128xf32>
    %8 = vector.multi_reduction <add>, %4, %cst_8 [0] : vector<32x128xf32> to vector<128xf32>
    %9 = vector.shape_cast %8 : vector<128xf32> to vector<1x128xf32>
    %10 = arith.mulf %4, %4 : vector<32x128xf32>
    %cst_9 = arith.constant dense<0.000000e+00> : vector<128xf32>
    %11 = vector.multi_reduction <add>, %10, %cst_9 [0] : vector<32x128xf32> to vector<128xf32>
    %12 = vector.shape_cast %11 : vector<128xf32> to vector<1x128xf32>
    %13 = tpu.concatenate %9, %12 in 0 : vector<1x128xf32>, vector<1x128xf32> -> vector<2x128xf32>
    %c0_10 = arith.constant 0 : index
    %c0_11 = arith.constant 0 : index
    %c0_12 = arith.constant 0 : index
    %c0_13 = arith.constant 0 : index
    %14 = vector.load %arg5[%c0_10, %c0_11, %c0_12, %c0_13] : memref<1x1x2x128xf32, #tpu.memory_space<vmem>>, vector<1x1x2x128xf32>
    %15 = vector.shape_cast %14 : vector<1x1x2x128xf32> to vector<2x128xf32>
    %16 = vector.shape_cast %13 : vector<2x128xf32> to vector<1x1x2x128xf32>
    tpu.vector_store %arg5[%c0_10, %c0_11, %c0_12, %c0_13], %16 {strides = array<i32>} : memref<1x1x2x128xf32, #tpu.memory_space<vmem>>, vector<1x1x2x128xf32>,
    return
  }
  func.func @transform_0(%arg0: i32, %arg1: i32) -> (i32, i32, i32) {
    %c0_i32 = arith.constant 0 : i32
    %c0_i32_0 = arith.constant 0 : i32
    return %arg0, %arg1, %c0_i32 : i32, i32, i32
  }
  func.func @transform_1(%arg0: i32, %arg1: i32) -> (i32, i32, i32) {
    %c0_i32 = arith.constant 0 : i32
    %c0_i32_0 = arith.constant 0 : i32
    %c0_i32_1 = arith.constant 0 : i32
    return %arg0, %c0_i32, %c0_i32_0 : i32, i32, i32
  }
  func.func @transform_2(%arg0: i32, %arg1: i32) -> (i32, i32, i32) {
    %c0_i32 = arith.constant 0 : i32
    %c0_i32_0 = arith.constant 0 : i32
    return %arg0, %arg1, %c0_i32 : i32, i32, i32
  }
  func.func @transform_3(%arg0: i32, %arg1: i32) -> (i32, i32, i32, i32) {
    %c0_i32 = arith.constant 0 : i32
    %c0_i32_0 = arith.constant 0 : i32
    %c0_i32_1 = arith.constant 0 : i32
    return %arg0, %arg1, %c0_i32, %c0_i32_0 : i32, i32, i32, i32
  }
}

module attributes {stable_mosaic.version = 11 : i64} {
  func.func @_bn_lrelu_kernel(%arg0: i32, %arg1: memref<32x128xf32, #tpu.memory_space<vmem>>, %arg2: memref<1x128xf32, #tpu.memory_space<vmem>>, %arg3: memref<1x128xf32, #tpu.memory_space<vmem>>, %arg4: memref<32x128xf32, #tpu.memory_space<vmem>>) attributes {dimension_semantics = [#tpu.dimension_semantics<parallel>], iteration_bounds = array<i64: 1>, scalar_prefetch = 0 : i64, scratch_operands = 0 : i64, tpu.core_type = #tpu.core_type<tc>, window_params = [{transform_indices = @transform_0, window_bounds = array<i64: 32, 128>}, {pipeline_mode = #tpu.pipeline_mode<synchronous>, transform_indices = @transform_1, window_bounds = array<i64: 1, 128>}, {pipeline_mode = #tpu.pipeline_mode<synchronous>, transform_indices = @transform_2, window_bounds = array<i64: 1, 128>}, {transform_indices = @transform_3, window_bounds = array<i64: 32, 128>}]} {
    %c0 = arith.constant 0 : index
    %c0_0 = arith.constant 0 : index
    %0 = vector.load %arg1[%c0, %c0_0] : memref<32x128xf32, #tpu.memory_space<vmem>>, vector<32x128xf32>
    %c0_1 = arith.constant 0 : index
    %c0_2 = arith.constant 0 : index
    %1 = vector.load %arg2[%c0_1, %c0_2] : memref<1x128xf32, #tpu.memory_space<vmem>>, vector<1x128xf32>
    %2 = vector.broadcast %1 : vector<1x128xf32> to vector<32x128xf32>
    %3 = arith.mulf %0, %2 : vector<32x128xf32>
    %c0_3 = arith.constant 0 : index
    %c0_4 = arith.constant 0 : index
    %4 = vector.load %arg3[%c0_3, %c0_4] : memref<1x128xf32, #tpu.memory_space<vmem>>, vector<1x128xf32>
    %5 = vector.broadcast %4 : vector<1x128xf32> to vector<32x128xf32>
    %6 = arith.addf %3, %5 : vector<32x128xf32>
    %cst = arith.constant 1.000000e-01 : f32
    %7 = vector.broadcast %cst : f32 to vector<32x128xf32>
    %8 = arith.mulf %7, %6 : vector<32x128xf32>
    %9 = arith.maximumf %6, %8 : vector<32x128xf32>
    %c0_5 = arith.constant 0 : index
    %c0_6 = arith.constant 0 : index
    %10 = vector.load %arg4[%c0_5, %c0_6] : memref<32x128xf32, #tpu.memory_space<vmem>>, vector<32x128xf32>
    tpu.vector_store %arg4[%c0_5, %c0_6], %9 {strides = array<i32>} : memref<32x128xf32, #tpu.memory_space<vmem>>, vector<32x128xf32>,
    return
  }
  func.func @transform_0(%arg0: i32) -> (i32, i32) {
    %c0_i32 = arith.constant 0 : i32
    %c0_i32_0 = arith.constant 0 : i32
    return %arg0, %c0_i32 : i32, i32
  }
  func.func @transform_1(%arg0: i32) -> (i32, i32) {
    %c0_i32 = arith.constant 0 : i32
    %c0_i32_0 = arith.constant 0 : i32
    %c0_i32_1 = arith.constant 0 : i32
    return %c0_i32, %c0_i32_0 : i32, i32
  }
  func.func @transform_2(%arg0: i32) -> (i32, i32) {
    %c0_i32 = arith.constant 0 : i32
    %c0_i32_0 = arith.constant 0 : i32
    %c0_i32_1 = arith.constant 0 : i32
    return %c0_i32, %c0_i32_0 : i32, i32
  }
  func.func @transform_3(%arg0: i32) -> (i32, i32) {
    %c0_i32 = arith.constant 0 : i32
    %c0_i32_0 = arith.constant 0 : i32
    return %arg0, %c0_i32 : i32, i32
  }
}

module attributes {stable_mosaic.version = 11 : i64} {
  func.func @_matmul_kernel(%arg0: i32, %arg1: i32, %arg2: memref<1x8x1152xbf16, #tpu.memory_space<vmem>>, %arg3: memref<1x1152x256xbf16, #tpu.memory_space<vmem>>, %arg4: memref<1x8x256xf32, #tpu.memory_space<vmem>>, %arg5: memref<1x1x2x256xf32, #tpu.memory_space<vmem>>) attributes {dimension_semantics = [#tpu.dimension_semantics<parallel>, #tpu.dimension_semantics<parallel>], iteration_bounds = array<i64: 1, 1>, scalar_prefetch = 0 : i64, scratch_operands = 0 : i64, tpu.core_type = #tpu.core_type<tc>, window_params = [{transform_indices = @transform_0, window_bounds = array<i64: 1, 8, 1152>}, {transform_indices = @transform_1, window_bounds = array<i64: 1, 1152, 256>}, {transform_indices = @transform_2, window_bounds = array<i64: 1, 8, 256>}, {transform_indices = @transform_3, window_bounds = array<i64: 1, 1, 2, 256>}]} {
    %c0 = arith.constant 0 : index
    %c0_0 = arith.constant 0 : index
    %c0_1 = arith.constant 0 : index
    %0 = vector.load %arg2[%c0, %c0_0, %c0_1] : memref<1x8x1152xbf16, #tpu.memory_space<vmem>>, vector<1x8x1152xbf16>
    %1 = vector.shape_cast %0 : vector<1x8x1152xbf16> to vector<8x1152xbf16>
    %c0_2 = arith.constant 0 : index
    %c0_3 = arith.constant 0 : index
    %c0_4 = arith.constant 0 : index
    %2 = vector.load %arg3[%c0_2, %c0_3, %c0_4] : memref<1x1152x256xbf16, #tpu.memory_space<vmem>>, vector<1x1152x256xbf16>
    %3 = vector.shape_cast %2 : vector<1x1152x256xbf16> to vector<1152x256xbf16>
    %cst = arith.constant dense<0.000000e+00> : vector<8x256xf32>
    %4 = tpu.matmul %1, %3, %cst {dimension_numbers = #tpu.dot_dimension_numbers<[1], [0], [0], [1], [0, 0, 1, 1], [], []>} : vector<8x1152xbf16>, vector<1152x256xbf16>, vector<8x256xf32> -> vector<8x256xf32>
    %c0_5 = arith.constant 0 : index
    %c0_6 = arith.constant 0 : index
    %c0_7 = arith.constant 0 : index
    %5 = vector.load %arg4[%c0_5, %c0_6, %c0_7] : memref<1x8x256xf32, #tpu.memory_space<vmem>>, vector<1x8x256xf32>
    %6 = vector.shape_cast %5 : vector<1x8x256xf32> to vector<8x256xf32>
    %7 = vector.shape_cast %4 : vector<8x256xf32> to vector<1x8x256xf32>
    tpu.vector_store %arg4[%c0_5, %c0_6, %c0_7], %7 {strides = array<i32>} : memref<1x8x256xf32, #tpu.memory_space<vmem>>, vector<1x8x256xf32>,
    %cst_8 = arith.constant dense<0.000000e+00> : vector<256xf32>
    %8 = vector.multi_reduction <add>, %4, %cst_8 [0] : vector<8x256xf32> to vector<256xf32>
    %9 = vector.shape_cast %8 : vector<256xf32> to vector<1x256xf32>
    %10 = arith.mulf %4, %4 : vector<8x256xf32>
    %cst_9 = arith.constant dense<0.000000e+00> : vector<256xf32>
    %11 = vector.multi_reduction <add>, %10, %cst_9 [0] : vector<8x256xf32> to vector<256xf32>
    %12 = vector.shape_cast %11 : vector<256xf32> to vector<1x256xf32>
    %13 = tpu.concatenate %9, %12 in 0 : vector<1x256xf32>, vector<1x256xf32> -> vector<2x256xf32>
    %c0_10 = arith.constant 0 : index
    %c0_11 = arith.constant 0 : index
    %c0_12 = arith.constant 0 : index
    %c0_13 = arith.constant 0 : index
    %14 = vector.load %arg5[%c0_10, %c0_11, %c0_12, %c0_13] : memref<1x1x2x256xf32, #tpu.memory_space<vmem>>, vector<1x1x2x256xf32>
    %15 = vector.shape_cast %14 : vector<1x1x2x256xf32> to vector<2x256xf32>
    %16 = vector.shape_cast %13 : vector<2x256xf32> to vector<1x1x2x256xf32>
    tpu.vector_store %arg5[%c0_10, %c0_11, %c0_12, %c0_13], %16 {strides = array<i32>} : memref<1x1x2x256xf32, #tpu.memory_space<vmem>>, vector<1x1x2x256xf32>,
    return
  }
  func.func @transform_0(%arg0: i32, %arg1: i32) -> (i32, i32, i32) {
    %c0_i32 = arith.constant 0 : i32
    %c0_i32_0 = arith.constant 0 : i32
    return %arg0, %arg1, %c0_i32 : i32, i32, i32
  }
  func.func @transform_1(%arg0: i32, %arg1: i32) -> (i32, i32, i32) {
    %c0_i32 = arith.constant 0 : i32
    %c0_i32_0 = arith.constant 0 : i32
    %c0_i32_1 = arith.constant 0 : i32
    return %arg0, %c0_i32, %c0_i32_0 : i32, i32, i32
  }
  func.func @transform_2(%arg0: i32, %arg1: i32) -> (i32, i32, i32) {
    %c0_i32 = arith.constant 0 : i32
    %c0_i32_0 = arith.constant 0 : i32
    return %arg0, %arg1, %c0_i32 : i32, i32, i32
  }
  func.func @transform_3(%arg0: i32, %arg1: i32) -> (i32, i32, i32, i32) {
    %c0_i32 = arith.constant 0 : i32
    %c0_i32_0 = arith.constant 0 : i32
    %c0_i32_1 = arith.constant 0 : i32
    return %arg0, %arg1, %c0_i32, %c0_i32_0 : i32, i32, i32, i32
  }
}

module attributes {stable_mosaic.version = 11 : i64} {
  func.func @_bn_lrelu_kernel(%arg0: i32, %arg1: memref<8x256xf32, #tpu.memory_space<vmem>>, %arg2: memref<1x256xf32, #tpu.memory_space<vmem>>, %arg3: memref<1x256xf32, #tpu.memory_space<vmem>>, %arg4: memref<8x256xf32, #tpu.memory_space<vmem>>) attributes {dimension_semantics = [#tpu.dimension_semantics<parallel>], iteration_bounds = array<i64: 1>, scalar_prefetch = 0 : i64, scratch_operands = 0 : i64, tpu.core_type = #tpu.core_type<tc>, window_params = [{transform_indices = @transform_0, window_bounds = array<i64: 8, 256>}, {pipeline_mode = #tpu.pipeline_mode<synchronous>, transform_indices = @transform_1, window_bounds = array<i64: 1, 256>}, {pipeline_mode = #tpu.pipeline_mode<synchronous>, transform_indices = @transform_2, window_bounds = array<i64: 1, 256>}, {transform_indices = @transform_3, window_bounds = array<i64: 8, 256>}]} {
    %c0 = arith.constant 0 : index
    %c0_0 = arith.constant 0 : index
    %0 = vector.load %arg1[%c0, %c0_0] : memref<8x256xf32, #tpu.memory_space<vmem>>, vector<8x256xf32>
    %c0_1 = arith.constant 0 : index
    %c0_2 = arith.constant 0 : index
    %1 = vector.load %arg2[%c0_1, %c0_2] : memref<1x256xf32, #tpu.memory_space<vmem>>, vector<1x256xf32>
    %2 = vector.broadcast %1 : vector<1x256xf32> to vector<8x256xf32>
    %3 = arith.mulf %0, %2 : vector<8x256xf32>
    %c0_3 = arith.constant 0 : index
    %c0_4 = arith.constant 0 : index
    %4 = vector.load %arg3[%c0_3, %c0_4] : memref<1x256xf32, #tpu.memory_space<vmem>>, vector<1x256xf32>
    %5 = vector.broadcast %4 : vector<1x256xf32> to vector<8x256xf32>
    %6 = arith.addf %3, %5 : vector<8x256xf32>
    %cst = arith.constant 1.000000e-01 : f32
    %7 = vector.broadcast %cst : f32 to vector<8x256xf32>
    %8 = arith.mulf %7, %6 : vector<8x256xf32>
    %9 = arith.maximumf %6, %8 : vector<8x256xf32>
    %c0_5 = arith.constant 0 : index
    %c0_6 = arith.constant 0 : index
    %10 = vector.load %arg4[%c0_5, %c0_6] : memref<8x256xf32, #tpu.memory_space<vmem>>, vector<8x256xf32>
    tpu.vector_store %arg4[%c0_5, %c0_6], %9 {strides = array<i32>} : memref<8x256xf32, #tpu.memory_space<vmem>>, vector<8x256xf32>,
    return
  }
  func.func @transform_0(%arg0: i32) -> (i32, i32) {
    %c0_i32 = arith.constant 0 : i32
    %c0_i32_0 = arith.constant 0 : i32
    return %arg0, %c0_i32 : i32, i32
  }
  func.func @transform_1(%arg0: i32) -> (i32, i32) {
    %c0_i32 = arith.constant 0 : i32
    %c0_i32_0 = arith.constant 0 : i32
    %c0_i32_1 = arith.constant 0 : i32
    return %c0_i32, %c0_i32_0 : i32, i32
  }
  func.func @transform_2(%arg0: i32) -> (i32, i32) {
    %c0_i32 = arith.constant 0 : i32
    %c0_i32_0 = arith.constant 0 : i32
    %c0_i32_1 = arith.constant 0 : i32
    return %c0_i32, %c0_i32_0 : i32, i32
  }
  func.func @transform_3(%arg0: i32) -> (i32, i32) {
    %c0_i32 = arith.constant 0 : i32
    %c0_i32_0 = arith.constant 0 : i32
    return %arg0, %c0_i32 : i32, i32
  }
}

module attributes {stable_mosaic.version = 11 : i64} {
  func.func @_bn_lrelu_kernel(%arg0: i32, %arg1: memref<8x512xf32, #tpu.memory_space<vmem>>, %arg2: memref<1x512xf32, #tpu.memory_space<vmem>>, %arg3: memref<1x512xf32, #tpu.memory_space<vmem>>, %arg4: memref<8x512xf32, #tpu.memory_space<vmem>>) attributes {dimension_semantics = [#tpu.dimension_semantics<parallel>], iteration_bounds = array<i64: 1>, scalar_prefetch = 0 : i64, scratch_operands = 0 : i64, tpu.core_type = #tpu.core_type<tc>, window_params = [{transform_indices = @transform_0, window_bounds = array<i64: 8, 512>}, {pipeline_mode = #tpu.pipeline_mode<synchronous>, transform_indices = @transform_1, window_bounds = array<i64: 1, 512>}, {pipeline_mode = #tpu.pipeline_mode<synchronous>, transform_indices = @transform_2, window_bounds = array<i64: 1, 512>}, {transform_indices = @transform_3, window_bounds = array<i64: 8, 512>}]} {
    %c0 = arith.constant 0 : index
    %c0_0 = arith.constant 0 : index
    %0 = vector.load %arg1[%c0, %c0_0] : memref<8x512xf32, #tpu.memory_space<vmem>>, vector<8x512xf32>
    %c0_1 = arith.constant 0 : index
    %c0_2 = arith.constant 0 : index
    %1 = vector.load %arg2[%c0_1, %c0_2] : memref<1x512xf32, #tpu.memory_space<vmem>>, vector<1x512xf32>
    %2 = vector.broadcast %1 : vector<1x512xf32> to vector<8x512xf32>
    %3 = arith.mulf %0, %2 : vector<8x512xf32>
    %c0_3 = arith.constant 0 : index
    %c0_4 = arith.constant 0 : index
    %4 = vector.load %arg3[%c0_3, %c0_4] : memref<1x512xf32, #tpu.memory_space<vmem>>, vector<1x512xf32>
    %5 = vector.broadcast %4 : vector<1x512xf32> to vector<8x512xf32>
    %6 = arith.addf %3, %5 : vector<8x512xf32>
    %cst = arith.constant 1.000000e-01 : f32
    %7 = vector.broadcast %cst : f32 to vector<8x512xf32>
    %8 = arith.mulf %7, %6 : vector<8x512xf32>
    %9 = arith.maximumf %6, %8 : vector<8x512xf32>
    %c0_5 = arith.constant 0 : index
    %c0_6 = arith.constant 0 : index
    %10 = vector.load %arg4[%c0_5, %c0_6] : memref<8x512xf32, #tpu.memory_space<vmem>>, vector<8x512xf32>
    tpu.vector_store %arg4[%c0_5, %c0_6], %9 {strides = array<i32>} : memref<8x512xf32, #tpu.memory_space<vmem>>, vector<8x512xf32>,
    return
  }
  func.func @transform_0(%arg0: i32) -> (i32, i32) {
    %c0_i32 = arith.constant 0 : i32
    %c0_i32_0 = arith.constant 0 : i32
    return %arg0, %c0_i32 : i32, i32
  }
  func.func @transform_1(%arg0: i32) -> (i32, i32) {
    %c0_i32 = arith.constant 0 : i32
    %c0_i32_0 = arith.constant 0 : i32
    %c0_i32_1 = arith.constant 0 : i32
    return %c0_i32, %c0_i32_0 : i32, i32
  }
  func.func @transform_2(%arg0: i32) -> (i32, i32) {
    %c0_i32 = arith.constant 0 : i32
    %c0_i32_0 = arith.constant 0 : i32
    %c0_i32_1 = arith.constant 0 : i32
    return %c0_i32, %c0_i32_0 : i32, i32
  }
  func.func @transform_3(%arg0: i32) -> (i32, i32) {
    %c0_i32 = arith.constant 0 : i32
    %c0_i32_0 = arith.constant 0 : i32
    return %arg0, %c0_i32 : i32, i32
  }
}

module attributes {stable_mosaic.version = 11 : i64} {
  func.func @_matmul_kernel(%arg0: i32, %arg1: i32, %arg2: memref<1x8x2304xbf16, #tpu.memory_space<vmem>>, %arg3: memref<1x2304x512xbf16, #tpu.memory_space<vmem>>, %arg4: memref<1x8x512xf32, #tpu.memory_space<vmem>>, %arg5: memref<1x1x2x512xf32, #tpu.memory_space<vmem>>) attributes {dimension_semantics = [#tpu.dimension_semantics<parallel>, #tpu.dimension_semantics<parallel>], iteration_bounds = array<i64: 1, 1>, scalar_prefetch = 0 : i64, scratch_operands = 0 : i64, tpu.core_type = #tpu.core_type<tc>, window_params = [{transform_indices = @transform_0, window_bounds = array<i64: 1, 8, 2304>}, {transform_indices = @transform_1, window_bounds = array<i64: 1, 2304, 512>}, {transform_indices = @transform_2, window_bounds = array<i64: 1, 8, 512>}, {transform_indices = @transform_3, window_bounds = array<i64: 1, 1, 2, 512>}]} {
    %c0 = arith.constant 0 : index
    %c0_0 = arith.constant 0 : index
    %c0_1 = arith.constant 0 : index
    %0 = vector.load %arg2[%c0, %c0_0, %c0_1] : memref<1x8x2304xbf16, #tpu.memory_space<vmem>>, vector<1x8x2304xbf16>
    %1 = vector.shape_cast %0 : vector<1x8x2304xbf16> to vector<8x2304xbf16>
    %c0_2 = arith.constant 0 : index
    %c0_3 = arith.constant 0 : index
    %c0_4 = arith.constant 0 : index
    %2 = vector.load %arg3[%c0_2, %c0_3, %c0_4] : memref<1x2304x512xbf16, #tpu.memory_space<vmem>>, vector<1x2304x512xbf16>
    %3 = vector.shape_cast %2 : vector<1x2304x512xbf16> to vector<2304x512xbf16>
    %cst = arith.constant dense<0.000000e+00> : vector<8x512xf32>
    %4 = tpu.matmul %1, %3, %cst {dimension_numbers = #tpu.dot_dimension_numbers<[1], [0], [0], [1], [0, 0, 1, 1], [], []>} : vector<8x2304xbf16>, vector<2304x512xbf16>, vector<8x512xf32> -> vector<8x512xf32>
    %c0_5 = arith.constant 0 : index
    %c0_6 = arith.constant 0 : index
    %c0_7 = arith.constant 0 : index
    %5 = vector.load %arg4[%c0_5, %c0_6, %c0_7] : memref<1x8x512xf32, #tpu.memory_space<vmem>>, vector<1x8x512xf32>
    %6 = vector.shape_cast %5 : vector<1x8x512xf32> to vector<8x512xf32>
    %7 = vector.shape_cast %4 : vector<8x512xf32> to vector<1x8x512xf32>
    tpu.vector_store %arg4[%c0_5, %c0_6, %c0_7], %7 {strides = array<i32>} : memref<1x8x512xf32, #tpu.memory_space<vmem>>, vector<1x8x512xf32>,
    %cst_8 = arith.constant dense<0.000000e+00> : vector<512xf32>
    %8 = vector.multi_reduction <add>, %4, %cst_8 [0] : vector<8x512xf32> to vector<512xf32>
    %9 = vector.shape_cast %8 : vector<512xf32> to vector<1x512xf32>
    %10 = arith.mulf %4, %4 : vector<8x512xf32>
    %cst_9 = arith.constant dense<0.000000e+00> : vector<512xf32>
    %11 = vector.multi_reduction <add>, %10, %cst_9 [0] : vector<8x512xf32> to vector<512xf32>
    %12 = vector.shape_cast %11 : vector<512xf32> to vector<1x512xf32>
    %13 = tpu.concatenate %9, %12 in 0 : vector<1x512xf32>, vector<1x512xf32> -> vector<2x512xf32>
    %c0_10 = arith.constant 0 : index
    %c0_11 = arith.constant 0 : index
    %c0_12 = arith.constant 0 : index
    %c0_13 = arith.constant 0 : index
    %14 = vector.load %arg5[%c0_10, %c0_11, %c0_12, %c0_13] : memref<1x1x2x512xf32, #tpu.memory_space<vmem>>, vector<1x1x2x512xf32>
    %15 = vector.shape_cast %14 : vector<1x1x2x512xf32> to vector<2x512xf32>
    %16 = vector.shape_cast %13 : vector<2x512xf32> to vector<1x1x2x512xf32>
    tpu.vector_store %arg5[%c0_10, %c0_11, %c0_12, %c0_13], %16 {strides = array<i32>} : memref<1x1x2x512xf32, #tpu.memory_space<vmem>>, vector<1x1x2x512xf32>,
    return
  }
  func.func @transform_0(%arg0: i32, %arg1: i32) -> (i32, i32, i32) {
    %c0_i32 = arith.constant 0 : i32
    %c0_i32_0 = arith.constant 0 : i32
    return %arg0, %arg1, %c0_i32 : i32, i32, i32
  }
  func.func @transform_1(%arg0: i32, %arg1: i32) -> (i32, i32, i32) {
    %c0_i32 = arith.constant 0 : i32
    %c0_i32_0 = arith.constant 0 : i32
    %c0_i32_1 = arith.constant 0 : i32
    return %arg0, %c0_i32, %c0_i32_0 : i32, i32, i32
  }
  func.func @transform_2(%arg0: i32, %arg1: i32) -> (i32, i32, i32) {
    %c0_i32 = arith.constant 0 : i32
    %c0_i32_0 = arith.constant 0 : i32
    return %arg0, %arg1, %c0_i32 : i32, i32, i32
  }
  func.func @transform_3(%arg0: i32, %arg1: i32) -> (i32, i32, i32, i32) {
    %c0_i32 = arith.constant 0 : i32
    %c0_i32_0 = arith.constant 0 : i32
    %c0_i32_1 = arith.constant 0 : i32
    return %arg0, %arg1, %c0_i32, %c0_i32_0 : i32, i32, i32, i32
  }
}

module attributes {stable_mosaic.version = 11 : i64} {
  func.func @_matmul_kernel(%arg0: i32, %arg1: i32, %arg2: memref<1x8x2048xbf16, #tpu.memory_space<vmem>>, %arg3: memref<1x2048x256xbf16, #tpu.memory_space<vmem>>, %arg4: memref<1x1x256xf32, #tpu.memory_space<vmem>>, %arg5: memref<1x8x256xf32, #tpu.memory_space<vmem>>) attributes {dimension_semantics = [#tpu.dimension_semantics<parallel>, #tpu.dimension_semantics<parallel>], iteration_bounds = array<i64: 4, 1>, scalar_prefetch = 0 : i64, scratch_operands = 0 : i64, tpu.core_type = #tpu.core_type<tc>, window_params = [{transform_indices = @transform_0, window_bounds = array<i64: 1, 8, 2048>}, {transform_indices = @transform_1, window_bounds = array<i64: 1, 2048, 256>}, {transform_indices = @transform_2, window_bounds = array<i64: 1, 1, 256>}, {transform_indices = @transform_3, window_bounds = array<i64: 1, 8, 256>}]} {
    %c0 = arith.constant 0 : index
    %c0_0 = arith.constant 0 : index
    %c0_1 = arith.constant 0 : index
    %0 = vector.load %arg2[%c0, %c0_0, %c0_1] : memref<1x8x2048xbf16, #tpu.memory_space<vmem>>, vector<1x8x2048xbf16>
    %1 = vector.shape_cast %0 : vector<1x8x2048xbf16> to vector<8x2048xbf16>
    %c0_2 = arith.constant 0 : index
    %c0_3 = arith.constant 0 : index
    %c0_4 = arith.constant 0 : index
    %2 = vector.load %arg3[%c0_2, %c0_3, %c0_4] : memref<1x2048x256xbf16, #tpu.memory_space<vmem>>, vector<1x2048x256xbf16>
    %3 = vector.shape_cast %2 : vector<1x2048x256xbf16> to vector<2048x256xbf16>
    %cst = arith.constant dense<0.000000e+00> : vector<8x256xf32>
    %4 = tpu.matmul %1, %3, %cst {dimension_numbers = #tpu.dot_dimension_numbers<[1], [0], [0], [1], [0, 0, 1, 1], [], []>} : vector<8x2048xbf16>, vector<2048x256xbf16>, vector<8x256xf32> -> vector<8x256xf32>
    %c0_5 = arith.constant 0 : index
    %c0_6 = arith.constant 0 : index
    %c0_7 = arith.constant 0 : index
    %5 = vector.load %arg4[%c0_5, %c0_6, %c0_7] : memref<1x1x256xf32, #tpu.memory_space<vmem>>, vector<1x1x256xf32>
    %6 = vector.shape_cast %5 : vector<1x1x256xf32> to vector<1x256xf32>
    %7 = vector.broadcast %6 : vector<1x256xf32> to vector<8x256xf32>
    %8 = arith.addf %4, %7 : vector<8x256xf32>
    %cst_8 = arith.constant 1.000000e-01 : f32
    %9 = vector.broadcast %cst_8 : f32 to vector<8x256xf32>
    %10 = arith.mulf %9, %8 : vector<8x256xf32>
    %11 = arith.maximumf %8, %10 : vector<8x256xf32>
    %c0_9 = arith.constant 0 : index
    %c0_10 = arith.constant 0 : index
    %c0_11 = arith.constant 0 : index
    %12 = vector.load %arg5[%c0_9, %c0_10, %c0_11] : memref<1x8x256xf32, #tpu.memory_space<vmem>>, vector<1x8x256xf32>
    %13 = vector.shape_cast %12 : vector<1x8x256xf32> to vector<8x256xf32>
    %14 = vector.shape_cast %11 : vector<8x256xf32> to vector<1x8x256xf32>
    tpu.vector_store %arg5[%c0_9, %c0_10, %c0_11], %14 {strides = array<i32>} : memref<1x8x256xf32, #tpu.memory_space<vmem>>, vector<1x8x256xf32>,
    return
  }
  func.func @transform_0(%arg0: i32, %arg1: i32) -> (i32, i32, i32) {
    %c0_i32 = arith.constant 0 : i32
    %c0_i32_0 = arith.constant 0 : i32
    return %arg0, %arg1, %c0_i32 : i32, i32, i32
  }
  func.func @transform_1(%arg0: i32, %arg1: i32) -> (i32, i32, i32) {
    %c0_i32 = arith.constant 0 : i32
    %c0_i32_0 = arith.constant 0 : i32
    %c0_i32_1 = arith.constant 0 : i32
    return %arg0, %c0_i32, %c0_i32_0 : i32, i32, i32
  }
  func.func @transform_2(%arg0: i32, %arg1: i32) -> (i32, i32, i32) {
    %c0_i32 = arith.constant 0 : i32
    %c0_i32_0 = arith.constant 0 : i32
    %c0_i32_1 = arith.constant 0 : i32
    return %arg0, %c0_i32, %c0_i32_0 : i32, i32, i32
  }
  func.func @transform_3(%arg0: i32, %arg1: i32) -> (i32, i32, i32) {
    %c0_i32 = arith.constant 0 : i32
    %c0_i32_0 = arith.constant 0 : i32
    return %arg0, %arg1, %c0_i32 : i32, i32, i32
  }
}

module attributes {stable_mosaic.version = 11 : i64} {
  func.func @_matmul_kernel(%arg0: i32, %arg1: i32, %arg2: memref<1x8x1024xbf16, #tpu.memory_space<vmem>>, %arg3: memref<1x1024x128xbf16, #tpu.memory_space<vmem>>, %arg4: memref<1x1x128xf32, #tpu.memory_space<vmem>>, %arg5: memref<1x8x128xf32, #tpu.memory_space<vmem>>) attributes {dimension_semantics = [#tpu.dimension_semantics<parallel>, #tpu.dimension_semantics<parallel>], iteration_bounds = array<i64: 4, 1>, scalar_prefetch = 0 : i64, scratch_operands = 0 : i64, tpu.core_type = #tpu.core_type<tc>, window_params = [{transform_indices = @transform_0, window_bounds = array<i64: 1, 8, 1024>}, {transform_indices = @transform_1, window_bounds = array<i64: 1, 1024, 128>}, {transform_indices = @transform_2, window_bounds = array<i64: 1, 1, 128>}, {transform_indices = @transform_3, window_bounds = array<i64: 1, 8, 128>}]} {
    %c0 = arith.constant 0 : index
    %c0_0 = arith.constant 0 : index
    %c0_1 = arith.constant 0 : index
    %0 = vector.load %arg2[%c0, %c0_0, %c0_1] : memref<1x8x1024xbf16, #tpu.memory_space<vmem>>, vector<1x8x1024xbf16>
    %1 = vector.shape_cast %0 : vector<1x8x1024xbf16> to vector<8x1024xbf16>
    %c0_2 = arith.constant 0 : index
    %c0_3 = arith.constant 0 : index
    %c0_4 = arith.constant 0 : index
    %2 = vector.load %arg3[%c0_2, %c0_3, %c0_4] : memref<1x1024x128xbf16, #tpu.memory_space<vmem>>, vector<1x1024x128xbf16>
    %3 = vector.shape_cast %2 : vector<1x1024x128xbf16> to vector<1024x128xbf16>
    %cst = arith.constant dense<0.000000e+00> : vector<8x128xf32>
    %4 = tpu.matmul %1, %3, %cst {dimension_numbers = #tpu.dot_dimension_numbers<[1], [0], [0], [1], [0, 0, 1, 1], [], []>} : vector<8x1024xbf16>, vector<1024x128xbf16>, vector<8x128xf32> -> vector<8x128xf32>
    %c0_5 = arith.constant 0 : index
    %c0_6 = arith.constant 0 : index
    %c0_7 = arith.constant 0 : index
    %5 = vector.load %arg4[%c0_5, %c0_6, %c0_7] : memref<1x1x128xf32, #tpu.memory_space<vmem>>, vector<1x1x128xf32>
    %6 = vector.shape_cast %5 : vector<1x1x128xf32> to vector<1x128xf32>
    %7 = vector.broadcast %6 : vector<1x128xf32> to vector<8x128xf32>
    %8 = arith.addf %4, %7 : vector<8x128xf32>
    %cst_8 = arith.constant 1.000000e-01 : f32
    %9 = vector.broadcast %cst_8 : f32 to vector<8x128xf32>
    %10 = arith.mulf %9, %8 : vector<8x128xf32>
    %11 = arith.maximumf %8, %10 : vector<8x128xf32>
    %c0_9 = arith.constant 0 : index
    %c0_10 = arith.constant 0 : index
    %c0_11 = arith.constant 0 : index
    %12 = vector.load %arg5[%c0_9, %c0_10, %c0_11] : memref<1x8x128xf32, #tpu.memory_space<vmem>>, vector<1x8x128xf32>
    %13 = vector.shape_cast %12 : vector<1x8x128xf32> to vector<8x128xf32>
    %14 = vector.shape_cast %11 : vector<8x128xf32> to vector<1x8x128xf32>
    tpu.vector_store %arg5[%c0_9, %c0_10, %c0_11], %14 {strides = array<i32>} : memref<1x8x128xf32, #tpu.memory_space<vmem>>, vector<1x8x128xf32>,
    return
  }
  func.func @transform_0(%arg0: i32, %arg1: i32) -> (i32, i32, i32) {
    %c0_i32 = arith.constant 0 : i32
    %c0_i32_0 = arith.constant 0 : i32
    return %arg0, %arg1, %c0_i32 : i32, i32, i32
  }
  func.func @transform_1(%arg0: i32, %arg1: i32) -> (i32, i32, i32) {
    %c0_i32 = arith.constant 0 : i32
    %c0_i32_0 = arith.constant 0 : i32
    %c0_i32_1 = arith.constant 0 : i32
    return %arg0, %c0_i32, %c0_i32_0 : i32, i32, i32
  }
  func.func @transform_2(%arg0: i32, %arg1: i32) -> (i32, i32, i32) {
    %c0_i32 = arith.constant 0 : i32
    %c0_i32_0 = arith.constant 0 : i32
    %c0_i32_1 = arith.constant 0 : i32
    return %arg0, %c0_i32, %c0_i32_0 : i32, i32, i32
  }
  func.func @transform_3(%arg0: i32, %arg1: i32) -> (i32, i32, i32) {
    %c0_i32 = arith.constant 0 : i32
    %c0_i32_0 = arith.constant 0 : i32
    return %arg0, %arg1, %c0_i32 : i32, i32, i32
  }
}

module attributes {stable_mosaic.version = 11 : i64} {
  func.func @_matmul_kernel(%arg0: i32, %arg1: i32, %arg2: memref<1x32x512xbf16, #tpu.memory_space<vmem>>, %arg3: memref<1x512x128xbf16, #tpu.memory_space<vmem>>, %arg4: memref<1x1x128xf32, #tpu.memory_space<vmem>>, %arg5: memref<1x32x128xf32, #tpu.memory_space<vmem>>) attributes {dimension_semantics = [#tpu.dimension_semantics<parallel>, #tpu.dimension_semantics<parallel>], iteration_bounds = array<i64: 4, 1>, scalar_prefetch = 0 : i64, scratch_operands = 0 : i64, tpu.core_type = #tpu.core_type<tc>, window_params = [{transform_indices = @transform_0, window_bounds = array<i64: 1, 32, 512>}, {transform_indices = @transform_1, window_bounds = array<i64: 1, 512, 128>}, {transform_indices = @transform_2, window_bounds = array<i64: 1, 1, 128>}, {transform_indices = @transform_3, window_bounds = array<i64: 1, 32, 128>}]} {
    %c0 = arith.constant 0 : index
    %c0_0 = arith.constant 0 : index
    %c0_1 = arith.constant 0 : index
    %0 = vector.load %arg2[%c0, %c0_0, %c0_1] : memref<1x32x512xbf16, #tpu.memory_space<vmem>>, vector<1x32x512xbf16>
    %1 = vector.shape_cast %0 : vector<1x32x512xbf16> to vector<32x512xbf16>
    %c0_2 = arith.constant 0 : index
    %c0_3 = arith.constant 0 : index
    %c0_4 = arith.constant 0 : index
    %2 = vector.load %arg3[%c0_2, %c0_3, %c0_4] : memref<1x512x128xbf16, #tpu.memory_space<vmem>>, vector<1x512x128xbf16>
    %3 = vector.shape_cast %2 : vector<1x512x128xbf16> to vector<512x128xbf16>
    %cst = arith.constant dense<0.000000e+00> : vector<32x128xf32>
    %4 = tpu.matmul %1, %3, %cst {dimension_numbers = #tpu.dot_dimension_numbers<[1], [0], [0], [1], [0, 0, 1, 1], [], []>} : vector<32x512xbf16>, vector<512x128xbf16>, vector<32x128xf32> -> vector<32x128xf32>
    %c0_5 = arith.constant 0 : index
    %c0_6 = arith.constant 0 : index
    %c0_7 = arith.constant 0 : index
    %5 = vector.load %arg4[%c0_5, %c0_6, %c0_7] : memref<1x1x128xf32, #tpu.memory_space<vmem>>, vector<1x1x128xf32>
    %6 = vector.shape_cast %5 : vector<1x1x128xf32> to vector<1x128xf32>
    %7 = vector.broadcast %6 : vector<1x128xf32> to vector<32x128xf32>
    %8 = arith.addf %4, %7 : vector<32x128xf32>
    %cst_8 = arith.constant 1.000000e-01 : f32
    %9 = vector.broadcast %cst_8 : f32 to vector<32x128xf32>
    %10 = arith.mulf %9, %8 : vector<32x128xf32>
    %11 = arith.maximumf %8, %10 : vector<32x128xf32>
    %c0_9 = arith.constant 0 : index
    %c0_10 = arith.constant 0 : index
    %c0_11 = arith.constant 0 : index
    %12 = vector.load %arg5[%c0_9, %c0_10, %c0_11] : memref<1x32x128xf32, #tpu.memory_space<vmem>>, vector<1x32x128xf32>
    %13 = vector.shape_cast %12 : vector<1x32x128xf32> to vector<32x128xf32>
    %14 = vector.shape_cast %11 : vector<32x128xf32> to vector<1x32x128xf32>
    tpu.vector_store %arg5[%c0_9, %c0_10, %c0_11], %14 {strides = array<i32>} : memref<1x32x128xf32, #tpu.memory_space<vmem>>, vector<1x32x128xf32>,
    return
  }
  func.func @transform_0(%arg0: i32, %arg1: i32) -> (i32, i32, i32) {
    %c0_i32 = arith.constant 0 : i32
    %c0_i32_0 = arith.constant 0 : i32
    return %arg0, %arg1, %c0_i32 : i32, i32, i32
  }
  func.func @transform_1(%arg0: i32, %arg1: i32) -> (i32, i32, i32) {
    %c0_i32 = arith.constant 0 : i32
    %c0_i32_0 = arith.constant 0 : i32
    %c0_i32_1 = arith.constant 0 : i32
    return %arg0, %c0_i32, %c0_i32_0 : i32, i32, i32
  }
  func.func @transform_2(%arg0: i32, %arg1: i32) -> (i32, i32, i32) {
    %c0_i32 = arith.constant 0 : i32
    %c0_i32_0 = arith.constant 0 : i32
    %c0_i32_1 = arith.constant 0 : i32
    return %arg0, %c0_i32, %c0_i32_0 : i32, i32, i32
  }
  func.func @transform_3(%arg0: i32, %arg1: i32) -> (i32, i32, i32) {
    %c0_i32 = arith.constant 0 : i32
    %c0_i32_0 = arith.constant 0 : i32
    return %arg0, %arg1, %c0_i32 : i32, i32, i32
  }
}

module attributes {stable_mosaic.version = 11 : i64} {
  func.func @_matmul_kernel(%arg0: i32, %arg1: i32, %arg2: memref<1x128x256xbf16, #tpu.memory_space<vmem>>, %arg3: memref<1x256x128xbf16, #tpu.memory_space<vmem>>, %arg4: memref<1x1x128xf32, #tpu.memory_space<vmem>>, %arg5: memref<1x128x128xf32, #tpu.memory_space<vmem>>) attributes {dimension_semantics = [#tpu.dimension_semantics<parallel>, #tpu.dimension_semantics<parallel>], iteration_bounds = array<i64: 4, 1>, scalar_prefetch = 0 : i64, scratch_operands = 0 : i64, tpu.core_type = #tpu.core_type<tc>, window_params = [{transform_indices = @transform_0, window_bounds = array<i64: 1, 128, 256>}, {transform_indices = @transform_1, window_bounds = array<i64: 1, 256, 128>}, {transform_indices = @transform_2, window_bounds = array<i64: 1, 1, 128>}, {transform_indices = @transform_3, window_bounds = array<i64: 1, 128, 128>}]} {
    %c0 = arith.constant 0 : index
    %c0_0 = arith.constant 0 : index
    %c0_1 = arith.constant 0 : index
    %0 = vector.load %arg2[%c0, %c0_0, %c0_1] : memref<1x128x256xbf16, #tpu.memory_space<vmem>>, vector<1x128x256xbf16>
    %1 = vector.shape_cast %0 : vector<1x128x256xbf16> to vector<128x256xbf16>
    %c0_2 = arith.constant 0 : index
    %c0_3 = arith.constant 0 : index
    %c0_4 = arith.constant 0 : index
    %2 = vector.load %arg3[%c0_2, %c0_3, %c0_4] : memref<1x256x128xbf16, #tpu.memory_space<vmem>>, vector<1x256x128xbf16>
    %3 = vector.shape_cast %2 : vector<1x256x128xbf16> to vector<256x128xbf16>
    %cst = arith.constant dense<0.000000e+00> : vector<128x128xf32>
    %4 = tpu.matmul %1, %3, %cst {dimension_numbers = #tpu.dot_dimension_numbers<[1], [0], [0], [1], [0, 0, 1, 1], [], []>} : vector<128x256xbf16>, vector<256x128xbf16>, vector<128x128xf32> -> vector<128x128xf32>
    %c0_5 = arith.constant 0 : index
    %c0_6 = arith.constant 0 : index
    %c0_7 = arith.constant 0 : index
    %5 = vector.load %arg4[%c0_5, %c0_6, %c0_7] : memref<1x1x128xf32, #tpu.memory_space<vmem>>, vector<1x1x128xf32>
    %6 = vector.shape_cast %5 : vector<1x1x128xf32> to vector<1x128xf32>
    %7 = vector.broadcast %6 : vector<1x128xf32> to vector<128x128xf32>
    %8 = arith.addf %4, %7 : vector<128x128xf32>
    %cst_8 = arith.constant 1.000000e-01 : f32
    %9 = vector.broadcast %cst_8 : f32 to vector<128x128xf32>
    %10 = arith.mulf %9, %8 : vector<128x128xf32>
    %11 = arith.maximumf %8, %10 : vector<128x128xf32>
    %c0_9 = arith.constant 0 : index
    %c0_10 = arith.constant 0 : index
    %c0_11 = arith.constant 0 : index
    %12 = vector.load %arg5[%c0_9, %c0_10, %c0_11] : memref<1x128x128xf32, #tpu.memory_space<vmem>>, vector<1x128x128xf32>
    %13 = vector.shape_cast %12 : vector<1x128x128xf32> to vector<128x128xf32>
    %14 = vector.shape_cast %11 : vector<128x128xf32> to vector<1x128x128xf32>
    tpu.vector_store %arg5[%c0_9, %c0_10, %c0_11], %14 {strides = array<i32>} : memref<1x128x128xf32, #tpu.memory_space<vmem>>, vector<1x128x128xf32>,
    return
  }
  func.func @transform_0(%arg0: i32, %arg1: i32) -> (i32, i32, i32) {
    %c0_i32 = arith.constant 0 : i32
    %c0_i32_0 = arith.constant 0 : i32
    return %arg0, %arg1, %c0_i32 : i32, i32, i32
  }
  func.func @transform_1(%arg0: i32, %arg1: i32) -> (i32, i32, i32) {
    %c0_i32 = arith.constant 0 : i32
    %c0_i32_0 = arith.constant 0 : i32
    %c0_i32_1 = arith.constant 0 : i32
    return %arg0, %c0_i32, %c0_i32_0 : i32, i32, i32
  }
  func.func @transform_2(%arg0: i32, %arg1: i32) -> (i32, i32, i32) {
    %c0_i32 = arith.constant 0 : i32
    %c0_i32_0 = arith.constant 0 : i32
    %c0_i32_1 = arith.constant 0 : i32
    return %arg0, %c0_i32, %c0_i32_0 : i32, i32, i32
  }
  func.func @transform_3(%arg0: i32, %arg1: i32) -> (i32, i32, i32) {
    %c0_i32 = arith.constant 0 : i32
    %c0_i32_0 = arith.constant 0 : i32
    return %arg0, %arg1, %c0_i32 : i32, i32, i32
  }
}

module attributes {stable_mosaic.version = 11 : i64} {
  func.func @_matmul_kernel(%arg0: i32, %arg1: i32, %arg2: memref<1x512x384xbf16, #tpu.memory_space<vmem>>, %arg3: memref<1x384x128xbf16, #tpu.memory_space<vmem>>, %arg4: memref<1x1x128xf32, #tpu.memory_space<vmem>>, %arg5: memref<1x512x128xf32, #tpu.memory_space<vmem>>) attributes {dimension_semantics = [#tpu.dimension_semantics<parallel>, #tpu.dimension_semantics<parallel>], iteration_bounds = array<i64: 1, 1>, scalar_prefetch = 0 : i64, scratch_operands = 0 : i64, tpu.core_type = #tpu.core_type<tc>, window_params = [{transform_indices = @transform_0, window_bounds = array<i64: 1, 512, 384>}, {transform_indices = @transform_1, window_bounds = array<i64: 1, 384, 128>}, {transform_indices = @transform_2, window_bounds = array<i64: 1, 1, 128>}, {transform_indices = @transform_3, window_bounds = array<i64: 1, 512, 128>}]} {
    %c0 = arith.constant 0 : index
    %c0_0 = arith.constant 0 : index
    %c0_1 = arith.constant 0 : index
    %0 = vector.load %arg2[%c0, %c0_0, %c0_1] : memref<1x512x384xbf16, #tpu.memory_space<vmem>>, vector<1x512x384xbf16>
    %1 = vector.shape_cast %0 : vector<1x512x384xbf16> to vector<512x384xbf16>
    %c0_2 = arith.constant 0 : index
    %c0_3 = arith.constant 0 : index
    %c0_4 = arith.constant 0 : index
    %2 = vector.load %arg3[%c0_2, %c0_3, %c0_4] : memref<1x384x128xbf16, #tpu.memory_space<vmem>>, vector<1x384x128xbf16>
    %3 = vector.shape_cast %2 : vector<1x384x128xbf16> to vector<384x128xbf16>
    %cst = arith.constant dense<0.000000e+00> : vector<512x128xf32>
    %4 = tpu.matmul %1, %3, %cst {dimension_numbers = #tpu.dot_dimension_numbers<[1], [0], [0], [1], [0, 0, 1, 1], [], []>} : vector<512x384xbf16>, vector<384x128xbf16>, vector<512x128xf32> -> vector<512x128xf32>
    %c0_5 = arith.constant 0 : index
    %c0_6 = arith.constant 0 : index
    %c0_7 = arith.constant 0 : index
    %5 = vector.load %arg4[%c0_5, %c0_6, %c0_7] : memref<1x1x128xf32, #tpu.memory_space<vmem>>, vector<1x1x128xf32>
    %6 = vector.shape_cast %5 : vector<1x1x128xf32> to vector<1x128xf32>
    %7 = vector.broadcast %6 : vector<1x128xf32> to vector<512x128xf32>
    %8 = arith.addf %4, %7 : vector<512x128xf32>
    %c0_8 = arith.constant 0 : index
    %c0_9 = arith.constant 0 : index
    %c0_10 = arith.constant 0 : index
    %9 = vector.load %arg5[%c0_8, %c0_9, %c0_10] : memref<1x512x128xf32, #tpu.memory_space<vmem>>, vector<1x512x128xf32>
    %10 = vector.shape_cast %9 : vector<1x512x128xf32> to vector<512x128xf32>
    %11 = vector.shape_cast %8 : vector<512x128xf32> to vector<1x512x128xf32>
    tpu.vector_store %arg5[%c0_8, %c0_9, %c0_10], %11 {strides = array<i32>} : memref<1x512x128xf32, #tpu.memory_space<vmem>>, vector<1x512x128xf32>,
    return
  }
  func.func @transform_0(%arg0: i32, %arg1: i32) -> (i32, i32, i32) {
    %c0_i32 = arith.constant 0 : i32
    %c0_i32_0 = arith.constant 0 : i32
    return %arg0, %arg1, %c0_i32 : i32, i32, i32
  }
  func.func @transform_1(%arg0: i32, %arg1: i32) -> (i32, i32, i32) {
    %c0_i32 = arith.constant 0 : i32
    %c0_i32_0 = arith.constant 0 : i32
    %c0_i32_1 = arith.constant 0 : i32
    return %arg0, %c0_i32, %c0_i32_0 : i32, i32, i32
  }
  func.func @transform_2(%arg0: i32, %arg1: i32) -> (i32, i32, i32) {
    %c0_i32 = arith.constant 0 : i32
    %c0_i32_0 = arith.constant 0 : i32
    %c0_i32_1 = arith.constant 0 : i32
    return %arg0, %c0_i32, %c0_i32_0 : i32, i32, i32
  }
  func.func @transform_3(%arg0: i32, %arg1: i32) -> (i32, i32, i32) {
    %c0_i32 = arith.constant 0 : i32
    %c0_i32_0 = arith.constant 0 : i32
    return %arg0, %arg1, %c0_i32 : i32, i32, i32
  }
}

</mosaic_0001>

<llo_original>
// kernel: transition_pruner_forward.13
$region0: #{transition_pruner_forward.13}
  #allocation0 [shape = 'u32[]', space=smem, size = 0x4, offset = 0x4, fixed_abs, tag = 'smem constant byte address 0x4 - core index']
  #allocation1 [shape = 'u32[144,128]{1,0:T(1,128)}', space=vmem, size = 0x12000, scoped, tag = 'internal scratch']
  %s0 = inlined_call_operand.vmem [shape: bf16[1,128,128], index: 0, kind: input, shape index: {}]
  %s1 = inlined_call_operand.vmem [shape: bf16[1,128,128], index: 1, kind: input, shape index: {}]
  %s2 = inlined_call_operand.vmem [shape: f32[1,128,128], index: 2, kind: output, shape index: {0}]
  %s3 = inlined_call_operand.vmem [shape: f32[1,1,2,128], index: 3, kind: output, shape index: {1}]
  %4 = xla_tuple %s2, %s3
  %s5 = sld [smem:[#allocation0]]
  $region26: #{transition_pruner_forward.13} parent=0
    _
  %s7 = ssub.s32 1, %s5
  %s8 = scalar_select 0, %s7, %s5
  // Predicated region
  $region2: #{transition_pruner_forward.13} parent=0 // pred_check
    _
  $region3: #{transition_pruner_forward.13} parent=0 // pred_check_branch
    %10 = sbr.rel (0) target = $region5
  $region4: #{transition_pruner_forward.13} parent=0 // pred_region
    _
  $region5: #{transition_pruner_forward.13} parent=0 // pred_fallthru
    _
  // Predicated region
  $region6: #{transition_pruner_forward.13} parent=0 // pred_check
    _
  $region7: #{transition_pruner_forward.13} parent=0 // pred_check_branch
    %12 = sbr.rel (0) target = $region9
  $region8: #{transition_pruner_forward.13} parent=0 // pred_region
    _
  $region9: #{transition_pruner_forward.13} parent=0 // pred_fallthru
    _
  %v14 = vld [vmem:[%s0] sm:$0xf]
  %v15 = vld [vmem:[%s0 + $0x4] sm:$0xf]
  %v16 = vld [vmem:[%s0 + $0x8] sm:$0xf]
  %v17 = vld [vmem:[%s0 + $0xc] sm:$0xf]
  %v18 = vld [vmem:[%s0 + $0x10] sm:$0xf]
  %v19 = vld [vmem:[%s0 + $0x14] sm:$0xf]
  %v20 = vld [vmem:[%s0 + $0x18] sm:$0xf]
  %v21 = vld [vmem:[%s0 + $0x1c] sm:$0xf]
  %v22 = vld [vmem:[%s0 + $0x20] sm:$0xf]
  %v23 = vld [vmem:[%s0 + $0x24] sm:$0xf]
  %v24 = vld [vmem:[%s0 + $0x28] sm:$0xf]
  %v25 = vld [vmem:[%s0 + $0x2c] sm:$0xf]
  %v26 = vld [vmem:[%s0 + $0x30] sm:$0xf]
  %v27 = vld [vmem:[%s0 + $0x34] sm:$0xf]
  %v28 = vld [vmem:[%s0 + $0x38] sm:$0xf]
  %v29 = vld [vmem:[%s0 + $0x3c] sm:$0xf]
  %v30 = vld [vmem:[%s1] sm:$0xf]
  %v31 = vld [vmem:[%s1 + $0x4] sm:$0xf]
  %v32 = vld [vmem:[%s1 + $0x8] sm:$0xf]
  %v33 = vld [vmem:[%s1 + $0xc] sm:$0xf]
  %v34 = vld [vmem:[%s1 + $0x10] sm:$0xf]
  %v35 = vld [vmem:[%s1 + $0x14] sm:$0xf]
  %v36 = vld [vmem:[%s1 + $0x18] sm:$0xf]
  %v37 = vld [vmem:[%s1 + $0x1c] sm:$0xf]
  %v38 = vld [vmem:[%s1 + $0x20] sm:$0xf]
  %v39 = vld [vmem:[%s1 + $0x24] sm:$0xf]
  %v40 = vld [vmem:[%s1 + $0x28] sm:$0xf]
  %v41 = vld [vmem:[%s1 + $0x2c] sm:$0xf]
  %v42 = vld [vmem:[%s1 + $0x30] sm:$0xf]
  %v43 = vld [vmem:[%s1 + $0x34] sm:$0xf]
  %v44 = vld [vmem:[%s1 + $0x38] sm:$0xf]
  %v45 = vld [vmem:[%s1 + $0x3c] sm:$0xf]
  %v62 = vunpack.c.l.b16 %v14
  %v63 = vunpack.c.l.b16 %v15
  %v64 = vunpack.c.l.b16 %v16
  %v65 = vunpack.c.l.b16 %v17
  %v66 = vunpack.c.l.b16 %v18
  %v67 = vunpack.c.l.b16 %v19
  %v68 = vunpack.c.l.b16 %v20
  %v69 = vunpack.c.l.b16 %v21
  %v70 = vunpack.c.l.b16 %v22
  %v71 = vunpack.c.l.b16 %v23
  %v72 = vunpack.c.l.b16 %v24
  %v73 = vunpack.c.l.b16 %v25
  %v74 = vunpack.c.l.b16 %v26
  %v75 = vunpack.c.l.b16 %v27
  %v76 = vunpack.c.l.b16 %v28
  %v77 = vunpack.c.l.b16 %v29
  %v78 = vpack.c.b16 %v63, %v62
  %v79 = vpack.c.b16 %v65, %v64
  %v80 = vpack.c.b16 %v67, %v66
  %v81 = vpack.c.b16 %v69, %v68
  %v82 = vpack.c.b16 %v71, %v70
  %v83 = vpack.c.b16 %v73, %v72
  %v84 = vpack.c.b16 %v75, %v74
  %v85 = vpack.c.b16 %v77, %v76
  %v110 = vunpack.c.l.b16 %v30
  %v111 = vunpack.c.l.b16 %v31
  %v112 = vunpack.c.l.b16 %v32
  %v113 = vunpack.c.l.b16 %v33
  %v114 = vunpack.c.l.b16 %v34
  %v115 = vunpack.c.l.b16 %v35
  %v116 = vunpack.c.l.b16 %v36
  %v117 = vunpack.c.l.b16 %v37
  %v118 = vunpack.c.l.b16 %v38
  %v119 = vunpack.c.l.b16 %v39
  %v120 = vunpack.c.l.b16 %v40
  %v121 = vunpack.c.l.b16 %v41
  %v122 = vunpack.c.l.b16 %v42
  %v123 = vunpack.c.l.b16 %v43
  %v124 = vunpack.c.l.b16 %v44
  %v125 = vunpack.c.l.b16 %v45
  %v126 = vpack.c.b16 %v111, %v110
  %v127 = vpack.c.b16 %v113, %v112
  %v128 = vpack.c.b16 %v115, %v114
  %v129 = vpack.c.b16 %v117, %v116
  %v130 = vpack.c.b16 %v119, %v118
  %v131 = vpack.c.b16 %v121, %v120
  %v132 = vpack.c.b16 %v123, %v122
  %v133 = vpack.c.b16 %v125, %v124
  %142 = vmatprep.subr.bf16.mxu0 0
  %143 = vmatpush1.bf16.msra.mxu0 %v126
  %144 = vmatprep.subr.bf16.mxu0 0
  %145 = vmatpush1.bf16.msra.mxu0 %v127
  %146 = vmatprep.subr.bf16.mxu0 0
  %147 = vmatpush1.bf16.msra.mxu0 %v128
  %148 = vmatprep.subr.bf16.mxu0 0
  %149 = vmatpush1.bf16.msra.mxu0 %v129
  %150 = vmatprep.subr.bf16.mxu0 0
  %151 = vmatpush1.bf16.msra.mxu0 %v130
  %152 = vmatprep.subr.bf16.mxu0 0
  %153 = vmatpush1.bf16.msra.mxu0 %v131
  %154 = vmatprep.subr.bf16.mxu0 0
  %155 = vmatpush1.bf16.msra.mxu0 %v132
  %156 = vmatprep.subr.bf16.mxu0 0
  %157 = vmatpush1.bf16.msra.mxu0 %v133
  %158 = vmatprep.subr.bf16.mxu0 0
  %159 = vmatpush1.bf16.msra.mxu0 0
  %160 = vmatprep.subr.bf16.mxu0 0
  %161 = vmatpush1.bf16.msra.mxu0 0
  %162 = vmatprep.subr.bf16.mxu0 0
  %163 = vmatpush1.bf16.msra.mxu0 0
  %164 = vmatprep.subr.bf16.mxu0 0
  %165 = vmatpush1.bf16.msra.mxu0 0
  %166 = vmatprep.subr.bf16.mxu0 0
  %167 = vmatpush1.bf16.msra.mxu0 0
  %168 = vmatprep.subr.bf16.mxu0 0
  %169 = vmatpush1.bf16.msra.mxu0 0
  %170 = vmatprep.subr.bf16.mxu0 0
  %171 = vmatpush1.bf16.msra.mxu0 0
  %172 = vmatprep.subr.bf16.mxu0 0
  %173 = vmatpush1.bf16.msra.mxu0 0
  %174 = vmatprep.mubr.bf16.mxu0 0
  %175 = vmatmul.mubr.bf16.gmra.mrb[0].mxu0 %v78
  %v176 = vpop.f32.mrb[0].mxu0
  %v177 = vadd.f32 0.0, %v176
  %v178 = vpop.f32.mrb[0].mxu0
  %v179 = vpop.f32.mrb[0].mxu0
  %v180 = vadd.f32 0.0, %v179
  %v181 = vpop.f32.mrb[0].mxu0
  %182 = vmatprep.mubr.bf16.mxu0 0
  %183 = vmatmul.mubr.bf16.gmra.mrb[0].mxu0 %v79
  %v184 = vpop.f32.mrb[0].mxu0
  %v185 = vadd.f32 0.0, %v184
  %v186 = vpop.f32.mrb[0].mxu0
  %v187 = vpop.f32.mrb[0].mxu0
  %v188 = vadd.f32 0.0, %v187
  %v189 = vpop.f32.mrb[0].mxu0
  %190 = vmatprep.mubr.bf16.mxu0 0
  %191 = vmatmul.mubr.bf16.gmra.mrb[0].mxu0 %v80
  %v192 = vpop.f32.mrb[0].mxu0
  %v193 = vadd.f32 0.0, %v192
  %v194 = vpop.f32.mrb[0].mxu0
  %v195 = vpop.f32.mrb[0].mxu0
  %v196 = vadd.f32 0.0, %v195
  %v197 = vpop.f32.mrb[0].mxu0
  %198 = vmatprep.mubr.bf16.mxu0 0
  %199 = vmatmul.mubr.bf16.gmra.mrb[0].mxu0 %v81
  %v200 = vpop.f32.mrb[0].mxu0
  %v201 = vadd.f32 0.0, %v200
  %v202 = vpop.f32.mrb[0].mxu0
  %v203 = vpop.f32.mrb[0].mxu0
  %v204 = vadd.f32 0.0, %v203
  %v205 = vpop.f32.mrb[0].mxu0
  %206 = vmatprep.mubr.bf16.mxu0 0
  %207 = vmatmul.mubr.bf16.gmra.mrb[0].mxu0 %v82
  %v208 = vpop.f32.mrb[0].mxu0
  %v209 = vadd.f32 0.0, %v208
  %v210 = vpop.f32.mrb[0].mxu0
  %v211 = vpop.f32.mrb[0].mxu0
  %v212 = vadd.f32 0.0, %v211
  %v213 = vpop.f32.mrb[0].mxu0
  %214 = vmatprep.mubr.bf16.mxu0 0
  %215 = vmatmul.mubr.bf16.gmra.mrb[0].mxu0 %v83
  %v216 = vpop.f32.mrb[0].mxu0
  %v217 = vadd.f32 0.0, %v216
  %v218 = vpop.f32.mrb[0].mxu0
  %v219 = vpop.f32.mrb[0].mxu0
  %v220 = vadd.f32 0.0, %v219
  %v221 = vpop.f32.mrb[0].mxu0
  %222 = vmatprep.mubr.bf16.mxu0 0
  %223 = vmatmul.mubr.bf16.gmra.mrb[0].mxu0 %v84
  %v224 = vpop.f32.mrb[0].mxu0
  %v225 = vadd.f32 0.0, %v224
  %v226 = vpop.f32.mrb[0].mxu0
  %v227 = vpop.f32.mrb[0].mxu0
  %v228 = vadd.f32 0.0, %v227
  %v229 = vpop.f32.mrb[0].mxu0
  %230 = vmatprep.mubr.bf16.mxu0 0
  %231 = vmatmul.mubr.bf16.gmra.mrb[0].mxu0 %v85
  %v232 = vpop.f32.mrb[0].mxu0
  %v233 = vadd.f32 0.0, %v232
  %v234 = vpop.f32.mrb[0].mxu0
  %v235 = vpop.f32.mrb[0].mxu0
  %v236 = vadd.f32 0.0, %v235
  %v237 = vpop.f32.mrb[0].mxu0
  %238 = vdwg.mxu0
  %239 = vst [vmem:[%s2] sm:$0xff] %v177
  %240 = vst [vmem:[%s2 + $0x8] sm:$0xff] %v180
  %241 = vst [vmem:[%s2 + $0x10] sm:$0xff] %v185
  %242 = vst [vmem:[%s2 + $0x18] sm:$0xff] %v188
  %243 = vst [vmem:[%s2 + $0x20] sm:$0xff] %v193
  %244 = vst [vmem:[%s2 + $0x28] sm:$0xff] %v196
  %245 = vst [vmem:[%s2 + $0x30] sm:$0xff] %v201
  %246 = vst [vmem:[%s2 + $0x38] sm:$0xff] %v204
  %247 = vst [vmem:[%s2 + $0x40] sm:$0xff] %v209
  %248 = vst [vmem:[%s2 + $0x48] sm:$0xff] %v212
  %249 = vst [vmem:[%s2 + $0x50] sm:$0xff] %v217
  %250 = vst [vmem:[%s2 + $0x58] sm:$0xff] %v220
  %251 = vst [vmem:[%s2 + $0x60] sm:$0xff] %v225
  %252 = vst [vmem:[%s2 + $0x68] sm:$0xff] %v228
  %253 = vst [vmem:[%s2 + $0x70] sm:$0xff] %v233
  %254 = vst [vmem:[%s2 + $0x78] sm:$0xff] %v236
  %v255 = vadd.f32 %v177, %v180
  %v256 = vadd.f32 %v255, %v185
  %v257 = vadd.f32 %v256, %v188
  %v258 = vadd.f32 %v257, %v193
  %v259 = vadd.f32 %v258, %v196
  %v260 = vadd.f32 %v259, %v201
  %v261 = vadd.f32 %v260, %v204
  %v262 = vadd.f32 %v261, %v209
  %v263 = vadd.f32 %v262, %v212
  %v264 = vadd.f32 %v263, %v217
  %v265 = vadd.f32 %v264, %v220
  %v266 = vadd.f32 %v265, %v225
  %v267 = vadd.f32 %v266, %v228
  %v268 = vadd.f32 %v267, %v233
  %v269 = vadd.f32 %v268, %v236
  %v270 = vrot.slane %v269, 4
  %v271 = vadd.f32 %v269, %v270
  %v272 = vrot.slane %v271, 2
  %v273 = vadd.f32 %v271, %v272
  %v274 = vrot.slane %v273, 1
  %v275 = vadd.f32 %v273, %v274
  %v276 = vmul.f32 %v177, %v177
  %v277 = vmul.f32 %v180, %v180
  %v278 = vmul.f32 %v185, %v185
  %v279 = vmul.f32 %v188, %v188
  %v280 = vmul.f32 %v193, %v193
  %v281 = vmul.f32 %v196, %v196
  %v282 = vmul.f32 %v201, %v201
  %v283 = vmul.f32 %v204, %v204
  %v284 = vmul.f32 %v209, %v209
  %v285 = vmul.f32 %v212, %v212
  %v286 = vmul.f32 %v217, %v217
  %v287 = vmul.f32 %v220, %v220
  %v288 = vmul.f32 %v225, %v225
  %v289 = vmul.f32 %v228, %v228
  %v290 = vmul.f32 %v233, %v233
  %v291 = vmul.f32 %v236, %v236
  %v292 = vadd.f32 %v276, %v277
  %v293 = vadd.f32 %v292, %v278
  %v294 = vadd.f32 %v293, %v279
  %v295 = vadd.f32 %v294, %v280
  %v296 = vadd.f32 %v295, %v281
  %v297 = vadd.f32 %v296, %v282
  %v298 = vadd.f32 %v297, %v283
  %v299 = vadd.f32 %v298, %v284
  %v300 = vadd.f32 %v299, %v285
  %v301 = vadd.f32 %v300, %v286
  %v302 = vadd.f32 %v301, %v287
  %v303 = vadd.f32 %v302, %v288
  %v304 = vadd.f32 %v303, %v289
  %v305 = vadd.f32 %v304, %v290
  %v306 = vadd.f32 %v305, %v291
  %v307 = vrot.slane %v306, 4
  %v308 = vadd.f32 %v306, %v307
  %v309 = vrot.slane %v308, 2
  %v310 = vadd.f32 %v308, %v309
  %v311 = vrot.slane %v310, 1
  %v312 = vadd.f32 %v310, %v311
  %vm313 = vcmask 1040384
  %v314 = vsel %vm313, %v275, %v312
  %315 = vst [vmem:[%s3] sm:$0x3] %v314
  // Predicated region
  $region10: #{transition_pruner_forward.13} parent=0 // pred_check
    _
  $region11: #{transition_pruner_forward.13} parent=0 // pred_check_branch
    %317 = sbr.rel (0) target = $region13
  $region12: #{transition_pruner_forward.13} parent=0 // pred_region
    _
  $region13: #{transition_pruner_forward.13} parent=0 // pred_fallthru
    _
  // Predicated region
  $region14: #{transition_pruner_forward.13} parent=0 // pred_check
    _
  $region15: #{transition_pruner_forward.13} parent=0 // pred_check_branch
    %319 = sbr.rel (0) target = $region17
  $region16: #{transition_pruner_forward.13} parent=0 // pred_region
    _
  $region17: #{transition_pruner_forward.13} parent=0 // pred_fallthru
    _
  // Predicated region
  $region18: #{transition_pruner_forward.13} parent=0 // pred_check
    _
  $region19: #{transition_pruner_forward.13} parent=0 // pred_check_branch
    %321 = sbr.rel (0) target = $region21
  $region20: #{transition_pruner_forward.13} parent=0 // pred_region
    _
  $region21: #{transition_pruner_forward.13} parent=0 // pred_fallthru
    _
  // Predicated region
  $region22: #{transition_pruner_forward.13} parent=0 // pred_check
    _
  $region23: #{transition_pruner_forward.13} parent=0 // pred_check_branch
    %323 = sbr.rel (0) target = $region25
  $region24: #{transition_pruner_forward.13} parent=0 // pred_region
    _
  $region25: #{transition_pruner_forward.13} parent=0 // pred_fallthru
    _

// kernel: transition_pruner_forward.14
$region0: #{transition_pruner_forward.14}
  #allocation0 [shape = 'u32[]', space=smem, size = 0x4, offset = 0x4, fixed_abs, tag = 'smem constant byte address 0x4 - core index']
  #allocation1 [shape = 'u32[144,128]{1,0:T(1,128)}', space=vmem, size = 0x12000, scoped, tag = 'internal scratch']
  %s0 = inlined_call_operand.vmem [shape: f32[128,128], index: 0, kind: input, shape index: {}]
  %s1 = inlined_call_operand.vmem [shape: f32[1,128], index: 1, kind: input, shape index: {}]
  %s2 = inlined_call_operand.vmem [shape: f32[1,128], index: 2, kind: input, shape index: {}]
  %s3 = inlined_call_operand.vmem [shape: f32[128,128], index: 3, kind: output, shape index: {}]
  %s4 = sld [smem:[#allocation0]]
  $region22: #{transition_pruner_forward.14} parent=0
    _
  %s6 = ssub.s32 1, %s4
  %s7 = scalar_select 0, %s6, %s4
  // Predicated region
  $region2: #{transition_pruner_forward.14} parent=0 // pred_check
    _
  $region3: #{transition_pruner_forward.14} parent=0 // pred_check_branch
    %9 = sbr.rel (0) target = $region5
  $region4: #{transition_pruner_forward.14} parent=0 // pred_region
    _
  $region5: #{transition_pruner_forward.14} parent=0 // pred_fallthru
    _
  // Predicated region
  $region6: #{transition_pruner_forward.14} parent=0 // pred_check
    _
  $region7: #{transition_pruner_forward.14} parent=0 // pred_check_branch
    %11 = sbr.rel (0) target = $region9
  $region8: #{transition_pruner_forward.14} parent=0 // pred_region
    _
  $region9: #{transition_pruner_forward.14} parent=0 // pred_fallthru
    _
  // Predicated region
  $region10: #{transition_pruner_forward.14} parent=0 // pred_check
    _
  $region11: #{transition_pruner_forward.14} parent=0 // pred_check_branch
    %13 = sbr.rel (0) target = $region13
  $region12: #{transition_pruner_forward.14} parent=0 // pred_region
    _
  $region13: #{transition_pruner_forward.14} parent=0 // pred_fallthru
    _
  %v14 = vld [vmem:[%s0] sm:$0xff]
  %v15 = vld [vmem:[%s0 + $0x8] sm:$0xff]
  %v16 = vld [vmem:[%s0 + $0x10] sm:$0xff]
  %v17 = vld [vmem:[%s0 + $0x18] sm:$0xff]
  %v18 = vld [vmem:[%s0 + $0x20] sm:$0xff]
  %v19 = vld [vmem:[%s0 + $0x28] sm:$0xff]
  %v20 = vld [vmem:[%s0 + $0x30] sm:$0xff]
  %v21 = vld [vmem:[%s0 + $0x38] sm:$0xff]
  %v22 = vld [vmem:[%s0 + $0x40] sm:$0xff]
  %v23 = vld [vmem:[%s0 + $0x48] sm:$0xff]
  %v24 = vld [vmem:[%s0 + $0x50] sm:$0xff]
  %v25 = vld [vmem:[%s0 + $0x58] sm:$0xff]
  %v26 = vld [vmem:[%s0 + $0x60] sm:$0xff]
  %v27 = vld [vmem:[%s0 + $0x68] sm:$0xff]
  %v28 = vld [vmem:[%s0 + $0x70] sm:$0xff]
  %v29 = vld [vmem:[%s0 + $0x78] sm:$0xff]
  %v30 = vld [vmem:[%s1] sm:$0x1]
  %v32 = vlaneseq
  %v33 = vshrl.u32 %v32, 7
  %v34 = vsub.s32 0, %v33
  %v35 = vrot.slane %v30, %v34
  %v37 = vmul.f32 %v14, %v35
  %v38 = vmul.f32 %v15, %v35
  %v39 = vmul.f32 %v16, %v35
  %v40 = vmul.f32 %v17, %v35
  %v41 = vmul.f32 %v18, %v35
  %v42 = vmul.f32 %v19, %v35
  %v43 = vmul.f32 %v20, %v35
  %v44 = vmul.f32 %v21, %v35
  %v45 = vmul.f32 %v22, %v35
  %v46 = vmul.f32 %v23, %v35
  %v47 = vmul.f32 %v24, %v35
  %v48 = vmul.f32 %v25, %v35
  %v49 = vmul.f32 %v26, %v35
  %v50 = vmul.f32 %v27, %v35
  %v51 = vmul.f32 %v28, %v35
  %v52 = vmul.f32 %v29, %v35
  %v53 = vld [vmem:[%s2] sm:$0x1]
  %v55 = vlaneseq
  %v56 = vshrl.u32 %v55, 7
  %v57 = vsub.s32 0, %v56
  %v58 = vrot.slane %v53, %v57
  %v60 = vadd.f32 %v37, %v58
  %v61 = vadd.f32 %v38, %v58
  %v62 = vadd.f32 %v39, %v58
  %v63 = vadd.f32 %v40, %v58
  %v64 = vadd.f32 %v41, %v58
  %v65 = vadd.f32 %v42, %v58
  %v66 = vadd.f32 %v43, %v58
  %v67 = vadd.f32 %v44, %v58
  %v68 = vadd.f32 %v45, %v58
  %v69 = vadd.f32 %v46, %v58
  %v70 = vadd.f32 %v47, %v58
  %v71 = vadd.f32 %v48, %v58
  %v72 = vadd.f32 %v49, %v58
  %v73 = vadd.f32 %v50, %v58
  %v74 = vadd.f32 %v51, %v58
  %v75 = vadd.f32 %v52, %v58
  %v76 = vmul.f32 %v60, 0.1
  %v77 = vmul.f32 %v61, 0.1
  %v78 = vmul.f32 %v62, 0.1
  %v79 = vmul.f32 %v63, 0.1
  %v80 = vmul.f32 %v64, 0.1
  %v81 = vmul.f32 %v65, 0.1
  %v82 = vmul.f32 %v66, 0.1
  %v83 = vmul.f32 %v67, 0.1
  %v84 = vmul.f32 %v68, 0.1
  %v85 = vmul.f32 %v69, 0.1
  %v86 = vmul.f32 %v70, 0.1
  %v87 = vmul.f32 %v71, 0.1
  %v88 = vmul.f32 %v72, 0.1
  %v89 = vmul.f32 %v73, 0.1
  %v90 = vmul.f32 %v74, 0.1
  %v91 = vmul.f32 %v75, 0.1
  %v92 = vmax.f32 %v60, %v76
  %v93 = vmax.f32 %v61, %v77
  %v94 = vmax.f32 %v62, %v78
  %v95 = vmax.f32 %v63, %v79
  %v96 = vmax.f32 %v64, %v80
  %v97 = vmax.f32 %v65, %v81
  %v98 = vmax.f32 %v66, %v82
  %v99 = vmax.f32 %v67, %v83
  %v100 = vmax.f32 %v68, %v84
  %v101 = vmax.f32 %v69, %v85
  %v102 = vmax.f32 %v70, %v86
  %v103 = vmax.f32 %v71, %v87
  %v104 = vmax.f32 %v72, %v88
  %v105 = vmax.f32 %v73, %v89
  %v106 = vmax.f32 %v74, %v90
  %v107 = vmax.f32 %v75, %v91
  %108 = vst [vmem:[%s3] sm:$0xff] %v92
  %109 = vst [vmem:[%s3 + $0x8] sm:$0xff] %v93
  %110 = vst [vmem:[%s3 + $0x10] sm:$0xff] %v94
  %111 = vst [vmem:[%s3 + $0x18] sm:$0xff] %v95
  %112 = vst [vmem:[%s3 + $0x20] sm:$0xff] %v96
  %113 = vst [vmem:[%s3 + $0x28] sm:$0xff] %v97
  %114 = vst [vmem:[%s3 + $0x30] sm:$0xff] %v98
  %115 = vst [vmem:[%s3 + $0x38] sm:$0xff] %v99
  %116 = vst [vmem:[%s3 + $0x40] sm:$0xff] %v100
  %117 = vst [vmem:[%s3 + $0x48] sm:$0xff] %v101
  %118 = vst [vmem:[%s3 + $0x50] sm:$0xff] %v102
  %119 = vst [vmem:[%s3 + $0x58] sm:$0xff] %v103
  %120 = vst [vmem:[%s3 + $0x60] sm:$0xff] %v104
  %121 = vst [vmem:[%s3 + $0x68] sm:$0xff] %v105
  %122 = vst [vmem:[%s3 + $0x70] sm:$0xff] %v106
  %123 = vst [vmem:[%s3 + $0x78] sm:$0xff] %v107
  // Predicated region
  $region14: #{transition_pruner_forward.14} parent=0 // pred_check
    _
  $region15: #{transition_pruner_forward.14} parent=0 // pred_check_branch
    %125 = sbr.rel (0) target = $region17
  $region16: #{transition_pruner_forward.14} parent=0 // pred_region
    _
  $region17: #{transition_pruner_forward.14} parent=0 // pred_fallthru
    _
  // Predicated region
  $region18: #{transition_pruner_forward.14} parent=0 // pred_check
    _
  $region19: #{transition_pruner_forward.14} parent=0 // pred_check_branch
    %127 = sbr.rel (0) target = $region21
  $region20: #{transition_pruner_forward.14} parent=0 // pred_region
    _
  $region21: #{transition_pruner_forward.14} parent=0 // pred_fallthru
    _

// kernel: transition_pruner_forward.16
$region0: #{transition_pruner_forward.16}
  #allocation0 [shape = 'u32[]', space=smem, size = 0x4, offset = 0x4, fixed_abs, tag = 'smem constant byte address 0x4 - core index']
  #allocation1 [shape = 'u32[144,128]{1,0:T(1,128)}', space=vmem, size = 0x12000, scoped, tag = 'internal scratch']
  %s0 = inlined_call_operand.vmem [shape: f32[32,128], index: 0, kind: input, shape index: {}]
  %s1 = inlined_call_operand.vmem [shape: f32[1,128], index: 1, kind: input, shape index: {}]
  %s2 = inlined_call_operand.vmem [shape: f32[1,128], index: 2, kind: input, shape index: {}]
  %s3 = inlined_call_operand.vmem [shape: f32[32,128], index: 3, kind: output, shape index: {}]
  %s4 = sld [smem:[#allocation0]]
  $region22: #{transition_pruner_forward.16} parent=0
    _
  %s6 = ssub.s32 1, %s4
  %s7 = scalar_select 0, %s6, %s4
  // Predicated region
  $region2: #{transition_pruner_forward.16} parent=0 // pred_check
    _
  $region3: #{transition_pruner_forward.16} parent=0 // pred_check_branch
    %9 = sbr.rel (0) target = $region5
  $region4: #{transition_pruner_forward.16} parent=0 // pred_region
    _
  $region5: #{transition_pruner_forward.16} parent=0 // pred_fallthru
    _
  // Predicated region
  $region6: #{transition_pruner_forward.16} parent=0 // pred_check
    _
  $region7: #{transition_pruner_forward.16} parent=0 // pred_check_branch
    %11 = sbr.rel (0) target = $region9
  $region8: #{transition_pruner_forward.16} parent=0 // pred_region
    _
  $region9: #{transition_pruner_forward.16} parent=0 // pred_fallthru
    _
  // Predicated region
  $region10: #{transition_pruner_forward.16} parent=0 // pred_check
    _
  $region11: #{transition_pruner_forward.16} parent=0 // pred_check_branch
    %13 = sbr.rel (0) target = $region13
  $region12: #{transition_pruner_forward.16} parent=0 // pred_region
    _
  $region13: #{transition_pruner_forward.16} parent=0 // pred_fallthru
    _
  %v14 = vld [vmem:[%s0] sm:$0xff]
  %v15 = vld [vmem:[%s0 + $0x8] sm:$0xff]
  %v16 = vld [vmem:[%s0 + $0x10] sm:$0xff]
  %v17 = vld [vmem:[%s0 + $0x18] sm:$0xff]
  %v18 = vld [vmem:[%s1] sm:$0x1]
  %v20 = vlaneseq
  %v21 = vshrl.u32 %v20, 7
  %v22 = vsub.s32 0, %v21
  %v23 = vrot.slane %v18, %v22
  %v25 = vmul.f32 %v14, %v23
  %v26 = vmul.f32 %v15, %v23
  %v27 = vmul.f32 %v16, %v23
  %v28 = vmul.f32 %v17, %v23
  %v29 = vld [vmem:[%s2] sm:$0x1]
  %v31 = vlaneseq
  %v32 = vshrl.u32 %v31, 7
  %v33 = vsub.s32 0, %v32
  %v34 = vrot.slane %v29, %v33
  %v36 = vadd.f32 %v25, %v34
  %v37 = vadd.f32 %v26, %v34
  %v38 = vadd.f32 %v27, %v34
  %v39 = vadd.f32 %v28, %v34
  %v40 = vmul.f32 %v36, 0.1
  %v41 = vmul.f32 %v37, 0.1
  %v42 = vmul.f32 %v38, 0.1
  %v43 = vmul.f32 %v39, 0.1
  %v44 = vmax.f32 %v36, %v40
  %v45 = vmax.f32 %v37, %v41
  %v46 = vmax.f32 %v38, %v42
  %v47 = vmax.f32 %v39, %v43
  %48 = vst [vmem:[%s3] sm:$0xff] %v44
  %49 = vst [vmem:[%s3 + $0x8] sm:$0xff] %v45
  %50 = vst [vmem:[%s3 + $0x10] sm:$0xff] %v46
  %51 = vst [vmem:[%s3 + $0x18] sm:$0xff] %v47
  // Predicated region
  $region14: #{transition_pruner_forward.16} parent=0 // pred_check
    _
  $region15: #{transition_pruner_forward.16} parent=0 // pred_check_branch
    %53 = sbr.rel (0) target = $region17
  $region16: #{transition_pruner_forward.16} parent=0 // pred_region
    _
  $region17: #{transition_pruner_forward.16} parent=0 // pred_fallthru
    _
  // Predicated region
  $region18: #{transition_pruner_forward.16} parent=0 // pred_check
    _
  $region19: #{transition_pruner_forward.16} parent=0 // pred_check_branch
    %55 = sbr.rel (0) target = $region21
  $region20: #{transition_pruner_forward.16} parent=0 // pred_region
    _
  $region21: #{transition_pruner_forward.16} parent=0 // pred_fallthru
    _

// kernel: transition_pruner_forward.15
$region0: #{transition_pruner_forward.15}
  #allocation0 [shape = 'u32[]', space=smem, size = 0x4, offset = 0x4, fixed_abs, tag = 'smem constant byte address 0x4 - core index']
  #allocation1 [shape = 'u32[144,128]{1,0:T(1,128)}', space=vmem, size = 0x12000, scoped, tag = 'internal scratch']
  %s0 = inlined_call_operand.vmem [shape: bf16[1,32,640], index: 0, kind: input, shape index: {}]
  %s1 = inlined_call_operand.hbm [shape: bf16[1,640,128], index: 1, kind: input, shape index: {}]
  %s2 = inlined_call_operand.vmem [shape: f32[1,32,128], index: 2, kind: output, shape index: {0}]
  %s3 = inlined_call_operand.vmem [shape: f32[1,1,2,128], index: 3, kind: output, shape index: {1}]
  %4 = xla_tuple %s2, %s3
  %s5 = sld [smem:[#allocation0]]
  $region30: #{transition_pruner_forward.15} parent=0
    _
  %s7 = ssub.s32 1, %s5
  %s8 = scalar_select 0, %s7, %s5
  $region1: #{transition_pruner_forward.15} parent=0
    #allocation2 [shape = 'u8[163840]{0}', space=vmem, size = 0x28000, scoped, tag = 'input window, operand 1, single buffered']
    #allocation3 [shape = 's32[1]{0}', space=sflag, size = 0x4, scoped, tag = 'scoped memory for transition_pruner_forward.15']
    %9 = vsyncpa [#allocation3], 0
    // Predicated region
    $region2: #{transition_pruner_forward.15} parent=1 // pred_check
      _
    $region3: #{transition_pruner_forward.15} parent=1 // pred_check_branch
      %11 = sbr.rel (0) target = $region5
    $region4: #{transition_pruner_forward.15} parent=1 // pred_region
      _
    $region5: #{transition_pruner_forward.15} parent=1 // pred_fallthru
      _
    // Predicated region
    $region6: #{transition_pruner_forward.15} parent=1 // pred_check
      _
    $region7: #{transition_pruner_forward.15} parent=1 // pred_check_branch
      %13 = sbr.rel (0) target = $region9
    $region8: #{transition_pruner_forward.15} parent=1 // pred_region
      %s15 = ssub.s32 5120, 5120
      %16 = vsyncadd [#allocation3], %s15
      %s17 = sshll.u32 [#allocation2], 4
      %s18 = int_to_ptr.vmem [resolvable:$true] %s17
      %23 = dma.hbm_to_vmem [thread:$0]  %s1, 5120, %s18, [#allocation3], 64, 64, 4
    $region9: #{transition_pruner_forward.15} parent=1 // pred_fallthru
      _
    // Predicated region
    $region10: #{transition_pruner_forward.15} parent=1 // pred_check
      _
    $region11: #{transition_pruner_forward.15} parent=1 // pred_check_branch
      %25 = sbr.rel (0) target = $region13
    $region12: #{transition_pruner_forward.15} parent=1 // pred_region
      %26 = dma.done [#allocation3], 5120
    $region13: #{transition_pruner_forward.15} parent=1 // pred_fallthru
      _
    %v28 = vld [vmem:[%s0] sm:$0xff]
    %v29 = vld [vmem:[%s0 + $0x8] sm:$0xff]
    %v30 = vld [vmem:[%s0 + $0x10] sm:$0xf]
    %v31 = vld [vmem:[%s0 + $0x14] sm:$0xff]
    %v32 = vld [vmem:[%s0 + $0x1c] sm:$0xff]
    %v33 = vld [vmem:[%s0 + $0x24] sm:$0xf]
    %v34 = vld [vmem:[%s0 + $0x28] sm:$0xff]
    %v35 = vld [vmem:[%s0 + $0x30] sm:$0xff]
    %v36 = vld [vmem:[%s0 + $0x38] sm:$0xf]
    %v37 = vld [vmem:[%s0 + $0x3c] sm:$0xff]
    %v38 = vld [vmem:[%s0 + $0x44] sm:$0xff]
    %v39 = vld [vmem:[%s0 + $0x4c] sm:$0xf]
    %v40 = vld [vmem:[#allocation2] sm:$0xf]
    %v41 = vld [vmem:[#allocation2 + $0x4] sm:$0xf]
    %v42 = vld [vmem:[#allocation2 + $0x8] sm:$0xf]
    %v43 = vld [vmem:[#allocation2 + $0xc] sm:$0xf]
    %v44 = vld [vmem:[#allocation2 + $0x10] sm:$0xf]
    %v45 = vld [vmem:[#allocation2 + $0x14] sm:$0xf]
    %v46 = vld [vmem:[#allocation2 + $0x18] sm:$0xf]
    %v47 = vld [vmem:[#allocation2 + $0x1c] sm:$0xf]
    %v48 = vld [vmem:[#allocation2 + $0x20] sm:$0xf]
    %v49 = vld [vmem:[#allocation2 + $0x24] sm:$0xf]
    %v50 = vld [vmem:[#allocation2 + $0x28] sm:$0xf]
    %v51 = vld [vmem:[#allocation2 + $0x2c] sm:$0xf]
    %v52 = vld [vmem:[#allocation2 + $0x30] sm:$0xf]
    %v53 = vld [vmem:[#allocation2 + $0x34] sm:$0xf]
    %v54 = vld [vmem:[#allocation2 + $0x38] sm:$0xf]
    %v55 = vld [vmem:[#allocation2 + $0x3c] sm:$0xf]
    %v56 = vld [vmem:[#allocation2 + $0x40] sm:$0xf]
    %v57 = vld [vmem:[#allocation2 + $0x44] sm:$0xf]
    %v58 = vld [vmem:[#allocation2 + $0x48] sm:$0xf]
    %v59 = vld [vmem:[#allocation2 + $0x4c] sm:$0xf]
    %v60 = vld [vmem:[#allocation2 + $0x50] sm:$0xf]
    %v61 = vld [vmem:[#allocation2 + $0x54] sm:$0xf]
    %v62 = vld [vmem:[#allocation2 + $0x58] sm:$0xf]
    %v63 = vld [vmem:[#allocation2 + $0x5c] sm:$0xf]
    %v64 = vld [vmem:[#allocation2 + $0x60] sm:$0xf]
    %v65 = vld [vmem:[#allocation2 + $0x64] sm:$0xf]
    %v66 = vld [vmem:[#allocation2 + $0x68] sm:$0xf]
    %v67 = vld [vmem:[#allocation2 + $0x6c] sm:$0xf]
    %v68 = vld [vmem:[#allocation2 + $0x70] sm:$0xf]
    %v69 = vld [vmem:[#allocation2 + $0x74] sm:$0xf]
    %v70 = vld [vmem:[#allocation2 + $0x78] sm:$0xf]
    %v71 = vld [vmem:[#allocation2 + $0x7c] sm:$0xf]
    %v72 = vld [vmem:[#allocation2 + $0x80] sm:$0xf]
    %v73 = vld [vmem:[#allocation2 + $0x84] sm:$0xf]
    %v74 = vld [vmem:[#allocation2 + $0x88] sm:$0xf]
    %v75 = vld [vmem:[#allocation2 + $0x8c] sm:$0xf]
    %v76 = vld [vmem:[#allocation2 + $0x90] sm:$0xf]
    %v77 = vld [vmem:[#allocation2 + $0x94] sm:$0xf]
    %v78 = vld [vmem:[#allocation2 + $0x98] sm:$0xf]
    %v79 = vld [vmem:[#allocation2 + $0x9c] sm:$0xf]
    %v80 = vld [vmem:[#allocation2 + $0xa0] sm:$0xf]
    %v81 = vld [vmem:[#allocation2 + $0xa4] sm:$0xf]
    %v82 = vld [vmem:[#allocation2 + $0xa8] sm:$0xf]
    %v83 = vld [vmem:[#allocation2 + $0xac] sm:$0xf]
    %v84 = vld [vmem:[#allocation2 + $0xb0] sm:$0xf]
    %v85 = vld [vmem:[#allocation2 + $0xb4] sm:$0xf]
    %v86 = vld [vmem:[#allocation2 + $0xb8] sm:$0xf]
    %v87 = vld [vmem:[#allocation2 + $0xbc] sm:$0xf]
    %v88 = vld [vmem:[#allocation2 + $0xc0] sm:$0xf]
    %v89 = vld [vmem:[#allocation2 + $0xc4] sm:$0xf]
    %v90 = vld [vmem:[#allocation2 + $0xc8] sm:$0xf]
    %v91 = vld [vmem:[#allocation2 + $0xcc] sm:$0xf]
    %v92 = vld [vmem:[#allocation2 + $0xd0] sm:$0xf]
    %v93 = vld [vmem:[#allocation2 + $0xd4] sm:$0xf]
    %v94 = vld [vmem:[#allocation2 + $0xd8] sm:$0xf]
    %v95 = vld [vmem:[#allocation2 + $0xdc] sm:$0xf]
    %v96 = vld [vmem:[#allocation2 + $0xe0] sm:$0xf]
    %v97 = vld [vmem:[#allocation2 + $0xe4] sm:$0xf]
    %v98 = vld [vmem:[#allocation2 + $0xe8] sm:$0xf]
    %v99 = vld [vmem:[#allocation2 + $0xec] sm:$0xf]
    %v100 = vld [vmem:[#allocation2 + $0xf0] sm:$0xf]
    %v101 = vld [vmem:[#allocation2 + $0xf4] sm:$0xf]
    %v102 = vld [vmem:[#allocation2 + $0xf8] sm:$0xf]
    %v103 = vld [vmem:[#allocation2 + $0xfc] sm:$0xf]
    %v104 = vld [vmem:[#allocation2 + $0x100] sm:$0xf]
    %v105 = vld [vmem:[#allocation2 + $0x104] sm:$0xf]
    %v106 = vld [vmem:[#allocation2 + $0x108] sm:$0xf]
    %v107 = vld [vmem:[#allocation2 + $0x10c] sm:$0xf]
    %v108 = vld [vmem:[#allocation2 + $0x110] sm:$0xf]
    %v109 = vld [vmem:[#allocation2 + $0x114] sm:$0xf]
    %v110 = vld [vmem:[#allocation2 + $0x118] sm:$0xf]
    %v111 = vld [vmem:[#allocation2 + $0x11c] sm:$0xf]
    %v112 = vld [vmem:[#allocation2 + $0x120] sm:$0xf]
    %v113 = vld [vmem:[#allocation2 + $0x124] sm:$0xf]
    %v114 = vld [vmem:[#allocation2 + $0x128] sm:$0xf]
    %v115 = vld [vmem:[#allocation2 + $0x12c] sm:$0xf]
    %v116 = vld [vmem:[#allocation2 + $0x130] sm:$0xf]
    %v117 = vld [vmem:[#allocation2 + $0x134] sm:$0xf]
    %v118 = vld [vmem:[#allocation2 + $0x138] sm:$0xf]
    %v119 = vld [vmem:[#allocation2 + $0x13c] sm:$0xf]
    %v132 = vunpack.c.l.b16 %v28
    %v133 = vunpack.c.h.b16 %v28
    %v134 = vunpack.c.l.b16 %v29
    %v135 = vunpack.c.h.b16 %v29
    %v136 = vunpack.c.l.b16 %v30
    %v137 = vunpack.c.l.b16 %v31
    %v138 = vunpack.c.h.b16 %v31
    %v139 = vunpack.c.l.b16 %v32
    %v140 = vunpack.c.h.b16 %v32
    %v141 = vunpack.c.l.b16 %v33
    %v142 = vunpack.c.l.b16 %v34
    %v143 = vunpack.c.h.b16 %v34
    %v144 = vunpack.c.l.b16 %v35
    %v145 = vunpack.c.h.b16 %v35
    %v146 = vunpack.c.l.b16 %v36
    %v147 = vunpack.c.l.b16 %v37
    %v148 = vunpack.c.h.b16 %v37
    %v149 = vunpack.c.l.b16 %v38
    %v150 = vunpack.c.h.b16 %v38
    %v151 = vunpack.c.l.b16 %v39
    %v152 = vpack.c.b16 %v137, %v132
    %v153 = vpack.c.b16 %v138, %v133
    %v154 = vpack.c.b16 %v139, %v134
    %v155 = vpack.c.b16 %v140, %v135
    %v156 = vpack.c.b16 %v141, %v136
    %v157 = vpack.c.b16 %v147, %v142
    %v158 = vpack.c.b16 %v148, %v143
    %v159 = vpack.c.b16 %v149, %v144
    %v160 = vpack.c.b16 %v150, %v145
    %v161 = vpack.c.b16 %v151, %v146
    %v252 = vunpack.c.l.b16 %v40
    %v253 = vunpack.c.l.b16 %v41
    %v254 = vunpack.c.l.b16 %v42
    %v255 = vunpack.c.l.b16 %v43
    %v256 = vunpack.c.l.b16 %v44
    %v257 = vunpack.c.l.b16 %v45
    %v258 = vunpack.c.l.b16 %v46
    %v259 = vunpack.c.l.b16 %v47
    %v260 = vunpack.c.l.b16 %v48
    %v261 = vunpack.c.l.b16 %v49
    %v262 = vunpack.c.l.b16 %v50
    %v263 = vunpack.c.l.b16 %v51
    %v264 = vunpack.c.l.b16 %v52
    %v265 = vunpack.c.l.b16 %v53
    %v266 = vunpack.c.l.b16 %v54
    %v267 = vunpack.c.l.b16 %v55
    %v268 = vunpack.c.l.b16 %v56
    %v269 = vunpack.c.l.b16 %v57
    %v270 = vunpack.c.l.b16 %v58
    %v271 = vunpack.c.l.b16 %v59
    %v272 = vunpack.c.l.b16 %v60
    %v273 = vunpack.c.l.b16 %v61
    %v274 = vunpack.c.l.b16 %v62
    %v275 = vunpack.c.l.b16 %v63
    %v276 = vunpack.c.l.b16 %v64
    %v277 = vunpack.c.l.b16 %v65
    %v278 = vunpack.c.l.b16 %v66
    %v279 = vunpack.c.l.b16 %v67
    %v280 = vunpack.c.l.b16 %v68
    %v281 = vunpack.c.l.b16 %v69
    %v282 = vunpack.c.l.b16 %v70
    %v283 = vunpack.c.l.b16 %v71
    %v284 = vunpack.c.l.b16 %v72
    %v285 = vunpack.c.l.b16 %v73
    %v286 = vunpack.c.l.b16 %v74
    %v287 = vunpack.c.l.b16 %v75
    %v288 = vunpack.c.l.b16 %v76
    %v289 = vunpack.c.l.b16 %v77
    %v290 = vunpack.c.l.b16 %v78
    %v291 = vunpack.c.l.b16 %v79
    %v292 = vunpack.c.l.b16 %v80
    %v293 = vunpack.c.l.b16 %v81
    %v294 = vunpack.c.l.b16 %v82
    %v295 = vunpack.c.l.b16 %v83
    %v296 = vunpack.c.l.b16 %v84
    %v297 = vunpack.c.l.b16 %v85
    %v298 = vunpack.c.l.b16 %v86
    %v299 = vunpack.c.l.b16 %v87
    %v300 = vunpack.c.l.b16 %v88
    %v301 = vunpack.c.l.b16 %v89
    %v302 = vunpack.c.l.b16 %v90
    %v303 = vunpack.c.l.b16 %v91
    %v304 = vunpack.c.l.b16 %v92
    %v305 = vunpack.c.l.b16 %v93
    %v306 = vunpack.c.l.b16 %v94
    %v307 = vunpack.c.l.b16 %v95
    %v308 = vunpack.c.l.b16 %v96
    %v309 = vunpack.c.l.b16 %v97
    %v310 = vunpack.c.l.b16 %v98
    %v311 = vunpack.c.l.b16 %v99
    %v312 = vunpack.c.l.b16 %v100
    %v313 = vunpack.c.l.b16 %v101
    %v314 = vunpack.c.l.b16 %v102
    %v315 = vunpack.c.l.b16 %v103
    %v316 = vunpack.c.l.b16 %v104
    %v317 = vunpack.c.l.b16 %v105
    %v318 = vunpack.c.l.b16 %v106
    %v319 = vunpack.c.l.b16 %v107
    %v320 = vunpack.c.l.b16 %v108
    %v321 = vunpack.c.l.b16 %v109
    %v322 = vunpack.c.l.b16 %v110
    %v323 = vunpack.c.l.b16 %v111
    %v324 = vunpack.c.l.b16 %v112
    %v325 = vunpack.c.l.b16 %v113
    %v326 = vunpack.c.l.b16 %v114
    %v327 = vunpack.c.l.b16 %v115
    %v328 = vunpack.c.l.b16 %v116
    %v329 = vunpack.c.l.b16 %v117
    %v330 = vunpack.c.l.b16 %v118
    %v331 = vunpack.c.l.b16 %v119
    %v332 = vpack.c.b16 %v253, %v252
    %v333 = vpack.c.b16 %v255, %v254
    %v334 = vpack.c.b16 %v257, %v256
    %v335 = vpack.c.b16 %v259, %v258
    %v336 = vpack.c.b16 %v261, %v260
    %v337 = vpack.c.b16 %v263, %v262
    %v338 = vpack.c.b16 %v265, %v264
    %v339 = vpack.c.b16 %v267, %v266
    %v340 = vpack.c.b16 %v269, %v268
    %v341 = vpack.c.b16 %v271, %v270
    %v342 = vpack.c.b16 %v273, %v272
    %v343 = vpack.c.b16 %v275, %v274
    %v344 = vpack.c.b16 %v277, %v276
    %v345 = vpack.c.b16 %v279, %v278
    %v346 = vpack.c.b16 %v281, %v280
    %v347 = vpack.c.b16 %v283, %v282
    %v348 = vpack.c.b16 %v285, %v284
    %v349 = vpack.c.b16 %v287, %v286
    %v350 = vpack.c.b16 %v289, %v288
    %v351 = vpack.c.b16 %v291, %v290
    %v352 = vpack.c.b16 %v293, %v292
    %v353 = vpack.c.b16 %v295, %v294
    %v354 = vpack.c.b16 %v297, %v296
    %v355 = vpack.c.b16 %v299, %v298
    %v356 = vpack.c.b16 %v301, %v300
    %v357 = vpack.c.b16 %v303, %v302
    %v358 = vpack.c.b16 %v305, %v304
    %v359 = vpack.c.b16 %v307, %v306
    %v360 = vpack.c.b16 %v309, %v308
    %v361 = vpack.c.b16 %v311, %v310
    %v362 = vpack.c.b16 %v313, %v312
    %v363 = vpack.c.b16 %v315, %v314
    %v364 = vpack.c.b16 %v317, %v316
    %v365 = vpack.c.b16 %v319, %v318
    %v366 = vpack.c.b16 %v321, %v320
    %v367 = vpack.c.b16 %v323, %v322
    %v368 = vpack.c.b16 %v325, %v324
    %v369 = vpack.c.b16 %v327, %v326
    %v370 = vpack.c.b16 %v329, %v328
    %v371 = vpack.c.b16 %v331, %v330
    %412 = vmatprep.subr.bf16.mxu0 0
    %413 = vmatpush1.bf16.msra.mxu0 %v332
    %414 = vmatprep.subr.bf16.mxu0 0
    %415 = vmatpush1.bf16.msra.mxu0 %v333
    %416 = vmatprep.subr.bf16.mxu0 0
    %417 = vmatpush1.bf16.msra.mxu0 %v334
    %418 = vmatprep.subr.bf16.mxu0 0
    %419 = vmatpush1.bf16.msra.mxu0 %v335
    %420 = vmatprep.subr.bf16.mxu0 0
    %421 = vmatpush1.bf16.msra.mxu0 %v336
    %422 = vmatprep.subr.bf16.mxu0 0
    %423 = vmatpush1.bf16.msra.mxu0 %v337
    %424 = vmatprep.subr.bf16.mxu0 0
    %425 = vmatpush1.bf16.msra.mxu0 %v338
    %426 = vmatprep.subr.bf16.mxu0 0
    %427 = vmatpush1.bf16.msra.mxu0 %v339
    %428 = vmatprep.subr.bf16.mxu0 0
    %429 = vmatpush1.bf16.msra.mxu0 %v340
    %430 = vmatprep.subr.bf16.mxu0 0
    %431 = vmatpush1.bf16.msra.mxu0 %v341
    %432 = vmatprep.subr.bf16.mxu0 0
    %433 = vmatpush1.bf16.msra.mxu0 %v342
    %434 = vmatprep.subr.bf16.mxu0 0
    %435 = vmatpush1.bf16.msra.mxu0 %v343
    %436 = vmatprep.subr.bf16.mxu0 0
    %437 = vmatpush1.bf16.msra.mxu0 %v344
    %438 = vmatprep.subr.bf16.mxu0 0
    %439 = vmatpush1.bf16.msra.mxu0 %v345
    %440 = vmatprep.subr.bf16.mxu0 0
    %441 = vmatpush1.bf16.msra.mxu0 %v346
    %442 = vmatprep.subr.bf16.mxu0 0
    %443 = vmatpush1.bf16.msra.mxu0 %v347
    %444 = vmatprep.mubr.bf16.mxu0 %v153
    %445 = vmatmul.mubr.bf16.gmra.mrb[0].mxu0 %v152
    %v446 = vpop.f32.mrb[0].mxu0
    %v447 = vadd.f32 0.0, %v446
    %v448 = vpop.f32.mrb[0].mxu0
    %v449 = vpop.f32.mrb[0].mxu0
    %v450 = vadd.f32 0.0, %v449
    %v451 = vpop.f32.mrb[0].mxu0
    %452 = vmatprep.mubr.bf16.mxu0 %v158
    %453 = vmatmul.mubr.bf16.gmra.mrb[0].mxu0 %v157
    %v454 = vpop.f32.mrb[0].mxu0
    %v455 = vadd.f32 0.0, %v454
    %v456 = vpop.f32.mrb[0].mxu0
    %v457 = vpop.f32.mrb[0].mxu0
    %v458 = vadd.f32 0.0, %v457
    %v459 = vpop.f32.mrb[0].mxu0
    %460 = vdwg.mxu0
    %461 = vmatprep.subr.bf16.mxu0 0
    %462 = vmatpush1.bf16.msra.mxu0 %v348
    %463 = vmatprep.subr.bf16.mxu0 0
    %464 = vmatpush1.bf16.msra.mxu0 %v349
    %465 = vmatprep.subr.bf16.mxu0 0
    %466 = vmatpush1.bf16.msra.mxu0 %v350
    %467 = vmatprep.subr.bf16.mxu0 0
    %468 = vmatpush1.bf16.msra.mxu0 %v351
    %469 = vmatprep.subr.bf16.mxu0 0
    %470 = vmatpush1.bf16.msra.mxu0 %v352
    %471 = vmatprep.subr.bf16.mxu0 0
    %472 = vmatpush1.bf16.msra.mxu0 %v353
    %473 = vmatprep.subr.bf16.mxu0 0
    %474 = vmatpush1.bf16.msra.mxu0 %v354
    %475 = vmatprep.subr.bf16.mxu0 0
    %476 = vmatpush1.bf16.msra.mxu0 %v355
    %477 = vmatprep.subr.bf16.mxu0 0
    %478 = vmatpush1.bf16.msra.mxu0 %v356
    %479 = vmatprep.subr.bf16.mxu0 0
    %480 = vmatpush1.bf16.msra.mxu0 %v357
    %481 = vmatprep.subr.bf16.mxu0 0
    %482 = vmatpush1.bf16.msra.mxu0 %v358
    %483 = vmatprep.subr.bf16.mxu0 0
    %484 = vmatpush1.bf16.msra.mxu0 %v359
    %485 = vmatprep.subr.bf16.mxu0 0
    %486 = vmatpush1.bf16.msra.mxu0 %v360
    %487 = vmatprep.subr.bf16.mxu0 0
    %488 = vmatpush1.bf16.msra.mxu0 %v361
    %489 = vmatprep.subr.bf16.mxu0 0
    %490 = vmatpush1.bf16.msra.mxu0 %v362
    %491 = vmatprep.subr.bf16.mxu0 0
    %492 = vmatpush1.bf16.msra.mxu0 %v363
    %493 = vmatprep.mubr.bf16.mxu0 %v155
    %494 = vmatmul.mubr.bf16.gmra.mrb[0].mxu0 %v154
    %v495 = vpop.f32.mrb[0].mxu0
    %v496 = vadd.f32 %v447, %v495
    %v497 = vpop.f32.mrb[0].mxu0
    %v498 = vpop.f32.mrb[0].mxu0
    %v499 = vadd.f32 %v450, %v498
    %v500 = vpop.f32.mrb[0].mxu0
    %501 = vmatprep.mubr.bf16.mxu0 %v160
    %502 = vmatmul.mubr.bf16.gmra.mrb[0].mxu0 %v159
    %v503 = vpop.f32.mrb[0].mxu0
    %v504 = vadd.f32 %v455, %v503
    %v505 = vpop.f32.mrb[0].mxu0
    %v506 = vpop.f32.mrb[0].mxu0
    %v507 = vadd.f32 %v458, %v506
    %v508 = vpop.f32.mrb[0].mxu0
    %509 = vdwg.mxu0
    %510 = vmatprep.subr.bf16.mxu0 0
    %511 = vmatpush1.bf16.msra.mxu0 %v364
    %512 = vmatprep.subr.bf16.mxu0 0
    %513 = vmatpush1.bf16.msra.mxu0 %v365
    %514 = vmatprep.subr.bf16.mxu0 0
    %515 = vmatpush1.bf16.msra.mxu0 %v366
    %516 = vmatprep.subr.bf16.mxu0 0
    %517 = vmatpush1.bf16.msra.mxu0 %v367
    %518 = vmatprep.subr.bf16.mxu0 0
    %519 = vmatpush1.bf16.msra.mxu0 %v368
    %520 = vmatprep.subr.bf16.mxu0 0
    %521 = vmatpush1.bf16.msra.mxu0 %v369
    %522 = vmatprep.subr.bf16.mxu0 0
    %523 = vmatpush1.bf16.msra.mxu0 %v370
    %524 = vmatprep.subr.bf16.mxu0 0
    %525 = vmatpush1.bf16.msra.mxu0 %v371
    %526 = vmatprep.subr.bf16.mxu0 0
    %527 = vmatpush1.bf16.msra.mxu0 0
    %528 = vmatprep.subr.bf16.mxu0 0
    %529 = vmatpush1.bf16.msra.mxu0 0
    %530 = vmatprep.subr.bf16.mxu0 0
    %531 = vmatpush1.bf16.msra.mxu0 0
    %532 = vmatprep.subr.bf16.mxu0 0
    %533 = vmatpush1.bf16.msra.mxu0 0
    %534 = vmatprep.subr.bf16.mxu0 0
    %535 = vmatpush1.bf16.msra.mxu0 0
    %536 = vmatprep.subr.bf16.mxu0 0
    %537 = vmatpush1.bf16.msra.mxu0 0
    %538 = vmatprep.subr.bf16.mxu0 0
    %539 = vmatpush1.bf16.msra.mxu0 0
    %540 = vmatprep.subr.bf16.mxu0 0
    %541 = vmatpush1.bf16.msra.mxu0 0
    %542 = vmatprep.mubr.bf16.mxu0 0
    %543 = vmatmul.mubr.bf16.gmra.mrb[0].mxu0 %v156
    %v544 = vpop.f32.mrb[0].mxu0
    %v545 = vadd.f32 %v496, %v544
    %v546 = vpop.f32.mrb[0].mxu0
    %v547 = vpop.f32.mrb[0].mxu0
    %v548 = vadd.f32 %v499, %v547
    %v549 = vpop.f32.mrb[0].mxu0
    %550 = vmatprep.mubr.bf16.mxu0 0
    %551 = vmatmul.mubr.bf16.gmra.mrb[0].mxu0 %v161
    %v552 = vpop.f32.mrb[0].mxu0
    %v553 = vadd.f32 %v504, %v552
    %v554 = vpop.f32.mrb[0].mxu0
    %v555 = vpop.f32.mrb[0].mxu0
    %v556 = vadd.f32 %v507, %v555
    %v557 = vpop.f32.mrb[0].mxu0
    %558 = vdwg.mxu0
    %559 = vst [vmem:[%s2] sm:$0xff] %v545
    %560 = vst [vmem:[%s2 + $0x8] sm:$0xff] %v548
    %561 = vst [vmem:[%s2 + $0x10] sm:$0xff] %v553
    %562 = vst [vmem:[%s2 + $0x18] sm:$0xff] %v556
    %v563 = vadd.f32 %v545, %v548
    %v564 = vadd.f32 %v563, %v553
    %v565 = vadd.f32 %v564, %v556
    %v566 = vrot.slane %v565, 4
    %v567 = vadd.f32 %v565, %v566
    %v568 = vrot.slane %v567, 2
    %v569 = vadd.f32 %v567, %v568
    %v570 = vrot.slane %v569, 1
    %v571 = vadd.f32 %v569, %v570
    %v572 = vmul.f32 %v545, %v545
    %v573 = vmul.f32 %v548, %v548
    %v574 = vmul.f32 %v553, %v553
    %v575 = vmul.f32 %v556, %v556
    %v576 = vadd.f32 %v572, %v573
    %v577 = vadd.f32 %v576, %v574
    %v578 = vadd.f32 %v577, %v575
    %v579 = vrot.slane %v578, 4
    %v580 = vadd.f32 %v578, %v579
    %v581 = vrot.slane %v580, 2
    %v582 = vadd.f32 %v580, %v581
    %v583 = vrot.slane %v582, 1
    %v584 = vadd.f32 %v582, %v583
    %vm585 = vcmask 1040384
    %v586 = vsel %vm585, %v571, %v584
    %587 = vst [vmem:[%s3] sm:$0x3] %v586
    // Predicated region
    $region14: #{transition_pruner_forward.15} parent=1 // pred_check
      _
    $region15: #{transition_pruner_forward.15} parent=1 // pred_check_branch
      %589 = sbr.rel (0) target = $region17
    $region16: #{transition_pruner_forward.15} parent=1 // pred_region
      _
    $region17: #{transition_pruner_forward.15} parent=1 // pred_fallthru
      _
    // Predicated region
    $region18: #{transition_pruner_forward.15} parent=1 // pred_check
      _
    $region19: #{transition_pruner_forward.15} parent=1 // pred_check_branch
      %591 = sbr.rel (0) target = $region21
    $region20: #{transition_pruner_forward.15} parent=1 // pred_region
      _
    $region21: #{transition_pruner_forward.15} parent=1 // pred_fallthru
      _
    // Predicated region
    $region22: #{transition_pruner_forward.15} parent=1 // pred_check
      _
    $region23: #{transition_pruner_forward.15} parent=1 // pred_check_branch
      %593 = sbr.rel (0) target = $region25
    $region24: #{transition_pruner_forward.15} parent=1 // pred_region
      _
    $region25: #{transition_pruner_forward.15} parent=1 // pred_fallthru
      _
    // Predicated region
    $region26: #{transition_pruner_forward.15} parent=1 // pred_check
      _
    $region27: #{transition_pruner_forward.15} parent=1 // pred_check_branch
      %595 = sbr.rel (0) target = $region29
    $region28: #{transition_pruner_forward.15} parent=1 // pred_region
      _
    $region29: #{transition_pruner_forward.15} parent=1 // pred_fallthru
      _
    %596 = vsyncpa [#allocation3], 1

// kernel: transition_pruner_forward.18
$region0: #{transition_pruner_forward.18}
  #allocation0 [shape = 'u32[]', space=smem, size = 0x4, offset = 0x4, fixed_abs, tag = 'smem constant byte address 0x4 - core index']
  #allocation1 [shape = 'u32[144,128]{1,0:T(1,128)}', space=vmem, size = 0x12000, scoped, tag = 'internal scratch']
  %s0 = inlined_call_operand.vmem [shape: f32[8,256], index: 0, kind: input, shape index: {}]
  %s1 = inlined_call_operand.vmem [shape: f32[1,256], index: 1, kind: input, shape index: {}]
  %s2 = inlined_call_operand.vmem [shape: f32[1,256], index: 2, kind: input, shape index: {}]
  %s3 = inlined_call_operand.vmem [shape: f32[8,256], index: 3, kind: output, shape index: {}]
  %s4 = sld [smem:[#allocation0]]
  $region22: #{transition_pruner_forward.18} parent=0
    _
  %s6 = ssub.s32 1, %s4
  %s7 = scalar_select 0, %s6, %s4
  // Predicated region
  $region2: #{transition_pruner_forward.18} parent=0 // pred_check
    _
  $region3: #{transition_pruner_forward.18} parent=0 // pred_check_branch
    %9 = sbr.rel (0) target = $region5
  $region4: #{transition_pruner_forward.18} parent=0 // pred_region
    _
  $region5: #{transition_pruner_forward.18} parent=0 // pred_fallthru
    _
  // Predicated region
  $region6: #{transition_pruner_forward.18} parent=0 // pred_check
    _
  $region7: #{transition_pruner_forward.18} parent=0 // pred_check_branch
    %11 = sbr.rel (0) target = $region9
  $region8: #{transition_pruner_forward.18} parent=0 // pred_region
    _
  $region9: #{transition_pruner_forward.18} parent=0 // pred_fallthru
    _
  // Predicated region
  $region10: #{transition_pruner_forward.18} parent=0 // pred_check
    _
  $region11: #{transition_pruner_forward.18} parent=0 // pred_check_branch
    %13 = sbr.rel (0) target = $region13
  $region12: #{transition_pruner_forward.18} parent=0 // pred_region
    _
  $region13: #{transition_pruner_forward.18} parent=0 // pred_fallthru
    _
  %v14 = vld [vmem:[%s0] sm:$0xff]
  %v15 = vld [vmem:[%s0 + $0x8] sm:$0xff]
  %v16 = vld [vmem:[%s1] sm:$0x3]
  %v18 = vlaneseq
  %v19 = vshrl.u32 %v18, 7
  %v20 = vsub.s32 0, %v19
  %v21 = vrot.slane %v16, %v20
  %v22 = vlaneseq
  %v23 = vshrl.u32 %v22, 7
  %v24 = vsub.s32 1, %v23
  %v25 = vrot.slane %v16, %v24
  %v28 = vmul.f32 %v14, %v21
  %v29 = vmul.f32 %v15, %v25
  %v30 = vld [vmem:[%s2] sm:$0x3]
  %v32 = vlaneseq
  %v33 = vshrl.u32 %v32, 7
  %v34 = vsub.s32 0, %v33
  %v35 = vrot.slane %v30, %v34
  %v36 = vlaneseq
  %v37 = vshrl.u32 %v36, 7
  %v38 = vsub.s32 1, %v37
  %v39 = vrot.slane %v30, %v38
  %v42 = vadd.f32 %v28, %v35
  %v43 = vadd.f32 %v29, %v39
  %v44 = vmul.f32 %v42, 0.1
  %v45 = vmul.f32 %v43, 0.1
  %v46 = vmax.f32 %v42, %v44
  %v47 = vmax.f32 %v43, %v45
  %48 = vst [vmem:[%s3] sm:$0xff] %v46
  %49 = vst [vmem:[%s3 + $0x8] sm:$0xff] %v47
  // Predicated region
  $region14: #{transition_pruner_forward.18} parent=0 // pred_check
    _
  $region15: #{transition_pruner_forward.18} parent=0 // pred_check_branch
    %51 = sbr.rel (0) target = $region17
  $region16: #{transition_pruner_forward.18} parent=0 // pred_region
    _
  $region17: #{transition_pruner_forward.18} parent=0 // pred_fallthru
    _
  // Predicated region
  $region18: #{transition_pruner_forward.18} parent=0 // pred_check
    _
  $region19: #{transition_pruner_forward.18} parent=0 // pred_check_branch
    %53 = sbr.rel (0) target = $region21
  $region20: #{transition_pruner_forward.18} parent=0 // pred_region
    _
  $region21: #{transition_pruner_forward.18} parent=0 // pred_fallthru
    _

// kernel: transition_pruner_forward.20
$region0: #{transition_pruner_forward.20}
  #allocation0 [shape = 'u32[]', space=smem, size = 0x4, offset = 0x4, fixed_abs, tag = 'smem constant byte address 0x4 - core index']
  #allocation1 [shape = 'u32[144,128]{1,0:T(1,128)}', space=vmem, size = 0x12000, scoped, tag = 'internal scratch']
  %s0 = inlined_call_operand.vmem [shape: f32[8,512], index: 0, kind: input, shape index: {}]
  %s1 = inlined_call_operand.vmem [shape: f32[1,512], index: 1, kind: input, shape index: {}]
  %s2 = inlined_call_operand.vmem [shape: f32[1,512], index: 2, kind: input, shape index: {}]
  %s3 = inlined_call_operand.vmem [shape: f32[8,512], index: 3, kind: output, shape index: {}]
  %s4 = sld [smem:[#allocation0]]
  $region22: #{transition_pruner_forward.20} parent=0
    _
  %s6 = ssub.s32 1, %s4
  %s7 = scalar_select 0, %s6, %s4
  // Predicated region
  $region2: #{transition_pruner_forward.20} parent=0 // pred_check
    _
  $region3: #{transition_pruner_forward.20} parent=0 // pred_check_branch
    %9 = sbr.rel (0) target = $region5
  $region4: #{transition_pruner_forward.20} parent=0 // pred_region
    _
  $region5: #{transition_pruner_forward.20} parent=0 // pred_fallthru
    _
  // Predicated region
  $region6: #{transition_pruner_forward.20} parent=0 // pred_check
    _
  $region7: #{transition_pruner_forward.20} parent=0 // pred_check_branch
    %11 = sbr.rel (0) target = $region9
  $region8: #{transition_pruner_forward.20} parent=0 // pred_region
    _
  $region9: #{transition_pruner_forward.20} parent=0 // pred_fallthru
    _
  // Predicated region
  $region10: #{transition_pruner_forward.20} parent=0 // pred_check
    _
  $region11: #{transition_pruner_forward.20} parent=0 // pred_check_branch
    %13 = sbr.rel (0) target = $region13
  $region12: #{transition_pruner_forward.20} parent=0 // pred_region
    _
  $region13: #{transition_pruner_forward.20} parent=0 // pred_fallthru
    _
  %v14 = vld [vmem:[%s0] sm:$0xff]
  %v15 = vld [vmem:[%s0 + $0x8] sm:$0xff]
  %v16 = vld [vmem:[%s0 + $0x10] sm:$0xff]
  %v17 = vld [vmem:[%s0 + $0x18] sm:$0xff]
  %v18 = vld [vmem:[%s1] sm:$0xf]
  %v20 = vlaneseq
  %v21 = vshrl.u32 %v20, 7
  %v22 = vsub.s32 0, %v21
  %v23 = vrot.slane %v18, %v22
  %v24 = vlaneseq
  %v25 = vshrl.u32 %v24, 7
  %v26 = vsub.s32 1, %v25
  %v27 = vrot.slane %v18, %v26
  %v28 = vlaneseq
  %v29 = vshrl.u32 %v28, 7
  %v30 = vsub.s32 2, %v29
  %v31 = vrot.slane %v18, %v30
  %v32 = vlaneseq
  %v33 = vshrl.u32 %v32, 7
  %v34 = vsub.s32 3, %v33
  %v35 = vrot.slane %v18, %v34
  %v40 = vmul.f32 %v14, %v23
  %v41 = vmul.f32 %v15, %v27
  %v42 = vmul.f32 %v16, %v31
  %v43 = vmul.f32 %v17, %v35
  %v44 = vld [vmem:[%s2] sm:$0xf]
  %v46 = vlaneseq
  %v47 = vshrl.u32 %v46, 7
  %v48 = vsub.s32 0, %v47
  %v49 = vrot.slane %v44, %v48
  %v50 = vlaneseq
  %v51 = vshrl.u32 %v50, 7
  %v52 = vsub.s32 1, %v51
  %v53 = vrot.slane %v44, %v52
  %v54 = vlaneseq
  %v55 = vshrl.u32 %v54, 7
  %v56 = vsub.s32 2, %v55
  %v57 = vrot.slane %v44, %v56
  %v58 = vlaneseq
  %v59 = vshrl.u32 %v58, 7
  %v60 = vsub.s32 3, %v59
  %v61 = vrot.slane %v44, %v60
  %v66 = vadd.f32 %v40, %v49
  %v67 = vadd.f32 %v41, %v53
  %v68 = vadd.f32 %v42, %v57
  %v69 = vadd.f32 %v43, %v61
  %v70 = vmul.f32 %v66, 0.1
  %v71 = vmul.f32 %v67, 0.1
  %v72 = vmul.f32 %v68, 0.1
  %v73 = vmul.f32 %v69, 0.1
  %v74 = vmax.f32 %v66, %v70
  %v75 = vmax.f32 %v67, %v71
  %v76 = vmax.f32 %v68, %v72
  %v77 = vmax.f32 %v69, %v73
  %78 = vst [vmem:[%s3] sm:$0xff] %v74
  %79 = vst [vmem:[%s3 + $0x8] sm:$0xff] %v75
  %80 = vst [vmem:[%s3 + $0x10] sm:$0xff] %v76
  %81 = vst [vmem:[%s3 + $0x18] sm:$0xff] %v77
  // Predicated region
  $region14: #{transition_pruner_forward.20} parent=0 // pred_check
    _
  $region15: #{transition_pruner_forward.20} parent=0 // pred_check_branch
    %83 = sbr.rel (0) target = $region17
  $region16: #{transition_pruner_forward.20} parent=0 // pred_region
    _
  $region17: #{transition_pruner_forward.20} parent=0 // pred_fallthru
    _
  // Predicated region
  $region18: #{transition_pruner_forward.20} parent=0 // pred_check
    _
  $region19: #{transition_pruner_forward.20} parent=0 // pred_check_branch
    %85 = sbr.rel (0) target = $region21
  $region20: #{transition_pruner_forward.20} parent=0 // pred_region
    _
  $region21: #{transition_pruner_forward.20} parent=0 // pred_fallthru
    _

// kernel: transition_pruner_forward.17
$region0: #{transition_pruner_forward.17}
  #allocation0 [shape = 'u32[]', space=smem, size = 0x4, offset = 0x4, fixed_abs, tag = 'smem constant byte address 0x4 - core index']
  #allocation1 [shape = 'u32[144,128]{1,0:T(1,128)}', space=vmem, size = 0x12000, scoped, tag = 'internal scratch']
  %s0 = inlined_call_operand.vmem [shape: bf16[1,8,1152], index: 0, kind: input, shape index: {}]
  %s1 = inlined_call_operand.hbm [shape: bf16[1,1152,256], index: 1, kind: input, shape index: {}]
  %s2 = inlined_call_operand.vmem [shape: f32[1,8,256], index: 2, kind: output, shape index: {0}]
  %s3 = inlined_call_operand.vmem [shape: f32[1,1,2,256], index: 3, kind: output, shape index: {1}]
  %4 = xla_tuple %s2, %s3
  %s5 = sld [smem:[#allocation0]]
  $region30: #{transition_pruner_forward.17} parent=0
    _
  %s7 = ssub.s32 1, %s5
  %s8 = scalar_select 0, %s7, %s5
  $region1: #{transition_pruner_forward.17} parent=0
    #allocation2 [shape = 'u8[589824]{0}', space=vmem, size = 0x90000, scoped, tag = 'input window, operand 1, single buffered']
    #allocation3 [shape = 's32[1]{0}', space=sflag, size = 0x4, scoped, tag = 'scoped memory for transition_pruner_forward.17']
    %9 = vsyncpa [#allocation3], 0
    // Predicated region
    $region2: #{transition_pruner_forward.17} parent=1 // pred_check
      _
    $region3: #{transition_pruner_forward.17} parent=1 // pred_check_branch
      %11 = sbr.rel (0) target = $region5
    $region4: #{transition_pruner_forward.17} parent=1 // pred_region
      _
    $region5: #{transition_pruner_forward.17} parent=1 // pred_fallthru
      _
    // Predicated region
    $region6: #{transition_pruner_forward.17} parent=1 // pred_check
      _
    $region7: #{transition_pruner_forward.17} parent=1 // pred_check_branch
      %13 = sbr.rel (0) target = $region9
    $region8: #{transition_pruner_forward.17} parent=1 // pred_region
      %s15 = ssub.s32 18432, 18432
      %16 = vsyncadd [#allocation3], %s15
      %s17 = sshll.u32 [#allocation2], 4
      %s18 = int_to_ptr.vmem [resolvable:$true] %s17
      %23 = dma.hbm_to_vmem [thread:$0]  %s1, 18432, %s18, [#allocation3], 128, 128, 8
    $region9: #{transition_pruner_forward.17} parent=1 // pred_fallthru
      _
    // Predicated region
    $region10: #{transition_pruner_forward.17} parent=1 // pred_check
      _
    $region11: #{transition_pruner_forward.17} parent=1 // pred_check_branch
      %25 = sbr.rel (0) target = $region13
    $region12: #{transition_pruner_forward.17} parent=1 // pred_region
      %26 = dma.done [#allocation3], 18432
    $region13: #{transition_pruner_forward.17} parent=1 // pred_fallthru
      _
    %v28 = vld [vmem:[%s0] sm:$0xff]
    %v29 = vld [vmem:[%s0 + $0x8] sm:$0xff]
    %v30 = vld [vmem:[%s0 + $0x10] sm:$0xff]
    %v31 = vld [vmem:[%s0 + $0x18] sm:$0xff]
    %v32 = vld [vmem:[%s0 + $0x20] sm:$0xf]
    %v33 = vld [vmem:[#allocation2] sm:$0xff]
    %v34 = vld [vmem:[#allocation2 + $0x8] sm:$0xff]
    %v35 = vld [vmem:[#allocation2 + $0x10] sm:$0xff]
    %v36 = vld [vmem:[#allocation2 + $0x18] sm:$0xff]
    %v37 = vld [vmem:[#allocation2 + $0x20] sm:$0xff]
    %v38 = vld [vmem:[#allocation2 + $0x28] sm:$0xff]
    %v39 = vld [vmem:[#allocation2 + $0x30] sm:$0xff]
    %v40 = vld [vmem:[#allocation2 + $0x38] sm:$0xff]
    %v41 = vld [vmem:[#allocation2 + $0x40] sm:$0xff]
    %v42 = vld [vmem:[#allocation2 + $0x48] sm:$0xff]
    %v43 = vld [vmem:[#allocation2 + $0x50] sm:$0xff]
    %v44 = vld [vmem:[#allocation2 + $0x58] sm:$0xff]
    %v45 = vld [vmem:[#allocation2 + $0x60] sm:$0xff]
    %v46 = vld [vmem:[#allocation2 + $0x68] sm:$0xff]
    %v47 = vld [vmem:[#allocation2 + $0x70] sm:$0xff]
    %v48 = vld [vmem:[#allocation2 + $0x78] sm:$0xff]
    %v49 = vld [vmem:[#allocation2 + $0x80] sm:$0xff]
    %v50 = vld [vmem:[#allocation2 + $0x88] sm:$0xff]
    %v51 = vld [vmem:[#allocation2 + $0x90] sm:$0xff]
    %v52 = vld [vmem:[#allocation2 + $0x98] sm:$0xff]
    %v53 = vld [vmem:[#allocation2 + $0xa0] sm:$0xff]
    %v54 = vld [vmem:[#allocation2 + $0xa8] sm:$0xff]
    %v55 = vld [vmem:[#allocation2 + $0xb0] sm:$0xff]
    %v56 = vld [vmem:[#allocation2 + $0xb8] sm:$0xff]
    %v57 = vld [vmem:[#allocation2 + $0xc0] sm:$0xff]
    %v58 = vld [vmem:[#allocation2 + $0xc8] sm:$0xff]
    %v59 = vld [vmem:[#allocation2 + $0xd0] sm:$0xff]
    %v60 = vld [vmem:[#allocation2 + $0xd8] sm:$0xff]
    %v61 = vld [vmem:[#allocation2 + $0xe0] sm:$0xff]
    %v62 = vld [vmem:[#allocation2 + $0xe8] sm:$0xff]
    %v63 = vld [vmem:[#allocation2 + $0xf0] sm:$0xff]
    %v64 = vld [vmem:[#allocation2 + $0xf8] sm:$0xff]
    %v65 = vld [vmem:[#allocation2 + $0x100] sm:$0xff]
    %v66 = vld [vmem:[#allocation2 + $0x108] sm:$0xff]
    %v67 = vld [vmem:[#allocation2 + $0x110] sm:$0xff]
    %v68 = vld [vmem:[#allocation2 + $0x118] sm:$0xff]
    %v69 = vld [vmem:[#allocation2 + $0x120] sm:$0xff]
    %v70 = vld [vmem:[#allocation2 + $0x128] sm:$0xff]
    %v71 = vld [vmem:[#allocation2 + $0x130] sm:$0xff]
    %v72 = vld [vmem:[#allocation2 + $0x138] sm:$0xff]
    %v73 = vld [vmem:[#allocation2 + $0x140] sm:$0xff]
    %v74 = vld [vmem:[#allocation2 + $0x148] sm:$0xff]
    %v75 = vld [vmem:[#allocation2 + $0x150] sm:$0xff]
    %v76 = vld [vmem:[#allocation2 + $0x158] sm:$0xff]
    %v77 = vld [vmem:[#allocation2 + $0x160] sm:$0xff]
    %v78 = vld [vmem:[#allocation2 + $0x168] sm:$0xff]
    %v79 = vld [vmem:[#allocation2 + $0x170] sm:$0xff]
    %v80 = vld [vmem:[#allocation2 + $0x178] sm:$0xff]
    %v81 = vld [vmem:[#allocation2 + $0x180] sm:$0xff]
    %v82 = vld [vmem:[#allocation2 + $0x188] sm:$0xff]
    %v83 = vld [vmem:[#allocation2 + $0x190] sm:$0xff]
    %v84 = vld [vmem:[#allocation2 + $0x198] sm:$0xff]
    %v85 = vld [vmem:[#allocation2 + $0x1a0] sm:$0xff]
    %v86 = vld [vmem:[#allocation2 + $0x1a8] sm:$0xff]
    %v87 = vld [vmem:[#allocation2 + $0x1b0] sm:$0xff]
    %v88 = vld [vmem:[#allocation2 + $0x1b8] sm:$0xff]
    %v89 = vld [vmem:[#allocation2 + $0x1c0] sm:$0xff]
    %v90 = vld [vmem:[#allocation2 + $0x1c8] sm:$0xff]
    %v91 = vld [vmem:[#allocation2 + $0x1d0] sm:$0xff]
    %v92 = vld [vmem:[#allocation2 + $0x1d8] sm:$0xff]
    %v93 = vld [vmem:[#allocation2 + $0x1e0] sm:$0xff]
    %v94 = vld [vmem:[#allocation2 + $0x1e8] sm:$0xff]
    %v95 = vld [vmem:[#allocation2 + $0x1f0] sm:$0xff]
    %v96 = vld [vmem:[#allocation2 + $0x1f8] sm:$0xff]
    %v97 = vld [vmem:[#allocation2 + $0x200] sm:$0xff]
    %v98 = vld [vmem:[#allocation2 + $0x208] sm:$0xff]
    %v99 = vld [vmem:[#allocation2 + $0x210] sm:$0xff]
    %v100 = vld [vmem:[#allocation2 + $0x218] sm:$0xff]
    %v101 = vld [vmem:[#allocation2 + $0x220] sm:$0xff]
    %v102 = vld [vmem:[#allocation2 + $0x228] sm:$0xff]
    %v103 = vld [vmem:[#allocation2 + $0x230] sm:$0xff]
    %v104 = vld [vmem:[#allocation2 + $0x238] sm:$0xff]
    %v105 = vld [vmem:[#allocation2 + $0x240] sm:$0xff]
    %v106 = vld [vmem:[#allocation2 + $0x248] sm:$0xff]
    %v107 = vld [vmem:[#allocation2 + $0x250] sm:$0xff]
    %v108 = vld [vmem:[#allocation2 + $0x258] sm:$0xff]
    %v109 = vld [vmem:[#allocation2 + $0x260] sm:$0xff]
    %v110 = vld [vmem:[#allocation2 + $0x268] sm:$0xff]
    %v111 = vld [vmem:[#allocation2 + $0x270] sm:$0xff]
    %v112 = vld [vmem:[#allocation2 + $0x278] sm:$0xff]
    %v113 = vld [vmem:[#allocation2 + $0x280] sm:$0xff]
    %v114 = vld [vmem:[#allocation2 + $0x288] sm:$0xff]
    %v115 = vld [vmem:[#allocation2 + $0x290] sm:$0xff]
    %v116 = vld [vmem:[#allocation2 + $0x298] sm:$0xff]
    %v117 = vld [vmem:[#allocation2 + $0x2a0] sm:$0xff]
    %v118 = vld [vmem:[#allocation2 + $0x2a8] sm:$0xff]
    %v119 = vld [vmem:[#allocation2 + $0x2b0] sm:$0xff]
    %v120 = vld [vmem:[#allocation2 + $0x2b8] sm:$0xff]
    %v121 = vld [vmem:[#allocation2 + $0x2c0] sm:$0xff]
    %v122 = vld [vmem:[#allocation2 + $0x2c8] sm:$0xff]
    %v123 = vld [vmem:[#allocation2 + $0x2d0] sm:$0xff]
    %v124 = vld [vmem:[#allocation2 + $0x2d8] sm:$0xff]
    %v125 = vld [vmem:[#allocation2 + $0x2e0] sm:$0xff]
    %v126 = vld [vmem:[#allocation2 + $0x2e8] sm:$0xff]
    %v127 = vld [vmem:[#allocation2 + $0x2f0] sm:$0xff]
    %v128 = vld [vmem:[#allocation2 + $0x2f8] sm:$0xff]
    %v129 = vld [vmem:[#allocation2 + $0x300] sm:$0xff]
    %v130 = vld [vmem:[#allocation2 + $0x308] sm:$0xff]
    %v131 = vld [vmem:[#allocation2 + $0x310] sm:$0xff]
    %v132 = vld [vmem:[#allocation2 + $0x318] sm:$0xff]
    %v133 = vld [vmem:[#allocation2 + $0x320] sm:$0xff]
    %v134 = vld [vmem:[#allocation2 + $0x328] sm:$0xff]
    %v135 = vld [vmem:[#allocation2 + $0x330] sm:$0xff]
    %v136 = vld [vmem:[#allocation2 + $0x338] sm:$0xff]
    %v137 = vld [vmem:[#allocation2 + $0x340] sm:$0xff]
    %v138 = vld [vmem:[#allocation2 + $0x348] sm:$0xff]
    %v139 = vld [vmem:[#allocation2 + $0x350] sm:$0xff]
    %v140 = vld [vmem:[#allocation2 + $0x358] sm:$0xff]
    %v141 = vld [vmem:[#allocation2 + $0x360] sm:$0xff]
    %v142 = vld [vmem:[#allocation2 + $0x368] sm:$0xff]
    %v143 = vld [vmem:[#allocation2 + $0x370] sm:$0xff]
    %v144 = vld [vmem:[#allocation2 + $0x378] sm:$0xff]
    %v145 = vld [vmem:[#allocation2 + $0x380] sm:$0xff]
    %v146 = vld [vmem:[#allocation2 + $0x388] sm:$0xff]
    %v147 = vld [vmem:[#allocation2 + $0x390] sm:$0xff]
    %v148 = vld [vmem:[#allocation2 + $0x398] sm:$0xff]
    %v149 = vld [vmem:[#allocation2 + $0x3a0] sm:$0xff]
    %v150 = vld [vmem:[#allocation2 + $0x3a8] sm:$0xff]
    %v151 = vld [vmem:[#allocation2 + $0x3b0] sm:$0xff]
    %v152 = vld [vmem:[#allocation2 + $0x3b8] sm:$0xff]
    %v153 = vld [vmem:[#allocation2 + $0x3c0] sm:$0xff]
    %v154 = vld [vmem:[#allocation2 + $0x3c8] sm:$0xff]
    %v155 = vld [vmem:[#allocation2 + $0x3d0] sm:$0xff]
    %v156 = vld [vmem:[#allocation2 + $0x3d8] sm:$0xff]
    %v157 = vld [vmem:[#allocation2 + $0x3e0] sm:$0xff]
    %v158 = vld [vmem:[#allocation2 + $0x3e8] sm:$0xff]
    %v159 = vld [vmem:[#allocation2 + $0x3f0] sm:$0xff]
    %v160 = vld [vmem:[#allocation2 + $0x3f8] sm:$0xff]
    %v161 = vld [vmem:[#allocation2 + $0x400] sm:$0xff]
    %v162 = vld [vmem:[#allocation2 + $0x408] sm:$0xff]
    %v163 = vld [vmem:[#allocation2 + $0x410] sm:$0xff]
    %v164 = vld [vmem:[#allocation2 + $0x418] sm:$0xff]
    %v165 = vld [vmem:[#allocation2 + $0x420] sm:$0xff]
    %v166 = vld [vmem:[#allocation2 + $0x428] sm:$0xff]
    %v167 = vld [vmem:[#allocation2 + $0x430] sm:$0xff]
    %v168 = vld [vmem:[#allocation2 + $0x438] sm:$0xff]
    %v169 = vld [vmem:[#allocation2 + $0x440] sm:$0xff]
    %v170 = vld [vmem:[#allocation2 + $0x448] sm:$0xff]
    %v171 = vld [vmem:[#allocation2 + $0x450] sm:$0xff]
    %v172 = vld [vmem:[#allocation2 + $0x458] sm:$0xff]
    %v173 = vld [vmem:[#allocation2 + $0x460] sm:$0xff]
    %v174 = vld [vmem:[#allocation2 + $0x468] sm:$0xff]
    %v175 = vld [vmem:[#allocation2 + $0x470] sm:$0xff]
    %v176 = vld [vmem:[#allocation2 + $0x478] sm:$0xff]
    %v182 = vunpack.c.l.b16 %v28
    %v183 = vunpack.c.h.b16 %v28
    %v184 = vunpack.c.l.b16 %v29
    %v185 = vunpack.c.h.b16 %v29
    %v186 = vunpack.c.l.b16 %v30
    %v187 = vunpack.c.h.b16 %v30
    %v188 = vunpack.c.l.b16 %v31
    %v189 = vunpack.c.h.b16 %v31
    %v190 = vunpack.c.l.b16 %v32
    %v191 = vpack.c.b16 %v182, %v182
    %v192 = vpack.c.b16 %v183, %v183
    %v193 = vpack.c.b16 %v184, %v184
    %v194 = vpack.c.b16 %v185, %v185
    %v195 = vpack.c.b16 %v186, %v186
    %v196 = vpack.c.b16 %v187, %v187
    %v197 = vpack.c.b16 %v188, %v188
    %v198 = vpack.c.b16 %v189, %v189
    %v199 = vpack.c.b16 %v190, %v190
    %v353 = vunpack.c.l.b16 %v33
    %v354 = vunpack.c.h.b16 %v33
    %v355 = vunpack.c.l.b16 %v34
    %v356 = vunpack.c.h.b16 %v34
    %v357 = vunpack.c.l.b16 %v35
    %v358 = vunpack.c.h.b16 %v35
    %v359 = vunpack.c.l.b16 %v36
    %v360 = vunpack.c.h.b16 %v36
    %v361 = vunpack.c.l.b16 %v37
    %v362 = vunpack.c.h.b16 %v37
    %v363 = vunpack.c.l.b16 %v38
    %v364 = vunpack.c.h.b16 %v38
    %v365 = vunpack.c.l.b16 %v39
    %v366 = vunpack.c.h.b16 %v39
    %v367 = vunpack.c.l.b16 %v40
    %v368 = vunpack.c.h.b16 %v40
    %v369 = vunpack.c.l.b16 %v41
    %v370 = vunpack.c.h.b16 %v41
    %v371 = vunpack.c.l.b16 %v42
    %v372 = vunpack.c.h.b16 %v42
    %v373 = vunpack.c.l.b16 %v43
    %v374 = vunpack.c.h.b16 %v43
    %v375 = vunpack.c.l.b16 %v44
    %v376 = vunpack.c.h.b16 %v44
    %v377 = vunpack.c.l.b16 %v45
    %v378 = vunpack.c.h.b16 %v45
    %v379 = vunpack.c.l.b16 %v46
    %v380 = vunpack.c.h.b16 %v46
    %v381 = vunpack.c.l.b16 %v47
    %v382 = vunpack.c.h.b16 %v47
    %v383 = vunpack.c.l.b16 %v48
    %v384 = vunpack.c.h.b16 %v48
    %v385 = vunpack.c.l.b16 %v49
    %v386 = vunpack.c.h.b16 %v49
    %v387 = vunpack.c.l.b16 %v50
    %v388 = vunpack.c.h.b16 %v50
    %v389 = vunpack.c.l.b16 %v51
    %v390 = vunpack.c.h.b16 %v51
    %v391 = vunpack.c.l.b16 %v52
    %v392 = vunpack.c.h.b16 %v52
    %v393 = vunpack.c.l.b16 %v53
    %v394 = vunpack.c.h.b16 %v53
    %v395 = vunpack.c.l.b16 %v54
    %v396 = vunpack.c.h.b16 %v54
    %v397 = vunpack.c.l.b16 %v55
    %v398 = vunpack.c.h.b16 %v55
    %v399 = vunpack.c.l.b16 %v56
    %v400 = vunpack.c.h.b16 %v56
    %v401 = vunpack.c.l.b16 %v57
    %v402 = vunpack.c.h.b16 %v57
    %v403 = vunpack.c.l.b16 %v58
    %v404 = vunpack.c.h.b16 %v58
    %v405 = vunpack.c.l.b16 %v59
    %v406 = vunpack.c.h.b16 %v59
    %v407 = vunpack.c.l.b16 %v60
    %v408 = vunpack.c.h.b16 %v60
    %v409 = vunpack.c.l.b16 %v61
    %v410 = vunpack.c.h.b16 %v61
    %v411 = vunpack.c.l.b16 %v62
    %v412 = vunpack.c.h.b16 %v62
    %v413 = vunpack.c.l.b16 %v63
    %v414 = vunpack.c.h.b16 %v63
    %v415 = vunpack.c.l.b16 %v64
    %v416 = vunpack.c.h.b16 %v64
    %v417 = vunpack.c.l.b16 %v65
    %v418 = vunpack.c.h.b16 %v65
    %v419 = vunpack.c.l.b16 %v66
    %v420 = vunpack.c.h.b16 %v66
    %v421 = vunpack.c.l.b16 %v67
    %v422 = vunpack.c.h.b16 %v67
    %v423 = vunpack.c.l.b16 %v68
    %v424 = vunpack.c.h.b16 %v68
    %v425 = vunpack.c.l.b16 %v69
    %v426 = vunpack.c.h.b16 %v69
    %v427 = vunpack.c.l.b16 %v70
    %v428 = vunpack.c.h.b16 %v70
    %v429 = vunpack.c.l.b16 %v71
    %v430 = vunpack.c.h.b16 %v71
    %v431 = vunpack.c.l.b16 %v72
    %v432 = vunpack.c.h.b16 %v72
    %v433 = vunpack.c.l.b16 %v73
    %v434 = vunpack.c.h.b16 %v73
    %v435 = vunpack.c.l.b16 %v74
    %v436 = vunpack.c.h.b16 %v74
    %v437 = vunpack.c.l.b16 %v75
    %v438 = vunpack.c.h.b16 %v75
    %v439 = vunpack.c.l.b16 %v76
    %v440 = vunpack.c.h.b16 %v76
    %v441 = vunpack.c.l.b16 %v77
    %v442 = vunpack.c.h.b16 %v77
    %v443 = vunpack.c.l.b16 %v78
    %v444 = vunpack.c.h.b16 %v78
    %v445 = vunpack.c.l.b16 %v79
    %v446 = vunpack.c.h.b16 %v79
    %v447 = vunpack.c.l.b16 %v80
    %v448 = vunpack.c.h.b16 %v80
    %v449 = vunpack.c.l.b16 %v81
    %v450 = vunpack.c.h.b16 %v81
    %v451 = vunpack.c.l.b16 %v82
    %v452 = vunpack.c.h.b16 %v82
    %v453 = vunpack.c.l.b16 %v83
    %v454 = vunpack.c.h.b16 %v83
    %v455 = vunpack.c.l.b16 %v84
    %v456 = vunpack.c.h.b16 %v84
    %v457 = vunpack.c.l.b16 %v85
    %v458 = vunpack.c.h.b16 %v85
    %v459 = vunpack.c.l.b16 %v86
    %v460 = vunpack.c.h.b16 %v86
    %v461 = vunpack.c.l.b16 %v87
    %v462 = vunpack.c.h.b16 %v87
    %v463 = vunpack.c.l.b16 %v88
    %v464 = vunpack.c.h.b16 %v88
    %v465 = vunpack.c.l.b16 %v89
    %v466 = vunpack.c.h.b16 %v89
    %v467 = vunpack.c.l.b16 %v90
    %v468 = vunpack.c.h.b16 %v90
    %v469 = vunpack.c.l.b16 %v91
    %v470 = vunpack.c.h.b16 %v91
    %v471 = vunpack.c.l.b16 %v92
    %v472 = vunpack.c.h.b16 %v92
    %v473 = vunpack.c.l.b16 %v93
    %v474 = vunpack.c.h.b16 %v93
    %v475 = vunpack.c.l.b16 %v94
    %v476 = vunpack.c.h.b16 %v94
    %v477 = vunpack.c.l.b16 %v95
    %v478 = vunpack.c.h.b16 %v95
    %v479 = vunpack.c.l.b16 %v96
    %v480 = vunpack.c.h.b16 %v96
    %v481 = vunpack.c.l.b16 %v97
    %v482 = vunpack.c.h.b16 %v97
    %v483 = vunpack.c.l.b16 %v98
    %v484 = vunpack.c.h.b16 %v98
    %v485 = vunpack.c.l.b16 %v99
    %v486 = vunpack.c.h.b16 %v99
    %v487 = vunpack.c.l.b16 %v100
    %v488 = vunpack.c.h.b16 %v100
    %v489 = vunpack.c.l.b16 %v101
    %v490 = vunpack.c.h.b16 %v101
    %v491 = vunpack.c.l.b16 %v102
    %v492 = vunpack.c.h.b16 %v102
    %v493 = vunpack.c.l.b16 %v103
    %v494 = vunpack.c.h.b16 %v103
    %v495 = vunpack.c.l.b16 %v104
    %v496 = vunpack.c.h.b16 %v104
    %v497 = vunpack.c.l.b16 %v105
    %v498 = vunpack.c.h.b16 %v105
    %v499 = vunpack.c.l.b16 %v106
    %v500 = vunpack.c.h.b16 %v106
    %v501 = vunpack.c.l.b16 %v107
    %v502 = vunpack.c.h.b16 %v107
    %v503 = vunpack.c.l.b16 %v108
    %v504 = vunpack.c.h.b16 %v108
    %v505 = vunpack.c.l.b16 %v109
    %v506 = vunpack.c.h.b16 %v109
    %v507 = vunpack.c.l.b16 %v110
    %v508 = vunpack.c.h.b16 %v110
    %v509 = vunpack.c.l.b16 %v111
    %v510 = vunpack.c.h.b16 %v111
    %v511 = vunpack.c.l.b16 %v112
    %v512 = vunpack.c.h.b16 %v112
    %v513 = vunpack.c.l.b16 %v113
    %v514 = vunpack.c.h.b16 %v113
    %v515 = vunpack.c.l.b16 %v114
    %v516 = vunpack.c.h.b16 %v114
    %v517 = vunpack.c.l.b16 %v115
    %v518 = vunpack.c.h.b16 %v115
    %v519 = vunpack.c.l.b16 %v116
    %v520 = vunpack.c.h.b16 %v116
    %v521 = vunpack.c.l.b16 %v117
    %v522 = vunpack.c.h.b16 %v117
    %v523 = vunpack.c.l.b16 %v118
    %v524 = vunpack.c.h.b16 %v118
    %v525 = vunpack.c.l.b16 %v119
    %v526 = vunpack.c.h.b16 %v119
    %v527 = vunpack.c.l.b16 %v120
    %v528 = vunpack.c.h.b16 %v120
    %v529 = vunpack.c.l.b16 %v121
    %v530 = vunpack.c.h.b16 %v121
    %v531 = vunpack.c.l.b16 %v122
    %v532 = vunpack.c.h.b16 %v122
    %v533 = vunpack.c.l.b16 %v123
    %v534 = vunpack.c.h.b16 %v123
    %v535 = vunpack.c.l.b16 %v124
    %v536 = vunpack.c.h.b16 %v124
    %v537 = vunpack.c.l.b16 %v125
    %v538 = vunpack.c.h.b16 %v125
    %v539 = vunpack.c.l.b16 %v126
    %v540 = vunpack.c.h.b16 %v126
    %v541 = vunpack.c.l.b16 %v127
    %v542 = vunpack.c.h.b16 %v127
    %v543 = vunpack.c.l.b16 %v128
    %v544 = vunpack.c.h.b16 %v128
    %v545 = vunpack.c.l.b16 %v129
    %v546 = vunpack.c.h.b16 %v129
    %v547 = vunpack.c.l.b16 %v130
    %v548 = vunpack.c.h.b16 %v130
    %v549 = vunpack.c.l.b16 %v131
    %v550 = vunpack.c.h.b16 %v131
    %v551 = vunpack.c.l.b16 %v132
    %v552 = vunpack.c.h.b16 %v132
    %v553 = vunpack.c.l.b16 %v133
    %v554 = vunpack.c.h.b16 %v133
    %v555 = vunpack.c.l.b16 %v134
    %v556 = vunpack.c.h.b16 %v134
    %v557 = vunpack.c.l.b16 %v135
    %v558 = vunpack.c.h.b16 %v135
    %v559 = vunpack.c.l.b16 %v136
    %v560 = vunpack.c.h.b16 %v136
    %v561 = vunpack.c.l.b16 %v137
    %v562 = vunpack.c.h.b16 %v137
    %v563 = vunpack.c.l.b16 %v138
    %v564 = vunpack.c.h.b16 %v138
    %v565 = vunpack.c.l.b16 %v139
    %v566 = vunpack.c.h.b16 %v139
    %v567 = vunpack.c.l.b16 %v140
    %v568 = vunpack.c.h.b16 %v140
    %v569 = vunpack.c.l.b16 %v141
    %v570 = vunpack.c.h.b16 %v141
    %v571 = vunpack.c.l.b16 %v142
    %v572 = vunpack.c.h.b16 %v142
    %v573 = vunpack.c.l.b16 %v143
    %v574 = vunpack.c.h.b16 %v143
    %v575 = vunpack.c.l.b16 %v144
    %v576 = vunpack.c.h.b16 %v144
    %v577 = vunpack.c.l.b16 %v145
    %v578 = vunpack.c.h.b16 %v145
    %v579 = vunpack.c.l.b16 %v146
    %v580 = vunpack.c.h.b16 %v146
    %v581 = vunpack.c.l.b16 %v147
    %v582 = vunpack.c.h.b16 %v147
    %v583 = vunpack.c.l.b16 %v148
    %v584 = vunpack.c.h.b16 %v148
    %v585 = vunpack.c.l.b16 %v149
    %v586 = vunpack.c.h.b16 %v149
    %v587 = vunpack.c.l.b16 %v150
    %v588 = vunpack.c.h.b16 %v150
    %v589 = vunpack.c.l.b16 %v151
    %v590 = vunpack.c.h.b16 %v151
    %v591 = vunpack.c.l.b16 %v152
    %v592 = vunpack.c.h.b16 %v152
    %v593 = vunpack.c.l.b16 %v153
    %v594 = vunpack.c.h.b16 %v153
    %v595 = vunpack.c.l.b16 %v154
    %v596 = vunpack.c.h.b16 %v154
    %v597 = vunpack.c.l.b16 %v155
    %v598 = vunpack.c.h.b16 %v155
    %v599 = vunpack.c.l.b16 %v156
    %v600 = vunpack.c.h.b16 %v156
    %v601 = vunpack.c.l.b16 %v157
    %v602 = vunpack.c.h.b16 %v157
    %v603 = vunpack.c.l.b16 %v158
    %v604 = vunpack.c.h.b16 %v158
    %v605 = vunpack.c.l.b16 %v159
    %v606 = vunpack.c.h.b16 %v159
    %v607 = vunpack.c.l.b16 %v160
    %v608 = vunpack.c.h.b16 %v160
    %v609 = vunpack.c.l.b16 %v161
    %v610 = vunpack.c.h.b16 %v161
    %v611 = vunpack.c.l.b16 %v162
    %v612 = vunpack.c.h.b16 %v162
    %v613 = vunpack.c.l.b16 %v163
    %v614 = vunpack.c.h.b16 %v163
    %v615 = vunpack.c.l.b16 %v164
    %v616 = vunpack.c.h.b16 %v164
    %v617 = vunpack.c.l.b16 %v165
    %v618 = vunpack.c.h.b16 %v165
    %v619 = vunpack.c.l.b16 %v166
    %v620 = vunpack.c.h.b16 %v166
    %v621 = vunpack.c.l.b16 %v167
    %v622 = vunpack.c.h.b16 %v167
    %v623 = vunpack.c.l.b16 %v168
    %v624 = vunpack.c.h.b16 %v168
    %v625 = vunpack.c.l.b16 %v169
    %v626 = vunpack.c.h.b16 %v169
    %v627 = vunpack.c.l.b16 %v170
    %v628 = vunpack.c.h.b16 %v170
    %v629 = vunpack.c.l.b16 %v171
    %v630 = vunpack.c.h.b16 %v171
    %v631 = vunpack.c.l.b16 %v172
    %v632 = vunpack.c.h.b16 %v172
    %v633 = vunpack.c.l.b16 %v173
    %v634 = vunpack.c.h.b16 %v173
    %v635 = vunpack.c.l.b16 %v174
    %v636 = vunpack.c.h.b16 %v174
    %v637 = vunpack.c.l.b16 %v175
    %v638 = vunpack.c.h.b16 %v175
    %v639 = vunpack.c.l.b16 %v176
    %v640 = vunpack.c.h.b16 %v176
    %v641 = vpack.c.b16 %v355, %v353
    %v642 = vpack.c.b16 %v356, %v354
    %v643 = vpack.c.b16 %v359, %v357
    %v644 = vpack.c.b16 %v360, %v358
    %v645 = vpack.c.b16 %v363, %v361
    %v646 = vpack.c.b16 %v364, %v362
    %v647 = vpack.c.b16 %v367, %v365
    %v648 = vpack.c.b16 %v368, %v366
    %v649 = vpack.c.b16 %v371, %v369
    %v650 = vpack.c.b16 %v372, %v370
    %v651 = vpack.c.b16 %v375, %v373
    %v652 = vpack.c.b16 %v376, %v374
    %v653 = vpack.c.b16 %v379, %v377
    %v654 = vpack.c.b16 %v380, %v378
    %v655 = vpack.c.b16 %v383, %v381
    %v656 = vpack.c.b16 %v384, %v382
    %v657 = vpack.c.b16 %v387, %v385
    %v658 = vpack.c.b16 %v388, %v386
    %v659 = vpack.c.b16 %v391, %v389
    %v660 = vpack.c.b16 %v392, %v390
    %v661 = vpack.c.b16 %v395, %v393
    %v662 = vpack.c.b16 %v396, %v394
    %v663 = vpack.c.b16 %v399, %v397
    %v664 = vpack.c.b16 %v400, %v398
    %v665 = vpack.c.b16 %v403, %v401
    %v666 = vpack.c.b16 %v404, %v402
    %v667 = vpack.c.b16 %v407, %v405
    %v668 = vpack.c.b16 %v408, %v406
    %v669 = vpack.c.b16 %v411, %v409
    %v670 = vpack.c.b16 %v412, %v410
    %v671 = vpack.c.b16 %v415, %v413
    %v672 = vpack.c.b16 %v416, %v414
    %v673 = vpack.c.b16 %v419, %v417
    %v674 = vpack.c.b16 %v420, %v418
    %v675 = vpack.c.b16 %v423, %v421
    %v676 = vpack.c.b16 %v424, %v422
    %v677 = vpack.c.b16 %v427, %v425
    %v678 = vpack.c.b16 %v428, %v426
    %v679 = vpack.c.b16 %v431, %v429
    %v680 = vpack.c.b16 %v432, %v430
    %v681 = vpack.c.b16 %v435, %v433
    %v682 = vpack.c.b16 %v436, %v434
    %v683 = vpack.c.b16 %v439, %v437
    %v684 = vpack.c.b16 %v440, %v438
    %v685 = vpack.c.b16 %v443, %v441
    %v686 = vpack.c.b16 %v444, %v442
    %v687 = vpack.c.b16 %v447, %v445
    %v688 = vpack.c.b16 %v448, %v446
    %v689 = vpack.c.b16 %v451, %v449
    %v690 = vpack.c.b16 %v452, %v450
    %v691 = vpack.c.b16 %v455, %v453
    %v692 = vpack.c.b16 %v456, %v454
    %v693 = vpack.c.b16 %v459, %v457
    %v694 = vpack.c.b16 %v460, %v458
    %v695 = vpack.c.b16 %v463, %v461
    %v696 = vpack.c.b16 %v464, %v462
    %v697 = vpack.c.b16 %v467, %v465
    %v698 = vpack.c.b16 %v468, %v466
    %v699 = vpack.c.b16 %v471, %v469
    %v700 = vpack.c.b16 %v472, %v470
    %v701 = vpack.c.b16 %v475, %v473
    %v702 = vpack.c.b16 %v476, %v474
    %v703 = vpack.c.b16 %v479, %v477
    %v704 = vpack.c.b16 %v480, %v478
    %v705 = vpack.c.b16 %v483, %v481
    %v706 = vpack.c.b16 %v484, %v482
    %v707 = vpack.c.b16 %v487, %v485
    %v708 = vpack.c.b16 %v488, %v486
    %v709 = vpack.c.b16 %v491, %v489
    %v710 = vpack.c.b16 %v492, %v490
    %v711 = vpack.c.b16 %v495, %v493
    %v712 = vpack.c.b16 %v496, %v494
    %v713 = vpack.c.b16 %v499, %v497
    %v714 = vpack.c.b16 %v500, %v498
    %v715 = vpack.c.b16 %v503, %v501
    %v716 = vpack.c.b16 %v504, %v502
    %v717 = vpack.c.b16 %v507, %v505
    %v718 = vpack.c.b16 %v508, %v506
    %v719 = vpack.c.b16 %v511, %v509
    %v720 = vpack.c.b16 %v512, %v510
    %v721 = vpack.c.b16 %v515, %v513
    %v722 = vpack.c.b16 %v516, %v514
    %v723 = vpack.c.b16 %v519, %v517
    %v724 = vpack.c.b16 %v520, %v518
    %v725 = vpack.c.b16 %v523, %v521
    %v726 = vpack.c.b16 %v524, %v522
    %v727 = vpack.c.b16 %v527, %v525
    %v728 = vpack.c.b16 %v528, %v526
    %v729 = vpack.c.b16 %v531, %v529
    %v730 = vpack.c.b16 %v532, %v530
    %v731 = vpack.c.b16 %v535, %v533
    %v732 = vpack.c.b16 %v536, %v534
    %v733 = vpack.c.b16 %v539, %v537
    %v734 = vpack.c.b16 %v540, %v538
    %v735 = vpack.c.b16 %v543, %v541
    %v736 = vpack.c.b16 %v544, %v542
    %v737 = vpack.c.b16 %v547, %v545
    %v738 = vpack.c.b16 %v548, %v546
    %v739 = vpack.c.b16 %v551, %v549
    %v740 = vpack.c.b16 %v552, %v550
    %v741 = vpack.c.b16 %v555, %v553
    %v742 = vpack.c.b16 %v556, %v554
    %v743 = vpack.c.b16 %v559, %v557
    %v744 = vpack.c.b16 %v560, %v558
    %v745 = vpack.c.b16 %v563, %v561
    %v746 = vpack.c.b16 %v564, %v562
    %v747 = vpack.c.b16 %v567, %v565
    %v748 = vpack.c.b16 %v568, %v566
    %v749 = vpack.c.b16 %v571, %v569
    %v750 = vpack.c.b16 %v572, %v570
    %v751 = vpack.c.b16 %v575, %v573
    %v752 = vpack.c.b16 %v576, %v574
    %v753 = vpack.c.b16 %v579, %v577
    %v754 = vpack.c.b16 %v580, %v578
    %v755 = vpack.c.b16 %v583, %v581
    %v756 = vpack.c.b16 %v584, %v582
    %v757 = vpack.c.b16 %v587, %v585
    %v758 = vpack.c.b16 %v588, %v586
    %v759 = vpack.c.b16 %v591, %v589
    %v760 = vpack.c.b16 %v592, %v590
    %v761 = vpack.c.b16 %v595, %v593
    %v762 = vpack.c.b16 %v596, %v594
    %v763 = vpack.c.b16 %v599, %v597
    %v764 = vpack.c.b16 %v600, %v598
    %v765 = vpack.c.b16 %v603, %v601
    %v766 = vpack.c.b16 %v604, %v602
    %v767 = vpack.c.b16 %v607, %v605
    %v768 = vpack.c.b16 %v608, %v606
    %v769 = vpack.c.b16 %v611, %v609
    %v770 = vpack.c.b16 %v612, %v610
    %v771 = vpack.c.b16 %v615, %v613
    %v772 = vpack.c.b16 %v616, %v614
    %v773 = vpack.c.b16 %v619, %v617
    %v774 = vpack.c.b16 %v620, %v618
    %v775 = vpack.c.b16 %v623, %v621
    %v776 = vpack.c.b16 %v624, %v622
    %v777 = vpack.c.b16 %v627, %v625
    %v778 = vpack.c.b16 %v628, %v626
    %v779 = vpack.c.b16 %v631, %v629
    %v780 = vpack.c.b16 %v632, %v630
    %v781 = vpack.c.b16 %v635, %v633
    %v782 = vpack.c.b16 %v636, %v634
    %v783 = vpack.c.b16 %v639, %v637
    %v784 = vpack.c.b16 %v640, %v638
    %929 = vmatprep.subr.bf16.mxu0 %v642
    %930 = vmatpush1.bf16.msra.mxu0 %v641
    %931 = vmatprep.subr.bf16.mxu0 %v644
    %932 = vmatpush1.bf16.msra.mxu0 %v643
    %933 = vmatprep.subr.bf16.mxu0 %v646
    %934 = vmatpush1.bf16.msra.mxu0 %v645
    %935 = vmatprep.subr.bf16.mxu0 %v648
    %936 = vmatpush1.bf16.msra.mxu0 %v647
    %937 = vmatprep.subr.bf16.mxu0 %v650
    %938 = vmatpush1.bf16.msra.mxu0 %v649
    %939 = vmatprep.subr.bf16.mxu0 %v652
    %940 = vmatpush1.bf16.msra.mxu0 %v651
    %941 = vmatprep.subr.bf16.mxu0 %v654
    %942 = vmatpush1.bf16.msra.mxu0 %v653
    %943 = vmatprep.subr.bf16.mxu0 %v656
    %944 = vmatpush1.bf16.msra.mxu0 %v655
    %945 = vmatprep.subr.bf16.mxu0 %v658
    %946 = vmatpush1.bf16.msra.mxu0 %v657
    %947 = vmatprep.subr.bf16.mxu0 %v660
    %948 = vmatpush1.bf16.msra.mxu0 %v659
    %949 = vmatprep.subr.bf16.mxu0 %v662
    %950 = vmatpush1.bf16.msra.mxu0 %v661
    %951 = vmatprep.subr.bf16.mxu0 %v664
    %952 = vmatpush1.bf16.msra.mxu0 %v663
    %953 = vmatprep.subr.bf16.mxu0 %v666
    %954 = vmatpush1.bf16.msra.mxu0 %v665
    %955 = vmatprep.subr.bf16.mxu0 %v668
    %956 = vmatpush1.bf16.msra.mxu0 %v667
    %957 = vmatprep.subr.bf16.mxu0 %v670
    %958 = vmatpush1.bf16.msra.mxu0 %v669
    %959 = vmatprep.subr.bf16.mxu0 %v672
    %960 = vmatpush1.bf16.msra.mxu0 %v671
    %961 = vmatprep.mubr.bf16.mxu0 %v192
    %962 = vmatmul.mubr.bf16.gmra.mrb[0].mxu0 %v191
    %v963 = vpop.f32.mrb[0].mxu0
    %v964 = vadd.f32 0.0, %v963
    %v965 = vpop.f32.mrb[0].mxu0
    %v966 = vadd.f32 0.0, %v965
    %v967 = vpop.f32.mrb[0].mxu0
    %v968 = vpop.f32.mrb[0].mxu0
    %969 = vdwg.mxu0
    %970 = vmatprep.subr.bf16.mxu0 %v674
    %971 = vmatpush1.bf16.msra.mxu0 %v673
    %972 = vmatprep.subr.bf16.mxu0 %v676
    %973 = vmatpush1.bf16.msra.mxu0 %v675
    %974 = vmatprep.subr.bf16.mxu0 %v678
    %975 = vmatpush1.bf16.msra.mxu0 %v677
    %976 = vmatprep.subr.bf16.mxu0 %v680
    %977 = vmatpush1.bf16.msra.mxu0 %v679
    %978 = vmatprep.subr.bf16.mxu0 %v682
    %979 = vmatpush1.bf16.msra.mxu0 %v681
    %980 = vmatprep.subr.bf16.mxu0 %v684
    %981 = vmatpush1.bf16.msra.mxu0 %v683
    %982 = vmatprep.subr.bf16.mxu0 %v686
    %983 = vmatpush1.bf16.msra.mxu0 %v685
    %984 = vmatprep.subr.bf16.mxu0 %v688
    %985 = vmatpush1.bf16.msra.mxu0 %v687
    %986 = vmatprep.subr.bf16.mxu0 %v690
    %987 = vmatpush1.bf16.msra.mxu0 %v689
    %988 = vmatprep.subr.bf16.mxu0 %v692
    %989 = vmatpush1.bf16.msra.mxu0 %v691
    %990 = vmatprep.subr.bf16.mxu0 %v694
    %991 = vmatpush1.bf16.msra.mxu0 %v693
    %992 = vmatprep.subr.bf16.mxu0 %v696
    %993 = vmatpush1.bf16.msra.mxu0 %v695
    %994 = vmatprep.subr.bf16.mxu0 %v698
    %995 = vmatpush1.bf16.msra.mxu0 %v697
    %996 = vmatprep.subr.bf16.mxu0 %v700
    %997 = vmatpush1.bf16.msra.mxu0 %v699
    %998 = vmatprep.subr.bf16.mxu0 %v702
    %999 = vmatpush1.bf16.msra.mxu0 %v701
    %1000 = vmatprep.subr.bf16.mxu0 %v704
    %1001 = vmatpush1.bf16.msra.mxu0 %v703
    %1002 = vmatprep.mubr.bf16.mxu0 %v194
    %1003 = vmatmul.mubr.bf16.gmra.mrb[0].mxu0 %v193
    %v1004 = vpop.f32.mrb[0].mxu0
    %v1005 = vadd.f32 %v964, %v1004
    %v1006 = vpop.f32.mrb[0].mxu0
    %v1007 = vadd.f32 %v966, %v1006
    %v1008 = vpop.f32.mrb[0].mxu0
    %v1009 = vpop.f32.mrb[0].mxu0
    %1010 = vdwg.mxu0
    %1011 = vmatprep.subr.bf16.mxu0 %v706
    %1012 = vmatpush1.bf16.msra.mxu0 %v705
    %1013 = vmatprep.subr.bf16.mxu0 %v708
    %1014 = vmatpush1.bf16.msra.mxu0 %v707
    %1015 = vmatprep.subr.bf16.mxu0 %v710
    %1016 = vmatpush1.bf16.msra.mxu0 %v709
    %1017 = vmatprep.subr.bf16.mxu0 %v712
    %1018 = vmatpush1.bf16.msra.mxu0 %v711
    %1019 = vmatprep.subr.bf16.mxu0 %v714
    %1020 = vmatpush1.bf16.msra.mxu0 %v713
    %1021 = vmatprep.subr.bf16.mxu0 %v716
    %1022 = vmatpush1.bf16.msra.mxu0 %v715
    %1023 = vmatprep.subr.bf16.mxu0 %v718
    %1024 = vmatpush1.bf16.msra.mxu0 %v717
    %1025 = vmatprep.subr.bf16.mxu0 %v720
    %1026 = vmatpush1.bf16.msra.mxu0 %v719
    %1027 = vmatprep.subr.bf16.mxu0 %v722
    %1028 = vmatpush1.bf16.msra.mxu0 %v721
    %1029 = vmatprep.subr.bf16.mxu0 %v724
    %1030 = vmatpush1.bf16.msra.mxu0 %v723
    %1031 = vmatprep.subr.bf16.mxu0 %v726
    %1032 = vmatpush1.bf16.msra.mxu0 %v725
    %1033 = vmatprep.subr.bf16.mxu0 %v728
    %1034 = vmatpush1.bf16.msra.mxu0 %v727
    %1035 = vmatprep.subr.bf16.mxu0 %v730
    %1036 = vmatpush1.bf16.msra.mxu0 %v729
    %1037 = vmatprep.subr.bf16.mxu0 %v732
    %1038 = vmatpush1.bf16.msra.mxu0 %v731
    %1039 = vmatprep.subr.bf16.mxu0 %v734
    %1040 = vmatpush1.bf16.msra.mxu0 %v733
    %1041 = vmatprep.subr.bf16.mxu0 %v736
    %1042 = vmatpush1.bf16.msra.mxu0 %v735
    %1043 = vmatprep.mubr.bf16.mxu0 %v196
    %1044 = vmatmul.mubr.bf16.gmra.mrb[0].mxu0 %v195
    %v1045 = vpop.f32.mrb[0].mxu0
    %v1046 = vadd.f32 %v1005, %v1045
    %v1047 = vpop.f32.mrb[0].mxu0
    %v1048 = vadd.f32 %v1007, %v1047
    %v1049 = vpop.f32.mrb[0].mxu0
    %v1050 = vpop.f32.mrb[0].mxu0
    %1051 = vdwg.mxu0
    %1052 = vmatprep.subr.bf16.mxu0 %v738
    %1053 = vmatpush1.bf16.msra.mxu0 %v737
    %1054 = vmatprep.subr.bf16.mxu0 %v740
    %1055 = vmatpush1.bf16.msra.mxu0 %v739
    %1056 = vmatprep.subr.bf16.mxu0 %v742
    %1057 = vmatpush1.bf16.msra.mxu0 %v741
    %1058 = vmatprep.subr.bf16.mxu0 %v744
    %1059 = vmatpush1.bf16.msra.mxu0 %v743
    %1060 = vmatprep.subr.bf16.mxu0 %v746
    %1061 = vmatpush1.bf16.msra.mxu0 %v745
    %1062 = vmatprep.subr.bf16.mxu0 %v748
    %1063 = vmatpush1.bf16.msra.mxu0 %v747
    %1064 = vmatprep.subr.bf16.mxu0 %v750
    %1065 = vmatpush1.bf16.msra.mxu0 %v749
    %1066 = vmatprep.subr.bf16.mxu0 %v752
    %1067 = vmatpush1.bf16.msra.mxu0 %v751
    %1068 = vmatprep.subr.bf16.mxu0 %v754
    %1069 = vmatpush1.bf16.msra.mxu0 %v753
    %1070 = vmatprep.subr.bf16.mxu0 %v756
    %1071 = vmatpush1.bf16.msra.mxu0 %v755
    %1072 = vmatprep.subr.bf16.mxu0 %v758
    %1073 = vmatpush1.bf16.msra.mxu0 %v757
    %1074 = vmatprep.subr.bf16.mxu0 %v760
    %1075 = vmatpush1.bf16.msra.mxu0 %v759
    %1076 = vmatprep.subr.bf16.mxu0 %v762
    %1077 = vmatpush1.bf16.msra.mxu0 %v761
    %1078 = vmatprep.subr.bf16.mxu0 %v764
    %1079 = vmatpush1.bf16.msra.mxu0 %v763
    %1080 = vmatprep.subr.bf16.mxu0 %v766
    %1081 = vmatpush1.bf16.msra.mxu0 %v765
    %1082 = vmatprep.subr.bf16.mxu0 %v768
    %1083 = vmatpush1.bf16.msra.mxu0 %v767
    %1084 = vmatprep.mubr.bf16.mxu0 %v198
    %1085 = vmatmul.mubr.bf16.gmra.mrb[0].mxu0 %v197
    %v1086 = vpop.f32.mrb[0].mxu0
    %v1087 = vadd.f32 %v1046, %v1086
    %v1088 = vpop.f32.mrb[0].mxu0
    %v1089 = vadd.f32 %v1048, %v1088
    %v1090 = vpop.f32.mrb[0].mxu0
    %v1091 = vpop.f32.mrb[0].mxu0
    %1092 = vdwg.mxu0
    %1093 = vmatprep.subr.bf16.mxu0 %v770
    %1094 = vmatpush1.bf16.msra.mxu0 %v769
    %1095 = vmatprep.subr.bf16.mxu0 %v772
    %1096 = vmatpush1.bf16.msra.mxu0 %v771
    %1097 = vmatprep.subr.bf16.mxu0 %v774
    %1098 = vmatpush1.bf16.msra.mxu0 %v773
    %1099 = vmatprep.subr.bf16.mxu0 %v776
    %1100 = vmatpush1.bf16.msra.mxu0 %v775
    %1101 = vmatprep.subr.bf16.mxu0 %v778
    %1102 = vmatpush1.bf16.msra.mxu0 %v777
    %1103 = vmatprep.subr.bf16.mxu0 %v780
    %1104 = vmatpush1.bf16.msra.mxu0 %v779
    %1105 = vmatprep.subr.bf16.mxu0 %v782
    %1106 = vmatpush1.bf16.msra.mxu0 %v781
    %1107 = vmatprep.subr.bf16.mxu0 %v784
    %1108 = vmatpush1.bf16.msra.mxu0 %v783
    %1109 = vmatprep.subr.bf16.mxu0 0
    %1110 = vmatpush1.bf16.msra.mxu0 0
    %1111 = vmatprep.subr.bf16.mxu0 0
    %1112 = vmatpush1.bf16.msra.mxu0 0
    %1113 = vmatprep.subr.bf16.mxu0 0
    %1114 = vmatpush1.bf16.msra.mxu0 0
    %1115 = vmatprep.subr.bf16.mxu0 0
    %1116 = vmatpush1.bf16.msra.mxu0 0
    %1117 = vmatprep.subr.bf16.mxu0 0
    %1118 = vmatpush1.bf16.msra.mxu0 0
    %1119 = vmatprep.subr.bf16.mxu0 0
    %1120 = vmatpush1.bf16.msra.mxu0 0
    %1121 = vmatprep.subr.bf16.mxu0 0
    %1122 = vmatpush1.bf16.msra.mxu0 0
    %1123 = vmatprep.subr.bf16.mxu0 0
    %1124 = vmatpush1.bf16.msra.mxu0 0
    %1125 = vmatprep.mubr.bf16.mxu0 0
    %1126 = vmatmul.mubr.bf16.gmra.mrb[0].mxu0 %v199
    %v1127 = vpop.f32.mrb[0].mxu0
    %v1128 = vadd.f32 %v1087, %v1127
    %v1129 = vpop.f32.mrb[0].mxu0
    %v1130 = vadd.f32 %v1089, %v1129
    %v1131 = vpop.f32.mrb[0].mxu0
    %v1132 = vpop.f32.mrb[0].mxu0
    %1133 = vdwg.mxu0
    %1134 = vst [vmem:[%s2] sm:$0xff] %v1128
    %1135 = vst [vmem:[%s2 + $0x8] sm:$0xff] %v1130
    %v1136 = vrot.slane %v1128, 4
    %v1137 = vadd.f32 %v1128, %v1136
    %v1138 = vrot.slane %v1137, 2
    %v1139 = vadd.f32 %v1137, %v1138
    %v1140 = vrot.slane %v1139, 1
    %v1141 = vadd.f32 %v1139, %v1140
    %v1142 = vrot.slane %v1130, 4
    %v1143 = vadd.f32 %v1130, %v1142
    %v1144 = vrot.slane %v1143, 2
    %v1145 = vadd.f32 %v1143, %v1144
    %v1146 = vrot.slane %v1145, 1
    %v1147 = vadd.f32 %v1145, %v1146
    %v1148 = vmul.f32 %v1128, %v1128
    %v1149 = vmul.f32 %v1130, %v1130
    %v1150 = vrot.slane %v1148, 4
    %v1151 = vadd.f32 %v1148, %v1150
    %v1152 = vrot.slane %v1151, 2
    %v1153 = vadd.f32 %v1151, %v1152
    %v1154 = vrot.slane %v1153, 1
    %v1155 = vadd.f32 %v1153, %v1154
    %v1156 = vrot.slane %v1149, 4
    %v1157 = vadd.f32 %v1149, %v1156
    %v1158 = vrot.slane %v1157, 2
    %v1159 = vadd.f32 %v1157, %v1158
    %v1160 = vrot.slane %v1159, 1
    %v1161 = vadd.f32 %v1159, %v1160
    %vm1162 = vcmask 1040384
    %v1163 = vsel %vm1162, %v1141, %v1155
    %v1164 = vsel %vm1162, %v1147, %v1161
    %v1167 = vcombine.low %v1163, %v1164
    %v1169 = vunpack.c.l.s4 1983009808
    %v1170 = vunpack.c.0.s8 %v1169
    %v1171 = vlaneseq
    %v1172 = vshrl.u32 %v1171, 7
    %v1173 = vsub.s32 %v1170, %v1172
    %v1174 = vrot.slane %v1167, %v1173
    %1176 = vst [vmem:[%s3] sm:$0xf] %v1174
    // Predicated region
    $region14: #{transition_pruner_forward.17} parent=1 // pred_check
      _
    $region15: #{transition_pruner_forward.17} parent=1 // pred_check_branch
      %1178 = sbr.rel (0) target = $region17
    $region16: #{transition_pruner_forward.17} parent=1 // pred_region
      _
    $region17: #{transition_pruner_forward.17} parent=1 // pred_fallthru
      _
    // Predicated region
    $region18: #{transition_pruner_forward.17} parent=1 // pred_check
      _
    $region19: #{transition_pruner_forward.17} parent=1 // pred_check_branch
      %1180 = sbr.rel (0) target = $region21
    $region20: #{transition_pruner_forward.17} parent=1 // pred_region
      _
    $region21: #{transition_pruner_forward.17} parent=1 // pred_fallthru
      _
    // Predicated region
    $region22: #{transition_pruner_forward.17} parent=1 // pred_check
      _
    $region23: #{transition_pruner_forward.17} parent=1 // pred_check_branch
      %1182 = sbr.rel (0) target = $region25
    $region24: #{transition_pruner_forward.17} parent=1 // pred_region
      _
    $region25: #{transition_pruner_forward.17} parent=1 // pred_fallthru
      _
    // Predicated region
    $region26: #{transition_pruner_forward.17} parent=1 // pred_check
      _
    $region27: #{transition_pruner_forward.17} parent=1 // pred_check_branch
      %1184 = sbr.rel (0) target = $region29
    $region28: #{transition_pruner_forward.17} parent=1 // pred_region
      _
    $region29: #{transition_pruner_forward.17} parent=1 // pred_fallthru
      _
    %1185 = vsyncpa [#allocation3], 1

// kernel: transition_pruner_forward.21
$region0: #{transition_pruner_forward.21}
  #allocation0 [shape = 'u32[]', space=smem, size = 0x4, offset = 0x4, fixed_abs, tag = 'smem constant byte address 0x4 - core index']
  #allocation1 [shape = 'u32[144,128]{1,0:T(1,128)}', space=vmem, size = 0x12000, scoped, tag = 'internal scratch']
  %s0 = inlined_call_operand.vmem [shape: bf16[4,8,2048], index: 0, kind: input, shape index: {}]
  %s1 = inlined_call_operand.vmem [shape: bf16[4,2048,256], index: 1, kind: input, shape index: {}]
  %s2 = inlined_call_operand.vmem [shape: f32[4,1,256], index: 2, kind: input, shape index: {}]
  %s3 = inlined_call_operand.vmem [shape: f32[4,8,256], index: 3, kind: output, shape index: {}]
  %s4 = sld [smem:[#allocation0]]
  $region45: #{transition_pruner_forward.21} parent=0
    _
  %s6 = ssub.s32 1, %s4
  %s7 = scalar_select 0, %s6, %s4
  loop: start=0, step=1, limit=6
  $region2: #{transition_pruner_forward.21} parent=0 // loop_pre_header
    _
  $region3: #{transition_pruner_forward.21} parent=0 // loop_header
    %s9 = sphi 0, %s13
    %p10 = scmp.ge.s32.totalorder %s9, 6
    %s16 = sphi 0, %s28
    %s17 = sphi 0, %s24
    %s18 = sphi 0, %s16
    %s19 = sphi 0, %s17
    %s20 = sphi 0, %s18
    %s21 = sphi 0, %s19
    %s33 = sphi 0, %s35
    %s36 = sphi 0, %s33
    %s37 = sphi 0, %s36
    %s53 = sphi 0, %s37
    %s59 = sphi 0, %s61
    %s62 = sphi 0, %s59
    %s63 = sphi 0, %s62
    %s79 = sphi 0, %s63
    %s85 = sphi 0, %s87
    %s88 = sphi 0, %s85
    %s89 = sphi 0, %s88
    %s105 = sphi 0, %s89
    %s113 = sphi 0, %s115
    %s116 = sphi 0, %s113
    %s117 = sphi 0, %s116
    %s133 = sphi 0, %s117
  $region4: #{transition_pruner_forward.21} parent=0 // loop_header_branch
    %12 = sbr.rel (%p10) target = $region8
  $region5: #{transition_pruner_forward.21} parent=0 // loop_body
    %s14 = ssub.s32 %s9, 1
    %s15 = ssub.s32 %s9, 2
    %s22 = sadd.s32 1, %s17
    %p23 = scmp.ge.s32.totalorder %s22, 1
    %s24 = scalar_select %p23, 0, %s22
    %s25 = sadd.s32 1, %s16
    %s26 = scalar_select %p23, %s25, %s16
    %p27 = scmp.ge.s32.totalorder %s26, 4
    %s28 = scalar_select %p27, 0, %s26
    %s29 = ssub.s32 %s16, %s28
    %s30 = ssub.s32 %s17, %s24
    %s31 = sor.u32 %s29, %s30
    %p32 = scmp.eq.s32.totalorder %s31, 0
    %s34 = sadd.s32 %s33, 1
    %s35 = scalar_select %p32, %s33, %s34
    %p38 = pneg %p32
    %p39 = scmp.eq.s32.totalorder %s9, 3
    %p40 = por %p38, %p39
    %p41 = scmp.ne.s32.totalorder %s33, %s36
    %p42 = scmp.eq.s32.totalorder %s9, 0
    %p43 = por %p41, %p42
    %p44 = scmp.ne.s32.totalorder %s33, %s36
    %p45 = scmp.eq.s32.totalorder %s14, 3
    %p46 = por %p44, %p45
    %p47 = scmp.ne.s32.totalorder %s36, %s37
    %p48 = scmp.eq.s32.totalorder %s14, 0
    %p49 = por %p47, %p48
    %p50 = scmp.ne.s32.totalorder %s36, %s37
    %p51 = scmp.eq.s32.totalorder %s15, 3
    %p52 = por %p50, %p51
    %p54 = scmp.ne.s32.totalorder %s37, %s53
    %p55 = scmp.eq.s32.totalorder %s15, 0
    %p56 = por %p54, %p55
    %s57 = ssub.s32 %s16, %s28
    %p58 = scmp.eq.s32.totalorder %s57, 0
    %s60 = sadd.s32 %s59, 1
    %s61 = scalar_select %p58, %s59, %s60
    %p64 = pneg %p58
    %p65 = scmp.eq.s32.totalorder %s9, 3
    %p66 = por %p64, %p65
    %p67 = scmp.ne.s32.totalorder %s59, %s62
    %p68 = scmp.eq.s32.totalorder %s9, 0
    %p69 = por %p67, %p68
    %p70 = scmp.ne.s32.totalorder %s59, %s62
    %p71 = scmp.eq.s32.totalorder %s14, 3
    %p72 = por %p70, %p71
    %p73 = scmp.ne.s32.totalorder %s62, %s63
    %p74 = scmp.eq.s32.totalorder %s14, 0
    %p75 = por %p73, %p74
    %p76 = scmp.ne.s32.totalorder %s62, %s63
    %p77 = scmp.eq.s32.totalorder %s15, 3
    %p78 = por %p76, %p77
    %p80 = scmp.ne.s32.totalorder %s63, %s79
    %p81 = scmp.eq.s32.totalorder %s15, 0
    %p82 = por %p80, %p81
    %s83 = ssub.s32 %s16, %s28
    %p84 = scmp.eq.s32.totalorder %s83, 0
    %s86 = sadd.s32 %s85, 1
    %s87 = scalar_select %p84, %s85, %s86
    %p90 = pneg %p84
    %p91 = scmp.eq.s32.totalorder %s9, 3
    %p92 = por %p90, %p91
    %p93 = scmp.ne.s32.totalorder %s85, %s88
    %p94 = scmp.eq.s32.totalorder %s9, 0
    %p95 = por %p93, %p94
    %p96 = scmp.ne.s32.totalorder %s85, %s88
    %p97 = scmp.eq.s32.totalorder %s14, 3
    %p98 = por %p96, %p97
    %p99 = scmp.ne.s32.totalorder %s88, %s89
    %p100 = scmp.eq.s32.totalorder %s14, 0
    %p101 = por %p99, %p100
    %p102 = scmp.ne.s32.totalorder %s88, %s89
    %p103 = scmp.eq.s32.totalorder %s15, 3
    %p104 = por %p102, %p103
    %p106 = scmp.ne.s32.totalorder %s89, %s105
    %p107 = scmp.eq.s32.totalorder %s15, 0
    %p108 = por %p106, %p107
    %s109 = ssub.s32 %s16, %s28
    %s110 = ssub.s32 %s17, %s24
    %s111 = sor.u32 %s109, %s110
    %p112 = scmp.eq.s32.totalorder %s111, 0
    %s114 = sadd.s32 %s113, 1
    %s115 = scalar_select %p112, %s113, %s114
    %p118 = pneg %p112
    %p119 = scmp.eq.s32.totalorder %s9, 3
    %p120 = por %p118, %p119
    %p121 = scmp.ne.s32.totalorder %s113, %s116
    %p122 = scmp.eq.s32.totalorder %s9, 0
    %p123 = por %p121, %p122
    %p124 = scmp.ne.s32.totalorder %s113, %s116
    %p125 = scmp.eq.s32.totalorder %s14, 3
    %p126 = por %p124, %p125
    %p127 = scmp.ne.s32.totalorder %s116, %s117
    %p128 = scmp.eq.s32.totalorder %s14, 0
    %p129 = por %p127, %p128
    %p130 = scmp.ne.s32.totalorder %s116, %s117
    %p131 = scmp.eq.s32.totalorder %s15, 3
    %p132 = por %p130, %p131
    %p134 = scmp.ne.s32.totalorder %s117, %s133
    %p135 = scmp.eq.s32.totalorder %s15, 0
    %p136 = por %p134, %p135
    %p137 = scmp.le.s32.totalorder 1, %s9
    %p138 = scmp.lt.s32.totalorder %s9, 5
    %p139 = pnand %p137, %p138
    %p140 = pneg %p139
    // Predicated region
    $region9: #{transition_pruner_forward.21} parent=5 // pred_check
      _
    $region10: #{transition_pruner_forward.21} parent=5 // pred_check_branch
      %142 = sbr.rel (%p139) target = $region12
    $region11: #{transition_pruner_forward.21} parent=5 // pred_region
      %s143 = ssub.s32 %s9, 1
    $region12: #{transition_pruner_forward.21} parent=5 // pred_fallthru
      _
    %p144 = scmp.lt.s32.totalorder %s9, 4
    // Predicated region
    $region13: #{transition_pruner_forward.21} parent=5 // pred_check
      %p145 = pneg %p144
    $region14: #{transition_pruner_forward.21} parent=5 // pred_check_branch
      %147 = sbr.rel (%p145) target = $region16
    $region15: #{transition_pruner_forward.21} parent=5 // pred_region
      // Predicated region
      $region17: #{transition_pruner_forward.21} parent=15 // pred_check
        %p148 = pneg %p43
      $region18: #{transition_pruner_forward.21} parent=15 // pred_check_branch
        %150 = sbr.rel (%p148) target = $region20
      $region19: #{transition_pruner_forward.21} parent=15 // pred_region
        %p151 = scmp.lt.s32.totalorder %s16, 3
        %s152 = scalar_select %p151, %s16, 3
        %p153 = scmp.lt.s32.totalorder %s17, 0
        %s154 = scalar_select %p153, %s17, 0
        %s155 = smul.addr %s154, 16
        %s156 = smul.addr %s152, 16
        %s157 = sadd.s32 %s155, %s156
        %s158 = smul.addr %s157, 4
        %s159 = scalar_lea.vmem %s0, %s158
      $region20: #{transition_pruner_forward.21} parent=15 // pred_fallthru
        _
      // Predicated region
      $region21: #{transition_pruner_forward.21} parent=15 // pred_check
        %p160 = pneg %p69
      $region22: #{transition_pruner_forward.21} parent=15 // pred_check_branch
        %162 = sbr.rel (%p160) target = $region24
      $region23: #{transition_pruner_forward.21} parent=15 // pred_region
        %p163 = scmp.lt.s32.totalorder %s16, 3
        %s164 = scalar_select %p163, %s16, 3
        %s165 = smul.addr %s164, 512
        %s166 = smul.addr %s165, 4
        %s167 = scalar_lea.vmem %s1, %s166
      $region24: #{transition_pruner_forward.21} parent=15 // pred_fallthru
        _
      // Predicated region
      $region25: #{transition_pruner_forward.21} parent=15 // pred_check
        %p168 = pneg %p95
      $region26: #{transition_pruner_forward.21} parent=15 // pred_check_branch
        %170 = sbr.rel (%p168) target = $region28
      $region27: #{transition_pruner_forward.21} parent=15 // pred_region
        %p171 = scmp.lt.s32.totalorder %s16, 3
        %s172 = scalar_select %p171, %s16, 3
        %s173 = smul.addr %s172, 2
        %s174 = scalar_lea.vmem %s2, %s173
      $region28: #{transition_pruner_forward.21} parent=15 // pred_fallthru
        _
    $region16: #{transition_pruner_forward.21} parent=5 // pred_fallthru
      _
    %p175 = scmp.le.s32.totalorder 1, %s9
    %p176 = scmp.lt.s32.totalorder %s9, 5
    %p177 = pnand %p175, %p176
    %p178 = pneg %p177
    // Predicated region
    $region29: #{transition_pruner_forward.21} parent=5 // pred_check
      _
    $region30: #{transition_pruner_forward.21} parent=5 // pred_check_branch
      %180 = sbr.rel (%p177) target = $region32
    $region31: #{transition_pruner_forward.21} parent=5 // pred_region
      %s181 = ssub.s32 %s9, 1
      %p182 = scmp.lt.s32.totalorder %s18, 3
      %s183 = scalar_select %p182, %s18, 3
      %p184 = scmp.lt.s32.totalorder %s19, 0
      %s185 = scalar_select %p184, %s19, 0
      %s186 = smul.addr %s185, 16
      %s187 = smul.addr %s183, 16
      %s188 = sadd.s32 %s186, %s187
      %s189 = smul.addr %s188, 4
      %s190 = scalar_lea.vmem %s0, %s189
      %p191 = pneg %p49
      %p192 = pneg %p46
      %p193 = scmp.lt.s32.totalorder %s18, 3
      %s194 = scalar_select %p193, %s18, 3
      %s195 = smul.addr %s194, 512
      %s196 = smul.addr %s195, 4
      %s197 = scalar_lea.vmem %s1, %s196
      %p198 = pneg %p75
      %p199 = pneg %p72
      %p200 = scmp.lt.s32.totalorder %s18, 3
      %s201 = scalar_select %p200, %s18, 3
      %s202 = smul.addr %s201, 2
      %s203 = scalar_lea.vmem %s2, %s202
      %p204 = pneg %p101
      %p205 = pneg %p98
      %p206 = pneg %p129
      %p207 = pneg %p126
      %p208 = scmp.lt.s32.totalorder %s18, 3
      %s209 = scalar_select %p208, %s18, 3
      %p210 = scmp.lt.s32.totalorder %s19, 0
      %s211 = scalar_select %p210, %s19, 0
      %s212 = smul.addr %s211, 2
      %s213 = smul.addr %s209, 2
      %s214 = sadd.s32 %s212, %s213
      %s215 = smul.addr %s214, 8
      %s216 = scalar_lea.vmem %s3, %s215
      %p217 = scmp.lt.s32.totalorder %s18, 3
      %s218 = scalar_select %p217, %s18, 3
      %p219 = scmp.lt.s32.totalorder %s19, 0
      %s220 = scalar_select %p219, %s19, 0
      %s221 = smul.addr %s220, 16
      %s222 = smul.addr %s218, 16
      %s223 = sadd.s32 %s221, %s222
      %s224 = smul.addr %s223, 4
      %s225 = scalar_lea.vmem %s0, %s224
      %p226 = scmp.lt.s32.totalorder %s18, 3
      %s227 = scalar_select %p226, %s18, 3
      %s228 = smul.addr %s227, 512
      %s229 = smul.addr %s228, 4
      %s230 = scalar_lea.vmem %s1, %s229
      %p231 = scmp.lt.s32.totalorder %s18, 3
      %s232 = scalar_select %p231, %s18, 3
      %s233 = smul.addr %s232, 2
      %s234 = scalar_lea.vmem %s2, %s233
      %p235 = scmp.lt.s32.totalorder %s18, 3
      %s236 = scalar_select %p235, %s18, 3
      %p237 = scmp.lt.s32.totalorder %s19, 0
      %s238 = scalar_select %p237, %s19, 0
      %s239 = smul.addr %s238, 2
      %s240 = smul.addr %s236, 2
      %s241 = sadd.s32 %s239, %s240
      %s242 = smul.addr %s241, 8
      %s243 = scalar_lea.vmem %s3, %s242
      %v244 = vld [vmem:[%s225] sm:$0xff]
      %v245 = vld [vmem:[%s225 + $0x8] sm:$0xff]
      %v246 = vld [vmem:[%s225 + $0x10] sm:$0xff]
      %v247 = vld [vmem:[%s225 + $0x18] sm:$0xff]
      %v248 = vld [vmem:[%s225 + $0x20] sm:$0xff]
      %v249 = vld [vmem:[%s225 + $0x28] sm:$0xff]
      %v250 = vld [vmem:[%s225 + $0x30] sm:$0xff]
      %v251 = vld [vmem:[%s225 + $0x38] sm:$0xff]
      %v252 = vld [vmem:[%s230] sm:$0xff]
      %v253 = vld [vmem:[%s230 + $0x8] sm:$0xff]
      %v254 = vld [vmem:[%s230 + $0x10] sm:$0xff]
      %v255 = vld [vmem:[%s230 + $0x18] sm:$0xff]
      %v256 = vld [vmem:[%s230 + $0x20] sm:$0xff]
      %v257 = vld [vmem:[%s230 + $0x28] sm:$0xff]
      %v258 = vld [vmem:[%s230 + $0x30] sm:$0xff]
      %v259 = vld [vmem:[%s230 + $0x38] sm:$0xff]
      %v260 = vld [vmem:[%s230 + $0x40] sm:$0xff]
      %v261 = vld [vmem:[%s230 + $0x48] sm:$0xff]
      %v262 = vld [vmem:[%s230 + $0x50] sm:$0xff]
      %v263 = vld [vmem:[%s230 + $0x58] sm:$0xff]
      %v264 = vld [vmem:[%s230 + $0x60] sm:$0xff]
      %v265 = vld [vmem:[%s230 + $0x68] sm:$0xff]
      %v266 = vld [vmem:[%s230 + $0x70] sm:$0xff]
      %v267 = vld [vmem:[%s230 + $0x78] sm:$0xff]
      %v268 = vld [vmem:[%s230 + $0x80] sm:$0xff]
      %v269 = vld [vmem:[%s230 + $0x88] sm:$0xff]
      %v270 = vld [vmem:[%s230 + $0x90] sm:$0xff]
      %v271 = vld [vmem:[%s230 + $0x98] sm:$0xff]
      %v272 = vld [vmem:[%s230 + $0xa0] sm:$0xff]
      %v273 = vld [vmem:[%s230 + $0xa8] sm:$0xff]
      %v274 = vld [vmem:[%s230 + $0xb0] sm:$0xff]
      %v275 = vld [vmem:[%s230 + $0xb8] sm:$0xff]
      %v276 = vld [vmem:[%s230 + $0xc0] sm:$0xff]
      %v277 = vld [vmem:[%s230 + $0xc8] sm:$0xff]
      %v278 = vld [vmem:[%s230 + $0xd0] sm:$0xff]
      %v279 = vld [vmem:[%s230 + $0xd8] sm:$0xff]
      %v280 = vld [vmem:[%s230 + $0xe0] sm:$0xff]
      %v281 = vld [vmem:[%s230 + $0xe8] sm:$0xff]
      %v282 = vld [vmem:[%s230 + $0xf0] sm:$0xff]
      %v283 = vld [vmem:[%s230 + $0xf8] sm:$0xff]
      %v284 = vld [vmem:[%s230 + $0x100] sm:$0xff]
      %v285 = vld [vmem:[%s230 + $0x108] sm:$0xff]
      %v286 = vld [vmem:[%s230 + $0x110] sm:$0xff]
      %v287 = vld [vmem:[%s230 + $0x118] sm:$0xff]
      %v288 = vld [vmem:[%s230 + $0x120] sm:$0xff]
      %v289 = vld [vmem:[%s230 + $0x128] sm:$0xff]
      %v290 = vld [vmem:[%s230 + $0x130] sm:$0xff]
      %v291 = vld [vmem:[%s230 + $0x138] sm:$0xff]
      %v292 = vld [vmem:[%s230 + $0x140] sm:$0xff]
      %v293 = vld [vmem:[%s230 + $0x148] sm:$0xff]
      %v294 = vld [vmem:[%s230 + $0x150] sm:$0xff]
      %v295 = vld [vmem:[%s230 + $0x158] sm:$0xff]
      %v296 = vld [vmem:[%s230 + $0x160] sm:$0xff]
      %v297 = vld [vmem:[%s230 + $0x168] sm:$0xff]
      %v298 = vld [vmem:[%s230 + $0x170] sm:$0xff]
      %v299 = vld [vmem:[%s230 + $0x178] sm:$0xff]
      %v300 = vld [vmem:[%s230 + $0x180] sm:$0xff]
      %v301 = vld [vmem:[%s230 + $0x188] sm:$0xff]
      %v302 = vld [vmem:[%s230 + $0x190] sm:$0xff]
      %v303 = vld [vmem:[%s230 + $0x198] sm:$0xff]
      %v304 = vld [vmem:[%s230 + $0x1a0] sm:$0xff]
      %v305 = vld [vmem:[%s230 + $0x1a8] sm:$0xff]
      %v306 = vld [vmem:[%s230 + $0x1b0] sm:$0xff]
      %v307 = vld [vmem:[%s230 + $0x1b8] sm:$0xff]
      %v308 = vld [vmem:[%s230 + $0x1c0] sm:$0xff]
      %v309 = vld [vmem:[%s230 + $0x1c8] sm:$0xff]
      %v310 = vld [vmem:[%s230 + $0x1d0] sm:$0xff]
      %v311 = vld [vmem:[%s230 + $0x1d8] sm:$0xff]
      %v312 = vld [vmem:[%s230 + $0x1e0] sm:$0xff]
      %v313 = vld [vmem:[%s230 + $0x1e8] sm:$0xff]
      %v314 = vld [vmem:[%s230 + $0x1f0] sm:$0xff]
      %v315 = vld [vmem:[%s230 + $0x1f8] sm:$0xff]
      %v316 = vld [vmem:[%s230 + $0x200] sm:$0xff]
      %v317 = vld [vmem:[%s230 + $0x208] sm:$0xff]
      %v318 = vld [vmem:[%s230 + $0x210] sm:$0xff]
      %v319 = vld [vmem:[%s230 + $0x218] sm:$0xff]
      %v320 = vld [vmem:[%s230 + $0x220] sm:$0xff]
      %v321 = vld [vmem:[%s230 + $0x228] sm:$0xff]
      %v322 = vld [vmem:[%s230 + $0x230] sm:$0xff]
      %v323 = vld [vmem:[%s230 + $0x238] sm:$0xff]
      %v324 = vld [vmem:[%s230 + $0x240] sm:$0xff]
      %v325 = vld [vmem:[%s230 + $0x248] sm:$0xff]
      %v326 = vld [vmem:[%s230 + $0x250] sm:$0xff]
      %v327 = vld [vmem:[%s230 + $0x258] sm:$0xff]
      %v328 = vld [vmem:[%s230 + $0x260] sm:$0xff]
      %v329 = vld [vmem:[%s230 + $0x268] sm:$0xff]
      %v330 = vld [vmem:[%s230 + $0x270] sm:$0xff]
      %v331 = vld [vmem:[%s230 + $0x278] sm:$0xff]
      %v332 = vld [vmem:[%s230 + $0x280] sm:$0xff]
      %v333 = vld [vmem:[%s230 + $0x288] sm:$0xff]
      %v334 = vld [vmem:[%s230 + $0x290] sm:$0xff]
      %v335 = vld [vmem:[%s230 + $0x298] sm:$0xff]
      %v336 = vld [vmem:[%s230 + $0x2a0] sm:$0xff]
      %v337 = vld [vmem:[%s230 + $0x2a8] sm:$0xff]
      %v338 = vld [vmem:[%s230 + $0x2b0] sm:$0xff]
      %v339 = vld [vmem:[%s230 + $0x2b8] sm:$0xff]
      %v340 = vld [vmem:[%s230 + $0x2c0] sm:$0xff]
      %v341 = vld [vmem:[%s230 + $0x2c8] sm:$0xff]
      %v342 = vld [vmem:[%s230 + $0x2d0] sm:$0xff]
      %v343 = vld [vmem:[%s230 + $0x2d8] sm:$0xff]
      %v344 = vld [vmem:[%s230 + $0x2e0] sm:$0xff]
      %v345 = vld [vmem:[%s230 + $0x2e8] sm:$0xff]
      %v346 = vld [vmem:[%s230 + $0x2f0] sm:$0xff]
      %v347 = vld [vmem:[%s230 + $0x2f8] sm:$0xff]
      %v348 = vld [vmem:[%s230 + $0x300] sm:$0xff]
      %v349 = vld [vmem:[%s230 + $0x308] sm:$0xff]
      %v350 = vld [vmem:[%s230 + $0x310] sm:$0xff]
      %v351 = vld [vmem:[%s230 + $0x318] sm:$0xff]
      %v352 = vld [vmem:[%s230 + $0x320] sm:$0xff]
      %v353 = vld [vmem:[%s230 + $0x328] sm:$0xff]
      %v354 = vld [vmem:[%s230 + $0x330] sm:$0xff]
      %v355 = vld [vmem:[%s230 + $0x338] sm:$0xff]
      %v356 = vld [vmem:[%s230 + $0x340] sm:$0xff]
      %v357 = vld [vmem:[%s230 + $0x348] sm:$0xff]
      %v358 = vld [vmem:[%s230 + $0x350] sm:$0xff]
      %v359 = vld [vmem:[%s230 + $0x358] sm:$0xff]
      %v360 = vld [vmem:[%s230 + $0x360] sm:$0xff]
      %v361 = vld [vmem:[%s230 + $0x368] sm:$0xff]
      %v362 = vld [vmem:[%s230 + $0x370] sm:$0xff]
      %v363 = vld [vmem:[%s230 + $0x378] sm:$0xff]
      %v364 = vld [vmem:[%s230 + $0x380] sm:$0xff]
      %v365 = vld [vmem:[%s230 + $0x388] sm:$0xff]
      %v366 = vld [vmem:[%s230 + $0x390] sm:$0xff]
      %v367 = vld [vmem:[%s230 + $0x398] sm:$0xff]
      %v368 = vld [vmem:[%s230 + $0x3a0] sm:$0xff]
      %v369 = vld [vmem:[%s230 + $0x3a8] sm:$0xff]
      %v370 = vld [vmem:[%s230 + $0x3b0] sm:$0xff]
      %v371 = vld [vmem:[%s230 + $0x3b8] sm:$0xff]
      %v372 = vld [vmem:[%s230 + $0x3c0] sm:$0xff]
      %v373 = vld [vmem:[%s230 + $0x3c8] sm:$0xff]
      %v374 = vld [vmem:[%s230 + $0x3d0] sm:$0xff]
      %v375 = vld [vmem:[%s230 + $0x3d8] sm:$0xff]
      %v376 = vld [vmem:[%s230 + $0x3e0] sm:$0xff]
      %v377 = vld [vmem:[%s230 + $0x3e8] sm:$0xff]
      %v378 = vld [vmem:[%s230 + $0x3f0] sm:$0xff]
      %v379 = vld [vmem:[%s230 + $0x3f8] sm:$0xff]
      %v380 = vld [vmem:[%s230 + $0x400] sm:$0xff]
      %v381 = vld [vmem:[%s230 + $0x408] sm:$0xff]
      %v382 = vld [vmem:[%s230 + $0x410] sm:$0xff]
      %v383 = vld [vmem:[%s230 + $0x418] sm:$0xff]
      %v384 = vld [vmem:[%s230 + $0x420] sm:$0xff]
      %v385 = vld [vmem:[%s230 + $0x428] sm:$0xff]
      %v386 = vld [vmem:[%s230 + $0x430] sm:$0xff]
      %v387 = vld [vmem:[%s230 + $0x438] sm:$0xff]
      %v388 = vld [vmem:[%s230 + $0x440] sm:$0xff]
      %v389 = vld [vmem:[%s230 + $0x448] sm:$0xff]
      %v390 = vld [vmem:[%s230 + $0x450] sm:$0xff]
      %v391 = vld [vmem:[%s230 + $0x458] sm:$0xff]
      %v392 = vld [vmem:[%s230 + $0x460] sm:$0xff]
      %v393 = vld [vmem:[%s230 + $0x468] sm:$0xff]
      %v394 = vld [vmem:[%s230 + $0x470] sm:$0xff]
      %v395 = vld [vmem:[%s230 + $0x478] sm:$0xff]
      %v396 = vld [vmem:[%s230 + $0x480] sm:$0xff]
      %v397 = vld [vmem:[%s230 + $0x488] sm:$0xff]
      %v398 = vld [vmem:[%s230 + $0x490] sm:$0xff]
      %v399 = vld [vmem:[%s230 + $0x498] sm:$0xff]
      %v400 = vld [vmem:[%s230 + $0x4a0] sm:$0xff]
      %v401 = vld [vmem:[%s230 + $0x4a8] sm:$0xff]
      %v402 = vld [vmem:[%s230 + $0x4b0] sm:$0xff]
      %v403 = vld [vmem:[%s230 + $0x4b8] sm:$0xff]
      %v404 = vld [vmem:[%s230 + $0x4c0] sm:$0xff]
      %v405 = vld [vmem:[%s230 + $0x4c8] sm:$0xff]
      %v406 = vld [vmem:[%s230 + $0x4d0] sm:$0xff]
      %v407 = vld [vmem:[%s230 + $0x4d8] sm:$0xff]
      %v408 = vld [vmem:[%s230 + $0x4e0] sm:$0xff]
      %v409 = vld [vmem:[%s230 + $0x4e8] sm:$0xff]
      %v410 = vld [vmem:[%s230 + $0x4f0] sm:$0xff]
      %v411 = vld [vmem:[%s230 + $0x4f8] sm:$0xff]
      %v412 = vld [vmem:[%s230 + $0x500] sm:$0xff]
      %v413 = vld [vmem:[%s230 + $0x508] sm:$0xff]
      %v414 = vld [vmem:[%s230 + $0x510] sm:$0xff]
      %v415 = vld [vmem:[%s230 + $0x518] sm:$0xff]
      %v416 = vld [vmem:[%s230 + $0x520] sm:$0xff]
      %v417 = vld [vmem:[%s230 + $0x528] sm:$0xff]
      %v418 = vld [vmem:[%s230 + $0x530] sm:$0xff]
      %v419 = vld [vmem:[%s230 + $0x538] sm:$0xff]
      %v420 = vld [vmem:[%s230 + $0x540] sm:$0xff]
      %v421 = vld [vmem:[%s230 + $0x548] sm:$0xff]
      %v422 = vld [vmem:[%s230 + $0x550] sm:$0xff]
      %v423 = vld [vmem:[%s230 + $0x558] sm:$0xff]
      %v424 = vld [vmem:[%s230 + $0x560] sm:$0xff]
      %v425 = vld [vmem:[%s230 + $0x568] sm:$0xff]
      %v426 = vld [vmem:[%s230 + $0x570] sm:$0xff]
      %v427 = vld [vmem:[%s230 + $0x578] sm:$0xff]
      %v428 = vld [vmem:[%s230 + $0x580] sm:$0xff]
      %v429 = vld [vmem:[%s230 + $0x588] sm:$0xff]
      %v430 = vld [vmem:[%s230 + $0x590] sm:$0xff]
      %v431 = vld [vmem:[%s230 + $0x598] sm:$0xff]
      %v432 = vld [vmem:[%s230 + $0x5a0] sm:$0xff]
      %v433 = vld [vmem:[%s230 + $0x5a8] sm:$0xff]
      %v434 = vld [vmem:[%s230 + $0x5b0] sm:$0xff]
      %v435 = vld [vmem:[%s230 + $0x5b8] sm:$0xff]
      %v436 = vld [vmem:[%s230 + $0x5c0] sm:$0xff]
      %v437 = vld [vmem:[%s230 + $0x5c8] sm:$0xff]
      %v438 = vld [vmem:[%s230 + $0x5d0] sm:$0xff]
      %v439 = vld [vmem:[%s230 + $0x5d8] sm:$0xff]
      %v440 = vld [vmem:[%s230 + $0x5e0] sm:$0xff]
      %v441 = vld [vmem:[%s230 + $0x5e8] sm:$0xff]
      %v442 = vld [vmem:[%s230 + $0x5f0] sm:$0xff]
      %v443 = vld [vmem:[%s230 + $0x5f8] sm:$0xff]
      %v444 = vld [vmem:[%s230 + $0x600] sm:$0xff]
      %v445 = vld [vmem:[%s230 + $0x608] sm:$0xff]
      %v446 = vld [vmem:[%s230 + $0x610] sm:$0xff]
      %v447 = vld [vmem:[%s230 + $0x618] sm:$0xff]
      %v448 = vld [vmem:[%s230 + $0x620] sm:$0xff]
      %v449 = vld [vmem:[%s230 + $0x628] sm:$0xff]
      %v450 = vld [vmem:[%s230 + $0x630] sm:$0xff]
      %v451 = vld [vmem:[%s230 + $0x638] sm:$0xff]
      %v452 = vld [vmem:[%s230 + $0x640] sm:$0xff]
      %v453 = vld [vmem:[%s230 + $0x648] sm:$0xff]
      %v454 = vld [vmem:[%s230 + $0x650] sm:$0xff]
      %v455 = vld [vmem:[%s230 + $0x658] sm:$0xff]
      %v456 = vld [vmem:[%s230 + $0x660] sm:$0xff]
      %v457 = vld [vmem:[%s230 + $0x668] sm:$0xff]
      %v458 = vld [vmem:[%s230 + $0x670] sm:$0xff]
      %v459 = vld [vmem:[%s230 + $0x678] sm:$0xff]
      %v460 = vld [vmem:[%s230 + $0x680] sm:$0xff]
      %v461 = vld [vmem:[%s230 + $0x688] sm:$0xff]
      %v462 = vld [vmem:[%s230 + $0x690] sm:$0xff]
      %v463 = vld [vmem:[%s230 + $0x698] sm:$0xff]
      %v464 = vld [vmem:[%s230 + $0x6a0] sm:$0xff]
      %v465 = vld [vmem:[%s230 + $0x6a8] sm:$0xff]
      %v466 = vld [vmem:[%s230 + $0x6b0] sm:$0xff]
      %v467 = vld [vmem:[%s230 + $0x6b8] sm:$0xff]
      %v468 = vld [vmem:[%s230 + $0x6c0] sm:$0xff]
      %v469 = vld [vmem:[%s230 + $0x6c8] sm:$0xff]
      %v470 = vld [vmem:[%s230 + $0x6d0] sm:$0xff]
      %v471 = vld [vmem:[%s230 + $0x6d8] sm:$0xff]
      %v472 = vld [vmem:[%s230 + $0x6e0] sm:$0xff]
      %v473 = vld [vmem:[%s230 + $0x6e8] sm:$0xff]
      %v474 = vld [vmem:[%s230 + $0x6f0] sm:$0xff]
      %v475 = vld [vmem:[%s230 + $0x6f8] sm:$0xff]
      %v476 = vld [vmem:[%s230 + $0x700] sm:$0xff]
      %v477 = vld [vmem:[%s230 + $0x708] sm:$0xff]
      %v478 = vld [vmem:[%s230 + $0x710] sm:$0xff]
      %v479 = vld [vmem:[%s230 + $0x718] sm:$0xff]
      %v480 = vld [vmem:[%s230 + $0x720] sm:$0xff]
      %v481 = vld [vmem:[%s230 + $0x728] sm:$0xff]
      %v482 = vld [vmem:[%s230 + $0x730] sm:$0xff]
      %v483 = vld [vmem:[%s230 + $0x738] sm:$0xff]
      %v484 = vld [vmem:[%s230 + $0x740] sm:$0xff]
      %v485 = vld [vmem:[%s230 + $0x748] sm:$0xff]
      %v486 = vld [vmem:[%s230 + $0x750] sm:$0xff]
      %v487 = vld [vmem:[%s230 + $0x758] sm:$0xff]
      %v488 = vld [vmem:[%s230 + $0x760] sm:$0xff]
      %v489 = vld [vmem:[%s230 + $0x768] sm:$0xff]
      %v490 = vld [vmem:[%s230 + $0x770] sm:$0xff]
      %v491 = vld [vmem:[%s230 + $0x778] sm:$0xff]
      %v492 = vld [vmem:[%s230 + $0x780] sm:$0xff]
      %v493 = vld [vmem:[%s230 + $0x788] sm:$0xff]
      %v494 = vld [vmem:[%s230 + $0x790] sm:$0xff]
      %v495 = vld [vmem:[%s230 + $0x798] sm:$0xff]
      %v496 = vld [vmem:[%s230 + $0x7a0] sm:$0xff]
      %v497 = vld [vmem:[%s230 + $0x7a8] sm:$0xff]
      %v498 = vld [vmem:[%s230 + $0x7b0] sm:$0xff]
      %v499 = vld [vmem:[%s230 + $0x7b8] sm:$0xff]
      %v500 = vld [vmem:[%s230 + $0x7c0] sm:$0xff]
      %v501 = vld [vmem:[%s230 + $0x7c8] sm:$0xff]
      %v502 = vld [vmem:[%s230 + $0x7d0] sm:$0xff]
      %v503 = vld [vmem:[%s230 + $0x7d8] sm:$0xff]
      %v504 = vld [vmem:[%s230 + $0x7e0] sm:$0xff]
      %v505 = vld [vmem:[%s230 + $0x7e8] sm:$0xff]
      %v506 = vld [vmem:[%s230 + $0x7f0] sm:$0xff]
      %v507 = vld [vmem:[%s230 + $0x7f8] sm:$0xff]
      %v508 = vld [vmem:[%s234] sm:$0x3]
      %v510 = vlaneseq
      %v511 = vshrl.u32 %v510, 7
      %v512 = vsub.s32 0, %v511
      %v513 = vrot.slane %v508, %v512
      %v514 = vlaneseq
      %v515 = vshrl.u32 %v514, 7
      %v516 = vsub.s32 1, %v515
      %v517 = vrot.slane %v508, %v516
      %v528 = vunpack.c.l.b16 %v244
      %v529 = vunpack.c.h.b16 %v244
      %v530 = vunpack.c.l.b16 %v245
      %v531 = vunpack.c.h.b16 %v245
      %v532 = vunpack.c.l.b16 %v246
      %v533 = vunpack.c.h.b16 %v246
      %v534 = vunpack.c.l.b16 %v247
      %v535 = vunpack.c.h.b16 %v247
      %v536 = vunpack.c.l.b16 %v248
      %v537 = vunpack.c.h.b16 %v248
      %v538 = vunpack.c.l.b16 %v249
      %v539 = vunpack.c.h.b16 %v249
      %v540 = vunpack.c.l.b16 %v250
      %v541 = vunpack.c.h.b16 %v250
      %v542 = vunpack.c.l.b16 %v251
      %v543 = vunpack.c.h.b16 %v251
      %v544 = vpack.c.b16 %v528, %v528
      %v545 = vpack.c.b16 %v529, %v529
      %v546 = vpack.c.b16 %v530, %v530
      %v547 = vpack.c.b16 %v531, %v531
      %v548 = vpack.c.b16 %v532, %v532
      %v549 = vpack.c.b16 %v533, %v533
      %v550 = vpack.c.b16 %v534, %v534
      %v551 = vpack.c.b16 %v535, %v535
      %v552 = vpack.c.b16 %v536, %v536
      %v553 = vpack.c.b16 %v537, %v537
      %v554 = vpack.c.b16 %v538, %v538
      %v555 = vpack.c.b16 %v539, %v539
      %v556 = vpack.c.b16 %v540, %v540
      %v557 = vpack.c.b16 %v541, %v541
      %v558 = vpack.c.b16 %v542, %v542
      %v559 = vpack.c.b16 %v543, %v543
      %v832 = vunpack.c.l.b16 %v252
      %v833 = vunpack.c.h.b16 %v252
      %v834 = vunpack.c.l.b16 %v253
      %v835 = vunpack.c.h.b16 %v253
      %v836 = vunpack.c.l.b16 %v254
      %v837 = vunpack.c.h.b16 %v254
      %v838 = vunpack.c.l.b16 %v255
      %v839 = vunpack.c.h.b16 %v255
      %v840 = vunpack.c.l.b16 %v256
      %v841 = vunpack.c.h.b16 %v256
      %v842 = vunpack.c.l.b16 %v257
      %v843 = vunpack.c.h.b16 %v257
      %v844 = vunpack.c.l.b16 %v258
      %v845 = vunpack.c.h.b16 %v258
      %v846 = vunpack.c.l.b16 %v259
      %v847 = vunpack.c.h.b16 %v259
      %v848 = vunpack.c.l.b16 %v260
      %v849 = vunpack.c.h.b16 %v260
      %v850 = vunpack.c.l.b16 %v261
      %v851 = vunpack.c.h.b16 %v261
      %v852 = vunpack.c.l.b16 %v262
      %v853 = vunpack.c.h.b16 %v262
      %v854 = vunpack.c.l.b16 %v263
      %v855 = vunpack.c.h.b16 %v263
      %v856 = vunpack.c.l.b16 %v264
      %v857 = vunpack.c.h.b16 %v264
      %v858 = vunpack.c.l.b16 %v265
      %v859 = vunpack.c.h.b16 %v265
      %v860 = vunpack.c.l.b16 %v266
      %v861 = vunpack.c.h.b16 %v266
      %v862 = vunpack.c.l.b16 %v267
      %v863 = vunpack.c.h.b16 %v267
      %v864 = vunpack.c.l.b16 %v268
      %v865 = vunpack.c.h.b16 %v268
      %v866 = vunpack.c.l.b16 %v269
      %v867 = vunpack.c.h.b16 %v269
      %v868 = vunpack.c.l.b16 %v270
      %v869 = vunpack.c.h.b16 %v270
      %v870 = vunpack.c.l.b16 %v271
      %v871 = vunpack.c.h.b16 %v271
      %v872 = vunpack.c.l.b16 %v272
      %v873 = vunpack.c.h.b16 %v272
      %v874 = vunpack.c.l.b16 %v273
      %v875 = vunpack.c.h.b16 %v273
      %v876 = vunpack.c.l.b16 %v274
      %v877 = vunpack.c.h.b16 %v274
      %v878 = vunpack.c.l.b16 %v275
      %v879 = vunpack.c.h.b16 %v275
      %v880 = vunpack.c.l.b16 %v276
      %v881 = vunpack.c.h.b16 %v276
      %v882 = vunpack.c.l.b16 %v277
      %v883 = vunpack.c.h.b16 %v277
      %v884 = vunpack.c.l.b16 %v278
      %v885 = vunpack.c.h.b16 %v278
      %v886 = vunpack.c.l.b16 %v279
      %v887 = vunpack.c.h.b16 %v279
      %v888 = vunpack.c.l.b16 %v280
      %v889 = vunpack.c.h.b16 %v280
      %v890 = vunpack.c.l.b16 %v281
      %v891 = vunpack.c.h.b16 %v281
      %v892 = vunpack.c.l.b16 %v282
      %v893 = vunpack.c.h.b16 %v282
      %v894 = vunpack.c.l.b16 %v283
      %v895 = vunpack.c.h.b16 %v283
      %v896 = vunpack.c.l.b16 %v284
      %v897 = vunpack.c.h.b16 %v284
      %v898 = vunpack.c.l.b16 %v285
      %v899 = vunpack.c.h.b16 %v285
      %v900 = vunpack.c.l.b16 %v286
      %v901 = vunpack.c.h.b16 %v286
      %v902 = vunpack.c.l.b16 %v287
      %v903 = vunpack.c.h.b16 %v287
      %v904 = vunpack.c.l.b16 %v288
      %v905 = vunpack.c.h.b16 %v288
      %v906 = vunpack.c.l.b16 %v289
      %v907 = vunpack.c.h.b16 %v289
      %v908 = vunpack.c.l.b16 %v290
      %v909 = vunpack.c.h.b16 %v290
      %v910 = vunpack.c.l.b16 %v291
      %v911 = vunpack.c.h.b16 %v291
      %v912 = vunpack.c.l.b16 %v292
      %v913 = vunpack.c.h.b16 %v292
      %v914 = vunpack.c.l.b16 %v293
      %v915 = vunpack.c.h.b16 %v293
      %v916 = vunpack.c.l.b16 %v294
      %v917 = vunpack.c.h.b16 %v294
      %v918 = vunpack.c.l.b16 %v295
      %v919 = vunpack.c.h.b16 %v295
      %v920 = vunpack.c.l.b16 %v296
      %v921 = vunpack.c.h.b16 %v296
      %v922 = vunpack.c.l.b16 %v297
      %v923 = vunpack.c.h.b16 %v297
      %v924 = vunpack.c.l.b16 %v298
      %v925 = vunpack.c.h.b16 %v298
      %v926 = vunpack.c.l.b16 %v299
      %v927 = vunpack.c.h.b16 %v299
      %v928 = vunpack.c.l.b16 %v300
      %v929 = vunpack.c.h.b16 %v300
      %v930 = vunpack.c.l.b16 %v301
      %v931 = vunpack.c.h.b16 %v301
      %v932 = vunpack.c.l.b16 %v302
      %v933 = vunpack.c.h.b16 %v302
      %v934 = vunpack.c.l.b16 %v303
      %v935 = vunpack.c.h.b16 %v303
      %v936 = vunpack.c.l.b16 %v304
      %v937 = vunpack.c.h.b16 %v304
      %v938 = vunpack.c.l.b16 %v305
      %v939 = vunpack.c.h.b16 %v305
      %v940 = vunpack.c.l.b16 %v306
      %v941 = vunpack.c.h.b16 %v306
      %v942 = vunpack.c.l.b16 %v307
      %v943 = vunpack.c.h.b16 %v307
      %v944 = vunpack.c.l.b16 %v308
      %v945 = vunpack.c.h.b16 %v308
      %v946 = vunpack.c.l.b16 %v309
      %v947 = vunpack.c.h.b16 %v309
      %v948 = vunpack.c.l.b16 %v310
      %v949 = vunpack.c.h.b16 %v310
      %v950 = vunpack.c.l.b16 %v311
      %v951 = vunpack.c.h.b16 %v311
      %v952 = vunpack.c.l.b16 %v312
      %v953 = vunpack.c.h.b16 %v312
      %v954 = vunpack.c.l.b16 %v313
      %v955 = vunpack.c.h.b16 %v313
      %v956 = vunpack.c.l.b16 %v314
      %v957 = vunpack.c.h.b16 %v314
      %v958 = vunpack.c.l.b16 %v315
      %v959 = vunpack.c.h.b16 %v315
      %v960 = vunpack.c.l.b16 %v316
      %v961 = vunpack.c.h.b16 %v316
      %v962 = vunpack.c.l.b16 %v317
      %v963 = vunpack.c.h.b16 %v317
      %v964 = vunpack.c.l.b16 %v318
      %v965 = vunpack.c.h.b16 %v318
      %v966 = vunpack.c.l.b16 %v319
      %v967 = vunpack.c.h.b16 %v319
      %v968 = vunpack.c.l.b16 %v320
      %v969 = vunpack.c.h.b16 %v320
      %v970 = vunpack.c.l.b16 %v321
      %v971 = vunpack.c.h.b16 %v321
      %v972 = vunpack.c.l.b16 %v322
      %v973 = vunpack.c.h.b16 %v322
      %v974 = vunpack.c.l.b16 %v323
      %v975 = vunpack.c.h.b16 %v323
      %v976 = vunpack.c.l.b16 %v324
      %v977 = vunpack.c.h.b16 %v324
      %v978 = vunpack.c.l.b16 %v325
      %v979 = vunpack.c.h.b16 %v325
      %v980 = vunpack.c.l.b16 %v326
      %v981 = vunpack.c.h.b16 %v326
      %v982 = vunpack.c.l.b16 %v327
      %v983 = vunpack.c.h.b16 %v327
      %v984 = vunpack.c.l.b16 %v328
      %v985 = vunpack.c.h.b16 %v328
      %v986 = vunpack.c.l.b16 %v329
      %v987 = vunpack.c.h.b16 %v329
      %v988 = vunpack.c.l.b16 %v330
      %v989 = vunpack.c.h.b16 %v330
      %v990 = vunpack.c.l.b16 %v331
      %v991 = vunpack.c.h.b16 %v331
      %v992 = vunpack.c.l.b16 %v332
      %v993 = vunpack.c.h.b16 %v332
      %v994 = vunpack.c.l.b16 %v333
      %v995 = vunpack.c.h.b16 %v333
      %v996 = vunpack.c.l.b16 %v334
      %v997 = vunpack.c.h.b16 %v334
      %v998 = vunpack.c.l.b16 %v335
      %v999 = vunpack.c.h.b16 %v335
      %v1000 = vunpack.c.l.b16 %v336
      %v1001 = vunpack.c.h.b16 %v336
      %v1002 = vunpack.c.l.b16 %v337
      %v1003 = vunpack.c.h.b16 %v337
      %v1004 = vunpack.c.l.b16 %v338
      %v1005 = vunpack.c.h.b16 %v338
      %v1006 = vunpack.c.l.b16 %v339
      %v1007 = vunpack.c.h.b16 %v339
      %v1008 = vunpack.c.l.b16 %v340
      %v1009 = vunpack.c.h.b16 %v340
      %v1010 = vunpack.c.l.b16 %v341
      %v1011 = vunpack.c.h.b16 %v341
      %v1012 = vunpack.c.l.b16 %v342
      %v1013 = vunpack.c.h.b16 %v342
      %v1014 = vunpack.c.l.b16 %v343
      %v1015 = vunpack.c.h.b16 %v343
      %v1016 = vunpack.c.l.b16 %v344
      %v1017 = vunpack.c.h.b16 %v344
      %v1018 = vunpack.c.l.b16 %v345
      %v1019 = vunpack.c.h.b16 %v345
      %v1020 = vunpack.c.l.b16 %v346
      %v1021 = vunpack.c.h.b16 %v346
      %v1022 = vunpack.c.l.b16 %v347
      %v1023 = vunpack.c.h.b16 %v347
      %v1024 = vunpack.c.l.b16 %v348
      %v1025 = vunpack.c.h.b16 %v348
      %v1026 = vunpack.c.l.b16 %v349
      %v1027 = vunpack.c.h.b16 %v349
      %v1028 = vunpack.c.l.b16 %v350
      %v1029 = vunpack.c.h.b16 %v350
      %v1030 = vunpack.c.l.b16 %v351
      %v1031 = vunpack.c.h.b16 %v351
      %v1032 = vunpack.c.l.b16 %v352
      %v1033 = vunpack.c.h.b16 %v352
      %v1034 = vunpack.c.l.b16 %v353
      %v1035 = vunpack.c.h.b16 %v353
      %v1036 = vunpack.c.l.b16 %v354
      %v1037 = vunpack.c.h.b16 %v354
      %v1038 = vunpack.c.l.b16 %v355
      %v1039 = vunpack.c.h.b16 %v355
      %v1040 = vunpack.c.l.b16 %v356
      %v1041 = vunpack.c.h.b16 %v356
      %v1042 = vunpack.c.l.b16 %v357
      %v1043 = vunpack.c.h.b16 %v357
      %v1044 = vunpack.c.l.b16 %v358
      %v1045 = vunpack.c.h.b16 %v358
      %v1046 = vunpack.c.l.b16 %v359
      %v1047 = vunpack.c.h.b16 %v359
      %v1048 = vunpack.c.l.b16 %v360
      %v1049 = vunpack.c.h.b16 %v360
      %v1050 = vunpack.c.l.b16 %v361
      %v1051 = vunpack.c.h.b16 %v361
      %v1052 = vunpack.c.l.b16 %v362
      %v1053 = vunpack.c.h.b16 %v362
      %v1054 = vunpack.c.l.b16 %v363
      %v1055 = vunpack.c.h.b16 %v363
      %v1056 = vunpack.c.l.b16 %v364
      %v1057 = vunpack.c.h.b16 %v364
      %v1058 = vunpack.c.l.b16 %v365
      %v1059 = vunpack.c.h.b16 %v365
      %v1060 = vunpack.c.l.b16 %v366
      %v1061 = vunpack.c.h.b16 %v366
      %v1062 = vunpack.c.l.b16 %v367
      %v1063 = vunpack.c.h.b16 %v367
      %v1064 = vunpack.c.l.b16 %v368
      %v1065 = vunpack.c.h.b16 %v368
      %v1066 = vunpack.c.l.b16 %v369
      %v1067 = vunpack.c.h.b16 %v369
      %v1068 = vunpack.c.l.b16 %v370
      %v1069 = vunpack.c.h.b16 %v370
      %v1070 = vunpack.c.l.b16 %v371
      %v1071 = vunpack.c.h.b16 %v371
      %v1072 = vunpack.c.l.b16 %v372
      %v1073 = vunpack.c.h.b16 %v372
      %v1074 = vunpack.c.l.b16 %v373
      %v1075 = vunpack.c.h.b16 %v373
      %v1076 = vunpack.c.l.b16 %v374
      %v1077 = vunpack.c.h.b16 %v374
      %v1078 = vunpack.c.l.b16 %v375
      %v1079 = vunpack.c.h.b16 %v375
      %v1080 = vunpack.c.l.b16 %v376
      %v1081 = vunpack.c.h.b16 %v376
      %v1082 = vunpack.c.l.b16 %v377
      %v1083 = vunpack.c.h.b16 %v377
      %v1084 = vunpack.c.l.b16 %v378
      %v1085 = vunpack.c.h.b16 %v378
      %v1086 = vunpack.c.l.b16 %v379
      %v1087 = vunpack.c.h.b16 %v379
      %v1088 = vunpack.c.l.b16 %v380
      %v1089 = vunpack.c.h.b16 %v380
      %v1090 = vunpack.c.l.b16 %v381
      %v1091 = vunpack.c.h.b16 %v381
      %v1092 = vunpack.c.l.b16 %v382
      %v1093 = vunpack.c.h.b16 %v382
      %v1094 = vunpack.c.l.b16 %v383
      %v1095 = vunpack.c.h.b16 %v383
      %v1096 = vunpack.c.l.b16 %v384
      %v1097 = vunpack.c.h.b16 %v384
      %v1098 = vunpack.c.l.b16 %v385
      %v1099 = vunpack.c.h.b16 %v385
      %v1100 = vunpack.c.l.b16 %v386
      %v1101 = vunpack.c.h.b16 %v386
      %v1102 = vunpack.c.l.b16 %v387
      %v1103 = vunpack.c.h.b16 %v387
      %v1104 = vunpack.c.l.b16 %v388
      %v1105 = vunpack.c.h.b16 %v388
      %v1106 = vunpack.c.l.b16 %v389
      %v1107 = vunpack.c.h.b16 %v389
      %v1108 = vunpack.c.l.b16 %v390
      %v1109 = vunpack.c.h.b16 %v390
      %v1110 = vunpack.c.l.b16 %v391
      %v1111 = vunpack.c.h.b16 %v391
      %v1112 = vunpack.c.l.b16 %v392
      %v1113 = vunpack.c.h.b16 %v392
      %v1114 = vunpack.c.l.b16 %v393
      %v1115 = vunpack.c.h.b16 %v393
      %v1116 = vunpack.c.l.b16 %v394
      %v1117 = vunpack.c.h.b16 %v394
      %v1118 = vunpack.c.l.b16 %v395
      %v1119 = vunpack.c.h.b16 %v395
      %v1120 = vunpack.c.l.b16 %v396
      %v1121 = vunpack.c.h.b16 %v396
      %v1122 = vunpack.c.l.b16 %v397
      %v1123 = vunpack.c.h.b16 %v397
      %v1124 = vunpack.c.l.b16 %v398
      %v1125 = vunpack.c.h.b16 %v398
      %v1126 = vunpack.c.l.b16 %v399
      %v1127 = vunpack.c.h.b16 %v399
      %v1128 = vunpack.c.l.b16 %v400
      %v1129 = vunpack.c.h.b16 %v400
      %v1130 = vunpack.c.l.b16 %v401
      %v1131 = vunpack.c.h.b16 %v401
      %v1132 = vunpack.c.l.b16 %v402
      %v1133 = vunpack.c.h.b16 %v402
      %v1134 = vunpack.c.l.b16 %v403
      %v1135 = vunpack.c.h.b16 %v403
      %v1136 = vunpack.c.l.b16 %v404
      %v1137 = vunpack.c.h.b16 %v404
      %v1138 = vunpack.c.l.b16 %v405
      %v1139 = vunpack.c.h.b16 %v405
      %v1140 = vunpack.c.l.b16 %v406
      %v1141 = vunpack.c.h.b16 %v406
      %v1142 = vunpack.c.l.b16 %v407
      %v1143 = vunpack.c.h.b16 %v407
      %v1144 = vunpack.c.l.b16 %v408
      %v1145 = vunpack.c.h.b16 %v408
      %v1146 = vunpack.c.l.b16 %v409
      %v1147 = vunpack.c.h.b16 %v409
      %v1148 = vunpack.c.l.b16 %v410
      %v1149 = vunpack.c.h.b16 %v410
      %v1150 = vunpack.c.l.b16 %v411
      %v1151 = vunpack.c.h.b16 %v411
      %v1152 = vunpack.c.l.b16 %v412
      %v1153 = vunpack.c.h.b16 %v412
      %v1154 = vunpack.c.l.b16 %v413
      %v1155 = vunpack.c.h.b16 %v413
      %v1156 = vunpack.c.l.b16 %v414
      %v1157 = vunpack.c.h.b16 %v414
      %v1158 = vunpack.c.l.b16 %v415
      %v1159 = vunpack.c.h.b16 %v415
      %v1160 = vunpack.c.l.b16 %v416
      %v1161 = vunpack.c.h.b16 %v416
      %v1162 = vunpack.c.l.b16 %v417
      %v1163 = vunpack.c.h.b16 %v417
      %v1164 = vunpack.c.l.b16 %v418
      %v1165 = vunpack.c.h.b16 %v418
      %v1166 = vunpack.c.l.b16 %v419
      %v1167 = vunpack.c.h.b16 %v419
      %v1168 = vunpack.c.l.b16 %v420
      %v1169 = vunpack.c.h.b16 %v420
      %v1170 = vunpack.c.l.b16 %v421
      %v1171 = vunpack.c.h.b16 %v421
      %v1172 = vunpack.c.l.b16 %v422
      %v1173 = vunpack.c.h.b16 %v422
      %v1174 = vunpack.c.l.b16 %v423
      %v1175 = vunpack.c.h.b16 %v423
      %v1176 = vunpack.c.l.b16 %v424
      %v1177 = vunpack.c.h.b16 %v424
      %v1178 = vunpack.c.l.b16 %v425
      %v1179 = vunpack.c.h.b16 %v425
      %v1180 = vunpack.c.l.b16 %v426
      %v1181 = vunpack.c.h.b16 %v426
      %v1182 = vunpack.c.l.b16 %v427
      %v1183 = vunpack.c.h.b16 %v427
      %v1184 = vunpack.c.l.b16 %v428
      %v1185 = vunpack.c.h.b16 %v428
      %v1186 = vunpack.c.l.b16 %v429
      %v1187 = vunpack.c.h.b16 %v429
      %v1188 = vunpack.c.l.b16 %v430
      %v1189 = vunpack.c.h.b16 %v430
      %v1190 = vunpack.c.l.b16 %v431
      %v1191 = vunpack.c.h.b16 %v431
      %v1192 = vunpack.c.l.b16 %v432
      %v1193 = vunpack.c.h.b16 %v432
      %v1194 = vunpack.c.l.b16 %v433
      %v1195 = vunpack.c.h.b16 %v433
      %v1196 = vunpack.c.l.b16 %v434
      %v1197 = vunpack.c.h.b16 %v434
      %v1198 = vunpack.c.l.b16 %v435
      %v1199 = vunpack.c.h.b16 %v435
      %v1200 = vunpack.c.l.b16 %v436
      %v1201 = vunpack.c.h.b16 %v436
      %v1202 = vunpack.c.l.b16 %v437
      %v1203 = vunpack.c.h.b16 %v437
      %v1204 = vunpack.c.l.b16 %v438
      %v1205 = vunpack.c.h.b16 %v438
      %v1206 = vunpack.c.l.b16 %v439
      %v1207 = vunpack.c.h.b16 %v439
      %v1208 = vunpack.c.l.b16 %v440
      %v1209 = vunpack.c.h.b16 %v440
      %v1210 = vunpack.c.l.b16 %v441
      %v1211 = vunpack.c.h.b16 %v441
      %v1212 = vunpack.c.l.b16 %v442
      %v1213 = vunpack.c.h.b16 %v442
      %v1214 = vunpack.c.l.b16 %v443
      %v1215 = vunpack.c.h.b16 %v443
      %v1216 = vunpack.c.l.b16 %v444
      %v1217 = vunpack.c.h.b16 %v444
      %v1218 = vunpack.c.l.b16 %v445
      %v1219 = vunpack.c.h.b16 %v445
      %v1220 = vunpack.c.l.b16 %v446
      %v1221 = vunpack.c.h.b16 %v446
      %v1222 = vunpack.c.l.b16 %v447
      %v1223 = vunpack.c.h.b16 %v447
      %v1224 = vunpack.c.l.b16 %v448
      %v1225 = vunpack.c.h.b16 %v448
      %v1226 = vunpack.c.l.b16 %v449
      %v1227 = vunpack.c.h.b16 %v449
      %v1228 = vunpack.c.l.b16 %v450
      %v1229 = vunpack.c.h.b16 %v450
      %v1230 = vunpack.c.l.b16 %v451
      %v1231 = vunpack.c.h.b16 %v451
      %v1232 = vunpack.c.l.b16 %v452
      %v1233 = vunpack.c.h.b16 %v452
      %v1234 = vunpack.c.l.b16 %v453
      %v1235 = vunpack.c.h.b16 %v453
      %v1236 = vunpack.c.l.b16 %v454
      %v1237 = vunpack.c.h.b16 %v454
      %v1238 = vunpack.c.l.b16 %v455
      %v1239 = vunpack.c.h.b16 %v455
      %v1240 = vunpack.c.l.b16 %v456
      %v1241 = vunpack.c.h.b16 %v456
      %v1242 = vunpack.c.l.b16 %v457
      %v1243 = vunpack.c.h.b16 %v457
      %v1244 = vunpack.c.l.b16 %v458
      %v1245 = vunpack.c.h.b16 %v458
      %v1246 = vunpack.c.l.b16 %v459
      %v1247 = vunpack.c.h.b16 %v459
      %v1248 = vunpack.c.l.b16 %v460
      %v1249 = vunpack.c.h.b16 %v460
      %v1250 = vunpack.c.l.b16 %v461
      %v1251 = vunpack.c.h.b16 %v461
      %v1252 = vunpack.c.l.b16 %v462
      %v1253 = vunpack.c.h.b16 %v462
      %v1254 = vunpack.c.l.b16 %v463
      %v1255 = vunpack.c.h.b16 %v463
      %v1256 = vunpack.c.l.b16 %v464
      %v1257 = vunpack.c.h.b16 %v464
      %v1258 = vunpack.c.l.b16 %v465
      %v1259 = vunpack.c.h.b16 %v465
      %v1260 = vunpack.c.l.b16 %v466
      %v1261 = vunpack.c.h.b16 %v466
      %v1262 = vunpack.c.l.b16 %v467
      %v1263 = vunpack.c.h.b16 %v467
      %v1264 = vunpack.c.l.b16 %v468
      %v1265 = vunpack.c.h.b16 %v468
      %v1266 = vunpack.c.l.b16 %v469
      %v1267 = vunpack.c.h.b16 %v469
      %v1268 = vunpack.c.l.b16 %v470
      %v1269 = vunpack.c.h.b16 %v470
      %v1270 = vunpack.c.l.b16 %v471
      %v1271 = vunpack.c.h.b16 %v471
      %v1272 = vunpack.c.l.b16 %v472
      %v1273 = vunpack.c.h.b16 %v472
      %v1274 = vunpack.c.l.b16 %v473
      %v1275 = vunpack.c.h.b16 %v473
      %v1276 = vunpack.c.l.b16 %v474
      %v1277 = vunpack.c.h.b16 %v474
      %v1278 = vunpack.c.l.b16 %v475
      %v1279 = vunpack.c.h.b16 %v475
      %v1280 = vunpack.c.l.b16 %v476
      %v1281 = vunpack.c.h.b16 %v476
      %v1282 = vunpack.c.l.b16 %v477
      %v1283 = vunpack.c.h.b16 %v477
      %v1284 = vunpack.c.l.b16 %v478
      %v1285 = vunpack.c.h.b16 %v478
      %v1286 = vunpack.c.l.b16 %v479
      %v1287 = vunpack.c.h.b16 %v479
      %v1288 = vunpack.c.l.b16 %v480
      %v1289 = vunpack.c.h.b16 %v480
      %v1290 = vunpack.c.l.b16 %v481
      %v1291 = vunpack.c.h.b16 %v481
      %v1292 = vunpack.c.l.b16 %v482
      %v1293 = vunpack.c.h.b16 %v482
      %v1294 = vunpack.c.l.b16 %v483
      %v1295 = vunpack.c.h.b16 %v483
      %v1296 = vunpack.c.l.b16 %v484
      %v1297 = vunpack.c.h.b16 %v484
      %v1298 = vunpack.c.l.b16 %v485
      %v1299 = vunpack.c.h.b16 %v485
      %v1300 = vunpack.c.l.b16 %v486
      %v1301 = vunpack.c.h.b16 %v486
      %v1302 = vunpack.c.l.b16 %v487
      %v1303 = vunpack.c.h.b16 %v487
      %v1304 = vunpack.c.l.b16 %v488
      %v1305 = vunpack.c.h.b16 %v488
      %v1306 = vunpack.c.l.b16 %v489
      %v1307 = vunpack.c.h.b16 %v489
      %v1308 = vunpack.c.l.b16 %v490
      %v1309 = vunpack.c.h.b16 %v490
      %v1310 = vunpack.c.l.b16 %v491
      %v1311 = vunpack.c.h.b16 %v491
      %v1312 = vunpack.c.l.b16 %v492
      %v1313 = vunpack.c.h.b16 %v492
      %v1314 = vunpack.c.l.b16 %v493
      %v1315 = vunpack.c.h.b16 %v493
      %v1316 = vunpack.c.l.b16 %v494
      %v1317 = vunpack.c.h.b16 %v494
      %v1318 = vunpack.c.l.b16 %v495
      %v1319 = vunpack.c.h.b16 %v495
      %v1320 = vunpack.c.l.b16 %v496
      %v1321 = vunpack.c.h.b16 %v496
      %v1322 = vunpack.c.l.b16 %v497
      %v1323 = vunpack.c.h.b16 %v497
      %v1324 = vunpack.c.l.b16 %v498
      %v1325 = vunpack.c.h.b16 %v498
      %v1326 = vunpack.c.l.b16 %v499
      %v1327 = vunpack.c.h.b16 %v499
      %v1328 = vunpack.c.l.b16 %v500
      %v1329 = vunpack.c.h.b16 %v500
      %v1330 = vunpack.c.l.b16 %v501
      %v1331 = vunpack.c.h.b16 %v501
      %v1332 = vunpack.c.l.b16 %v502
      %v1333 = vunpack.c.h.b16 %v502
      %v1334 = vunpack.c.l.b16 %v503
      %v1335 = vunpack.c.h.b16 %v503
      %v1336 = vunpack.c.l.b16 %v504
      %v1337 = vunpack.c.h.b16 %v504
      %v1338 = vunpack.c.l.b16 %v505
      %v1339 = vunpack.c.h.b16 %v505
      %v1340 = vunpack.c.l.b16 %v506
      %v1341 = vunpack.c.h.b16 %v506
      %v1342 = vunpack.c.l.b16 %v507
      %v1343 = vunpack.c.h.b16 %v507
      %v1344 = vpack.c.b16 %v834, %v832
      %v1345 = vpack.c.b16 %v835, %v833
      %v1346 = vpack.c.b16 %v838, %v836
      %v1347 = vpack.c.b16 %v839, %v837
      %v1348 = vpack.c.b16 %v842, %v840
      %v1349 = vpack.c.b16 %v843, %v841
      %v1350 = vpack.c.b16 %v846, %v844
      %v1351 = vpack.c.b16 %v847, %v845
      %v1352 = vpack.c.b16 %v850, %v848
      %v1353 = vpack.c.b16 %v851, %v849
      %v1354 = vpack.c.b16 %v854, %v852
      %v1355 = vpack.c.b16 %v855, %v853
      %v1356 = vpack.c.b16 %v858, %v856
      %v1357 = vpack.c.b16 %v859, %v857
      %v1358 = vpack.c.b16 %v862, %v860
      %v1359 = vpack.c.b16 %v863, %v861
      %v1360 = vpack.c.b16 %v866, %v864
      %v1361 = vpack.c.b16 %v867, %v865
      %v1362 = vpack.c.b16 %v870, %v868
      %v1363 = vpack.c.b16 %v871, %v869
      %v1364 = vpack.c.b16 %v874, %v872
      %v1365 = vpack.c.b16 %v875, %v873
      %v1366 = vpack.c.b16 %v878, %v876
      %v1367 = vpack.c.b16 %v879, %v877
      %v1368 = vpack.c.b16 %v882, %v880
      %v1369 = vpack.c.b16 %v883, %v881
      %v1370 = vpack.c.b16 %v886, %v884
      %v1371 = vpack.c.b16 %v887, %v885
      %v1372 = vpack.c.b16 %v890, %v888
      %v1373 = vpack.c.b16 %v891, %v889
      %v1374 = vpack.c.b16 %v894, %v892
      %v1375 = vpack.c.b16 %v895, %v893
      %v1376 = vpack.c.b16 %v898, %v896
      %v1377 = vpack.c.b16 %v899, %v897
      %v1378 = vpack.c.b16 %v902, %v900
      %v1379 = vpack.c.b16 %v903, %v901
      %v1380 = vpack.c.b16 %v906, %v904
      %v1381 = vpack.c.b16 %v907, %v905
      %v1382 = vpack.c.b16 %v910, %v908
      %v1383 = vpack.c.b16 %v911, %v909
      %v1384 = vpack.c.b16 %v914, %v912
      %v1385 = vpack.c.b16 %v915, %v913
      %v1386 = vpack.c.b16 %v918, %v916
      %v1387 = vpack.c.b16 %v919, %v917
      %v1388 = vpack.c.b16 %v922, %v920
      %v1389 = vpack.c.b16 %v923, %v921
      %v1390 = vpack.c.b16 %v926, %v924
      %v1391 = vpack.c.b16 %v927, %v925
      %v1392 = vpack.c.b16 %v930, %v928
      %v1393 = vpack.c.b16 %v931, %v929
      %v1394 = vpack.c.b16 %v934, %v932
      %v1395 = vpack.c.b16 %v935, %v933
      %v1396 = vpack.c.b16 %v938, %v936
      %v1397 = vpack.c.b16 %v939, %v937
      %v1398 = vpack.c.b16 %v942, %v940
      %v1399 = vpack.c.b16 %v943, %v941
      %v1400 = vpack.c.b16 %v946, %v944
      %v1401 = vpack.c.b16 %v947, %v945
      %v1402 = vpack.c.b16 %v950, %v948
      %v1403 = vpack.c.b16 %v951, %v949
      %v1404 = vpack.c.b16 %v954, %v952
      %v1405 = vpack.c.b16 %v955, %v953
      %v1406 = vpack.c.b16 %v958, %v956
      %v1407 = vpack.c.b16 %v959, %v957
      %v1408 = vpack.c.b16 %v962, %v960
      %v1409 = vpack.c.b16 %v963, %v961
      %v1410 = vpack.c.b16 %v966, %v964
      %v1411 = vpack.c.b16 %v967, %v965
      %v1412 = vpack.c.b16 %v970, %v968
      %v1413 = vpack.c.b16 %v971, %v969
      %v1414 = vpack.c.b16 %v974, %v972
      %v1415 = vpack.c.b16 %v975, %v973
      %v1416 = vpack.c.b16 %v978, %v976
      %v1417 = vpack.c.b16 %v979, %v977
      %v1418 = vpack.c.b16 %v982, %v980
      %v1419 = vpack.c.b16 %v983, %v981
      %v1420 = vpack.c.b16 %v986, %v984
      %v1421 = vpack.c.b16 %v987, %v985
      %v1422 = vpack.c.b16 %v990, %v988
      %v1423 = vpack.c.b16 %v991, %v989
      %v1424 = vpack.c.b16 %v994, %v992
      %v1425 = vpack.c.b16 %v995, %v993
      %v1426 = vpack.c.b16 %v998, %v996
      %v1427 = vpack.c.b16 %v999, %v997
      %v1428 = vpack.c.b16 %v1002, %v1000
      %v1429 = vpack.c.b16 %v1003, %v1001
      %v1430 = vpack.c.b16 %v1006, %v1004
      %v1431 = vpack.c.b16 %v1007, %v1005
      %v1432 = vpack.c.b16 %v1010, %v1008
      %v1433 = vpack.c.b16 %v1011, %v1009
      %v1434 = vpack.c.b16 %v1014, %v1012
      %v1435 = vpack.c.b16 %v1015, %v1013
      %v1436 = vpack.c.b16 %v1018, %v1016
      %v1437 = vpack.c.b16 %v1019, %v1017
      %v1438 = vpack.c.b16 %v1022, %v1020
      %v1439 = vpack.c.b16 %v1023, %v1021
      %v1440 = vpack.c.b16 %v1026, %v1024
      %v1441 = vpack.c.b16 %v1027, %v1025
      %v1442 = vpack.c.b16 %v1030, %v1028
      %v1443 = vpack.c.b16 %v1031, %v1029
      %v1444 = vpack.c.b16 %v1034, %v1032
      %v1445 = vpack.c.b16 %v1035, %v1033
      %v1446 = vpack.c.b16 %v1038, %v1036
      %v1447 = vpack.c.b16 %v1039, %v1037
      %v1448 = vpack.c.b16 %v1042, %v1040
      %v1449 = vpack.c.b16 %v1043, %v1041
      %v1450 = vpack.c.b16 %v1046, %v1044
      %v1451 = vpack.c.b16 %v1047, %v1045
      %v1452 = vpack.c.b16 %v1050, %v1048
      %v1453 = vpack.c.b16 %v1051, %v1049
      %v1454 = vpack.c.b16 %v1054, %v1052
      %v1455 = vpack.c.b16 %v1055, %v1053
      %v1456 = vpack.c.b16 %v1058, %v1056
      %v1457 = vpack.c.b16 %v1059, %v1057
      %v1458 = vpack.c.b16 %v1062, %v1060
      %v1459 = vpack.c.b16 %v1063, %v1061
      %v1460 = vpack.c.b16 %v1066, %v1064
      %v1461 = vpack.c.b16 %v1067, %v1065
      %v1462 = vpack.c.b16 %v1070, %v1068
      %v1463 = vpack.c.b16 %v1071, %v1069
      %v1464 = vpack.c.b16 %v1074, %v1072
      %v1465 = vpack.c.b16 %v1075, %v1073
      %v1466 = vpack.c.b16 %v1078, %v1076
      %v1467 = vpack.c.b16 %v1079, %v1077
      %v1468 = vpack.c.b16 %v1082, %v1080
      %v1469 = vpack.c.b16 %v1083, %v1081
      %v1470 = vpack.c.b16 %v1086, %v1084
      %v1471 = vpack.c.b16 %v1087, %v1085
      %v1472 = vpack.c.b16 %v1090, %v1088
      %v1473 = vpack.c.b16 %v1091, %v1089
      %v1474 = vpack.c.b16 %v1094, %v1092
      %v1475 = vpack.c.b16 %v1095, %v1093
      %v1476 = vpack.c.b16 %v1098, %v1096
      %v1477 = vpack.c.b16 %v1099, %v1097
      %v1478 = vpack.c.b16 %v1102, %v1100
      %v1479 = vpack.c.b16 %v1103, %v1101
      %v1480 = vpack.c.b16 %v1106, %v1104
      %v1481 = vpack.c.b16 %v1107, %v1105
      %v1482 = vpack.c.b16 %v1110, %v1108
      %v1483 = vpack.c.b16 %v1111, %v1109
      %v1484 = vpack.c.b16 %v1114, %v1112
      %v1485 = vpack.c.b16 %v1115, %v1113
      %v1486 = vpack.c.b16 %v1118, %v1116
      %v1487 = vpack.c.b16 %v1119, %v1117
      %v1488 = vpack.c.b16 %v1122, %v1120
      %v1489 = vpack.c.b16 %v1123, %v1121
      %v1490 = vpack.c.b16 %v1126, %v1124
      %v1491 = vpack.c.b16 %v1127, %v1125
      %v1492 = vpack.c.b16 %v1130, %v1128
      %v1493 = vpack.c.b16 %v1131, %v1129
      %v1494 = vpack.c.b16 %v1134, %v1132
      %v1495 = vpack.c.b16 %v1135, %v1133
      %v1496 = vpack.c.b16 %v1138, %v1136
      %v1497 = vpack.c.b16 %v1139, %v1137
      %v1498 = vpack.c.b16 %v1142, %v1140
      %v1499 = vpack.c.b16 %v1143, %v1141
      %v1500 = vpack.c.b16 %v1146, %v1144
      %v1501 = vpack.c.b16 %v1147, %v1145
      %v1502 = vpack.c.b16 %v1150, %v1148
      %v1503 = vpack.c.b16 %v1151, %v1149
      %v1504 = vpack.c.b16 %v1154, %v1152
      %v1505 = vpack.c.b16 %v1155, %v1153
      %v1506 = vpack.c.b16 %v1158, %v1156
      %v1507 = vpack.c.b16 %v1159, %v1157
      %v1508 = vpack.c.b16 %v1162, %v1160
      %v1509 = vpack.c.b16 %v1163, %v1161
      %v1510 = vpack.c.b16 %v1166, %v1164
      %v1511 = vpack.c.b16 %v1167, %v1165
      %v1512 = vpack.c.b16 %v1170, %v1168
      %v1513 = vpack.c.b16 %v1171, %v1169
      %v1514 = vpack.c.b16 %v1174, %v1172
      %v1515 = vpack.c.b16 %v1175, %v1173
      %v1516 = vpack.c.b16 %v1178, %v1176
      %v1517 = vpack.c.b16 %v1179, %v1177
      %v1518 = vpack.c.b16 %v1182, %v1180
      %v1519 = vpack.c.b16 %v1183, %v1181
      %v1520 = vpack.c.b16 %v1186, %v1184
      %v1521 = vpack.c.b16 %v1187, %v1185
      %v1522 = vpack.c.b16 %v1190, %v1188
      %v1523 = vpack.c.b16 %v1191, %v1189
      %v1524 = vpack.c.b16 %v1194, %v1192
      %v1525 = vpack.c.b16 %v1195, %v1193
      %v1526 = vpack.c.b16 %v1198, %v1196
      %v1527 = vpack.c.b16 %v1199, %v1197
      %v1528 = vpack.c.b16 %v1202, %v1200
      %v1529 = vpack.c.b16 %v1203, %v1201
      %v1530 = vpack.c.b16 %v1206, %v1204
      %v1531 = vpack.c.b16 %v1207, %v1205
      %v1532 = vpack.c.b16 %v1210, %v1208
      %v1533 = vpack.c.b16 %v1211, %v1209
      %v1534 = vpack.c.b16 %v1214, %v1212
      %v1535 = vpack.c.b16 %v1215, %v1213
      %v1536 = vpack.c.b16 %v1218, %v1216
      %v1537 = vpack.c.b16 %v1219, %v1217
      %v1538 = vpack.c.b16 %v1222, %v1220
      %v1539 = vpack.c.b16 %v1223, %v1221
      %v1540 = vpack.c.b16 %v1226, %v1224
      %v1541 = vpack.c.b16 %v1227, %v1225
      %v1542 = vpack.c.b16 %v1230, %v1228
      %v1543 = vpack.c.b16 %v1231, %v1229
      %v1544 = vpack.c.b16 %v1234, %v1232
      %v1545 = vpack.c.b16 %v1235, %v1233
      %v1546 = vpack.c.b16 %v1238, %v1236
      %v1547 = vpack.c.b16 %v1239, %v1237
      %v1548 = vpack.c.b16 %v1242, %v1240
      %v1549 = vpack.c.b16 %v1243, %v1241
      %v1550 = vpack.c.b16 %v1246, %v1244
      %v1551 = vpack.c.b16 %v1247, %v1245
      %v1552 = vpack.c.b16 %v1250, %v1248
      %v1553 = vpack.c.b16 %v1251, %v1249
      %v1554 = vpack.c.b16 %v1254, %v1252
      %v1555 = vpack.c.b16 %v1255, %v1253
      %v1556 = vpack.c.b16 %v1258, %v1256
      %v1557 = vpack.c.b16 %v1259, %v1257
      %v1558 = vpack.c.b16 %v1262, %v1260
      %v1559 = vpack.c.b16 %v1263, %v1261
      %v1560 = vpack.c.b16 %v1266, %v1264
      %v1561 = vpack.c.b16 %v1267, %v1265
      %v1562 = vpack.c.b16 %v1270, %v1268
      %v1563 = vpack.c.b16 %v1271, %v1269
      %v1564 = vpack.c.b16 %v1274, %v1272
      %v1565 = vpack.c.b16 %v1275, %v1273
      %v1566 = vpack.c.b16 %v1278, %v1276
      %v1567 = vpack.c.b16 %v1279, %v1277
      %v1568 = vpack.c.b16 %v1282, %v1280
      %v1569 = vpack.c.b16 %v1283, %v1281
      %v1570 = vpack.c.b16 %v1286, %v1284
      %v1571 = vpack.c.b16 %v1287, %v1285
      %v1572 = vpack.c.b16 %v1290, %v1288
      %v1573 = vpack.c.b16 %v1291, %v1289
      %v1574 = vpack.c.b16 %v1294, %v1292
      %v1575 = vpack.c.b16 %v1295, %v1293
      %v1576 = vpack.c.b16 %v1298, %v1296
      %v1577 = vpack.c.b16 %v1299, %v1297
      %v1578 = vpack.c.b16 %v1302, %v1300
      %v1579 = vpack.c.b16 %v1303, %v1301
      %v1580 = vpack.c.b16 %v1306, %v1304
      %v1581 = vpack.c.b16 %v1307, %v1305
      %v1582 = vpack.c.b16 %v1310, %v1308
      %v1583 = vpack.c.b16 %v1311, %v1309
      %v1584 = vpack.c.b16 %v1314, %v1312
      %v1585 = vpack.c.b16 %v1315, %v1313
      %v1586 = vpack.c.b16 %v1318, %v1316
      %v1587 = vpack.c.b16 %v1319, %v1317
      %v1588 = vpack.c.b16 %v1322, %v1320
      %v1589 = vpack.c.b16 %v1323, %v1321
      %v1590 = vpack.c.b16 %v1326, %v1324
      %v1591 = vpack.c.b16 %v1327, %v1325
      %v1592 = vpack.c.b16 %v1330, %v1328
      %v1593 = vpack.c.b16 %v1331, %v1329
      %v1594 = vpack.c.b16 %v1334, %v1332
      %v1595 = vpack.c.b16 %v1335, %v1333
      %v1596 = vpack.c.b16 %v1338, %v1336
      %v1597 = vpack.c.b16 %v1339, %v1337
      %v1598 = vpack.c.b16 %v1342, %v1340
      %v1599 = vpack.c.b16 %v1343, %v1341
      %1856 = vmatprep.subr.bf16.mxu0 %v1345
      %1857 = vmatpush1.bf16.msra.mxu0 %v1344
      %1858 = vmatprep.subr.bf16.mxu0 %v1347
      %1859 = vmatpush1.bf16.msra.mxu0 %v1346
      %1860 = vmatprep.subr.bf16.mxu0 %v1349
      %1861 = vmatpush1.bf16.msra.mxu0 %v1348
      %1862 = vmatprep.subr.bf16.mxu0 %v1351
      %1863 = vmatpush1.bf16.msra.mxu0 %v1350
      %1864 = vmatprep.subr.bf16.mxu0 %v1353
      %1865 = vmatpush1.bf16.msra.mxu0 %v1352
      %1866 = vmatprep.subr.bf16.mxu0 %v1355
      %1867 = vmatpush1.bf16.msra.mxu0 %v1354
      %1868 = vmatprep.subr.bf16.mxu0 %v1357
      %1869 = vmatpush1.bf16.msra.mxu0 %v1356
      %1870 = vmatprep.subr.bf16.mxu0 %v1359
      %1871 = vmatpush1.bf16.msra.mxu0 %v1358
      %1872 = vmatprep.subr.bf16.mxu0 %v1361
      %1873 = vmatpush1.bf16.msra.mxu0 %v1360
      %1874 = vmatprep.subr.bf16.mxu0 %v1363
      %1875 = vmatpush1.bf16.msra.mxu0 %v1362
      %1876 = vmatprep.subr.bf16.mxu0 %v1365
      %1877 = vmatpush1.bf16.msra.mxu0 %v1364
      %1878 = vmatprep.subr.bf16.mxu0 %v1367
      %1879 = vmatpush1.bf16.msra.mxu0 %v1366
      %1880 = vmatprep.subr.bf16.mxu0 %v1369
      %1881 = vmatpush1.bf16.msra.mxu0 %v1368
      %1882 = vmatprep.subr.bf16.mxu0 %v1371
      %1883 = vmatpush1.bf16.msra.mxu0 %v1370
      %1884 = vmatprep.subr.bf16.mxu0 %v1373
      %1885 = vmatpush1.bf16.msra.mxu0 %v1372
      %1886 = vmatprep.subr.bf16.mxu0 %v1375
      %1887 = vmatpush1.bf16.msra.mxu0 %v1374
      %1888 = vmatprep.mubr.bf16.mxu0 %v545
      %1889 = vmatmul.mubr.bf16.gmra.mrb[0].mxu0 %v544
      %v1890 = vpop.f32.mrb[0].mxu0
      %v1891 = vadd.f32 %v513, %v1890
      %v1892 = vpop.f32.mrb[0].mxu0
      %v1893 = vadd.f32 %v517, %v1892
      %v1894 = vpop.f32.mrb[0].mxu0
      %v1895 = vpop.f32.mrb[0].mxu0
      %1896 = vdwg.mxu0
      %1897 = vmatprep.subr.bf16.mxu0 %v1377
      %1898 = vmatpush1.bf16.msra.mxu0 %v1376
      %1899 = vmatprep.subr.bf16.mxu0 %v1379
      %1900 = vmatpush1.bf16.msra.mxu0 %v1378
      %1901 = vmatprep.subr.bf16.mxu0 %v1381
      %1902 = vmatpush1.bf16.msra.mxu0 %v1380
      %1903 = vmatprep.subr.bf16.mxu0 %v1383
      %1904 = vmatpush1.bf16.msra.mxu0 %v1382
      %1905 = vmatprep.subr.bf16.mxu0 %v1385
      %1906 = vmatpush1.bf16.msra.mxu0 %v1384
      %1907 = vmatprep.subr.bf16.mxu0 %v1387
      %1908 = vmatpush1.bf16.msra.mxu0 %v1386
      %1909 = vmatprep.subr.bf16.mxu0 %v1389
      %1910 = vmatpush1.bf16.msra.mxu0 %v1388
      %1911 = vmatprep.subr.bf16.mxu0 %v1391
      %1912 = vmatpush1.bf16.msra.mxu0 %v1390
      %1913 = vmatprep.subr.bf16.mxu0 %v1393
      %1914 = vmatpush1.bf16.msra.mxu0 %v1392
      %1915 = vmatprep.subr.bf16.mxu0 %v1395
      %1916 = vmatpush1.bf16.msra.mxu0 %v1394
      %1917 = vmatprep.subr.bf16.mxu0 %v1397
      %1918 = vmatpush1.bf16.msra.mxu0 %v1396
      %1919 = vmatprep.subr.bf16.mxu0 %v1399
      %1920 = vmatpush1.bf16.msra.mxu0 %v1398
      %1921 = vmatprep.subr.bf16.mxu0 %v1401
      %1922 = vmatpush1.bf16.msra.mxu0 %v1400
      %1923 = vmatprep.subr.bf16.mxu0 %v1403
      %1924 = vmatpush1.bf16.msra.mxu0 %v1402
      %1925 = vmatprep.subr.bf16.mxu0 %v1405
      %1926 = vmatpush1.bf16.msra.mxu0 %v1404
      %1927 = vmatprep.subr.bf16.mxu0 %v1407
      %1928 = vmatpush1.bf16.msra.mxu0 %v1406
      %1929 = vmatprep.mubr.bf16.mxu0 %v547
      %1930 = vmatmul.mubr.bf16.gmra.mrb[0].mxu0 %v546
      %v1931 = vpop.f32.mrb[0].mxu0
      %v1932 = vadd.f32 %v1891, %v1931
      %v1933 = vpop.f32.mrb[0].mxu0
      %v1934 = vadd.f32 %v1893, %v1933
      %v1935 = vpop.f32.mrb[0].mxu0
      %v1936 = vpop.f32.mrb[0].mxu0
      %1937 = vdwg.mxu0
      %1938 = vmatprep.subr.bf16.mxu0 %v1409
      %1939 = vmatpush1.bf16.msra.mxu0 %v1408
      %1940 = vmatprep.subr.bf16.mxu0 %v1411
      %1941 = vmatpush1.bf16.msra.mxu0 %v1410
      %1942 = vmatprep.subr.bf16.mxu0 %v1413
      %1943 = vmatpush1.bf16.msra.mxu0 %v1412
      %1944 = vmatprep.subr.bf16.mxu0 %v1415
      %1945 = vmatpush1.bf16.msra.mxu0 %v1414
      %1946 = vmatprep.subr.bf16.mxu0 %v1417
      %1947 = vmatpush1.bf16.msra.mxu0 %v1416
      %1948 = vmatprep.subr.bf16.mxu0 %v1419
      %1949 = vmatpush1.bf16.msra.mxu0 %v1418
      %1950 = vmatprep.subr.bf16.mxu0 %v1421
      %1951 = vmatpush1.bf16.msra.mxu0 %v1420
      %1952 = vmatprep.subr.bf16.mxu0 %v1423
      %1953 = vmatpush1.bf16.msra.mxu0 %v1422
      %1954 = vmatprep.subr.bf16.mxu0 %v1425
      %1955 = vmatpush1.bf16.msra.mxu0 %v1424
      %1956 = vmatprep.subr.bf16.mxu0 %v1427
      %1957 = vmatpush1.bf16.msra.mxu0 %v1426
      %1958 = vmatprep.subr.bf16.mxu0 %v1429
      %1959 = vmatpush1.bf16.msra.mxu0 %v1428
      %1960 = vmatprep.subr.bf16.mxu0 %v1431
      %1961 = vmatpush1.bf16.msra.mxu0 %v1430
      %1962 = vmatprep.subr.bf16.mxu0 %v1433
      %1963 = vmatpush1.bf16.msra.mxu0 %v1432
      %1964 = vmatprep.subr.bf16.mxu0 %v1435
      %1965 = vmatpush1.bf16.msra.mxu0 %v1434
      %1966 = vmatprep.subr.bf16.mxu0 %v1437
      %1967 = vmatpush1.bf16.msra.mxu0 %v1436
      %1968 = vmatprep.subr.bf16.mxu0 %v1439
      %1969 = vmatpush1.bf16.msra.mxu0 %v1438
      %1970 = vmatprep.mubr.bf16.mxu0 %v549
      %1971 = vmatmul.mubr.bf16.gmra.mrb[0].mxu0 %v548
      %v1972 = vpop.f32.mrb[0].mxu0
      %v1973 = vadd.f32 %v1932, %v1972
      %v1974 = vpop.f32.mrb[0].mxu0
      %v1975 = vadd.f32 %v1934, %v1974
      %v1976 = vpop.f32.mrb[0].mxu0
      %v1977 = vpop.f32.mrb[0].mxu0
      %1978 = vdwg.mxu0
      %1979 = vmatprep.subr.bf16.mxu0 %v1441
      %1980 = vmatpush1.bf16.msra.mxu0 %v1440
      %1981 = vmatprep.subr.bf16.mxu0 %v1443
      %1982 = vmatpush1.bf16.msra.mxu0 %v1442
      %1983 = vmatprep.subr.bf16.mxu0 %v1445
      %1984 = vmatpush1.bf16.msra.mxu0 %v1444
      %1985 = vmatprep.subr.bf16.mxu0 %v1447
      %1986 = vmatpush1.bf16.msra.mxu0 %v1446
      %1987 = vmatprep.subr.bf16.mxu0 %v1449
      %1988 = vmatpush1.bf16.msra.mxu0 %v1448
      %1989 = vmatprep.subr.bf16.mxu0 %v1451
      %1990 = vmatpush1.bf16.msra.mxu0 %v1450
      %1991 = vmatprep.subr.bf16.mxu0 %v1453
      %1992 = vmatpush1.bf16.msra.mxu0 %v1452
      %1993 = vmatprep.subr.bf16.mxu0 %v1455
      %1994 = vmatpush1.bf16.msra.mxu0 %v1454
      %1995 = vmatprep.subr.bf16.mxu0 %v1457
      %1996 = vmatpush1.bf16.msra.mxu0 %v1456
      %1997 = vmatprep.subr.bf16.mxu0 %v1459
      %1998 = vmatpush1.bf16.msra.mxu0 %v1458
      %1999 = vmatprep.subr.bf16.mxu0 %v1461
      %2000 = vmatpush1.bf16.msra.mxu0 %v1460
      %2001 = vmatprep.subr.bf16.mxu0 %v1463
      %2002 = vmatpush1.bf16.msra.mxu0 %v1462
      %2003 = vmatprep.subr.bf16.mxu0 %v1465
      %2004 = vmatpush1.bf16.msra.mxu0 %v1464
      %2005 = vmatprep.subr.bf16.mxu0 %v1467
      %2006 = vmatpush1.bf16.msra.mxu0 %v1466
      %2007 = vmatprep.subr.bf16.mxu0 %v1469
      %2008 = vmatpush1.bf16.msra.mxu0 %v1468
      %2009 = vmatprep.subr.bf16.mxu0 %v1471
      %2010 = vmatpush1.bf16.msra.mxu0 %v1470
      %2011 = vmatprep.mubr.bf16.mxu0 %v551
      %2012 = vmatmul.mubr.bf16.gmra.mrb[0].mxu0 %v550
      %v2013 = vpop.f32.mrb[0].mxu0
      %v2014 = vadd.f32 %v1973, %v2013
      %v2015 = vpop.f32.mrb[0].mxu0
      %v2016 = vadd.f32 %v1975, %v2015
      %v2017 = vpop.f32.mrb[0].mxu0
      %v2018 = vpop.f32.mrb[0].mxu0
      %2019 = vdwg.mxu0
      %2020 = vmatprep.subr.bf16.mxu0 %v1473
      %2021 = vmatpush1.bf16.msra.mxu0 %v1472
      %2022 = vmatprep.subr.bf16.mxu0 %v1475
      %2023 = vmatpush1.bf16.msra.mxu0 %v1474
      %2024 = vmatprep.subr.bf16.mxu0 %v1477
      %2025 = vmatpush1.bf16.msra.mxu0 %v1476
      %2026 = vmatprep.subr.bf16.mxu0 %v1479
      %2027 = vmatpush1.bf16.msra.mxu0 %v1478
      %2028 = vmatprep.subr.bf16.mxu0 %v1481
      %2029 = vmatpush1.bf16.msra.mxu0 %v1480
      %2030 = vmatprep.subr.bf16.mxu0 %v1483
      %2031 = vmatpush1.bf16.msra.mxu0 %v1482
      %2032 = vmatprep.subr.bf16.mxu0 %v1485
      %2033 = vmatpush1.bf16.msra.mxu0 %v1484
      %2034 = vmatprep.subr.bf16.mxu0 %v1487
      %2035 = vmatpush1.bf16.msra.mxu0 %v1486
      %2036 = vmatprep.subr.bf16.mxu0 %v1489
      %2037 = vmatpush1.bf16.msra.mxu0 %v1488
      %2038 = vmatprep.subr.bf16.mxu0 %v1491
      %2039 = vmatpush1.bf16.msra.mxu0 %v1490
      %2040 = vmatprep.subr.bf16.mxu0 %v1493
      %2041 = vmatpush1.bf16.msra.mxu0 %v1492
      %2042 = vmatprep.subr.bf16.mxu0 %v1495
      %2043 = vmatpush1.bf16.msra.mxu0 %v1494
      %2044 = vmatprep.subr.bf16.mxu0 %v1497
      %2045 = vmatpush1.bf16.msra.mxu0 %v1496
      %2046 = vmatprep.subr.bf16.mxu0 %v1499
      %2047 = vmatpush1.bf16.msra.mxu0 %v1498
      %2048 = vmatprep.subr.bf16.mxu0 %v1501
      %2049 = vmatpush1.bf16.msra.mxu0 %v1500
      %2050 = vmatprep.subr.bf16.mxu0 %v1503
      %2051 = vmatpush1.bf16.msra.mxu0 %v1502
      %2052 = vmatprep.mubr.bf16.mxu0 %v553
      %2053 = vmatmul.mubr.bf16.gmra.mrb[0].mxu0 %v552
      %v2054 = vpop.f32.mrb[0].mxu0
      %v2055 = vadd.f32 %v2014, %v2054
      %v2056 = vpop.f32.mrb[0].mxu0
      %v2057 = vadd.f32 %v2016, %v2056
      %v2058 = vpop.f32.mrb[0].mxu0
      %v2059 = vpop.f32.mrb[0].mxu0
      %2060 = vdwg.mxu0
      %2061 = vmatprep.subr.bf16.mxu0 %v1505
      %2062 = vmatpush1.bf16.msra.mxu0 %v1504
      %2063 = vmatprep.subr.bf16.mxu0 %v1507
      %2064 = vmatpush1.bf16.msra.mxu0 %v1506
      %2065 = vmatprep.subr.bf16.mxu0 %v1509
      %2066 = vmatpush1.bf16.msra.mxu0 %v1508
      %2067 = vmatprep.subr.bf16.mxu0 %v1511
      %2068 = vmatpush1.bf16.msra.mxu0 %v1510
      %2069 = vmatprep.subr.bf16.mxu0 %v1513
      %2070 = vmatpush1.bf16.msra.mxu0 %v1512
      %2071 = vmatprep.subr.bf16.mxu0 %v1515
      %2072 = vmatpush1.bf16.msra.mxu0 %v1514
      %2073 = vmatprep.subr.bf16.mxu0 %v1517
      %2074 = vmatpush1.bf16.msra.mxu0 %v1516
      %2075 = vmatprep.subr.bf16.mxu0 %v1519
      %2076 = vmatpush1.bf16.msra.mxu0 %v1518
      %2077 = vmatprep.subr.bf16.mxu0 %v1521
      %2078 = vmatpush1.bf16.msra.mxu0 %v1520
      %2079 = vmatprep.subr.bf16.mxu0 %v1523
      %2080 = vmatpush1.bf16.msra.mxu0 %v1522
      %2081 = vmatprep.subr.bf16.mxu0 %v1525
      %2082 = vmatpush1.bf16.msra.mxu0 %v1524
      %2083 = vmatprep.subr.bf16.mxu0 %v1527
      %2084 = vmatpush1.bf16.msra.mxu0 %v1526
      %2085 = vmatprep.subr.bf16.mxu0 %v1529
      %2086 = vmatpush1.bf16.msra.mxu0 %v1528
      %2087 = vmatprep.subr.bf16.mxu0 %v1531
      %2088 = vmatpush1.bf16.msra.mxu0 %v1530
      %2089 = vmatprep.subr.bf16.mxu0 %v1533
      %2090 = vmatpush1.bf16.msra.mxu0 %v1532
      %2091 = vmatprep.subr.bf16.mxu0 %v1535
      %2092 = vmatpush1.bf16.msra.mxu0 %v1534
      %2093 = vmatprep.mubr.bf16.mxu0 %v555
      %2094 = vmatmul.mubr.bf16.gmra.mrb[0].mxu0 %v554
      %v2095 = vpop.f32.mrb[0].mxu0
      %v2096 = vadd.f32 %v2055, %v2095
      %v2097 = vpop.f32.mrb[0].mxu0
      %v2098 = vadd.f32 %v2057, %v2097
      %v2099 = vpop.f32.mrb[0].mxu0
      %v2100 = vpop.f32.mrb[0].mxu0
      %2101 = vdwg.mxu0
      %2102 = vmatprep.subr.bf16.mxu0 %v1537
      %2103 = vmatpush1.bf16.msra.mxu0 %v1536
      %2104 = vmatprep.subr.bf16.mxu0 %v1539
      %2105 = vmatpush1.bf16.msra.mxu0 %v1538
      %2106 = vmatprep.subr.bf16.mxu0 %v1541
      %2107 = vmatpush1.bf16.msra.mxu0 %v1540
      %2108 = vmatprep.subr.bf16.mxu0 %v1543
      %2109 = vmatpush1.bf16.msra.mxu0 %v1542
      %2110 = vmatprep.subr.bf16.mxu0 %v1545
      %2111 = vmatpush1.bf16.msra.mxu0 %v1544
      %2112 = vmatprep.subr.bf16.mxu0 %v1547
      %2113 = vmatpush1.bf16.msra.mxu0 %v1546
      %2114 = vmatprep.subr.bf16.mxu0 %v1549
      %2115 = vmatpush1.bf16.msra.mxu0 %v1548
      %2116 = vmatprep.subr.bf16.mxu0 %v1551
      %2117 = vmatpush1.bf16.msra.mxu0 %v1550
      %2118 = vmatprep.subr.bf16.mxu0 %v1553
      %2119 = vmatpush1.bf16.msra.mxu0 %v1552
      %2120 = vmatprep.subr.bf16.mxu0 %v1555
      %2121 = vmatpush1.bf16.msra.mxu0 %v1554
      %2122 = vmatprep.subr.bf16.mxu0 %v1557
      %2123 = vmatpush1.bf16.msra.mxu0 %v1556
      %2124 = vmatprep.subr.bf16.mxu0 %v1559
      %2125 = vmatpush1.bf16.msra.mxu0 %v1558
      %2126 = vmatprep.subr.bf16.mxu0 %v1561
      %2127 = vmatpush1.bf16.msra.mxu0 %v1560
      %2128 = vmatprep.subr.bf16.mxu0 %v1563
      %2129 = vmatpush1.bf16.msra.mxu0 %v1562
      %2130 = vmatprep.subr.bf16.mxu0 %v1565
      %2131 = vmatpush1.bf16.msra.mxu0 %v1564
      %2132 = vmatprep.subr.bf16.mxu0 %v1567
      %2133 = vmatpush1.bf16.msra.mxu0 %v1566
      %2134 = vmatprep.mubr.bf16.mxu0 %v557
      %2135 = vmatmul.mubr.bf16.gmra.mrb[0].mxu0 %v556
      %v2136 = vpop.f32.mrb[0].mxu0
      %v2137 = vadd.f32 %v2096, %v2136
      %v2138 = vpop.f32.mrb[0].mxu0
      %v2139 = vadd.f32 %v2098, %v2138
      %v2140 = vpop.f32.mrb[0].mxu0
      %v2141 = vpop.f32.mrb[0].mxu0
      %2142 = vdwg.mxu0
      %2143 = vmatprep.subr.bf16.mxu0 %v1569
      %2144 = vmatpush1.bf16.msra.mxu0 %v1568
      %2145 = vmatprep.subr.bf16.mxu0 %v1571
      %2146 = vmatpush1.bf16.msra.mxu0 %v1570
      %2147 = vmatprep.subr.bf16.mxu0 %v1573
      %2148 = vmatpush1.bf16.msra.mxu0 %v1572
      %2149 = vmatprep.subr.bf16.mxu0 %v1575
      %2150 = vmatpush1.bf16.msra.mxu0 %v1574
      %2151 = vmatprep.subr.bf16.mxu0 %v1577
      %2152 = vmatpush1.bf16.msra.mxu0 %v1576
      %2153 = vmatprep.subr.bf16.mxu0 %v1579
      %2154 = vmatpush1.bf16.msra.mxu0 %v1578
      %2155 = vmatprep.subr.bf16.mxu0 %v1581
      %2156 = vmatpush1.bf16.msra.mxu0 %v1580
      %2157 = vmatprep.subr.bf16.mxu0 %v1583
      %2158 = vmatpush1.bf16.msra.mxu0 %v1582
      %2159 = vmatprep.subr.bf16.mxu0 %v1585
      %2160 = vmatpush1.bf16.msra.mxu0 %v1584
      %2161 = vmatprep.subr.bf16.mxu0 %v1587
      %2162 = vmatpush1.bf16.msra.mxu0 %v1586
      %2163 = vmatprep.subr.bf16.mxu0 %v1589
      %2164 = vmatpush1.bf16.msra.mxu0 %v1588
      %2165 = vmatprep.subr.bf16.mxu0 %v1591
      %2166 = vmatpush1.bf16.msra.mxu0 %v1590
      %2167 = vmatprep.subr.bf16.mxu0 %v1593
      %2168 = vmatpush1.bf16.msra.mxu0 %v1592
      %2169 = vmatprep.subr.bf16.mxu0 %v1595
      %2170 = vmatpush1.bf16.msra.mxu0 %v1594
      %2171 = vmatprep.subr.bf16.mxu0 %v1597
      %2172 = vmatpush1.bf16.msra.mxu0 %v1596
      %2173 = vmatprep.subr.bf16.mxu0 %v1599
      %2174 = vmatpush1.bf16.msra.mxu0 %v1598
      %2175 = vmatprep.mubr.bf16.mxu0 %v559
      %2176 = vmatmul.mubr.bf16.gmra.mrb[0].mxu0 %v558
      %v2177 = vpop.f32.mrb[0].mxu0
      %v2178 = vadd.f32 %v2137, %v2177
      %v2179 = vpop.f32.mrb[0].mxu0
      %v2180 = vadd.f32 %v2139, %v2179
      %v2181 = vpop.f32.mrb[0].mxu0
      %v2182 = vpop.f32.mrb[0].mxu0
      %2183 = vdwg.mxu0
      %v2184 = vmul.f32 %v2178, 0.1
      %v2185 = vmul.f32 %v2180, 0.1
      %v2186 = vmax.f32 %v2178, %v2184
      %v2187 = vmax.f32 %v2180, %v2185
      %2188 = vst [vmem:[%s243] sm:$0xff] %v2186
      %2189 = vst [vmem:[%s243 + $0x8] sm:$0xff] %v2187
      %p2190 = scmp.lt.s32.totalorder %s18, 3
      %s2191 = scalar_select %p2190, %s18, 3
      %p2192 = scmp.lt.s32.totalorder %s19, 0
      %s2193 = scalar_select %p2192, %s19, 0
      %s2194 = smul.addr %s2193, 2
      %s2195 = smul.addr %s2191, 2
      %s2196 = sadd.s32 %s2194, %s2195
      %s2197 = smul.addr %s2196, 8
      %s2198 = scalar_lea.vmem %s3, %s2197
      // Predicated region
      $region33: #{transition_pruner_forward.21} parent=31 // pred_check
        %p2199 = pneg %p126
      $region34: #{transition_pruner_forward.21} parent=31 // pred_check_branch
        %2201 = sbr.rel (%p2199) target = $region36
      $region35: #{transition_pruner_forward.21} parent=31 // pred_region
        _
      $region36: #{transition_pruner_forward.21} parent=31 // pred_fallthru
        _
    $region32: #{transition_pruner_forward.21} parent=5 // pred_fallthru
      _
    %p2202 = scmp.le.s32.totalorder 2, %s9
    // Predicated region
    $region37: #{transition_pruner_forward.21} parent=5 // pred_check
      %p2203 = pneg %p2202
    $region38: #{transition_pruner_forward.21} parent=5 // pred_check_branch
      %2205 = sbr.rel (%p2203) target = $region40
    $region39: #{transition_pruner_forward.21} parent=5 // pred_region
      %s2206 = ssub.s32 %s9, 2
      // Predicated region
      $region41: #{transition_pruner_forward.21} parent=39 // pred_check
        %p2207 = pneg %p132
      $region42: #{transition_pruner_forward.21} parent=39 // pred_check_branch
        %2209 = sbr.rel (%p2207) target = $region44
      $region43: #{transition_pruner_forward.21} parent=39 // pred_region
        %p2210 = scmp.lt.s32.totalorder %s20, 3
        %s2211 = scalar_select %p2210, %s20, 3
        %p2212 = scmp.lt.s32.totalorder %s21, 0
        %s2213 = scalar_select %p2212, %s21, 0
        %s2214 = smul.addr %s2213, 2
        %s2215 = smul.addr %s2211, 2
        %s2216 = sadd.s32 %s2214, %s2215
        %s2217 = smul.addr %s2216, 8
        %s2218 = scalar_lea.vmem %s3, %s2217
      $region44: #{transition_pruner_forward.21} parent=39 // pred_fallthru
        _
    $region40: #{transition_pruner_forward.21} parent=5 // pred_fallthru
      _
  $region6: #{transition_pruner_forward.21} parent=0 // loop_footer
    %s13 = sadd.s32 1, %s9
  $region7: #{transition_pruner_forward.21} parent=0 // loop_footer_branch
    %8 = sbr.rel target = $region3
  $region8: #{transition_pruner_forward.21} parent=0 // loop_exit
    _

// kernel: transition_pruner_forward.22
$region0: #{transition_pruner_forward.22}
  #allocation0 [shape = 'u32[]', space=smem, size = 0x4, offset = 0x4, fixed_abs, tag = 'smem constant byte address 0x4 - core index']
  #allocation1 [shape = 'u32[144,128]{1,0:T(1,128)}', space=vmem, size = 0x12000, scoped, tag = 'internal scratch']
  %s0 = inlined_call_operand.vmem [shape: bf16[4,8,1024], index: 0, kind: input, shape index: {}]
  %s1 = inlined_call_operand.vmem [shape: bf16[4,1024,128], index: 1, kind: input, shape index: {}]
  %s2 = inlined_call_operand.vmem [shape: f32[4,1,128], index: 2, kind: input, shape index: {}]
  %s3 = inlined_call_operand.vmem [shape: f32[4,8,128], index: 3, kind: output, shape index: {}]
  %s4 = sld [smem:[#allocation0]]
  $region45: #{transition_pruner_forward.22} parent=0
    _
  %s6 = ssub.s32 1, %s4
  %s7 = scalar_select 0, %s6, %s4
  loop: start=0, step=1, limit=6
  $region2: #{transition_pruner_forward.22} parent=0 // loop_pre_header
    _
  $region3: #{transition_pruner_forward.22} parent=0 // loop_header
    %s9 = sphi 0, %s13
    %p10 = scmp.ge.s32.totalorder %s9, 6
    %s16 = sphi 0, %s28
    %s17 = sphi 0, %s24
    %s18 = sphi 0, %s16
    %s19 = sphi 0, %s17
    %s20 = sphi 0, %s18
    %s21 = sphi 0, %s19
    %s33 = sphi 0, %s35
    %s36 = sphi 0, %s33
    %s37 = sphi 0, %s36
    %s53 = sphi 0, %s37
    %s59 = sphi 0, %s61
    %s62 = sphi 0, %s59
    %s63 = sphi 0, %s62
    %s79 = sphi 0, %s63
    %s85 = sphi 0, %s87
    %s88 = sphi 0, %s85
    %s89 = sphi 0, %s88
    %s105 = sphi 0, %s89
    %s113 = sphi 0, %s115
    %s116 = sphi 0, %s113
    %s117 = sphi 0, %s116
    %s133 = sphi 0, %s117
  $region4: #{transition_pruner_forward.22} parent=0 // loop_header_branch
    %12 = sbr.rel (%p10) target = $region8
  $region5: #{transition_pruner_forward.22} parent=0 // loop_body
    %s14 = ssub.s32 %s9, 1
    %s15 = ssub.s32 %s9, 2
    %s22 = sadd.s32 1, %s17
    %p23 = scmp.ge.s32.totalorder %s22, 1
    %s24 = scalar_select %p23, 0, %s22
    %s25 = sadd.s32 1, %s16
    %s26 = scalar_select %p23, %s25, %s16
    %p27 = scmp.ge.s32.totalorder %s26, 4
    %s28 = scalar_select %p27, 0, %s26
    %s29 = ssub.s32 %s16, %s28
    %s30 = ssub.s32 %s17, %s24
    %s31 = sor.u32 %s29, %s30
    %p32 = scmp.eq.s32.totalorder %s31, 0
    %s34 = sadd.s32 %s33, 1
    %s35 = scalar_select %p32, %s33, %s34
    %p38 = pneg %p32
    %p39 = scmp.eq.s32.totalorder %s9, 3
    %p40 = por %p38, %p39
    %p41 = scmp.ne.s32.totalorder %s33, %s36
    %p42 = scmp.eq.s32.totalorder %s9, 0
    %p43 = por %p41, %p42
    %p44 = scmp.ne.s32.totalorder %s33, %s36
    %p45 = scmp.eq.s32.totalorder %s14, 3
    %p46 = por %p44, %p45
    %p47 = scmp.ne.s32.totalorder %s36, %s37
    %p48 = scmp.eq.s32.totalorder %s14, 0
    %p49 = por %p47, %p48
    %p50 = scmp.ne.s32.totalorder %s36, %s37
    %p51 = scmp.eq.s32.totalorder %s15, 3
    %p52 = por %p50, %p51
    %p54 = scmp.ne.s32.totalorder %s37, %s53
    %p55 = scmp.eq.s32.totalorder %s15, 0
    %p56 = por %p54, %p55
    %s57 = ssub.s32 %s16, %s28
    %p58 = scmp.eq.s32.totalorder %s57, 0
    %s60 = sadd.s32 %s59, 1
    %s61 = scalar_select %p58, %s59, %s60
    %p64 = pneg %p58
    %p65 = scmp.eq.s32.totalorder %s9, 3
    %p66 = por %p64, %p65
    %p67 = scmp.ne.s32.totalorder %s59, %s62
    %p68 = scmp.eq.s32.totalorder %s9, 0
    %p69 = por %p67, %p68
    %p70 = scmp.ne.s32.totalorder %s59, %s62
    %p71 = scmp.eq.s32.totalorder %s14, 3
    %p72 = por %p70, %p71
    %p73 = scmp.ne.s32.totalorder %s62, %s63
    %p74 = scmp.eq.s32.totalorder %s14, 0
    %p75 = por %p73, %p74
    %p76 = scmp.ne.s32.totalorder %s62, %s63
    %p77 = scmp.eq.s32.totalorder %s15, 3
    %p78 = por %p76, %p77
    %p80 = scmp.ne.s32.totalorder %s63, %s79
    %p81 = scmp.eq.s32.totalorder %s15, 0
    %p82 = por %p80, %p81
    %s83 = ssub.s32 %s16, %s28
    %p84 = scmp.eq.s32.totalorder %s83, 0
    %s86 = sadd.s32 %s85, 1
    %s87 = scalar_select %p84, %s85, %s86
    %p90 = pneg %p84
    %p91 = scmp.eq.s32.totalorder %s9, 3
    %p92 = por %p90, %p91
    %p93 = scmp.ne.s32.totalorder %s85, %s88
    %p94 = scmp.eq.s32.totalorder %s9, 0
    %p95 = por %p93, %p94
    %p96 = scmp.ne.s32.totalorder %s85, %s88
    %p97 = scmp.eq.s32.totalorder %s14, 3
    %p98 = por %p96, %p97
    %p99 = scmp.ne.s32.totalorder %s88, %s89
    %p100 = scmp.eq.s32.totalorder %s14, 0
    %p101 = por %p99, %p100
    %p102 = scmp.ne.s32.totalorder %s88, %s89
    %p103 = scmp.eq.s32.totalorder %s15, 3
    %p104 = por %p102, %p103
    %p106 = scmp.ne.s32.totalorder %s89, %s105
    %p107 = scmp.eq.s32.totalorder %s15, 0
    %p108 = por %p106, %p107
    %s109 = ssub.s32 %s16, %s28
    %s110 = ssub.s32 %s17, %s24
    %s111 = sor.u32 %s109, %s110
    %p112 = scmp.eq.s32.totalorder %s111, 0
    %s114 = sadd.s32 %s113, 1
    %s115 = scalar_select %p112, %s113, %s114
    %p118 = pneg %p112
    %p119 = scmp.eq.s32.totalorder %s9, 3
    %p120 = por %p118, %p119
    %p121 = scmp.ne.s32.totalorder %s113, %s116
    %p122 = scmp.eq.s32.totalorder %s9, 0
    %p123 = por %p121, %p122
    %p124 = scmp.ne.s32.totalorder %s113, %s116
    %p125 = scmp.eq.s32.totalorder %s14, 3
    %p126 = por %p124, %p125
    %p127 = scmp.ne.s32.totalorder %s116, %s117
    %p128 = scmp.eq.s32.totalorder %s14, 0
    %p129 = por %p127, %p128
    %p130 = scmp.ne.s32.totalorder %s116, %s117
    %p131 = scmp.eq.s32.totalorder %s15, 3
    %p132 = por %p130, %p131
    %p134 = scmp.ne.s32.totalorder %s117, %s133
    %p135 = scmp.eq.s32.totalorder %s15, 0
    %p136 = por %p134, %p135
    %p137 = scmp.le.s32.totalorder 1, %s9
    %p138 = scmp.lt.s32.totalorder %s9, 5
    %p139 = pnand %p137, %p138
    %p140 = pneg %p139
    // Predicated region
    $region9: #{transition_pruner_forward.22} parent=5 // pred_check
      _
    $region10: #{transition_pruner_forward.22} parent=5 // pred_check_branch
      %142 = sbr.rel (%p139) target = $region12
    $region11: #{transition_pruner_forward.22} parent=5 // pred_region
      %s143 = ssub.s32 %s9, 1
    $region12: #{transition_pruner_forward.22} parent=5 // pred_fallthru
      _
    %p144 = scmp.lt.s32.totalorder %s9, 4
    // Predicated region
    $region13: #{transition_pruner_forward.22} parent=5 // pred_check
      %p145 = pneg %p144
    $region14: #{transition_pruner_forward.22} parent=5 // pred_check_branch
      %147 = sbr.rel (%p145) target = $region16
    $region15: #{transition_pruner_forward.22} parent=5 // pred_region
      // Predicated region
      $region17: #{transition_pruner_forward.22} parent=15 // pred_check
        %p148 = pneg %p43
      $region18: #{transition_pruner_forward.22} parent=15 // pred_check_branch
        %150 = sbr.rel (%p148) target = $region20
      $region19: #{transition_pruner_forward.22} parent=15 // pred_region
        %p151 = scmp.lt.s32.totalorder %s16, 3
        %s152 = scalar_select %p151, %s16, 3
        %p153 = scmp.lt.s32.totalorder %s17, 0
        %s154 = scalar_select %p153, %s17, 0
        %s155 = smul.addr %s154, 8
        %s156 = smul.addr %s152, 8
        %s157 = sadd.s32 %s155, %s156
        %s158 = smul.addr %s157, 4
        %s159 = scalar_lea.vmem %s0, %s158
      $region20: #{transition_pruner_forward.22} parent=15 // pred_fallthru
        _
      // Predicated region
      $region21: #{transition_pruner_forward.22} parent=15 // pred_check
        %p160 = pneg %p69
      $region22: #{transition_pruner_forward.22} parent=15 // pred_check_branch
        %162 = sbr.rel (%p160) target = $region24
      $region23: #{transition_pruner_forward.22} parent=15 // pred_region
        %p163 = scmp.lt.s32.totalorder %s16, 3
        %s164 = scalar_select %p163, %s16, 3
        %s165 = smul.addr %s164, 128
        %s166 = smul.addr %s165, 4
        %s167 = scalar_lea.vmem %s1, %s166
      $region24: #{transition_pruner_forward.22} parent=15 // pred_fallthru
        _
      // Predicated region
      $region25: #{transition_pruner_forward.22} parent=15 // pred_check
        %p168 = pneg %p95
      $region26: #{transition_pruner_forward.22} parent=15 // pred_check_branch
        %170 = sbr.rel (%p168) target = $region28
      $region27: #{transition_pruner_forward.22} parent=15 // pred_region
        %p171 = scmp.lt.s32.totalorder %s16, 3
        %s172 = scalar_select %p171, %s16, 3
        %s173 = scalar_lea.vmem %s2, %s172
      $region28: #{transition_pruner_forward.22} parent=15 // pred_fallthru
        _
    $region16: #{transition_pruner_forward.22} parent=5 // pred_fallthru
      _
    %p174 = scmp.le.s32.totalorder 1, %s9
    %p175 = scmp.lt.s32.totalorder %s9, 5
    %p176 = pnand %p174, %p175
    %p177 = pneg %p176
    // Predicated region
    $region29: #{transition_pruner_forward.22} parent=5 // pred_check
      _
    $region30: #{transition_pruner_forward.22} parent=5 // pred_check_branch
      %179 = sbr.rel (%p176) target = $region32
    $region31: #{transition_pruner_forward.22} parent=5 // pred_region
      %s180 = ssub.s32 %s9, 1
      %p181 = scmp.lt.s32.totalorder %s18, 3
      %s182 = scalar_select %p181, %s18, 3
      %p183 = scmp.lt.s32.totalorder %s19, 0
      %s184 = scalar_select %p183, %s19, 0
      %s185 = smul.addr %s184, 8
      %s186 = smul.addr %s182, 8
      %s187 = sadd.s32 %s185, %s186
      %s188 = smul.addr %s187, 4
      %s189 = scalar_lea.vmem %s0, %s188
      %p190 = pneg %p49
      %p191 = pneg %p46
      %p192 = scmp.lt.s32.totalorder %s18, 3
      %s193 = scalar_select %p192, %s18, 3
      %s194 = smul.addr %s193, 128
      %s195 = smul.addr %s194, 4
      %s196 = scalar_lea.vmem %s1, %s195
      %p197 = pneg %p75
      %p198 = pneg %p72
      %p199 = scmp.lt.s32.totalorder %s18, 3
      %s200 = scalar_select %p199, %s18, 3
      %s201 = scalar_lea.vmem %s2, %s200
      %p202 = pneg %p101
      %p203 = pneg %p98
      %p204 = pneg %p129
      %p205 = pneg %p126
      %p206 = scmp.lt.s32.totalorder %s18, 3
      %s207 = scalar_select %p206, %s18, 3
      %p208 = scmp.lt.s32.totalorder %s19, 0
      %s209 = scalar_select %p208, %s19, 0
      %s210 = sadd.s32 %s209, %s207
      %s211 = smul.addr %s210, 8
      %s212 = scalar_lea.vmem %s3, %s211
      %p213 = scmp.lt.s32.totalorder %s18, 3
      %s214 = scalar_select %p213, %s18, 3
      %p215 = scmp.lt.s32.totalorder %s19, 0
      %s216 = scalar_select %p215, %s19, 0
      %s217 = smul.addr %s216, 8
      %s218 = smul.addr %s214, 8
      %s219 = sadd.s32 %s217, %s218
      %s220 = smul.addr %s219, 4
      %s221 = scalar_lea.vmem %s0, %s220
      %p222 = scmp.lt.s32.totalorder %s18, 3
      %s223 = scalar_select %p222, %s18, 3
      %s224 = smul.addr %s223, 128
      %s225 = smul.addr %s224, 4
      %s226 = scalar_lea.vmem %s1, %s225
      %p227 = scmp.lt.s32.totalorder %s18, 3
      %s228 = scalar_select %p227, %s18, 3
      %s229 = scalar_lea.vmem %s2, %s228
      %p230 = scmp.lt.s32.totalorder %s18, 3
      %s231 = scalar_select %p230, %s18, 3
      %p232 = scmp.lt.s32.totalorder %s19, 0
      %s233 = scalar_select %p232, %s19, 0
      %s234 = sadd.s32 %s233, %s231
      %s235 = smul.addr %s234, 8
      %s236 = scalar_lea.vmem %s3, %s235
      %v238 = vld [vmem:[%s221] sm:$0xff]
      %v239 = vld [vmem:[%s221 + $0x8] sm:$0xff]
      %v240 = vld [vmem:[%s221 + $0x10] sm:$0xff]
      %v241 = vld [vmem:[%s221 + $0x18] sm:$0xff]
      %v242 = vld [vmem:[%s226] sm:$0xf]
      %v243 = vld [vmem:[%s226 + $0x4] sm:$0xf]
      %v244 = vld [vmem:[%s226 + $0x8] sm:$0xf]
      %v245 = vld [vmem:[%s226 + $0xc] sm:$0xf]
      %v246 = vld [vmem:[%s226 + $0x10] sm:$0xf]
      %v247 = vld [vmem:[%s226 + $0x14] sm:$0xf]
      %v248 = vld [vmem:[%s226 + $0x18] sm:$0xf]
      %v249 = vld [vmem:[%s226 + $0x1c] sm:$0xf]
      %v250 = vld [vmem:[%s226 + $0x20] sm:$0xf]
      %v251 = vld [vmem:[%s226 + $0x24] sm:$0xf]
      %v252 = vld [vmem:[%s226 + $0x28] sm:$0xf]
      %v253 = vld [vmem:[%s226 + $0x2c] sm:$0xf]
      %v254 = vld [vmem:[%s226 + $0x30] sm:$0xf]
      %v255 = vld [vmem:[%s226 + $0x34] sm:$0xf]
      %v256 = vld [vmem:[%s226 + $0x38] sm:$0xf]
      %v257 = vld [vmem:[%s226 + $0x3c] sm:$0xf]
      %v258 = vld [vmem:[%s226 + $0x40] sm:$0xf]
      %v259 = vld [vmem:[%s226 + $0x44] sm:$0xf]
      %v260 = vld [vmem:[%s226 + $0x48] sm:$0xf]
      %v261 = vld [vmem:[%s226 + $0x4c] sm:$0xf]
      %v262 = vld [vmem:[%s226 + $0x50] sm:$0xf]
      %v263 = vld [vmem:[%s226 + $0x54] sm:$0xf]
      %v264 = vld [vmem:[%s226 + $0x58] sm:$0xf]
      %v265 = vld [vmem:[%s226 + $0x5c] sm:$0xf]
      %v266 = vld [vmem:[%s226 + $0x60] sm:$0xf]
      %v267 = vld [vmem:[%s226 + $0x64] sm:$0xf]
      %v268 = vld [vmem:[%s226 + $0x68] sm:$0xf]
      %v269 = vld [vmem:[%s226 + $0x6c] sm:$0xf]
      %v270 = vld [vmem:[%s226 + $0x70] sm:$0xf]
      %v271 = vld [vmem:[%s226 + $0x74] sm:$0xf]
      %v272 = vld [vmem:[%s226 + $0x78] sm:$0xf]
      %v273 = vld [vmem:[%s226 + $0x7c] sm:$0xf]
      %v274 = vld [vmem:[%s226 + $0x80] sm:$0xf]
      %v275 = vld [vmem:[%s226 + $0x84] sm:$0xf]
      %v276 = vld [vmem:[%s226 + $0x88] sm:$0xf]
      %v277 = vld [vmem:[%s226 + $0x8c] sm:$0xf]
      %v278 = vld [vmem:[%s226 + $0x90] sm:$0xf]
      %v279 = vld [vmem:[%s226 + $0x94] sm:$0xf]
      %v280 = vld [vmem:[%s226 + $0x98] sm:$0xf]
      %v281 = vld [vmem:[%s226 + $0x9c] sm:$0xf]
      %v282 = vld [vmem:[%s226 + $0xa0] sm:$0xf]
      %v283 = vld [vmem:[%s226 + $0xa4] sm:$0xf]
      %v284 = vld [vmem:[%s226 + $0xa8] sm:$0xf]
      %v285 = vld [vmem:[%s226 + $0xac] sm:$0xf]
      %v286 = vld [vmem:[%s226 + $0xb0] sm:$0xf]
      %v287 = vld [vmem:[%s226 + $0xb4] sm:$0xf]
      %v288 = vld [vmem:[%s226 + $0xb8] sm:$0xf]
      %v289 = vld [vmem:[%s226 + $0xbc] sm:$0xf]
      %v290 = vld [vmem:[%s226 + $0xc0] sm:$0xf]
      %v291 = vld [vmem:[%s226 + $0xc4] sm:$0xf]
      %v292 = vld [vmem:[%s226 + $0xc8] sm:$0xf]
      %v293 = vld [vmem:[%s226 + $0xcc] sm:$0xf]
      %v294 = vld [vmem:[%s226 + $0xd0] sm:$0xf]
      %v295 = vld [vmem:[%s226 + $0xd4] sm:$0xf]
      %v296 = vld [vmem:[%s226 + $0xd8] sm:$0xf]
      %v297 = vld [vmem:[%s226 + $0xdc] sm:$0xf]
      %v298 = vld [vmem:[%s226 + $0xe0] sm:$0xf]
      %v299 = vld [vmem:[%s226 + $0xe4] sm:$0xf]
      %v300 = vld [vmem:[%s226 + $0xe8] sm:$0xf]
      %v301 = vld [vmem:[%s226 + $0xec] sm:$0xf]
      %v302 = vld [vmem:[%s226 + $0xf0] sm:$0xf]
      %v303 = vld [vmem:[%s226 + $0xf4] sm:$0xf]
      %v304 = vld [vmem:[%s226 + $0xf8] sm:$0xf]
      %v305 = vld [vmem:[%s226 + $0xfc] sm:$0xf]
      %v306 = vld [vmem:[%s226 + $0x100] sm:$0xf]
      %v307 = vld [vmem:[%s226 + $0x104] sm:$0xf]
      %v308 = vld [vmem:[%s226 + $0x108] sm:$0xf]
      %v309 = vld [vmem:[%s226 + $0x10c] sm:$0xf]
      %v310 = vld [vmem:[%s226 + $0x110] sm:$0xf]
      %v311 = vld [vmem:[%s226 + $0x114] sm:$0xf]
      %v312 = vld [vmem:[%s226 + $0x118] sm:$0xf]
      %v313 = vld [vmem:[%s226 + $0x11c] sm:$0xf]
      %v314 = vld [vmem:[%s226 + $0x120] sm:$0xf]
      %v315 = vld [vmem:[%s226 + $0x124] sm:$0xf]
      %v316 = vld [vmem:[%s226 + $0x128] sm:$0xf]
      %v317 = vld [vmem:[%s226 + $0x12c] sm:$0xf]
      %v318 = vld [vmem:[%s226 + $0x130] sm:$0xf]
      %v319 = vld [vmem:[%s226 + $0x134] sm:$0xf]
      %v320 = vld [vmem:[%s226 + $0x138] sm:$0xf]
      %v321 = vld [vmem:[%s226 + $0x13c] sm:$0xf]
      %v322 = vld [vmem:[%s226 + $0x140] sm:$0xf]
      %v323 = vld [vmem:[%s226 + $0x144] sm:$0xf]
      %v324 = vld [vmem:[%s226 + $0x148] sm:$0xf]
      %v325 = vld [vmem:[%s226 + $0x14c] sm:$0xf]
      %v326 = vld [vmem:[%s226 + $0x150] sm:$0xf]
      %v327 = vld [vmem:[%s226 + $0x154] sm:$0xf]
      %v328 = vld [vmem:[%s226 + $0x158] sm:$0xf]
      %v329 = vld [vmem:[%s226 + $0x15c] sm:$0xf]
      %v330 = vld [vmem:[%s226 + $0x160] sm:$0xf]
      %v331 = vld [vmem:[%s226 + $0x164] sm:$0xf]
      %v332 = vld [vmem:[%s226 + $0x168] sm:$0xf]
      %v333 = vld [vmem:[%s226 + $0x16c] sm:$0xf]
      %v334 = vld [vmem:[%s226 + $0x170] sm:$0xf]
      %v335 = vld [vmem:[%s226 + $0x174] sm:$0xf]
      %v336 = vld [vmem:[%s226 + $0x178] sm:$0xf]
      %v337 = vld [vmem:[%s226 + $0x17c] sm:$0xf]
      %v338 = vld [vmem:[%s226 + $0x180] sm:$0xf]
      %v339 = vld [vmem:[%s226 + $0x184] sm:$0xf]
      %v340 = vld [vmem:[%s226 + $0x188] sm:$0xf]
      %v341 = vld [vmem:[%s226 + $0x18c] sm:$0xf]
      %v342 = vld [vmem:[%s226 + $0x190] sm:$0xf]
      %v343 = vld [vmem:[%s226 + $0x194] sm:$0xf]
      %v344 = vld [vmem:[%s226 + $0x198] sm:$0xf]
      %v345 = vld [vmem:[%s226 + $0x19c] sm:$0xf]
      %v346 = vld [vmem:[%s226 + $0x1a0] sm:$0xf]
      %v347 = vld [vmem:[%s226 + $0x1a4] sm:$0xf]
      %v348 = vld [vmem:[%s226 + $0x1a8] sm:$0xf]
      %v349 = vld [vmem:[%s226 + $0x1ac] sm:$0xf]
      %v350 = vld [vmem:[%s226 + $0x1b0] sm:$0xf]
      %v351 = vld [vmem:[%s226 + $0x1b4] sm:$0xf]
      %v352 = vld [vmem:[%s226 + $0x1b8] sm:$0xf]
      %v353 = vld [vmem:[%s226 + $0x1bc] sm:$0xf]
      %v354 = vld [vmem:[%s226 + $0x1c0] sm:$0xf]
      %v355 = vld [vmem:[%s226 + $0x1c4] sm:$0xf]
      %v356 = vld [vmem:[%s226 + $0x1c8] sm:$0xf]
      %v357 = vld [vmem:[%s226 + $0x1cc] sm:$0xf]
      %v358 = vld [vmem:[%s226 + $0x1d0] sm:$0xf]
      %v359 = vld [vmem:[%s226 + $0x1d4] sm:$0xf]
      %v360 = vld [vmem:[%s226 + $0x1d8] sm:$0xf]
      %v361 = vld [vmem:[%s226 + $0x1dc] sm:$0xf]
      %v362 = vld [vmem:[%s226 + $0x1e0] sm:$0xf]
      %v363 = vld [vmem:[%s226 + $0x1e4] sm:$0xf]
      %v364 = vld [vmem:[%s226 + $0x1e8] sm:$0xf]
      %v365 = vld [vmem:[%s226 + $0x1ec] sm:$0xf]
      %v366 = vld [vmem:[%s226 + $0x1f0] sm:$0xf]
      %v367 = vld [vmem:[%s226 + $0x1f4] sm:$0xf]
      %v368 = vld [vmem:[%s226 + $0x1f8] sm:$0xf]
      %v369 = vld [vmem:[%s226 + $0x1fc] sm:$0xf]
      %v370 = vld [vmem:[%s229] sm:$0x1]
      %v372 = vlaneseq
      %v373 = vshrl.u32 %v372, 7
      %v374 = vsub.s32 0, %v373
      %v375 = vrot.slane %v370, %v374
      %v381 = vunpack.c.l.b16 %v238
      %v382 = vunpack.c.h.b16 %v238
      %v383 = vunpack.c.l.b16 %v239
      %v384 = vunpack.c.h.b16 %v239
      %v385 = vunpack.c.l.b16 %v240
      %v386 = vunpack.c.h.b16 %v240
      %v387 = vunpack.c.l.b16 %v241
      %v388 = vunpack.c.h.b16 %v241
      %v389 = vpack.c.b16 %v381, %v381
      %v390 = vpack.c.b16 %v382, %v382
      %v391 = vpack.c.b16 %v383, %v383
      %v392 = vpack.c.b16 %v384, %v384
      %v393 = vpack.c.b16 %v385, %v385
      %v394 = vpack.c.b16 %v386, %v386
      %v395 = vpack.c.b16 %v387, %v387
      %v396 = vpack.c.b16 %v388, %v388
      %v533 = vunpack.c.l.b16 %v242
      %v534 = vunpack.c.l.b16 %v243
      %v535 = vunpack.c.l.b16 %v244
      %v536 = vunpack.c.l.b16 %v245
      %v537 = vunpack.c.l.b16 %v246
      %v538 = vunpack.c.l.b16 %v247
      %v539 = vunpack.c.l.b16 %v248
      %v540 = vunpack.c.l.b16 %v249
      %v541 = vunpack.c.l.b16 %v250
      %v542 = vunpack.c.l.b16 %v251
      %v543 = vunpack.c.l.b16 %v252
      %v544 = vunpack.c.l.b16 %v253
      %v545 = vunpack.c.l.b16 %v254
      %v546 = vunpack.c.l.b16 %v255
      %v547 = vunpack.c.l.b16 %v256
      %v548 = vunpack.c.l.b16 %v257
      %v549 = vunpack.c.l.b16 %v258
      %v550 = vunpack.c.l.b16 %v259
      %v551 = vunpack.c.l.b16 %v260
      %v552 = vunpack.c.l.b16 %v261
      %v553 = vunpack.c.l.b16 %v262
      %v554 = vunpack.c.l.b16 %v263
      %v555 = vunpack.c.l.b16 %v264
      %v556 = vunpack.c.l.b16 %v265
      %v557 = vunpack.c.l.b16 %v266
      %v558 = vunpack.c.l.b16 %v267
      %v559 = vunpack.c.l.b16 %v268
      %v560 = vunpack.c.l.b16 %v269
      %v561 = vunpack.c.l.b16 %v270
      %v562 = vunpack.c.l.b16 %v271
      %v563 = vunpack.c.l.b16 %v272
      %v564 = vunpack.c.l.b16 %v273
      %v565 = vunpack.c.l.b16 %v274
      %v566 = vunpack.c.l.b16 %v275
      %v567 = vunpack.c.l.b16 %v276
      %v568 = vunpack.c.l.b16 %v277
      %v569 = vunpack.c.l.b16 %v278
      %v570 = vunpack.c.l.b16 %v279
      %v571 = vunpack.c.l.b16 %v280
      %v572 = vunpack.c.l.b16 %v281
      %v573 = vunpack.c.l.b16 %v282
      %v574 = vunpack.c.l.b16 %v283
      %v575 = vunpack.c.l.b16 %v284
      %v576 = vunpack.c.l.b16 %v285
      %v577 = vunpack.c.l.b16 %v286
      %v578 = vunpack.c.l.b16 %v287
      %v579 = vunpack.c.l.b16 %v288
      %v580 = vunpack.c.l.b16 %v289
      %v581 = vunpack.c.l.b16 %v290
      %v582 = vunpack.c.l.b16 %v291
      %v583 = vunpack.c.l.b16 %v292
      %v584 = vunpack.c.l.b16 %v293
      %v585 = vunpack.c.l.b16 %v294
      %v586 = vunpack.c.l.b16 %v295
      %v587 = vunpack.c.l.b16 %v296
      %v588 = vunpack.c.l.b16 %v297
      %v589 = vunpack.c.l.b16 %v298
      %v590 = vunpack.c.l.b16 %v299
      %v591 = vunpack.c.l.b16 %v300
      %v592 = vunpack.c.l.b16 %v301
      %v593 = vunpack.c.l.b16 %v302
      %v594 = vunpack.c.l.b16 %v303
      %v595 = vunpack.c.l.b16 %v304
      %v596 = vunpack.c.l.b16 %v305
      %v597 = vunpack.c.l.b16 %v306
      %v598 = vunpack.c.l.b16 %v307
      %v599 = vunpack.c.l.b16 %v308
      %v600 = vunpack.c.l.b16 %v309
      %v601 = vunpack.c.l.b16 %v310
      %v602 = vunpack.c.l.b16 %v311
      %v603 = vunpack.c.l.b16 %v312
      %v604 = vunpack.c.l.b16 %v313
      %v605 = vunpack.c.l.b16 %v314
      %v606 = vunpack.c.l.b16 %v315
      %v607 = vunpack.c.l.b16 %v316
      %v608 = vunpack.c.l.b16 %v317
      %v609 = vunpack.c.l.b16 %v318
      %v610 = vunpack.c.l.b16 %v319
      %v611 = vunpack.c.l.b16 %v320
      %v612 = vunpack.c.l.b16 %v321
      %v613 = vunpack.c.l.b16 %v322
      %v614 = vunpack.c.l.b16 %v323
      %v615 = vunpack.c.l.b16 %v324
      %v616 = vunpack.c.l.b16 %v325
      %v617 = vunpack.c.l.b16 %v326
      %v618 = vunpack.c.l.b16 %v327
      %v619 = vunpack.c.l.b16 %v328
      %v620 = vunpack.c.l.b16 %v329
      %v621 = vunpack.c.l.b16 %v330
      %v622 = vunpack.c.l.b16 %v331
      %v623 = vunpack.c.l.b16 %v332
      %v624 = vunpack.c.l.b16 %v333
      %v625 = vunpack.c.l.b16 %v334
      %v626 = vunpack.c.l.b16 %v335
      %v627 = vunpack.c.l.b16 %v336
      %v628 = vunpack.c.l.b16 %v337
      %v629 = vunpack.c.l.b16 %v338
      %v630 = vunpack.c.l.b16 %v339
      %v631 = vunpack.c.l.b16 %v340
      %v632 = vunpack.c.l.b16 %v341
      %v633 = vunpack.c.l.b16 %v342
      %v634 = vunpack.c.l.b16 %v343
      %v635 = vunpack.c.l.b16 %v344
      %v636 = vunpack.c.l.b16 %v345
      %v637 = vunpack.c.l.b16 %v346
      %v638 = vunpack.c.l.b16 %v347
      %v639 = vunpack.c.l.b16 %v348
      %v640 = vunpack.c.l.b16 %v349
      %v641 = vunpack.c.l.b16 %v350
      %v642 = vunpack.c.l.b16 %v351
      %v643 = vunpack.c.l.b16 %v352
      %v644 = vunpack.c.l.b16 %v353
      %v645 = vunpack.c.l.b16 %v354
      %v646 = vunpack.c.l.b16 %v355
      %v647 = vunpack.c.l.b16 %v356
      %v648 = vunpack.c.l.b16 %v357
      %v649 = vunpack.c.l.b16 %v358
      %v650 = vunpack.c.l.b16 %v359
      %v651 = vunpack.c.l.b16 %v360
      %v652 = vunpack.c.l.b16 %v361
      %v653 = vunpack.c.l.b16 %v362
      %v654 = vunpack.c.l.b16 %v363
      %v655 = vunpack.c.l.b16 %v364
      %v656 = vunpack.c.l.b16 %v365
      %v657 = vunpack.c.l.b16 %v366
      %v658 = vunpack.c.l.b16 %v367
      %v659 = vunpack.c.l.b16 %v368
      %v660 = vunpack.c.l.b16 %v369
      %v661 = vpack.c.b16 %v534, %v533
      %v662 = vpack.c.b16 %v536, %v535
      %v663 = vpack.c.b16 %v538, %v537
      %v664 = vpack.c.b16 %v540, %v539
      %v665 = vpack.c.b16 %v542, %v541
      %v666 = vpack.c.b16 %v544, %v543
      %v667 = vpack.c.b16 %v546, %v545
      %v668 = vpack.c.b16 %v548, %v547
      %v669 = vpack.c.b16 %v550, %v549
      %v670 = vpack.c.b16 %v552, %v551
      %v671 = vpack.c.b16 %v554, %v553
      %v672 = vpack.c.b16 %v556, %v555
      %v673 = vpack.c.b16 %v558, %v557
      %v674 = vpack.c.b16 %v560, %v559
      %v675 = vpack.c.b16 %v562, %v561
      %v676 = vpack.c.b16 %v564, %v563
      %v677 = vpack.c.b16 %v566, %v565
      %v678 = vpack.c.b16 %v568, %v567
      %v679 = vpack.c.b16 %v570, %v569
      %v680 = vpack.c.b16 %v572, %v571
      %v681 = vpack.c.b16 %v574, %v573
      %v682 = vpack.c.b16 %v576, %v575
      %v683 = vpack.c.b16 %v578, %v577
      %v684 = vpack.c.b16 %v580, %v579
      %v685 = vpack.c.b16 %v582, %v581
      %v686 = vpack.c.b16 %v584, %v583
      %v687 = vpack.c.b16 %v586, %v585
      %v688 = vpack.c.b16 %v588, %v587
      %v689 = vpack.c.b16 %v590, %v589
      %v690 = vpack.c.b16 %v592, %v591
      %v691 = vpack.c.b16 %v594, %v593
      %v692 = vpack.c.b16 %v596, %v595
      %v693 = vpack.c.b16 %v598, %v597
      %v694 = vpack.c.b16 %v600, %v599
      %v695 = vpack.c.b16 %v602, %v601
      %v696 = vpack.c.b16 %v604, %v603
      %v697 = vpack.c.b16 %v606, %v605
      %v698 = vpack.c.b16 %v608, %v607
      %v699 = vpack.c.b16 %v610, %v609
      %v700 = vpack.c.b16 %v612, %v611
      %v701 = vpack.c.b16 %v614, %v613
      %v702 = vpack.c.b16 %v616, %v615
      %v703 = vpack.c.b16 %v618, %v617
      %v704 = vpack.c.b16 %v620, %v619
      %v705 = vpack.c.b16 %v622, %v621
      %v706 = vpack.c.b16 %v624, %v623
      %v707 = vpack.c.b16 %v626, %v625
      %v708 = vpack.c.b16 %v628, %v627
      %v709 = vpack.c.b16 %v630, %v629
      %v710 = vpack.c.b16 %v632, %v631
      %v711 = vpack.c.b16 %v634, %v633
      %v712 = vpack.c.b16 %v636, %v635
      %v713 = vpack.c.b16 %v638, %v637
      %v714 = vpack.c.b16 %v640, %v639
      %v715 = vpack.c.b16 %v642, %v641
      %v716 = vpack.c.b16 %v644, %v643
      %v717 = vpack.c.b16 %v646, %v645
      %v718 = vpack.c.b16 %v648, %v647
      %v719 = vpack.c.b16 %v650, %v649
      %v720 = vpack.c.b16 %v652, %v651
      %v721 = vpack.c.b16 %v654, %v653
      %v722 = vpack.c.b16 %v656, %v655
      %v723 = vpack.c.b16 %v658, %v657
      %v724 = vpack.c.b16 %v660, %v659
      %789 = vmatprep.subr.bf16.mxu0 0
      %790 = vmatpush1.bf16.msra.mxu0 %v661
      %791 = vmatprep.subr.bf16.mxu0 0
      %792 = vmatpush1.bf16.msra.mxu0 %v662
      %793 = vmatprep.subr.bf16.mxu0 0
      %794 = vmatpush1.bf16.msra.mxu0 %v663
      %795 = vmatprep.subr.bf16.mxu0 0
      %796 = vmatpush1.bf16.msra.mxu0 %v664
      %797 = vmatprep.subr.bf16.mxu0 0
      %798 = vmatpush1.bf16.msra.mxu0 %v665
      %799 = vmatprep.subr.bf16.mxu0 0
      %800 = vmatpush1.bf16.msra.mxu0 %v666
      %801 = vmatprep.subr.bf16.mxu0 0
      %802 = vmatpush1.bf16.msra.mxu0 %v667
      %803 = vmatprep.subr.bf16.mxu0 0
      %804 = vmatpush1.bf16.msra.mxu0 %v668
      %805 = vmatprep.subr.bf16.mxu0 0
      %806 = vmatpush1.bf16.msra.mxu0 %v669
      %807 = vmatprep.subr.bf16.mxu0 0
      %808 = vmatpush1.bf16.msra.mxu0 %v670
      %809 = vmatprep.subr.bf16.mxu0 0
      %810 = vmatpush1.bf16.msra.mxu0 %v671
      %811 = vmatprep.subr.bf16.mxu0 0
      %812 = vmatpush1.bf16.msra.mxu0 %v672
      %813 = vmatprep.subr.bf16.mxu0 0
      %814 = vmatpush1.bf16.msra.mxu0 %v673
      %815 = vmatprep.subr.bf16.mxu0 0
      %816 = vmatpush1.bf16.msra.mxu0 %v674
      %817 = vmatprep.subr.bf16.mxu0 0
      %818 = vmatpush1.bf16.msra.mxu0 %v675
      %819 = vmatprep.subr.bf16.mxu0 0
      %820 = vmatpush1.bf16.msra.mxu0 %v676
      %821 = vmatprep.mubr.bf16.mxu0 %v390
      %822 = vmatmul.mubr.bf16.gmra.mrb[0].mxu0 %v389
      %v823 = vpop.f32.mrb[0].mxu0
      %v824 = vadd.f32 %v375, %v823
      %v825 = vpop.f32.mrb[0].mxu0
      %v826 = vpop.f32.mrb[0].mxu0
      %v827 = vpop.f32.mrb[0].mxu0
      %828 = vdwg.mxu0
      %829 = vmatprep.subr.bf16.mxu0 0
      %830 = vmatpush1.bf16.msra.mxu0 %v677
      %831 = vmatprep.subr.bf16.mxu0 0
      %832 = vmatpush1.bf16.msra.mxu0 %v678
      %833 = vmatprep.subr.bf16.mxu0 0
      %834 = vmatpush1.bf16.msra.mxu0 %v679
      %835 = vmatprep.subr.bf16.mxu0 0
      %836 = vmatpush1.bf16.msra.mxu0 %v680
      %837 = vmatprep.subr.bf16.mxu0 0
      %838 = vmatpush1.bf16.msra.mxu0 %v681
      %839 = vmatprep.subr.bf16.mxu0 0
      %840 = vmatpush1.bf16.msra.mxu0 %v682
      %841 = vmatprep.subr.bf16.mxu0 0
      %842 = vmatpush1.bf16.msra.mxu0 %v683
      %843 = vmatprep.subr.bf16.mxu0 0
      %844 = vmatpush1.bf16.msra.mxu0 %v684
      %845 = vmatprep.subr.bf16.mxu0 0
      %846 = vmatpush1.bf16.msra.mxu0 %v685
      %847 = vmatprep.subr.bf16.mxu0 0
      %848 = vmatpush1.bf16.msra.mxu0 %v686
      %849 = vmatprep.subr.bf16.mxu0 0
      %850 = vmatpush1.bf16.msra.mxu0 %v687
      %851 = vmatprep.subr.bf16.mxu0 0
      %852 = vmatpush1.bf16.msra.mxu0 %v688
      %853 = vmatprep.subr.bf16.mxu0 0
      %854 = vmatpush1.bf16.msra.mxu0 %v689
      %855 = vmatprep.subr.bf16.mxu0 0
      %856 = vmatpush1.bf16.msra.mxu0 %v690
      %857 = vmatprep.subr.bf16.mxu0 0
      %858 = vmatpush1.bf16.msra.mxu0 %v691
      %859 = vmatprep.subr.bf16.mxu0 0
      %860 = vmatpush1.bf16.msra.mxu0 %v692
      %861 = vmatprep.mubr.bf16.mxu0 %v392
      %862 = vmatmul.mubr.bf16.gmra.mrb[0].mxu0 %v391
      %v863 = vpop.f32.mrb[0].mxu0
      %v864 = vadd.f32 %v824, %v863
      %v865 = vpop.f32.mrb[0].mxu0
      %v866 = vpop.f32.mrb[0].mxu0
      %v867 = vpop.f32.mrb[0].mxu0
      %868 = vdwg.mxu0
      %869 = vmatprep.subr.bf16.mxu0 0
      %870 = vmatpush1.bf16.msra.mxu0 %v693
      %871 = vmatprep.subr.bf16.mxu0 0
      %872 = vmatpush1.bf16.msra.mxu0 %v694
      %873 = vmatprep.subr.bf16.mxu0 0
      %874 = vmatpush1.bf16.msra.mxu0 %v695
      %875 = vmatprep.subr.bf16.mxu0 0
      %876 = vmatpush1.bf16.msra.mxu0 %v696
      %877 = vmatprep.subr.bf16.mxu0 0
      %878 = vmatpush1.bf16.msra.mxu0 %v697
      %879 = vmatprep.subr.bf16.mxu0 0
      %880 = vmatpush1.bf16.msra.mxu0 %v698
      %881 = vmatprep.subr.bf16.mxu0 0
      %882 = vmatpush1.bf16.msra.mxu0 %v699
      %883 = vmatprep.subr.bf16.mxu0 0
      %884 = vmatpush1.bf16.msra.mxu0 %v700
      %885 = vmatprep.subr.bf16.mxu0 0
      %886 = vmatpush1.bf16.msra.mxu0 %v701
      %887 = vmatprep.subr.bf16.mxu0 0
      %888 = vmatpush1.bf16.msra.mxu0 %v702
      %889 = vmatprep.subr.bf16.mxu0 0
      %890 = vmatpush1.bf16.msra.mxu0 %v703
      %891 = vmatprep.subr.bf16.mxu0 0
      %892 = vmatpush1.bf16.msra.mxu0 %v704
      %893 = vmatprep.subr.bf16.mxu0 0
      %894 = vmatpush1.bf16.msra.mxu0 %v705
      %895 = vmatprep.subr.bf16.mxu0 0
      %896 = vmatpush1.bf16.msra.mxu0 %v706
      %897 = vmatprep.subr.bf16.mxu0 0
      %898 = vmatpush1.bf16.msra.mxu0 %v707
      %899 = vmatprep.subr.bf16.mxu0 0
      %900 = vmatpush1.bf16.msra.mxu0 %v708
      %901 = vmatprep.mubr.bf16.mxu0 %v394
      %902 = vmatmul.mubr.bf16.gmra.mrb[0].mxu0 %v393
      %v903 = vpop.f32.mrb[0].mxu0
      %v904 = vadd.f32 %v864, %v903
      %v905 = vpop.f32.mrb[0].mxu0
      %v906 = vpop.f32.mrb[0].mxu0
      %v907 = vpop.f32.mrb[0].mxu0
      %908 = vdwg.mxu0
      %909 = vmatprep.subr.bf16.mxu0 0
      %910 = vmatpush1.bf16.msra.mxu0 %v709
      %911 = vmatprep.subr.bf16.mxu0 0
      %912 = vmatpush1.bf16.msra.mxu0 %v710
      %913 = vmatprep.subr.bf16.mxu0 0
      %914 = vmatpush1.bf16.msra.mxu0 %v711
      %915 = vmatprep.subr.bf16.mxu0 0
      %916 = vmatpush1.bf16.msra.mxu0 %v712
      %917 = vmatprep.subr.bf16.mxu0 0
      %918 = vmatpush1.bf16.msra.mxu0 %v713
      %919 = vmatprep.subr.bf16.mxu0 0
      %920 = vmatpush1.bf16.msra.mxu0 %v714
      %921 = vmatprep.subr.bf16.mxu0 0
      %922 = vmatpush1.bf16.msra.mxu0 %v715
      %923 = vmatprep.subr.bf16.mxu0 0
      %924 = vmatpush1.bf16.msra.mxu0 %v716
      %925 = vmatprep.subr.bf16.mxu0 0
      %926 = vmatpush1.bf16.msra.mxu0 %v717
      %927 = vmatprep.subr.bf16.mxu0 0
      %928 = vmatpush1.bf16.msra.mxu0 %v718
      %929 = vmatprep.subr.bf16.mxu0 0
      %930 = vmatpush1.bf16.msra.mxu0 %v719
      %931 = vmatprep.subr.bf16.mxu0 0
      %932 = vmatpush1.bf16.msra.mxu0 %v720
      %933 = vmatprep.subr.bf16.mxu0 0
      %934 = vmatpush1.bf16.msra.mxu0 %v721
      %935 = vmatprep.subr.bf16.mxu0 0
      %936 = vmatpush1.bf16.msra.mxu0 %v722
      %937 = vmatprep.subr.bf16.mxu0 0
      %938 = vmatpush1.bf16.msra.mxu0 %v723
      %939 = vmatprep.subr.bf16.mxu0 0
      %940 = vmatpush1.bf16.msra.mxu0 %v724
      %941 = vmatprep.mubr.bf16.mxu0 %v396
      %942 = vmatmul.mubr.bf16.gmra.mrb[0].mxu0 %v395
      %v943 = vpop.f32.mrb[0].mxu0
      %v944 = vadd.f32 %v904, %v943
      %v945 = vpop.f32.mrb[0].mxu0
      %v946 = vpop.f32.mrb[0].mxu0
      %v947 = vpop.f32.mrb[0].mxu0
      %948 = vdwg.mxu0
      %v949 = vmul.f32 %v944, 0.1
      %v950 = vmax.f32 %v944, %v949
      %951 = vst [vmem:[%s236] sm:$0xff] %v950
      %p952 = scmp.lt.s32.totalorder %s18, 3
      %s953 = scalar_select %p952, %s18, 3
      %p954 = scmp.lt.s32.totalorder %s19, 0
      %s955 = scalar_select %p954, %s19, 0
      %s956 = sadd.s32 %s955, %s953
      %s957 = smul.addr %s956, 8
      %s958 = scalar_lea.vmem %s3, %s957
      // Predicated region
      $region33: #{transition_pruner_forward.22} parent=31 // pred_check
        %p959 = pneg %p126
      $region34: #{transition_pruner_forward.22} parent=31 // pred_check_branch
        %961 = sbr.rel (%p959) target = $region36
      $region35: #{transition_pruner_forward.22} parent=31 // pred_region
        _
      $region36: #{transition_pruner_forward.22} parent=31 // pred_fallthru
        _
    $region32: #{transition_pruner_forward.22} parent=5 // pred_fallthru
      _
    %p962 = scmp.le.s32.totalorder 2, %s9
    // Predicated region
    $region37: #{transition_pruner_forward.22} parent=5 // pred_check
      %p963 = pneg %p962
    $region38: #{transition_pruner_forward.22} parent=5 // pred_check_branch
      %965 = sbr.rel (%p963) target = $region40
    $region39: #{transition_pruner_forward.22} parent=5 // pred_region
      %s966 = ssub.s32 %s9, 2
      // Predicated region
      $region41: #{transition_pruner_forward.22} parent=39 // pred_check
        %p967 = pneg %p132
      $region42: #{transition_pruner_forward.22} parent=39 // pred_check_branch
        %969 = sbr.rel (%p967) target = $region44
      $region43: #{transition_pruner_forward.22} parent=39 // pred_region
        %p970 = scmp.lt.s32.totalorder %s20, 3
        %s971 = scalar_select %p970, %s20, 3
        %p972 = scmp.lt.s32.totalorder %s21, 0
        %s973 = scalar_select %p972, %s21, 0
        %s974 = sadd.s32 %s973, %s971
        %s975 = smul.addr %s974, 8
        %s976 = scalar_lea.vmem %s3, %s975
      $region44: #{transition_pruner_forward.22} parent=39 // pred_fallthru
        _
    $region40: #{transition_pruner_forward.22} parent=5 // pred_fallthru
      _
  $region6: #{transition_pruner_forward.22} parent=0 // loop_footer
    %s13 = sadd.s32 1, %s9
  $region7: #{transition_pruner_forward.22} parent=0 // loop_footer_branch
    %8 = sbr.rel target = $region3
  $region8: #{transition_pruner_forward.22} parent=0 // loop_exit
    _

// kernel: transition_pruner_forward.23
$region0: #{transition_pruner_forward.23}
  #allocation0 [shape = 'u32[]', space=smem, size = 0x4, offset = 0x4, fixed_abs, tag = 'smem constant byte address 0x4 - core index']
  #allocation1 [shape = 'u32[144,128]{1,0:T(1,128)}', space=vmem, size = 0x12000, scoped, tag = 'internal scratch']
  %s0 = inlined_call_operand.vmem [shape: bf16[4,32,512], index: 0, kind: input, shape index: {}]
  %s1 = inlined_call_operand.vmem [shape: bf16[4,512,128], index: 1, kind: input, shape index: {}]
  %s2 = inlined_call_operand.vmem [shape: f32[4,1,128], index: 2, kind: input, shape index: {}]
  %s3 = inlined_call_operand.vmem [shape: f32[4,32,128], index: 3, kind: output, shape index: {}]
  %s4 = sld [smem:[#allocation0]]
  $region45: #{transition_pruner_forward.23} parent=0
    _
  %s6 = ssub.s32 1, %s4
  %s7 = scalar_select 0, %s6, %s4
  loop: start=0, step=1, limit=6
  $region2: #{transition_pruner_forward.23} parent=0 // loop_pre_header
    _
  $region3: #{transition_pruner_forward.23} parent=0 // loop_header
    %s9 = sphi 0, %s13
    %p10 = scmp.ge.s32.totalorder %s9, 6
    %s16 = sphi 0, %s28
    %s17 = sphi 0, %s24
    %s18 = sphi 0, %s16
    %s19 = sphi 0, %s17
    %s20 = sphi 0, %s18
    %s21 = sphi 0, %s19
    %s33 = sphi 0, %s35
    %s36 = sphi 0, %s33
    %s37 = sphi 0, %s36
    %s53 = sphi 0, %s37
    %s59 = sphi 0, %s61
    %s62 = sphi 0, %s59
    %s63 = sphi 0, %s62
    %s79 = sphi 0, %s63
    %s85 = sphi 0, %s87
    %s88 = sphi 0, %s85
    %s89 = sphi 0, %s88
    %s105 = sphi 0, %s89
    %s113 = sphi 0, %s115
    %s116 = sphi 0, %s113
    %s117 = sphi 0, %s116
    %s133 = sphi 0, %s117
  $region4: #{transition_pruner_forward.23} parent=0 // loop_header_branch
    %12 = sbr.rel (%p10) target = $region8
  $region5: #{transition_pruner_forward.23} parent=0 // loop_body
    %s14 = ssub.s32 %s9, 1
    %s15 = ssub.s32 %s9, 2
    %s22 = sadd.s32 1, %s17
    %p23 = scmp.ge.s32.totalorder %s22, 1
    %s24 = scalar_select %p23, 0, %s22
    %s25 = sadd.s32 1, %s16
    %s26 = scalar_select %p23, %s25, %s16
    %p27 = scmp.ge.s32.totalorder %s26, 4
    %s28 = scalar_select %p27, 0, %s26
    %s29 = ssub.s32 %s16, %s28
    %s30 = ssub.s32 %s17, %s24
    %s31 = sor.u32 %s29, %s30
    %p32 = scmp.eq.s32.totalorder %s31, 0
    %s34 = sadd.s32 %s33, 1
    %s35 = scalar_select %p32, %s33, %s34
    %p38 = pneg %p32
    %p39 = scmp.eq.s32.totalorder %s9, 3
    %p40 = por %p38, %p39
    %p41 = scmp.ne.s32.totalorder %s33, %s36
    %p42 = scmp.eq.s32.totalorder %s9, 0
    %p43 = por %p41, %p42
    %p44 = scmp.ne.s32.totalorder %s33, %s36
    %p45 = scmp.eq.s32.totalorder %s14, 3
    %p46 = por %p44, %p45
    %p47 = scmp.ne.s32.totalorder %s36, %s37
    %p48 = scmp.eq.s32.totalorder %s14, 0
    %p49 = por %p47, %p48
    %p50 = scmp.ne.s32.totalorder %s36, %s37
    %p51 = scmp.eq.s32.totalorder %s15, 3
    %p52 = por %p50, %p51
    %p54 = scmp.ne.s32.totalorder %s37, %s53
    %p55 = scmp.eq.s32.totalorder %s15, 0
    %p56 = por %p54, %p55
    %s57 = ssub.s32 %s16, %s28
    %p58 = scmp.eq.s32.totalorder %s57, 0
    %s60 = sadd.s32 %s59, 1
    %s61 = scalar_select %p58, %s59, %s60
    %p64 = pneg %p58
    %p65 = scmp.eq.s32.totalorder %s9, 3
    %p66 = por %p64, %p65
    %p67 = scmp.ne.s32.totalorder %s59, %s62
    %p68 = scmp.eq.s32.totalorder %s9, 0
    %p69 = por %p67, %p68
    %p70 = scmp.ne.s32.totalorder %s59, %s62
    %p71 = scmp.eq.s32.totalorder %s14, 3
    %p72 = por %p70, %p71
    %p73 = scmp.ne.s32.totalorder %s62, %s63
    %p74 = scmp.eq.s32.totalorder %s14, 0
    %p75 = por %p73, %p74
    %p76 = scmp.ne.s32.totalorder %s62, %s63
    %p77 = scmp.eq.s32.totalorder %s15, 3
    %p78 = por %p76, %p77
    %p80 = scmp.ne.s32.totalorder %s63, %s79
    %p81 = scmp.eq.s32.totalorder %s15, 0
    %p82 = por %p80, %p81
    %s83 = ssub.s32 %s16, %s28
    %p84 = scmp.eq.s32.totalorder %s83, 0
    %s86 = sadd.s32 %s85, 1
    %s87 = scalar_select %p84, %s85, %s86
    %p90 = pneg %p84
    %p91 = scmp.eq.s32.totalorder %s9, 3
    %p92 = por %p90, %p91
    %p93 = scmp.ne.s32.totalorder %s85, %s88
    %p94 = scmp.eq.s32.totalorder %s9, 0
    %p95 = por %p93, %p94
    %p96 = scmp.ne.s32.totalorder %s85, %s88
    %p97 = scmp.eq.s32.totalorder %s14, 3
    %p98 = por %p96, %p97
    %p99 = scmp.ne.s32.totalorder %s88, %s89
    %p100 = scmp.eq.s32.totalorder %s14, 0
    %p101 = por %p99, %p100
    %p102 = scmp.ne.s32.totalorder %s88, %s89
    %p103 = scmp.eq.s32.totalorder %s15, 3
    %p104 = por %p102, %p103
    %p106 = scmp.ne.s32.totalorder %s89, %s105
    %p107 = scmp.eq.s32.totalorder %s15, 0
    %p108 = por %p106, %p107
    %s109 = ssub.s32 %s16, %s28
    %s110 = ssub.s32 %s17, %s24
    %s111 = sor.u32 %s109, %s110
    %p112 = scmp.eq.s32.totalorder %s111, 0
    %s114 = sadd.s32 %s113, 1
    %s115 = scalar_select %p112, %s113, %s114
    %p118 = pneg %p112
    %p119 = scmp.eq.s32.totalorder %s9, 3
    %p120 = por %p118, %p119
    %p121 = scmp.ne.s32.totalorder %s113, %s116
    %p122 = scmp.eq.s32.totalorder %s9, 0
    %p123 = por %p121, %p122
    %p124 = scmp.ne.s32.totalorder %s113, %s116
    %p125 = scmp.eq.s32.totalorder %s14, 3
    %p126 = por %p124, %p125
    %p127 = scmp.ne.s32.totalorder %s116, %s117
    %p128 = scmp.eq.s32.totalorder %s14, 0
    %p129 = por %p127, %p128
    %p130 = scmp.ne.s32.totalorder %s116, %s117
    %p131 = scmp.eq.s32.totalorder %s15, 3
    %p132 = por %p130, %p131
    %p134 = scmp.ne.s32.totalorder %s117, %s133
    %p135 = scmp.eq.s32.totalorder %s15, 0
    %p136 = por %p134, %p135
    %p137 = scmp.le.s32.totalorder 1, %s9
    %p138 = scmp.lt.s32.totalorder %s9, 5
    %p139 = pnand %p137, %p138
    %p140 = pneg %p139
    // Predicated region
    $region9: #{transition_pruner_forward.23} parent=5 // pred_check
      _
    $region10: #{transition_pruner_forward.23} parent=5 // pred_check_branch
      %142 = sbr.rel (%p139) target = $region12
    $region11: #{transition_pruner_forward.23} parent=5 // pred_region
      %s143 = ssub.s32 %s9, 1
    $region12: #{transition_pruner_forward.23} parent=5 // pred_fallthru
      _
    %p144 = scmp.lt.s32.totalorder %s9, 4
    // Predicated region
    $region13: #{transition_pruner_forward.23} parent=5 // pred_check
      %p145 = pneg %p144
    $region14: #{transition_pruner_forward.23} parent=5 // pred_check_branch
      %147 = sbr.rel (%p145) target = $region16
    $region15: #{transition_pruner_forward.23} parent=5 // pred_region
      // Predicated region
      $region17: #{transition_pruner_forward.23} parent=15 // pred_check
        %p148 = pneg %p43
      $region18: #{transition_pruner_forward.23} parent=15 // pred_check_branch
        %150 = sbr.rel (%p148) target = $region20
      $region19: #{transition_pruner_forward.23} parent=15 // pred_region
        %s151 = smul.u32 4, %s17
        %p152 = scmp.lt.s32.totalorder %s16, 3
        %s153 = scalar_select %p152, %s16, 3
        %p154 = scmp.lt.s32.totalorder %s151, 3
        %s155 = scalar_select %p154, %s151, 3
        %s156 = smul.addr %s155, 4
        %s157 = smul.addr %s153, 16
        %s158 = sadd.s32 %s156, %s157
        %s159 = smul.addr %s158, 4
        %s160 = scalar_lea.vmem %s0, %s159
        %s161 = smul.u32 4, %s17
      $region20: #{transition_pruner_forward.23} parent=15 // pred_fallthru
        _
      // Predicated region
      $region21: #{transition_pruner_forward.23} parent=15 // pred_check
        %p162 = pneg %p69
      $region22: #{transition_pruner_forward.23} parent=15 // pred_check_branch
        %164 = sbr.rel (%p162) target = $region24
      $region23: #{transition_pruner_forward.23} parent=15 // pred_region
        %p165 = scmp.lt.s32.totalorder %s16, 3
        %s166 = scalar_select %p165, %s16, 3
        %s167 = smul.addr %s166, 64
        %s168 = smul.addr %s167, 4
        %s169 = scalar_lea.vmem %s1, %s168
      $region24: #{transition_pruner_forward.23} parent=15 // pred_fallthru
        _
      // Predicated region
      $region25: #{transition_pruner_forward.23} parent=15 // pred_check
        %p170 = pneg %p95
      $region26: #{transition_pruner_forward.23} parent=15 // pred_check_branch
        %172 = sbr.rel (%p170) target = $region28
      $region27: #{transition_pruner_forward.23} parent=15 // pred_region
        %p173 = scmp.lt.s32.totalorder %s16, 3
        %s174 = scalar_select %p173, %s16, 3
        %s175 = scalar_lea.vmem %s2, %s174
      $region28: #{transition_pruner_forward.23} parent=15 // pred_fallthru
        _
    $region16: #{transition_pruner_forward.23} parent=5 // pred_fallthru
      _
    %p176 = scmp.le.s32.totalorder 1, %s9
    %p177 = scmp.lt.s32.totalorder %s9, 5
    %p178 = pnand %p176, %p177
    %p179 = pneg %p178
    // Predicated region
    $region29: #{transition_pruner_forward.23} parent=5 // pred_check
      _
    $region30: #{transition_pruner_forward.23} parent=5 // pred_check_branch
      %181 = sbr.rel (%p178) target = $region32
    $region31: #{transition_pruner_forward.23} parent=5 // pred_region
      %s182 = ssub.s32 %s9, 1
      %s183 = smul.u32 4, %s19
      %p184 = scmp.lt.s32.totalorder %s18, 3
      %s185 = scalar_select %p184, %s18, 3
      %p186 = scmp.lt.s32.totalorder %s183, 3
      %s187 = scalar_select %p186, %s183, 3
      %s188 = smul.addr %s187, 4
      %s189 = smul.addr %s185, 16
      %s190 = sadd.s32 %s188, %s189
      %s191 = smul.addr %s190, 4
      %s192 = scalar_lea.vmem %s0, %s191
      %p193 = pneg %p49
      %p194 = pneg %p46
      %p195 = scmp.lt.s32.totalorder %s18, 3
      %s196 = scalar_select %p195, %s18, 3
      %s197 = smul.addr %s196, 64
      %s198 = smul.addr %s197, 4
      %s199 = scalar_lea.vmem %s1, %s198
      %p200 = pneg %p75
      %p201 = pneg %p72
      %p202 = scmp.lt.s32.totalorder %s18, 3
      %s203 = scalar_select %p202, %s18, 3
      %s204 = scalar_lea.vmem %s2, %s203
      %p205 = pneg %p101
      %p206 = pneg %p98
      %p207 = pneg %p129
      %p208 = pneg %p126
      %s209 = smul.u32 4, %s19
      %p210 = scmp.lt.s32.totalorder %s18, 3
      %s211 = scalar_select %p210, %s18, 3
      %p212 = scmp.lt.s32.totalorder %s209, 3
      %s213 = scalar_select %p212, %s209, 3
      %s214 = smul.addr %s211, 4
      %s215 = sadd.s32 %s213, %s214
      %s216 = smul.addr %s215, 8
      %s217 = scalar_lea.vmem %s3, %s216
      %s218 = smul.u32 4, %s19
      %p219 = scmp.lt.s32.totalorder %s18, 3
      %s220 = scalar_select %p219, %s18, 3
      %p221 = scmp.lt.s32.totalorder %s218, 3
      %s222 = scalar_select %p221, %s218, 3
      %s223 = smul.addr %s222, 4
      %s224 = smul.addr %s220, 16
      %s225 = sadd.s32 %s223, %s224
      %s226 = smul.addr %s225, 4
      %s227 = scalar_lea.vmem %s0, %s226
      %s228 = smul.u32 4, %s19
      %p229 = scmp.lt.s32.totalorder %s18, 3
      %s230 = scalar_select %p229, %s18, 3
      %s231 = smul.addr %s230, 64
      %s232 = smul.addr %s231, 4
      %s233 = scalar_lea.vmem %s1, %s232
      %p234 = scmp.lt.s32.totalorder %s18, 3
      %s235 = scalar_select %p234, %s18, 3
      %s236 = scalar_lea.vmem %s2, %s235
      %s237 = smul.u32 4, %s19
      %p238 = scmp.lt.s32.totalorder %s18, 3
      %s239 = scalar_select %p238, %s18, 3
      %p240 = scmp.lt.s32.totalorder %s237, 3
      %s241 = scalar_select %p240, %s237, 3
      %s242 = smul.addr %s239, 4
      %s243 = sadd.s32 %s241, %s242
      %s244 = smul.addr %s243, 8
      %s245 = scalar_lea.vmem %s3, %s244
      %s246 = smul.u32 4, %s19
      %v248 = vld [vmem:[%s227] sm:$0xff]
      %v249 = vld [vmem:[%s227 + $0x8] sm:$0xff]
      %v250 = vld [vmem:[%s227 + $0x10] sm:$0xff]
      %v251 = vld [vmem:[%s227 + $0x18] sm:$0xff]
      %v252 = vld [vmem:[%s227 + $0x20] sm:$0xff]
      %v253 = vld [vmem:[%s227 + $0x28] sm:$0xff]
      %v254 = vld [vmem:[%s227 + $0x30] sm:$0xff]
      %v255 = vld [vmem:[%s227 + $0x38] sm:$0xff]
      %v256 = vld [vmem:[%s233] sm:$0xf]
      %v257 = vld [vmem:[%s233 + $0x4] sm:$0xf]
      %v258 = vld [vmem:[%s233 + $0x8] sm:$0xf]
      %v259 = vld [vmem:[%s233 + $0xc] sm:$0xf]
      %v260 = vld [vmem:[%s233 + $0x10] sm:$0xf]
      %v261 = vld [vmem:[%s233 + $0x14] sm:$0xf]
      %v262 = vld [vmem:[%s233 + $0x18] sm:$0xf]
      %v263 = vld [vmem:[%s233 + $0x1c] sm:$0xf]
      %v264 = vld [vmem:[%s233 + $0x20] sm:$0xf]
      %v265 = vld [vmem:[%s233 + $0x24] sm:$0xf]
      %v266 = vld [vmem:[%s233 + $0x28] sm:$0xf]
      %v267 = vld [vmem:[%s233 + $0x2c] sm:$0xf]
      %v268 = vld [vmem:[%s233 + $0x30] sm:$0xf]
      %v269 = vld [vmem:[%s233 + $0x34] sm:$0xf]
      %v270 = vld [vmem:[%s233 + $0x38] sm:$0xf]
      %v271 = vld [vmem:[%s233 + $0x3c] sm:$0xf]
      %v272 = vld [vmem:[%s233 + $0x40] sm:$0xf]
      %v273 = vld [vmem:[%s233 + $0x44] sm:$0xf]
      %v274 = vld [vmem:[%s233 + $0x48] sm:$0xf]
      %v275 = vld [vmem:[%s233 + $0x4c] sm:$0xf]
      %v276 = vld [vmem:[%s233 + $0x50] sm:$0xf]
      %v277 = vld [vmem:[%s233 + $0x54] sm:$0xf]
      %v278 = vld [vmem:[%s233 + $0x58] sm:$0xf]
      %v279 = vld [vmem:[%s233 + $0x5c] sm:$0xf]
      %v280 = vld [vmem:[%s233 + $0x60] sm:$0xf]
      %v281 = vld [vmem:[%s233 + $0x64] sm:$0xf]
      %v282 = vld [vmem:[%s233 + $0x68] sm:$0xf]
      %v283 = vld [vmem:[%s233 + $0x6c] sm:$0xf]
      %v284 = vld [vmem:[%s233 + $0x70] sm:$0xf]
      %v285 = vld [vmem:[%s233 + $0x74] sm:$0xf]
      %v286 = vld [vmem:[%s233 + $0x78] sm:$0xf]
      %v287 = vld [vmem:[%s233 + $0x7c] sm:$0xf]
      %v288 = vld [vmem:[%s233 + $0x80] sm:$0xf]
      %v289 = vld [vmem:[%s233 + $0x84] sm:$0xf]
      %v290 = vld [vmem:[%s233 + $0x88] sm:$0xf]
      %v291 = vld [vmem:[%s233 + $0x8c] sm:$0xf]
      %v292 = vld [vmem:[%s233 + $0x90] sm:$0xf]
      %v293 = vld [vmem:[%s233 + $0x94] sm:$0xf]
      %v294 = vld [vmem:[%s233 + $0x98] sm:$0xf]
      %v295 = vld [vmem:[%s233 + $0x9c] sm:$0xf]
      %v296 = vld [vmem:[%s233 + $0xa0] sm:$0xf]
      %v297 = vld [vmem:[%s233 + $0xa4] sm:$0xf]
      %v298 = vld [vmem:[%s233 + $0xa8] sm:$0xf]
      %v299 = vld [vmem:[%s233 + $0xac] sm:$0xf]
      %v300 = vld [vmem:[%s233 + $0xb0] sm:$0xf]
      %v301 = vld [vmem:[%s233 + $0xb4] sm:$0xf]
      %v302 = vld [vmem:[%s233 + $0xb8] sm:$0xf]
      %v303 = vld [vmem:[%s233 + $0xbc] sm:$0xf]
      %v304 = vld [vmem:[%s233 + $0xc0] sm:$0xf]
      %v305 = vld [vmem:[%s233 + $0xc4] sm:$0xf]
      %v306 = vld [vmem:[%s233 + $0xc8] sm:$0xf]
      %v307 = vld [vmem:[%s233 + $0xcc] sm:$0xf]
      %v308 = vld [vmem:[%s233 + $0xd0] sm:$0xf]
      %v309 = vld [vmem:[%s233 + $0xd4] sm:$0xf]
      %v310 = vld [vmem:[%s233 + $0xd8] sm:$0xf]
      %v311 = vld [vmem:[%s233 + $0xdc] sm:$0xf]
      %v312 = vld [vmem:[%s233 + $0xe0] sm:$0xf]
      %v313 = vld [vmem:[%s233 + $0xe4] sm:$0xf]
      %v314 = vld [vmem:[%s233 + $0xe8] sm:$0xf]
      %v315 = vld [vmem:[%s233 + $0xec] sm:$0xf]
      %v316 = vld [vmem:[%s233 + $0xf0] sm:$0xf]
      %v317 = vld [vmem:[%s233 + $0xf4] sm:$0xf]
      %v318 = vld [vmem:[%s233 + $0xf8] sm:$0xf]
      %v319 = vld [vmem:[%s233 + $0xfc] sm:$0xf]
      %v320 = vld [vmem:[%s236] sm:$0x1]
      %v322 = vlaneseq
      %v323 = vshrl.u32 %v322, 7
      %v324 = vsub.s32 0, %v323
      %v325 = vrot.slane %v320, %v324
      %v335 = vunpack.c.l.b16 %v248
      %v336 = vunpack.c.h.b16 %v248
      %v337 = vunpack.c.l.b16 %v249
      %v338 = vunpack.c.h.b16 %v249
      %v339 = vunpack.c.l.b16 %v250
      %v340 = vunpack.c.h.b16 %v250
      %v341 = vunpack.c.l.b16 %v251
      %v342 = vunpack.c.h.b16 %v251
      %v343 = vunpack.c.l.b16 %v252
      %v344 = vunpack.c.h.b16 %v252
      %v345 = vunpack.c.l.b16 %v253
      %v346 = vunpack.c.h.b16 %v253
      %v347 = vunpack.c.l.b16 %v254
      %v348 = vunpack.c.h.b16 %v254
      %v349 = vunpack.c.l.b16 %v255
      %v350 = vunpack.c.h.b16 %v255
      %v351 = vpack.c.b16 %v339, %v335
      %v352 = vpack.c.b16 %v340, %v336
      %v353 = vpack.c.b16 %v341, %v337
      %v354 = vpack.c.b16 %v342, %v338
      %v355 = vpack.c.b16 %v347, %v343
      %v356 = vpack.c.b16 %v348, %v344
      %v357 = vpack.c.b16 %v349, %v345
      %v358 = vpack.c.b16 %v350, %v346
      %v431 = vunpack.c.l.b16 %v256
      %v432 = vunpack.c.l.b16 %v257
      %v433 = vunpack.c.l.b16 %v258
      %v434 = vunpack.c.l.b16 %v259
      %v435 = vunpack.c.l.b16 %v260
      %v436 = vunpack.c.l.b16 %v261
      %v437 = vunpack.c.l.b16 %v262
      %v438 = vunpack.c.l.b16 %v263
      %v439 = vunpack.c.l.b16 %v264
      %v440 = vunpack.c.l.b16 %v265
      %v441 = vunpack.c.l.b16 %v266
      %v442 = vunpack.c.l.b16 %v267
      %v443 = vunpack.c.l.b16 %v268
      %v444 = vunpack.c.l.b16 %v269
      %v445 = vunpack.c.l.b16 %v270
      %v446 = vunpack.c.l.b16 %v271
      %v447 = vunpack.c.l.b16 %v272
      %v448 = vunpack.c.l.b16 %v273
      %v449 = vunpack.c.l.b16 %v274
      %v450 = vunpack.c.l.b16 %v275
      %v451 = vunpack.c.l.b16 %v276
      %v452 = vunpack.c.l.b16 %v277
      %v453 = vunpack.c.l.b16 %v278
      %v454 = vunpack.c.l.b16 %v279
      %v455 = vunpack.c.l.b16 %v280
      %v456 = vunpack.c.l.b16 %v281
      %v457 = vunpack.c.l.b16 %v282
      %v458 = vunpack.c.l.b16 %v283
      %v459 = vunpack.c.l.b16 %v284
      %v460 = vunpack.c.l.b16 %v285
      %v461 = vunpack.c.l.b16 %v286
      %v462 = vunpack.c.l.b16 %v287
      %v463 = vunpack.c.l.b16 %v288
      %v464 = vunpack.c.l.b16 %v289
      %v465 = vunpack.c.l.b16 %v290
      %v466 = vunpack.c.l.b16 %v291
      %v467 = vunpack.c.l.b16 %v292
      %v468 = vunpack.c.l.b16 %v293
      %v469 = vunpack.c.l.b16 %v294
      %v470 = vunpack.c.l.b16 %v295
      %v471 = vunpack.c.l.b16 %v296
      %v472 = vunpack.c.l.b16 %v297
      %v473 = vunpack.c.l.b16 %v298
      %v474 = vunpack.c.l.b16 %v299
      %v475 = vunpack.c.l.b16 %v300
      %v476 = vunpack.c.l.b16 %v301
      %v477 = vunpack.c.l.b16 %v302
      %v478 = vunpack.c.l.b16 %v303
      %v479 = vunpack.c.l.b16 %v304
      %v480 = vunpack.c.l.b16 %v305
      %v481 = vunpack.c.l.b16 %v306
      %v482 = vunpack.c.l.b16 %v307
      %v483 = vunpack.c.l.b16 %v308
      %v484 = vunpack.c.l.b16 %v309
      %v485 = vunpack.c.l.b16 %v310
      %v486 = vunpack.c.l.b16 %v311
      %v487 = vunpack.c.l.b16 %v312
      %v488 = vunpack.c.l.b16 %v313
      %v489 = vunpack.c.l.b16 %v314
      %v490 = vunpack.c.l.b16 %v315
      %v491 = vunpack.c.l.b16 %v316
      %v492 = vunpack.c.l.b16 %v317
      %v493 = vunpack.c.l.b16 %v318
      %v494 = vunpack.c.l.b16 %v319
      %v495 = vpack.c.b16 %v432, %v431
      %v496 = vpack.c.b16 %v434, %v433
      %v497 = vpack.c.b16 %v436, %v435
      %v498 = vpack.c.b16 %v438, %v437
      %v499 = vpack.c.b16 %v440, %v439
      %v500 = vpack.c.b16 %v442, %v441
      %v501 = vpack.c.b16 %v444, %v443
      %v502 = vpack.c.b16 %v446, %v445
      %v503 = vpack.c.b16 %v448, %v447
      %v504 = vpack.c.b16 %v450, %v449
      %v505 = vpack.c.b16 %v452, %v451
      %v506 = vpack.c.b16 %v454, %v453
      %v507 = vpack.c.b16 %v456, %v455
      %v508 = vpack.c.b16 %v458, %v457
      %v509 = vpack.c.b16 %v460, %v459
      %v510 = vpack.c.b16 %v462, %v461
      %v511 = vpack.c.b16 %v464, %v463
      %v512 = vpack.c.b16 %v466, %v465
      %v513 = vpack.c.b16 %v468, %v467
      %v514 = vpack.c.b16 %v470, %v469
      %v515 = vpack.c.b16 %v472, %v471
      %v516 = vpack.c.b16 %v474, %v473
      %v517 = vpack.c.b16 %v476, %v475
      %v518 = vpack.c.b16 %v478, %v477
      %v519 = vpack.c.b16 %v480, %v479
      %v520 = vpack.c.b16 %v482, %v481
      %v521 = vpack.c.b16 %v484, %v483
      %v522 = vpack.c.b16 %v486, %v485
      %v523 = vpack.c.b16 %v488, %v487
      %v524 = vpack.c.b16 %v490, %v489
      %v525 = vpack.c.b16 %v492, %v491
      %v526 = vpack.c.b16 %v494, %v493
      %559 = vmatprep.subr.bf16.mxu0 0
      %560 = vmatpush1.bf16.msra.mxu0 %v495
      %561 = vmatprep.subr.bf16.mxu0 0
      %562 = vmatpush1.bf16.msra.mxu0 %v496
      %563 = vmatprep.subr.bf16.mxu0 0
      %564 = vmatpush1.bf16.msra.mxu0 %v497
      %565 = vmatprep.subr.bf16.mxu0 0
      %566 = vmatpush1.bf16.msra.mxu0 %v498
      %567 = vmatprep.subr.bf16.mxu0 0
      %568 = vmatpush1.bf16.msra.mxu0 %v499
      %569 = vmatprep.subr.bf16.mxu0 0
      %570 = vmatpush1.bf16.msra.mxu0 %v500
      %571 = vmatprep.subr.bf16.mxu0 0
      %572 = vmatpush1.bf16.msra.mxu0 %v501
      %573 = vmatprep.subr.bf16.mxu0 0
      %574 = vmatpush1.bf16.msra.mxu0 %v502
      %575 = vmatprep.subr.bf16.mxu0 0
      %576 = vmatpush1.bf16.msra.mxu0 %v503
      %577 = vmatprep.subr.bf16.mxu0 0
      %578 = vmatpush1.bf16.msra.mxu0 %v504
      %579 = vmatprep.subr.bf16.mxu0 0
      %580 = vmatpush1.bf16.msra.mxu0 %v505
      %581 = vmatprep.subr.bf16.mxu0 0
      %582 = vmatpush1.bf16.msra.mxu0 %v506
      %583 = vmatprep.subr.bf16.mxu0 0
      %584 = vmatpush1.bf16.msra.mxu0 %v507
      %585 = vmatprep.subr.bf16.mxu0 0
      %586 = vmatpush1.bf16.msra.mxu0 %v508
      %587 = vmatprep.subr.bf16.mxu0 0
      %588 = vmatpush1.bf16.msra.mxu0 %v509
      %589 = vmatprep.subr.bf16.mxu0 0
      %590 = vmatpush1.bf16.msra.mxu0 %v510
      %591 = vmatprep.mubr.bf16.mxu0 %v352
      %592 = vmatmul.mubr.bf16.gmra.mrb[0].mxu0 %v351
      %v593 = vpop.f32.mrb[0].mxu0
      %v594 = vadd.f32 %v325, %v593
      %v595 = vpop.f32.mrb[0].mxu0
      %v596 = vpop.f32.mrb[0].mxu0
      %v597 = vadd.f32 %v325, %v596
      %v598 = vpop.f32.mrb[0].mxu0
      %599 = vmatprep.mubr.bf16.mxu0 %v356
      %600 = vmatmul.mubr.bf16.gmra.mrb[0].mxu0 %v355
      %v601 = vpop.f32.mrb[0].mxu0
      %v602 = vadd.f32 %v325, %v601
      %v603 = vpop.f32.mrb[0].mxu0
      %v604 = vpop.f32.mrb[0].mxu0
      %v605 = vadd.f32 %v325, %v604
      %v606 = vpop.f32.mrb[0].mxu0
      %607 = vdwg.mxu0
      %608 = vmatprep.subr.bf16.mxu0 0
      %609 = vmatpush1.bf16.msra.mxu0 %v511
      %610 = vmatprep.subr.bf16.mxu0 0
      %611 = vmatpush1.bf16.msra.mxu0 %v512
      %612 = vmatprep.subr.bf16.mxu0 0
      %613 = vmatpush1.bf16.msra.mxu0 %v513
      %614 = vmatprep.subr.bf16.mxu0 0
      %615 = vmatpush1.bf16.msra.mxu0 %v514
      %616 = vmatprep.subr.bf16.mxu0 0
      %617 = vmatpush1.bf16.msra.mxu0 %v515
      %618 = vmatprep.subr.bf16.mxu0 0
      %619 = vmatpush1.bf16.msra.mxu0 %v516
      %620 = vmatprep.subr.bf16.mxu0 0
      %621 = vmatpush1.bf16.msra.mxu0 %v517
      %622 = vmatprep.subr.bf16.mxu0 0
      %623 = vmatpush1.bf16.msra.mxu0 %v518
      %624 = vmatprep.subr.bf16.mxu0 0
      %625 = vmatpush1.bf16.msra.mxu0 %v519
      %626 = vmatprep.subr.bf16.mxu0 0
      %627 = vmatpush1.bf16.msra.mxu0 %v520
      %628 = vmatprep.subr.bf16.mxu0 0
      %629 = vmatpush1.bf16.msra.mxu0 %v521
      %630 = vmatprep.subr.bf16.mxu0 0
      %631 = vmatpush1.bf16.msra.mxu0 %v522
      %632 = vmatprep.subr.bf16.mxu0 0
      %633 = vmatpush1.bf16.msra.mxu0 %v523
      %634 = vmatprep.subr.bf16.mxu0 0
      %635 = vmatpush1.bf16.msra.mxu0 %v524
      %636 = vmatprep.subr.bf16.mxu0 0
      %637 = vmatpush1.bf16.msra.mxu0 %v525
      %638 = vmatprep.subr.bf16.mxu0 0
      %639 = vmatpush1.bf16.msra.mxu0 %v526
      %640 = vmatprep.mubr.bf16.mxu0 %v354
      %641 = vmatmul.mubr.bf16.gmra.mrb[0].mxu0 %v353
      %v642 = vpop.f32.mrb[0].mxu0
      %v643 = vadd.f32 %v594, %v642
      %v644 = vpop.f32.mrb[0].mxu0
      %v645 = vpop.f32.mrb[0].mxu0
      %v646 = vadd.f32 %v597, %v645
      %v647 = vpop.f32.mrb[0].mxu0
      %648 = vmatprep.mubr.bf16.mxu0 %v358
      %649 = vmatmul.mubr.bf16.gmra.mrb[0].mxu0 %v357
      %v650 = vpop.f32.mrb[0].mxu0
      %v651 = vadd.f32 %v602, %v650
      %v652 = vpop.f32.mrb[0].mxu0
      %v653 = vpop.f32.mrb[0].mxu0
      %v654 = vadd.f32 %v605, %v653
      %v655 = vpop.f32.mrb[0].mxu0
      %656 = vdwg.mxu0
      %v657 = vmul.f32 %v643, 0.1
      %v658 = vmul.f32 %v646, 0.1
      %v659 = vmul.f32 %v651, 0.1
      %v660 = vmul.f32 %v654, 0.1
      %v661 = vmax.f32 %v643, %v657
      %v662 = vmax.f32 %v646, %v658
      %v663 = vmax.f32 %v651, %v659
      %v664 = vmax.f32 %v654, %v660
      %665 = vst [vmem:[%s245] sm:$0xff] %v661
      %666 = vst [vmem:[%s245 + $0x8] sm:$0xff] %v662
      %667 = vst [vmem:[%s245 + $0x10] sm:$0xff] %v663
      %668 = vst [vmem:[%s245 + $0x18] sm:$0xff] %v664
      %s669 = smul.u32 4, %s19
      %p670 = scmp.lt.s32.totalorder %s18, 3
      %s671 = scalar_select %p670, %s18, 3
      %p672 = scmp.lt.s32.totalorder %s669, 3
      %s673 = scalar_select %p672, %s669, 3
      %s674 = smul.addr %s671, 4
      %s675 = sadd.s32 %s673, %s674
      %s676 = smul.addr %s675, 8
      %s677 = scalar_lea.vmem %s3, %s676
      // Predicated region
      $region33: #{transition_pruner_forward.23} parent=31 // pred_check
        %p678 = pneg %p126
      $region34: #{transition_pruner_forward.23} parent=31 // pred_check_branch
        %680 = sbr.rel (%p678) target = $region36
      $region35: #{transition_pruner_forward.23} parent=31 // pred_region
        %s681 = smul.u32 4, %s19
      $region36: #{transition_pruner_forward.23} parent=31 // pred_fallthru
        _
    $region32: #{transition_pruner_forward.23} parent=5 // pred_fallthru
      _
    %p682 = scmp.le.s32.totalorder 2, %s9
    // Predicated region
    $region37: #{transition_pruner_forward.23} parent=5 // pred_check
      %p683 = pneg %p682
    $region38: #{transition_pruner_forward.23} parent=5 // pred_check_branch
      %685 = sbr.rel (%p683) target = $region40
    $region39: #{transition_pruner_forward.23} parent=5 // pred_region
      %s686 = ssub.s32 %s9, 2
      // Predicated region
      $region41: #{transition_pruner_forward.23} parent=39 // pred_check
        %p687 = pneg %p132
      $region42: #{transition_pruner_forward.23} parent=39 // pred_check_branch
        %689 = sbr.rel (%p687) target = $region44
      $region43: #{transition_pruner_forward.23} parent=39 // pred_region
        %s690 = smul.u32 4, %s21
        %p691 = scmp.lt.s32.totalorder %s20, 3
        %s692 = scalar_select %p691, %s20, 3
        %p693 = scmp.lt.s32.totalorder %s690, 3
        %s694 = scalar_select %p693, %s690, 3
        %s695 = smul.addr %s692, 4
        %s696 = sadd.s32 %s694, %s695
        %s697 = smul.addr %s696, 8
        %s698 = scalar_lea.vmem %s3, %s697
      $region44: #{transition_pruner_forward.23} parent=39 // pred_fallthru
        _
    $region40: #{transition_pruner_forward.23} parent=5 // pred_fallthru
      _
  $region6: #{transition_pruner_forward.23} parent=0 // loop_footer
    %s13 = sadd.s32 1, %s9
  $region7: #{transition_pruner_forward.23} parent=0 // loop_footer_branch
    %8 = sbr.rel target = $region3
  $region8: #{transition_pruner_forward.23} parent=0 // loop_exit
    _

// kernel: transition_pruner_forward.19
$region0: #{transition_pruner_forward.19}
  #allocation0 [shape = 'u32[]', space=smem, size = 0x4, offset = 0x4, fixed_abs, tag = 'smem constant byte address 0x4 - core index']
  #allocation1 [shape = 'u32[144,128]{1,0:T(1,128)}', space=vmem, size = 0x12000, scoped, tag = 'internal scratch']
  %s0 = inlined_call_operand.vmem [shape: bf16[1,8,2304], index: 0, kind: input, shape index: {}]
  %s1 = inlined_call_operand.vmem [shape: bf16[1,2304,512], index: 1, kind: input, shape index: {}]
  %s2 = inlined_call_operand.vmem [shape: f32[1,8,512], index: 2, kind: output, shape index: {0}]
  %s3 = inlined_call_operand.vmem [shape: f32[1,1,2,512], index: 3, kind: output, shape index: {1}]
  %4 = xla_tuple %s2, %s3
  %s5 = sld [smem:[#allocation0]]
  $region26: #{transition_pruner_forward.19} parent=0
    _
  %s7 = ssub.s32 1, %s5
  %s8 = scalar_select 0, %s7, %s5
  // Predicated region
  $region2: #{transition_pruner_forward.19} parent=0 // pred_check
    _
  $region3: #{transition_pruner_forward.19} parent=0 // pred_check_branch
    %10 = sbr.rel (0) target = $region5
  $region4: #{transition_pruner_forward.19} parent=0 // pred_region
    _
  $region5: #{transition_pruner_forward.19} parent=0 // pred_fallthru
    _
  // Predicated region
  $region6: #{transition_pruner_forward.19} parent=0 // pred_check
    _
  $region7: #{transition_pruner_forward.19} parent=0 // pred_check_branch
    %12 = sbr.rel (0) target = $region9
  $region8: #{transition_pruner_forward.19} parent=0 // pred_region
    _
  $region9: #{transition_pruner_forward.19} parent=0 // pred_fallthru
    _
  %v13 = vld [vmem:[%s0] sm:$0xff]
  %v14 = vld [vmem:[%s0 + $0x8] sm:$0xff]
  %v15 = vld [vmem:[%s0 + $0x10] sm:$0xff]
  %v16 = vld [vmem:[%s0 + $0x18] sm:$0xff]
  %v17 = vld [vmem:[%s0 + $0x20] sm:$0xff]
  %v18 = vld [vmem:[%s0 + $0x28] sm:$0xff]
  %v19 = vld [vmem:[%s0 + $0x30] sm:$0xff]
  %v20 = vld [vmem:[%s0 + $0x38] sm:$0xff]
  %v21 = vld [vmem:[%s0 + $0x40] sm:$0xff]
  %v22 = vld [vmem:[%s1] sm:$0xff]
  %v23 = vld [vmem:[%s1 + $0x8] sm:$0xff]
  %v24 = vld [vmem:[%s1 + $0x10] sm:$0xff]
  %v25 = vld [vmem:[%s1 + $0x18] sm:$0xff]
  %v26 = vld [vmem:[%s1 + $0x20] sm:$0xff]
  %v27 = vld [vmem:[%s1 + $0x28] sm:$0xff]
  %v28 = vld [vmem:[%s1 + $0x30] sm:$0xff]
  %v29 = vld [vmem:[%s1 + $0x38] sm:$0xff]
  %v30 = vld [vmem:[%s1 + $0x40] sm:$0xff]
  %v31 = vld [vmem:[%s1 + $0x48] sm:$0xff]
  %v32 = vld [vmem:[%s1 + $0x50] sm:$0xff]
  %v33 = vld [vmem:[%s1 + $0x58] sm:$0xff]
  %v34 = vld [vmem:[%s1 + $0x60] sm:$0xff]
  %v35 = vld [vmem:[%s1 + $0x68] sm:$0xff]
  %v36 = vld [vmem:[%s1 + $0x70] sm:$0xff]
  %v37 = vld [vmem:[%s1 + $0x78] sm:$0xff]
  %v38 = vld [vmem:[%s1 + $0x80] sm:$0xff]
  %v39 = vld [vmem:[%s1 + $0x88] sm:$0xff]
  %v40 = vld [vmem:[%s1 + $0x90] sm:$0xff]
  %v41 = vld [vmem:[%s1 + $0x98] sm:$0xff]
  %v42 = vld [vmem:[%s1 + $0xa0] sm:$0xff]
  %v43 = vld [vmem:[%s1 + $0xa8] sm:$0xff]
  %v44 = vld [vmem:[%s1 + $0xb0] sm:$0xff]
  %v45 = vld [vmem:[%s1 + $0xb8] sm:$0xff]
  %v46 = vld [vmem:[%s1 + $0xc0] sm:$0xff]
  %v47 = vld [vmem:[%s1 + $0xc8] sm:$0xff]
  %v48 = vld [vmem:[%s1 + $0xd0] sm:$0xff]
  %v49 = vld [vmem:[%s1 + $0xd8] sm:$0xff]
  %v50 = vld [vmem:[%s1 + $0xe0] sm:$0xff]
  %v51 = vld [vmem:[%s1 + $0xe8] sm:$0xff]
  %v52 = vld [vmem:[%s1 + $0xf0] sm:$0xff]
  %v53 = vld [vmem:[%s1 + $0xf8] sm:$0xff]
  %v54 = vld [vmem:[%s1 + $0x100] sm:$0xff]
  %v55 = vld [vmem:[%s1 + $0x108] sm:$0xff]
  %v56 = vld [vmem:[%s1 + $0x110] sm:$0xff]
  %v57 = vld [vmem:[%s1 + $0x118] sm:$0xff]
  %v58 = vld [vmem:[%s1 + $0x120] sm:$0xff]
  %v59 = vld [vmem:[%s1 + $0x128] sm:$0xff]
  %v60 = vld [vmem:[%s1 + $0x130] sm:$0xff]
  %v61 = vld [vmem:[%s1 + $0x138] sm:$0xff]
  %v62 = vld [vmem:[%s1 + $0x140] sm:$0xff]
  %v63 = vld [vmem:[%s1 + $0x148] sm:$0xff]
  %v64 = vld [vmem:[%s1 + $0x150] sm:$0xff]
  %v65 = vld [vmem:[%s1 + $0x158] sm:$0xff]
  %v66 = vld [vmem:[%s1 + $0x160] sm:$0xff]
  %v67 = vld [vmem:[%s1 + $0x168] sm:$0xff]
  %v68 = vld [vmem:[%s1 + $0x170] sm:$0xff]
  %v69 = vld [vmem:[%s1 + $0x178] sm:$0xff]
  %v70 = vld [vmem:[%s1 + $0x180] sm:$0xff]
  %v71 = vld [vmem:[%s1 + $0x188] sm:$0xff]
  %v72 = vld [vmem:[%s1 + $0x190] sm:$0xff]
  %v73 = vld [vmem:[%s1 + $0x198] sm:$0xff]
  %v74 = vld [vmem:[%s1 + $0x1a0] sm:$0xff]
  %v75 = vld [vmem:[%s1 + $0x1a8] sm:$0xff]
  %v76 = vld [vmem:[%s1 + $0x1b0] sm:$0xff]
  %v77 = vld [vmem:[%s1 + $0x1b8] sm:$0xff]
  %v78 = vld [vmem:[%s1 + $0x1c0] sm:$0xff]
  %v79 = vld [vmem:[%s1 + $0x1c8] sm:$0xff]
  %v80 = vld [vmem:[%s1 + $0x1d0] sm:$0xff]
  %v81 = vld [vmem:[%s1 + $0x1d8] sm:$0xff]
  %v82 = vld [vmem:[%s1 + $0x1e0] sm:$0xff]
  %v83 = vld [vmem:[%s1 + $0x1e8] sm:$0xff]
  %v84 = vld [vmem:[%s1 + $0x1f0] sm:$0xff]
  %v85 = vld [vmem:[%s1 + $0x1f8] sm:$0xff]
  %v86 = vld [vmem:[%s1 + $0x200] sm:$0xff]
  %v87 = vld [vmem:[%s1 + $0x208] sm:$0xff]
  %v88 = vld [vmem:[%s1 + $0x210] sm:$0xff]
  %v89 = vld [vmem:[%s1 + $0x218] sm:$0xff]
  %v90 = vld [vmem:[%s1 + $0x220] sm:$0xff]
  %v91 = vld [vmem:[%s1 + $0x228] sm:$0xff]
  %v92 = vld [vmem:[%s1 + $0x230] sm:$0xff]
  %v93 = vld [vmem:[%s1 + $0x238] sm:$0xff]
  %v94 = vld [vmem:[%s1 + $0x240] sm:$0xff]
  %v95 = vld [vmem:[%s1 + $0x248] sm:$0xff]
  %v96 = vld [vmem:[%s1 + $0x250] sm:$0xff]
  %v97 = vld [vmem:[%s1 + $0x258] sm:$0xff]
  %v98 = vld [vmem:[%s1 + $0x260] sm:$0xff]
  %v99 = vld [vmem:[%s1 + $0x268] sm:$0xff]
  %v100 = vld [vmem:[%s1 + $0x270] sm:$0xff]
  %v101 = vld [vmem:[%s1 + $0x278] sm:$0xff]
  %v102 = vld [vmem:[%s1 + $0x280] sm:$0xff]
  %v103 = vld [vmem:[%s1 + $0x288] sm:$0xff]
  %v104 = vld [vmem:[%s1 + $0x290] sm:$0xff]
  %v105 = vld [vmem:[%s1 + $0x298] sm:$0xff]
  %v106 = vld [vmem:[%s1 + $0x2a0] sm:$0xff]
  %v107 = vld [vmem:[%s1 + $0x2a8] sm:$0xff]
  %v108 = vld [vmem:[%s1 + $0x2b0] sm:$0xff]
  %v109 = vld [vmem:[%s1 + $0x2b8] sm:$0xff]
  %v110 = vld [vmem:[%s1 + $0x2c0] sm:$0xff]
  %v111 = vld [vmem:[%s1 + $0x2c8] sm:$0xff]
  %v112 = vld [vmem:[%s1 + $0x2d0] sm:$0xff]
  %v113 = vld [vmem:[%s1 + $0x2d8] sm:$0xff]
  %v114 = vld [vmem:[%s1 + $0x2e0] sm:$0xff]
  %v115 = vld [vmem:[%s1 + $0x2e8] sm:$0xff]
  %v116 = vld [vmem:[%s1 + $0x2f0] sm:$0xff]
  %v117 = vld [vmem:[%s1 + $0x2f8] sm:$0xff]
  %v118 = vld [vmem:[%s1 + $0x300] sm:$0xff]
  %v119 = vld [vmem:[%s1 + $0x308] sm:$0xff]
  %v120 = vld [vmem:[%s1 + $0x310] sm:$0xff]
  %v121 = vld [vmem:[%s1 + $0x318] sm:$0xff]
  %v122 = vld [vmem:[%s1 + $0x320] sm:$0xff]
  %v123 = vld [vmem:[%s1 + $0x328] sm:$0xff]
  %v124 = vld [vmem:[%s1 + $0x330] sm:$0xff]
  %v125 = vld [vmem:[%s1 + $0x338] sm:$0xff]
  %v126 = vld [vmem:[%s1 + $0x340] sm:$0xff]
  %v127 = vld [vmem:[%s1 + $0x348] sm:$0xff]
  %v128 = vld [vmem:[%s1 + $0x350] sm:$0xff]
  %v129 = vld [vmem:[%s1 + $0x358] sm:$0xff]
  %v130 = vld [vmem:[%s1 + $0x360] sm:$0xff]
  %v131 = vld [vmem:[%s1 + $0x368] sm:$0xff]
  %v132 = vld [vmem:[%s1 + $0x370] sm:$0xff]
  %v133 = vld [vmem:[%s1 + $0x378] sm:$0xff]
  %v134 = vld [vmem:[%s1 + $0x380] sm:$0xff]
  %v135 = vld [vmem:[%s1 + $0x388] sm:$0xff]
  %v136 = vld [vmem:[%s1 + $0x390] sm:$0xff]
  %v137 = vld [vmem:[%s1 + $0x398] sm:$0xff]
  %v138 = vld [vmem:[%s1 + $0x3a0] sm:$0xff]
  %v139 = vld [vmem:[%s1 + $0x3a8] sm:$0xff]
  %v140 = vld [vmem:[%s1 + $0x3b0] sm:$0xff]
  %v141 = vld [vmem:[%s1 + $0x3b8] sm:$0xff]
  %v142 = vld [vmem:[%s1 + $0x3c0] sm:$0xff]
  %v143 = vld [vmem:[%s1 + $0x3c8] sm:$0xff]
  %v144 = vld [vmem:[%s1 + $0x3d0] sm:$0xff]
  %v145 = vld [vmem:[%s1 + $0x3d8] sm:$0xff]
  %v146 = vld [vmem:[%s1 + $0x3e0] sm:$0xff]
  %v147 = vld [vmem:[%s1 + $0x3e8] sm:$0xff]
  %v148 = vld [vmem:[%s1 + $0x3f0] sm:$0xff]
  %v149 = vld [vmem:[%s1 + $0x3f8] sm:$0xff]
  %v150 = vld [vmem:[%s1 + $0x400] sm:$0xff]
  %v151 = vld [vmem:[%s1 + $0x408] sm:$0xff]
  %v152 = vld [vmem:[%s1 + $0x410] sm:$0xff]
  %v153 = vld [vmem:[%s1 + $0x418] sm:$0xff]
  %v154 = vld [vmem:[%s1 + $0x420] sm:$0xff]
  %v155 = vld [vmem:[%s1 + $0x428] sm:$0xff]
  %v156 = vld [vmem:[%s1 + $0x430] sm:$0xff]
  %v157 = vld [vmem:[%s1 + $0x438] sm:$0xff]
  %v158 = vld [vmem:[%s1 + $0x440] sm:$0xff]
  %v159 = vld [vmem:[%s1 + $0x448] sm:$0xff]
  %v160 = vld [vmem:[%s1 + $0x450] sm:$0xff]
  %v161 = vld [vmem:[%s1 + $0x458] sm:$0xff]
  %v162 = vld [vmem:[%s1 + $0x460] sm:$0xff]
  %v163 = vld [vmem:[%s1 + $0x468] sm:$0xff]
  %v164 = vld [vmem:[%s1 + $0x470] sm:$0xff]
  %v165 = vld [vmem:[%s1 + $0x478] sm:$0xff]
  %v166 = vld [vmem:[%s1 + $0x480] sm:$0xff]
  %v167 = vld [vmem:[%s1 + $0x488] sm:$0xff]
  %v168 = vld [vmem:[%s1 + $0x490] sm:$0xff]
  %v169 = vld [vmem:[%s1 + $0x498] sm:$0xff]
  %v170 = vld [vmem:[%s1 + $0x4a0] sm:$0xff]
  %v171 = vld [vmem:[%s1 + $0x4a8] sm:$0xff]
  %v172 = vld [vmem:[%s1 + $0x4b0] sm:$0xff]
  %v173 = vld [vmem:[%s1 + $0x4b8] sm:$0xff]
  %v174 = vld [vmem:[%s1 + $0x4c0] sm:$0xff]
  %v175 = vld [vmem:[%s1 + $0x4c8] sm:$0xff]
  %v176 = vld [vmem:[%s1 + $0x4d0] sm:$0xff]
  %v177 = vld [vmem:[%s1 + $0x4d8] sm:$0xff]
  %v178 = vld [vmem:[%s1 + $0x4e0] sm:$0xff]
  %v179 = vld [vmem:[%s1 + $0x4e8] sm:$0xff]
  %v180 = vld [vmem:[%s1 + $0x4f0] sm:$0xff]
  %v181 = vld [vmem:[%s1 + $0x4f8] sm:$0xff]
  %v182 = vld [vmem:[%s1 + $0x500] sm:$0xff]
  %v183 = vld [vmem:[%s1 + $0x508] sm:$0xff]
  %v184 = vld [vmem:[%s1 + $0x510] sm:$0xff]
  %v185 = vld [vmem:[%s1 + $0x518] sm:$0xff]
  %v186 = vld [vmem:[%s1 + $0x520] sm:$0xff]
  %v187 = vld [vmem:[%s1 + $0x528] sm:$0xff]
  %v188 = vld [vmem:[%s1 + $0x530] sm:$0xff]
  %v189 = vld [vmem:[%s1 + $0x538] sm:$0xff]
  %v190 = vld [vmem:[%s1 + $0x540] sm:$0xff]
  %v191 = vld [vmem:[%s1 + $0x548] sm:$0xff]
  %v192 = vld [vmem:[%s1 + $0x550] sm:$0xff]
  %v193 = vld [vmem:[%s1 + $0x558] sm:$0xff]
  %v194 = vld [vmem:[%s1 + $0x560] sm:$0xff]
  %v195 = vld [vmem:[%s1 + $0x568] sm:$0xff]
  %v196 = vld [vmem:[%s1 + $0x570] sm:$0xff]
  %v197 = vld [vmem:[%s1 + $0x578] sm:$0xff]
  %v198 = vld [vmem:[%s1 + $0x580] sm:$0xff]
  %v199 = vld [vmem:[%s1 + $0x588] sm:$0xff]
  %v200 = vld [vmem:[%s1 + $0x590] sm:$0xff]
  %v201 = vld [vmem:[%s1 + $0x598] sm:$0xff]
  %v202 = vld [vmem:[%s1 + $0x5a0] sm:$0xff]
  %v203 = vld [vmem:[%s1 + $0x5a8] sm:$0xff]
  %v204 = vld [vmem:[%s1 + $0x5b0] sm:$0xff]
  %v205 = vld [vmem:[%s1 + $0x5b8] sm:$0xff]
  %v206 = vld [vmem:[%s1 + $0x5c0] sm:$0xff]
  %v207 = vld [vmem:[%s1 + $0x5c8] sm:$0xff]
  %v208 = vld [vmem:[%s1 + $0x5d0] sm:$0xff]
  %v209 = vld [vmem:[%s1 + $0x5d8] sm:$0xff]
  %v210 = vld [vmem:[%s1 + $0x5e0] sm:$0xff]
  %v211 = vld [vmem:[%s1 + $0x5e8] sm:$0xff]
  %v212 = vld [vmem:[%s1 + $0x5f0] sm:$0xff]
  %v213 = vld [vmem:[%s1 + $0x5f8] sm:$0xff]
  %v214 = vld [vmem:[%s1 + $0x600] sm:$0xff]
  %v215 = vld [vmem:[%s1 + $0x608] sm:$0xff]
  %v216 = vld [vmem:[%s1 + $0x610] sm:$0xff]
  %v217 = vld [vmem:[%s1 + $0x618] sm:$0xff]
  %v218 = vld [vmem:[%s1 + $0x620] sm:$0xff]
  %v219 = vld [vmem:[%s1 + $0x628] sm:$0xff]
  %v220 = vld [vmem:[%s1 + $0x630] sm:$0xff]
  %v221 = vld [vmem:[%s1 + $0x638] sm:$0xff]
  %v222 = vld [vmem:[%s1 + $0x640] sm:$0xff]
  %v223 = vld [vmem:[%s1 + $0x648] sm:$0xff]
  %v224 = vld [vmem:[%s1 + $0x650] sm:$0xff]
  %v225 = vld [vmem:[%s1 + $0x658] sm:$0xff]
  %v226 = vld [vmem:[%s1 + $0x660] sm:$0xff]
  %v227 = vld [vmem:[%s1 + $0x668] sm:$0xff]
  %v228 = vld [vmem:[%s1 + $0x670] sm:$0xff]
  %v229 = vld [vmem:[%s1 + $0x678] sm:$0xff]
  %v230 = vld [vmem:[%s1 + $0x680] sm:$0xff]
  %v231 = vld [vmem:[%s1 + $0x688] sm:$0xff]
  %v232 = vld [vmem:[%s1 + $0x690] sm:$0xff]
  %v233 = vld [vmem:[%s1 + $0x698] sm:$0xff]
  %v234 = vld [vmem:[%s1 + $0x6a0] sm:$0xff]
  %v235 = vld [vmem:[%s1 + $0x6a8] sm:$0xff]
  %v236 = vld [vmem:[%s1 + $0x6b0] sm:$0xff]
  %v237 = vld [vmem:[%s1 + $0x6b8] sm:$0xff]
  %v238 = vld [vmem:[%s1 + $0x6c0] sm:$0xff]
  %v239 = vld [vmem:[%s1 + $0x6c8] sm:$0xff]
  %v240 = vld [vmem:[%s1 + $0x6d0] sm:$0xff]
  %v241 = vld [vmem:[%s1 + $0x6d8] sm:$0xff]
  %v242 = vld [vmem:[%s1 + $0x6e0] sm:$0xff]
  %v243 = vld [vmem:[%s1 + $0x6e8] sm:$0xff]
  %v244 = vld [vmem:[%s1 + $0x6f0] sm:$0xff]
  %v245 = vld [vmem:[%s1 + $0x6f8] sm:$0xff]
  %v246 = vld [vmem:[%s1 + $0x700] sm:$0xff]
  %v247 = vld [vmem:[%s1 + $0x708] sm:$0xff]
  %v248 = vld [vmem:[%s1 + $0x710] sm:$0xff]
  %v249 = vld [vmem:[%s1 + $0x718] sm:$0xff]
  %v250 = vld [vmem:[%s1 + $0x720] sm:$0xff]
  %v251 = vld [vmem:[%s1 + $0x728] sm:$0xff]
  %v252 = vld [vmem:[%s1 + $0x730] sm:$0xff]
  %v253 = vld [vmem:[%s1 + $0x738] sm:$0xff]
  %v254 = vld [vmem:[%s1 + $0x740] sm:$0xff]
  %v255 = vld [vmem:[%s1 + $0x748] sm:$0xff]
  %v256 = vld [vmem:[%s1 + $0x750] sm:$0xff]
  %v257 = vld [vmem:[%s1 + $0x758] sm:$0xff]
  %v258 = vld [vmem:[%s1 + $0x760] sm:$0xff]
  %v259 = vld [vmem:[%s1 + $0x768] sm:$0xff]
  %v260 = vld [vmem:[%s1 + $0x770] sm:$0xff]
  %v261 = vld [vmem:[%s1 + $0x778] sm:$0xff]
  %v262 = vld [vmem:[%s1 + $0x780] sm:$0xff]
  %v263 = vld [vmem:[%s1 + $0x788] sm:$0xff]
  %v264 = vld [vmem:[%s1 + $0x790] sm:$0xff]
  %v265 = vld [vmem:[%s1 + $0x798] sm:$0xff]
  %v266 = vld [vmem:[%s1 + $0x7a0] sm:$0xff]
  %v267 = vld [vmem:[%s1 + $0x7a8] sm:$0xff]
  %v268 = vld [vmem:[%s1 + $0x7b0] sm:$0xff]
  %v269 = vld [vmem:[%s1 + $0x7b8] sm:$0xff]
  %v270 = vld [vmem:[%s1 + $0x7c0] sm:$0xff]
  %v271 = vld [vmem:[%s1 + $0x7c8] sm:$0xff]
  %v272 = vld [vmem:[%s1 + $0x7d0] sm:$0xff]
  %v273 = vld [vmem:[%s1 + $0x7d8] sm:$0xff]
  %v274 = vld [vmem:[%s1 + $0x7e0] sm:$0xff]
  %v275 = vld [vmem:[%s1 + $0x7e8] sm:$0xff]
  %v276 = vld [vmem:[%s1 + $0x7f0] sm:$0xff]
  %v277 = vld [vmem:[%s1 + $0x7f8] sm:$0xff]
  %v278 = vld [vmem:[%s1 + $0x800] sm:$0xff]
  %v279 = vld [vmem:[%s1 + $0x808] sm:$0xff]
  %v280 = vld [vmem:[%s1 + $0x810] sm:$0xff]
  %v281 = vld [vmem:[%s1 + $0x818] sm:$0xff]
  %v282 = vld [vmem:[%s1 + $0x820] sm:$0xff]
  %v283 = vld [vmem:[%s1 + $0x828] sm:$0xff]
  %v284 = vld [vmem:[%s1 + $0x830] sm:$0xff]
  %v285 = vld [vmem:[%s1 + $0x838] sm:$0xff]
  %v286 = vld [vmem:[%s1 + $0x840] sm:$0xff]
  %v287 = vld [vmem:[%s1 + $0x848] sm:$0xff]
  %v288 = vld [vmem:[%s1 + $0x850] sm:$0xff]
  %v289 = vld [vmem:[%s1 + $0x858] sm:$0xff]
  %v290 = vld [vmem:[%s1 + $0x860] sm:$0xff]
  %v291 = vld [vmem:[%s1 + $0x868] sm:$0xff]
  %v292 = vld [vmem:[%s1 + $0x870] sm:$0xff]
  %v293 = vld [vmem:[%s1 + $0x878] sm:$0xff]
  %v294 = vld [vmem:[%s1 + $0x880] sm:$0xff]
  %v295 = vld [vmem:[%s1 + $0x888] sm:$0xff]
  %v296 = vld [vmem:[%s1 + $0x890] sm:$0xff]
  %v297 = vld [vmem:[%s1 + $0x898] sm:$0xff]
  %v298 = vld [vmem:[%s1 + $0x8a0] sm:$0xff]
  %v299 = vld [vmem:[%s1 + $0x8a8] sm:$0xff]
  %v300 = vld [vmem:[%s1 + $0x8b0] sm:$0xff]
  %v301 = vld [vmem:[%s1 + $0x8b8] sm:$0xff]
  %v302 = vld [vmem:[%s1 + $0x8c0] sm:$0xff]
  %v303 = vld [vmem:[%s1 + $0x8c8] sm:$0xff]
  %v304 = vld [vmem:[%s1 + $0x8d0] sm:$0xff]
  %v305 = vld [vmem:[%s1 + $0x8d8] sm:$0xff]
  %v306 = vld [vmem:[%s1 + $0x8e0] sm:$0xff]
  %v307 = vld [vmem:[%s1 + $0x8e8] sm:$0xff]
  %v308 = vld [vmem:[%s1 + $0x8f0] sm:$0xff]
  %v309 = vld [vmem:[%s1 + $0x8f8] sm:$0xff]
  %v310 = vld [vmem:[%s1 + $0x900] sm:$0xff]
  %v311 = vld [vmem:[%s1 + $0x908] sm:$0xff]
  %v312 = vld [vmem:[%s1 + $0x910] sm:$0xff]
  %v313 = vld [vmem:[%s1 + $0x918] sm:$0xff]
  %v314 = vld [vmem:[%s1 + $0x920] sm:$0xff]
  %v315 = vld [vmem:[%s1 + $0x928] sm:$0xff]
  %v316 = vld [vmem:[%s1 + $0x930] sm:$0xff]
  %v317 = vld [vmem:[%s1 + $0x938] sm:$0xff]
  %v318 = vld [vmem:[%s1 + $0x940] sm:$0xff]
  %v319 = vld [vmem:[%s1 + $0x948] sm:$0xff]
  %v320 = vld [vmem:[%s1 + $0x950] sm:$0xff]
  %v321 = vld [vmem:[%s1 + $0x958] sm:$0xff]
  %v322 = vld [vmem:[%s1 + $0x960] sm:$0xff]
  %v323 = vld [vmem:[%s1 + $0x968] sm:$0xff]
  %v324 = vld [vmem:[%s1 + $0x970] sm:$0xff]
  %v325 = vld [vmem:[%s1 + $0x978] sm:$0xff]
  %v326 = vld [vmem:[%s1 + $0x980] sm:$0xff]
  %v327 = vld [vmem:[%s1 + $0x988] sm:$0xff]
  %v328 = vld [vmem:[%s1 + $0x990] sm:$0xff]
  %v329 = vld [vmem:[%s1 + $0x998] sm:$0xff]
  %v330 = vld [vmem:[%s1 + $0x9a0] sm:$0xff]
  %v331 = vld [vmem:[%s1 + $0x9a8] sm:$0xff]
  %v332 = vld [vmem:[%s1 + $0x9b0] sm:$0xff]
  %v333 = vld [vmem:[%s1 + $0x9b8] sm:$0xff]
  %v334 = vld [vmem:[%s1 + $0x9c0] sm:$0xff]
  %v335 = vld [vmem:[%s1 + $0x9c8] sm:$0xff]
  %v336 = vld [vmem:[%s1 + $0x9d0] sm:$0xff]
  %v337 = vld [vmem:[%s1 + $0x9d8] sm:$0xff]
  %v338 = vld [vmem:[%s1 + $0x9e0] sm:$0xff]
  %v339 = vld [vmem:[%s1 + $0x9e8] sm:$0xff]
  %v340 = vld [vmem:[%s1 + $0x9f0] sm:$0xff]
  %v341 = vld [vmem:[%s1 + $0x9f8] sm:$0xff]
  %v342 = vld [vmem:[%s1 + $0xa00] sm:$0xff]
  %v343 = vld [vmem:[%s1 + $0xa08] sm:$0xff]
  %v344 = vld [vmem:[%s1 + $0xa10] sm:$0xff]
  %v345 = vld [vmem:[%s1 + $0xa18] sm:$0xff]
  %v346 = vld [vmem:[%s1 + $0xa20] sm:$0xff]
  %v347 = vld [vmem:[%s1 + $0xa28] sm:$0xff]
  %v348 = vld [vmem:[%s1 + $0xa30] sm:$0xff]
  %v349 = vld [vmem:[%s1 + $0xa38] sm:$0xff]
  %v350 = vld [vmem:[%s1 + $0xa40] sm:$0xff]
  %v351 = vld [vmem:[%s1 + $0xa48] sm:$0xff]
  %v352 = vld [vmem:[%s1 + $0xa50] sm:$0xff]
  %v353 = vld [vmem:[%s1 + $0xa58] sm:$0xff]
  %v354 = vld [vmem:[%s1 + $0xa60] sm:$0xff]
  %v355 = vld [vmem:[%s1 + $0xa68] sm:$0xff]
  %v356 = vld [vmem:[%s1 + $0xa70] sm:$0xff]
  %v357 = vld [vmem:[%s1 + $0xa78] sm:$0xff]
  %v358 = vld [vmem:[%s1 + $0xa80] sm:$0xff]
  %v359 = vld [vmem:[%s1 + $0xa88] sm:$0xff]
  %v360 = vld [vmem:[%s1 + $0xa90] sm:$0xff]
  %v361 = vld [vmem:[%s1 + $0xa98] sm:$0xff]
  %v362 = vld [vmem:[%s1 + $0xaa0] sm:$0xff]
  %v363 = vld [vmem:[%s1 + $0xaa8] sm:$0xff]
  %v364 = vld [vmem:[%s1 + $0xab0] sm:$0xff]
  %v365 = vld [vmem:[%s1 + $0xab8] sm:$0xff]
  %v366 = vld [vmem:[%s1 + $0xac0] sm:$0xff]
  %v367 = vld [vmem:[%s1 + $0xac8] sm:$0xff]
  %v368 = vld [vmem:[%s1 + $0xad0] sm:$0xff]
  %v369 = vld [vmem:[%s1 + $0xad8] sm:$0xff]
  %v370 = vld [vmem:[%s1 + $0xae0] sm:$0xff]
  %v371 = vld [vmem:[%s1 + $0xae8] sm:$0xff]
  %v372 = vld [vmem:[%s1 + $0xaf0] sm:$0xff]
  %v373 = vld [vmem:[%s1 + $0xaf8] sm:$0xff]
  %v374 = vld [vmem:[%s1 + $0xb00] sm:$0xff]
  %v375 = vld [vmem:[%s1 + $0xb08] sm:$0xff]
  %v376 = vld [vmem:[%s1 + $0xb10] sm:$0xff]
  %v377 = vld [vmem:[%s1 + $0xb18] sm:$0xff]
  %v378 = vld [vmem:[%s1 + $0xb20] sm:$0xff]
  %v379 = vld [vmem:[%s1 + $0xb28] sm:$0xff]
  %v380 = vld [vmem:[%s1 + $0xb30] sm:$0xff]
  %v381 = vld [vmem:[%s1 + $0xb38] sm:$0xff]
  %v382 = vld [vmem:[%s1 + $0xb40] sm:$0xff]
  %v383 = vld [vmem:[%s1 + $0xb48] sm:$0xff]
  %v384 = vld [vmem:[%s1 + $0xb50] sm:$0xff]
  %v385 = vld [vmem:[%s1 + $0xb58] sm:$0xff]
  %v386 = vld [vmem:[%s1 + $0xb60] sm:$0xff]
  %v387 = vld [vmem:[%s1 + $0xb68] sm:$0xff]
  %v388 = vld [vmem:[%s1 + $0xb70] sm:$0xff]
  %v389 = vld [vmem:[%s1 + $0xb78] sm:$0xff]
  %v390 = vld [vmem:[%s1 + $0xb80] sm:$0xff]
  %v391 = vld [vmem:[%s1 + $0xb88] sm:$0xff]
  %v392 = vld [vmem:[%s1 + $0xb90] sm:$0xff]
  %v393 = vld [vmem:[%s1 + $0xb98] sm:$0xff]
  %v394 = vld [vmem:[%s1 + $0xba0] sm:$0xff]
  %v395 = vld [vmem:[%s1 + $0xba8] sm:$0xff]
  %v396 = vld [vmem:[%s1 + $0xbb0] sm:$0xff]
  %v397 = vld [vmem:[%s1 + $0xbb8] sm:$0xff]
  %v398 = vld [vmem:[%s1 + $0xbc0] sm:$0xff]
  %v399 = vld [vmem:[%s1 + $0xbc8] sm:$0xff]
  %v400 = vld [vmem:[%s1 + $0xbd0] sm:$0xff]
  %v401 = vld [vmem:[%s1 + $0xbd8] sm:$0xff]
  %v402 = vld [vmem:[%s1 + $0xbe0] sm:$0xff]
  %v403 = vld [vmem:[%s1 + $0xbe8] sm:$0xff]
  %v404 = vld [vmem:[%s1 + $0xbf0] sm:$0xff]
  %v405 = vld [vmem:[%s1 + $0xbf8] sm:$0xff]
  %v406 = vld [vmem:[%s1 + $0xc00] sm:$0xff]
  %v407 = vld [vmem:[%s1 + $0xc08] sm:$0xff]
  %v408 = vld [vmem:[%s1 + $0xc10] sm:$0xff]
  %v409 = vld [vmem:[%s1 + $0xc18] sm:$0xff]
  %v410 = vld [vmem:[%s1 + $0xc20] sm:$0xff]
  %v411 = vld [vmem:[%s1 + $0xc28] sm:$0xff]
  %v412 = vld [vmem:[%s1 + $0xc30] sm:$0xff]
  %v413 = vld [vmem:[%s1 + $0xc38] sm:$0xff]
  %v414 = vld [vmem:[%s1 + $0xc40] sm:$0xff]
  %v415 = vld [vmem:[%s1 + $0xc48] sm:$0xff]
  %v416 = vld [vmem:[%s1 + $0xc50] sm:$0xff]
  %v417 = vld [vmem:[%s1 + $0xc58] sm:$0xff]
  %v418 = vld [vmem:[%s1 + $0xc60] sm:$0xff]
  %v419 = vld [vmem:[%s1 + $0xc68] sm:$0xff]
  %v420 = vld [vmem:[%s1 + $0xc70] sm:$0xff]
  %v421 = vld [vmem:[%s1 + $0xc78] sm:$0xff]
  %v422 = vld [vmem:[%s1 + $0xc80] sm:$0xff]
  %v423 = vld [vmem:[%s1 + $0xc88] sm:$0xff]
  %v424 = vld [vmem:[%s1 + $0xc90] sm:$0xff]
  %v425 = vld [vmem:[%s1 + $0xc98] sm:$0xff]
  %v426 = vld [vmem:[%s1 + $0xca0] sm:$0xff]
  %v427 = vld [vmem:[%s1 + $0xca8] sm:$0xff]
  %v428 = vld [vmem:[%s1 + $0xcb0] sm:$0xff]
  %v429 = vld [vmem:[%s1 + $0xcb8] sm:$0xff]
  %v430 = vld [vmem:[%s1 + $0xcc0] sm:$0xff]
  %v431 = vld [vmem:[%s1 + $0xcc8] sm:$0xff]
  %v432 = vld [vmem:[%s1 + $0xcd0] sm:$0xff]
  %v433 = vld [vmem:[%s1 + $0xcd8] sm:$0xff]
  %v434 = vld [vmem:[%s1 + $0xce0] sm:$0xff]
  %v435 = vld [vmem:[%s1 + $0xce8] sm:$0xff]
  %v436 = vld [vmem:[%s1 + $0xcf0] sm:$0xff]
  %v437 = vld [vmem:[%s1 + $0xcf8] sm:$0xff]
  %v438 = vld [vmem:[%s1 + $0xd00] sm:$0xff]
  %v439 = vld [vmem:[%s1 + $0xd08] sm:$0xff]
  %v440 = vld [vmem:[%s1 + $0xd10] sm:$0xff]
  %v441 = vld [vmem:[%s1 + $0xd18] sm:$0xff]
  %v442 = vld [vmem:[%s1 + $0xd20] sm:$0xff]
  %v443 = vld [vmem:[%s1 + $0xd28] sm:$0xff]
  %v444 = vld [vmem:[%s1 + $0xd30] sm:$0xff]
  %v445 = vld [vmem:[%s1 + $0xd38] sm:$0xff]
  %v446 = vld [vmem:[%s1 + $0xd40] sm:$0xff]
  %v447 = vld [vmem:[%s1 + $0xd48] sm:$0xff]
  %v448 = vld [vmem:[%s1 + $0xd50] sm:$0xff]
  %v449 = vld [vmem:[%s1 + $0xd58] sm:$0xff]
  %v450 = vld [vmem:[%s1 + $0xd60] sm:$0xff]
  %v451 = vld [vmem:[%s1 + $0xd68] sm:$0xff]
  %v452 = vld [vmem:[%s1 + $0xd70] sm:$0xff]
  %v453 = vld [vmem:[%s1 + $0xd78] sm:$0xff]
  %v454 = vld [vmem:[%s1 + $0xd80] sm:$0xff]
  %v455 = vld [vmem:[%s1 + $0xd88] sm:$0xff]
  %v456 = vld [vmem:[%s1 + $0xd90] sm:$0xff]
  %v457 = vld [vmem:[%s1 + $0xd98] sm:$0xff]
  %v458 = vld [vmem:[%s1 + $0xda0] sm:$0xff]
  %v459 = vld [vmem:[%s1 + $0xda8] sm:$0xff]
  %v460 = vld [vmem:[%s1 + $0xdb0] sm:$0xff]
  %v461 = vld [vmem:[%s1 + $0xdb8] sm:$0xff]
  %v462 = vld [vmem:[%s1 + $0xdc0] sm:$0xff]
  %v463 = vld [vmem:[%s1 + $0xdc8] sm:$0xff]
  %v464 = vld [vmem:[%s1 + $0xdd0] sm:$0xff]
  %v465 = vld [vmem:[%s1 + $0xdd8] sm:$0xff]
  %v466 = vld [vmem:[%s1 + $0xde0] sm:$0xff]
  %v467 = vld [vmem:[%s1 + $0xde8] sm:$0xff]
  %v468 = vld [vmem:[%s1 + $0xdf0] sm:$0xff]
  %v469 = vld [vmem:[%s1 + $0xdf8] sm:$0xff]
  %v470 = vld [vmem:[%s1 + $0xe00] sm:$0xff]
  %v471 = vld [vmem:[%s1 + $0xe08] sm:$0xff]
  %v472 = vld [vmem:[%s1 + $0xe10] sm:$0xff]
  %v473 = vld [vmem:[%s1 + $0xe18] sm:$0xff]
  %v474 = vld [vmem:[%s1 + $0xe20] sm:$0xff]
  %v475 = vld [vmem:[%s1 + $0xe28] sm:$0xff]
  %v476 = vld [vmem:[%s1 + $0xe30] sm:$0xff]
  %v477 = vld [vmem:[%s1 + $0xe38] sm:$0xff]
  %v478 = vld [vmem:[%s1 + $0xe40] sm:$0xff]
  %v479 = vld [vmem:[%s1 + $0xe48] sm:$0xff]
  %v480 = vld [vmem:[%s1 + $0xe50] sm:$0xff]
  %v481 = vld [vmem:[%s1 + $0xe58] sm:$0xff]
  %v482 = vld [vmem:[%s1 + $0xe60] sm:$0xff]
  %v483 = vld [vmem:[%s1 + $0xe68] sm:$0xff]
  %v484 = vld [vmem:[%s1 + $0xe70] sm:$0xff]
  %v485 = vld [vmem:[%s1 + $0xe78] sm:$0xff]
  %v486 = vld [vmem:[%s1 + $0xe80] sm:$0xff]
  %v487 = vld [vmem:[%s1 + $0xe88] sm:$0xff]
  %v488 = vld [vmem:[%s1 + $0xe90] sm:$0xff]
  %v489 = vld [vmem:[%s1 + $0xe98] sm:$0xff]
  %v490 = vld [vmem:[%s1 + $0xea0] sm:$0xff]
  %v491 = vld [vmem:[%s1 + $0xea8] sm:$0xff]
  %v492 = vld [vmem:[%s1 + $0xeb0] sm:$0xff]
  %v493 = vld [vmem:[%s1 + $0xeb8] sm:$0xff]
  %v494 = vld [vmem:[%s1 + $0xec0] sm:$0xff]
  %v495 = vld [vmem:[%s1 + $0xec8] sm:$0xff]
  %v496 = vld [vmem:[%s1 + $0xed0] sm:$0xff]
  %v497 = vld [vmem:[%s1 + $0xed8] sm:$0xff]
  %v498 = vld [vmem:[%s1 + $0xee0] sm:$0xff]
  %v499 = vld [vmem:[%s1 + $0xee8] sm:$0xff]
  %v500 = vld [vmem:[%s1 + $0xef0] sm:$0xff]
  %v501 = vld [vmem:[%s1 + $0xef8] sm:$0xff]
  %v502 = vld [vmem:[%s1 + $0xf00] sm:$0xff]
  %v503 = vld [vmem:[%s1 + $0xf08] sm:$0xff]
  %v504 = vld [vmem:[%s1 + $0xf10] sm:$0xff]
  %v505 = vld [vmem:[%s1 + $0xf18] sm:$0xff]
  %v506 = vld [vmem:[%s1 + $0xf20] sm:$0xff]
  %v507 = vld [vmem:[%s1 + $0xf28] sm:$0xff]
  %v508 = vld [vmem:[%s1 + $0xf30] sm:$0xff]
  %v509 = vld [vmem:[%s1 + $0xf38] sm:$0xff]
  %v510 = vld [vmem:[%s1 + $0xf40] sm:$0xff]
  %v511 = vld [vmem:[%s1 + $0xf48] sm:$0xff]
  %v512 = vld [vmem:[%s1 + $0xf50] sm:$0xff]
  %v513 = vld [vmem:[%s1 + $0xf58] sm:$0xff]
  %v514 = vld [vmem:[%s1 + $0xf60] sm:$0xff]
  %v515 = vld [vmem:[%s1 + $0xf68] sm:$0xff]
  %v516 = vld [vmem:[%s1 + $0xf70] sm:$0xff]
  %v517 = vld [vmem:[%s1 + $0xf78] sm:$0xff]
  %v518 = vld [vmem:[%s1 + $0xf80] sm:$0xff]
  %v519 = vld [vmem:[%s1 + $0xf88] sm:$0xff]
  %v520 = vld [vmem:[%s1 + $0xf90] sm:$0xff]
  %v521 = vld [vmem:[%s1 + $0xf98] sm:$0xff]
  %v522 = vld [vmem:[%s1 + $0xfa0] sm:$0xff]
  %v523 = vld [vmem:[%s1 + $0xfa8] sm:$0xff]
  %v524 = vld [vmem:[%s1 + $0xfb0] sm:$0xff]
  %v525 = vld [vmem:[%s1 + $0xfb8] sm:$0xff]
  %v526 = vld [vmem:[%s1 + $0xfc0] sm:$0xff]
  %v527 = vld [vmem:[%s1 + $0xfc8] sm:$0xff]
  %v528 = vld [vmem:[%s1 + $0xfd0] sm:$0xff]
  %v529 = vld [vmem:[%s1 + $0xfd8] sm:$0xff]
  %v530 = vld [vmem:[%s1 + $0xfe0] sm:$0xff]
  %v531 = vld [vmem:[%s1 + $0xfe8] sm:$0xff]
  %v532 = vld [vmem:[%s1 + $0xff0] sm:$0xff]
  %v533 = vld [vmem:[%s1 + $0xff8] sm:$0xff]
  %v534 = vld [vmem:[%s1 + $0x1000] sm:$0xff]
  %v535 = vld [vmem:[%s1 + $0x1008] sm:$0xff]
  %v536 = vld [vmem:[%s1 + $0x1010] sm:$0xff]
  %v537 = vld [vmem:[%s1 + $0x1018] sm:$0xff]
  %v538 = vld [vmem:[%s1 + $0x1020] sm:$0xff]
  %v539 = vld [vmem:[%s1 + $0x1028] sm:$0xff]
  %v540 = vld [vmem:[%s1 + $0x1030] sm:$0xff]
  %v541 = vld [vmem:[%s1 + $0x1038] sm:$0xff]
  %v542 = vld [vmem:[%s1 + $0x1040] sm:$0xff]
  %v543 = vld [vmem:[%s1 + $0x1048] sm:$0xff]
  %v544 = vld [vmem:[%s1 + $0x1050] sm:$0xff]
  %v545 = vld [vmem:[%s1 + $0x1058] sm:$0xff]
  %v546 = vld [vmem:[%s1 + $0x1060] sm:$0xff]
  %v547 = vld [vmem:[%s1 + $0x1068] sm:$0xff]
  %v548 = vld [vmem:[%s1 + $0x1070] sm:$0xff]
  %v549 = vld [vmem:[%s1 + $0x1078] sm:$0xff]
  %v550 = vld [vmem:[%s1 + $0x1080] sm:$0xff]
  %v551 = vld [vmem:[%s1 + $0x1088] sm:$0xff]
  %v552 = vld [vmem:[%s1 + $0x1090] sm:$0xff]
  %v553 = vld [vmem:[%s1 + $0x1098] sm:$0xff]
  %v554 = vld [vmem:[%s1 + $0x10a0] sm:$0xff]
  %v555 = vld [vmem:[%s1 + $0x10a8] sm:$0xff]
  %v556 = vld [vmem:[%s1 + $0x10b0] sm:$0xff]
  %v557 = vld [vmem:[%s1 + $0x10b8] sm:$0xff]
  %v558 = vld [vmem:[%s1 + $0x10c0] sm:$0xff]
  %v559 = vld [vmem:[%s1 + $0x10c8] sm:$0xff]
  %v560 = vld [vmem:[%s1 + $0x10d0] sm:$0xff]
  %v561 = vld [vmem:[%s1 + $0x10d8] sm:$0xff]
  %v562 = vld [vmem:[%s1 + $0x10e0] sm:$0xff]
  %v563 = vld [vmem:[%s1 + $0x10e8] sm:$0xff]
  %v564 = vld [vmem:[%s1 + $0x10f0] sm:$0xff]
  %v565 = vld [vmem:[%s1 + $0x10f8] sm:$0xff]
  %v566 = vld [vmem:[%s1 + $0x1100] sm:$0xff]
  %v567 = vld [vmem:[%s1 + $0x1108] sm:$0xff]
  %v568 = vld [vmem:[%s1 + $0x1110] sm:$0xff]
  %v569 = vld [vmem:[%s1 + $0x1118] sm:$0xff]
  %v570 = vld [vmem:[%s1 + $0x1120] sm:$0xff]
  %v571 = vld [vmem:[%s1 + $0x1128] sm:$0xff]
  %v572 = vld [vmem:[%s1 + $0x1130] sm:$0xff]
  %v573 = vld [vmem:[%s1 + $0x1138] sm:$0xff]
  %v574 = vld [vmem:[%s1 + $0x1140] sm:$0xff]
  %v575 = vld [vmem:[%s1 + $0x1148] sm:$0xff]
  %v576 = vld [vmem:[%s1 + $0x1150] sm:$0xff]
  %v577 = vld [vmem:[%s1 + $0x1158] sm:$0xff]
  %v578 = vld [vmem:[%s1 + $0x1160] sm:$0xff]
  %v579 = vld [vmem:[%s1 + $0x1168] sm:$0xff]
  %v580 = vld [vmem:[%s1 + $0x1170] sm:$0xff]
  %v581 = vld [vmem:[%s1 + $0x1178] sm:$0xff]
  %v582 = vld [vmem:[%s1 + $0x1180] sm:$0xff]
  %v583 = vld [vmem:[%s1 + $0x1188] sm:$0xff]
  %v584 = vld [vmem:[%s1 + $0x1190] sm:$0xff]
  %v585 = vld [vmem:[%s1 + $0x1198] sm:$0xff]
  %v586 = vld [vmem:[%s1 + $0x11a0] sm:$0xff]
  %v587 = vld [vmem:[%s1 + $0x11a8] sm:$0xff]
  %v588 = vld [vmem:[%s1 + $0x11b0] sm:$0xff]
  %v589 = vld [vmem:[%s1 + $0x11b8] sm:$0xff]
  %v590 = vld [vmem:[%s1 + $0x11c0] sm:$0xff]
  %v591 = vld [vmem:[%s1 + $0x11c8] sm:$0xff]
  %v592 = vld [vmem:[%s1 + $0x11d0] sm:$0xff]
  %v593 = vld [vmem:[%s1 + $0x11d8] sm:$0xff]
  %v594 = vld [vmem:[%s1 + $0x11e0] sm:$0xff]
  %v595 = vld [vmem:[%s1 + $0x11e8] sm:$0xff]
  %v596 = vld [vmem:[%s1 + $0x11f0] sm:$0xff]
  %v597 = vld [vmem:[%s1 + $0x11f8] sm:$0xff]
  %v607 = vunpack.c.l.b16 %v13
  %v608 = vunpack.c.h.b16 %v13
  %v609 = vunpack.c.l.b16 %v14
  %v610 = vunpack.c.h.b16 %v14
  %v611 = vunpack.c.l.b16 %v15
  %v612 = vunpack.c.h.b16 %v15
  %v613 = vunpack.c.l.b16 %v16
  %v614 = vunpack.c.h.b16 %v16
  %v615 = vunpack.c.l.b16 %v17
  %v616 = vunpack.c.h.b16 %v17
  %v617 = vunpack.c.l.b16 %v18
  %v618 = vunpack.c.h.b16 %v18
  %v619 = vunpack.c.l.b16 %v19
  %v620 = vunpack.c.h.b16 %v19
  %v621 = vunpack.c.l.b16 %v20
  %v622 = vunpack.c.h.b16 %v20
  %v623 = vunpack.c.l.b16 %v21
  %v624 = vunpack.c.h.b16 %v21
  %v625 = vpack.c.b16 %v607, %v607
  %v626 = vpack.c.b16 %v608, %v608
  %v627 = vpack.c.b16 %v609, %v609
  %v628 = vpack.c.b16 %v610, %v610
  %v629 = vpack.c.b16 %v611, %v611
  %v630 = vpack.c.b16 %v612, %v612
  %v631 = vpack.c.b16 %v613, %v613
  %v632 = vpack.c.b16 %v614, %v614
  %v633 = vpack.c.b16 %v615, %v615
  %v634 = vpack.c.b16 %v616, %v616
  %v635 = vpack.c.b16 %v617, %v617
  %v636 = vpack.c.b16 %v618, %v618
  %v637 = vpack.c.b16 %v619, %v619
  %v638 = vpack.c.b16 %v620, %v620
  %v639 = vpack.c.b16 %v621, %v621
  %v640 = vpack.c.b16 %v622, %v622
  %v641 = vpack.c.b16 %v623, %v623
  %v642 = vpack.c.b16 %v624, %v624
  %v1237 = vunpack.c.l.b16 %v22
  %v1238 = vunpack.c.h.b16 %v22
  %v1239 = vunpack.c.l.b16 %v23
  %v1240 = vunpack.c.h.b16 %v23
  %v1241 = vunpack.c.l.b16 %v24
  %v1242 = vunpack.c.h.b16 %v24
  %v1243 = vunpack.c.l.b16 %v25
  %v1244 = vunpack.c.h.b16 %v25
  %v1245 = vunpack.c.l.b16 %v26
  %v1246 = vunpack.c.h.b16 %v26
  %v1247 = vunpack.c.l.b16 %v27
  %v1248 = vunpack.c.h.b16 %v27
  %v1249 = vunpack.c.l.b16 %v28
  %v1250 = vunpack.c.h.b16 %v28
  %v1251 = vunpack.c.l.b16 %v29
  %v1252 = vunpack.c.h.b16 %v29
  %v1253 = vunpack.c.l.b16 %v30
  %v1254 = vunpack.c.h.b16 %v30
  %v1255 = vunpack.c.l.b16 %v31
  %v1256 = vunpack.c.h.b16 %v31
  %v1257 = vunpack.c.l.b16 %v32
  %v1258 = vunpack.c.h.b16 %v32
  %v1259 = vunpack.c.l.b16 %v33
  %v1260 = vunpack.c.h.b16 %v33
  %v1261 = vunpack.c.l.b16 %v34
  %v1262 = vunpack.c.h.b16 %v34
  %v1263 = vunpack.c.l.b16 %v35
  %v1264 = vunpack.c.h.b16 %v35
  %v1265 = vunpack.c.l.b16 %v36
  %v1266 = vunpack.c.h.b16 %v36
  %v1267 = vunpack.c.l.b16 %v37
  %v1268 = vunpack.c.h.b16 %v37
  %v1269 = vunpack.c.l.b16 %v38
  %v1270 = vunpack.c.h.b16 %v38
  %v1271 = vunpack.c.l.b16 %v39
  %v1272 = vunpack.c.h.b16 %v39
  %v1273 = vunpack.c.l.b16 %v40
  %v1274 = vunpack.c.h.b16 %v40
  %v1275 = vunpack.c.l.b16 %v41
  %v1276 = vunpack.c.h.b16 %v41
  %v1277 = vunpack.c.l.b16 %v42
  %v1278 = vunpack.c.h.b16 %v42
  %v1279 = vunpack.c.l.b16 %v43
  %v1280 = vunpack.c.h.b16 %v43
  %v1281 = vunpack.c.l.b16 %v44
  %v1282 = vunpack.c.h.b16 %v44
  %v1283 = vunpack.c.l.b16 %v45
  %v1284 = vunpack.c.h.b16 %v45
  %v1285 = vunpack.c.l.b16 %v46
  %v1286 = vunpack.c.h.b16 %v46
  %v1287 = vunpack.c.l.b16 %v47
  %v1288 = vunpack.c.h.b16 %v47
  %v1289 = vunpack.c.l.b16 %v48
  %v1290 = vunpack.c.h.b16 %v48
  %v1291 = vunpack.c.l.b16 %v49
  %v1292 = vunpack.c.h.b16 %v49
  %v1293 = vunpack.c.l.b16 %v50
  %v1294 = vunpack.c.h.b16 %v50
  %v1295 = vunpack.c.l.b16 %v51
  %v1296 = vunpack.c.h.b16 %v51
  %v1297 = vunpack.c.l.b16 %v52
  %v1298 = vunpack.c.h.b16 %v52
  %v1299 = vunpack.c.l.b16 %v53
  %v1300 = vunpack.c.h.b16 %v53
  %v1301 = vunpack.c.l.b16 %v54
  %v1302 = vunpack.c.h.b16 %v54
  %v1303 = vunpack.c.l.b16 %v55
  %v1304 = vunpack.c.h.b16 %v55
  %v1305 = vunpack.c.l.b16 %v56
  %v1306 = vunpack.c.h.b16 %v56
  %v1307 = vunpack.c.l.b16 %v57
  %v1308 = vunpack.c.h.b16 %v57
  %v1309 = vunpack.c.l.b16 %v58
  %v1310 = vunpack.c.h.b16 %v58
  %v1311 = vunpack.c.l.b16 %v59
  %v1312 = vunpack.c.h.b16 %v59
  %v1313 = vunpack.c.l.b16 %v60
  %v1314 = vunpack.c.h.b16 %v60
  %v1315 = vunpack.c.l.b16 %v61
  %v1316 = vunpack.c.h.b16 %v61
  %v1317 = vunpack.c.l.b16 %v62
  %v1318 = vunpack.c.h.b16 %v62
  %v1319 = vunpack.c.l.b16 %v63
  %v1320 = vunpack.c.h.b16 %v63
  %v1321 = vunpack.c.l.b16 %v64
  %v1322 = vunpack.c.h.b16 %v64
  %v1323 = vunpack.c.l.b16 %v65
  %v1324 = vunpack.c.h.b16 %v65
  %v1325 = vunpack.c.l.b16 %v66
  %v1326 = vunpack.c.h.b16 %v66
  %v1327 = vunpack.c.l.b16 %v67
  %v1328 = vunpack.c.h.b16 %v67
  %v1329 = vunpack.c.l.b16 %v68
  %v1330 = vunpack.c.h.b16 %v68
  %v1331 = vunpack.c.l.b16 %v69
  %v1332 = vunpack.c.h.b16 %v69
  %v1333 = vunpack.c.l.b16 %v70
  %v1334 = vunpack.c.h.b16 %v70
  %v1335 = vunpack.c.l.b16 %v71
  %v1336 = vunpack.c.h.b16 %v71
  %v1337 = vunpack.c.l.b16 %v72
  %v1338 = vunpack.c.h.b16 %v72
  %v1339 = vunpack.c.l.b16 %v73
  %v1340 = vunpack.c.h.b16 %v73
  %v1341 = vunpack.c.l.b16 %v74
  %v1342 = vunpack.c.h.b16 %v74
  %v1343 = vunpack.c.l.b16 %v75
  %v1344 = vunpack.c.h.b16 %v75
  %v1345 = vunpack.c.l.b16 %v76
  %v1346 = vunpack.c.h.b16 %v76
  %v1347 = vunpack.c.l.b16 %v77
  %v1348 = vunpack.c.h.b16 %v77
  %v1349 = vunpack.c.l.b16 %v78
  %v1350 = vunpack.c.h.b16 %v78
  %v1351 = vunpack.c.l.b16 %v79
  %v1352 = vunpack.c.h.b16 %v79
  %v1353 = vunpack.c.l.b16 %v80
  %v1354 = vunpack.c.h.b16 %v80
  %v1355 = vunpack.c.l.b16 %v81
  %v1356 = vunpack.c.h.b16 %v81
  %v1357 = vunpack.c.l.b16 %v82
  %v1358 = vunpack.c.h.b16 %v82
  %v1359 = vunpack.c.l.b16 %v83
  %v1360 = vunpack.c.h.b16 %v83
  %v1361 = vunpack.c.l.b16 %v84
  %v1362 = vunpack.c.h.b16 %v84
  %v1363 = vunpack.c.l.b16 %v85
  %v1364 = vunpack.c.h.b16 %v85
  %v1365 = vunpack.c.l.b16 %v86
  %v1366 = vunpack.c.h.b16 %v86
  %v1367 = vunpack.c.l.b16 %v87
  %v1368 = vunpack.c.h.b16 %v87
  %v1369 = vunpack.c.l.b16 %v88
  %v1370 = vunpack.c.h.b16 %v88
  %v1371 = vunpack.c.l.b16 %v89
  %v1372 = vunpack.c.h.b16 %v89
  %v1373 = vunpack.c.l.b16 %v90
  %v1374 = vunpack.c.h.b16 %v90
  %v1375 = vunpack.c.l.b16 %v91
  %v1376 = vunpack.c.h.b16 %v91
  %v1377 = vunpack.c.l.b16 %v92
  %v1378 = vunpack.c.h.b16 %v92
  %v1379 = vunpack.c.l.b16 %v93
  %v1380 = vunpack.c.h.b16 %v93
  %v1381 = vunpack.c.l.b16 %v94
  %v1382 = vunpack.c.h.b16 %v94
  %v1383 = vunpack.c.l.b16 %v95
  %v1384 = vunpack.c.h.b16 %v95
  %v1385 = vunpack.c.l.b16 %v96
  %v1386 = vunpack.c.h.b16 %v96
  %v1387 = vunpack.c.l.b16 %v97
  %v1388 = vunpack.c.h.b16 %v97
  %v1389 = vunpack.c.l.b16 %v98
  %v1390 = vunpack.c.h.b16 %v98
  %v1391 = vunpack.c.l.b16 %v99
  %v1392 = vunpack.c.h.b16 %v99
  %v1393 = vunpack.c.l.b16 %v100
  %v1394 = vunpack.c.h.b16 %v100
  %v1395 = vunpack.c.l.b16 %v101
  %v1396 = vunpack.c.h.b16 %v101
  %v1397 = vunpack.c.l.b16 %v102
  %v1398 = vunpack.c.h.b16 %v102
  %v1399 = vunpack.c.l.b16 %v103
  %v1400 = vunpack.c.h.b16 %v103
  %v1401 = vunpack.c.l.b16 %v104
  %v1402 = vunpack.c.h.b16 %v104
  %v1403 = vunpack.c.l.b16 %v105
  %v1404 = vunpack.c.h.b16 %v105
  %v1405 = vunpack.c.l.b16 %v106
  %v1406 = vunpack.c.h.b16 %v106
  %v1407 = vunpack.c.l.b16 %v107
  %v1408 = vunpack.c.h.b16 %v107
  %v1409 = vunpack.c.l.b16 %v108
  %v1410 = vunpack.c.h.b16 %v108
  %v1411 = vunpack.c.l.b16 %v109
  %v1412 = vunpack.c.h.b16 %v109
  %v1413 = vunpack.c.l.b16 %v110
  %v1414 = vunpack.c.h.b16 %v110
  %v1415 = vunpack.c.l.b16 %v111
  %v1416 = vunpack.c.h.b16 %v111
  %v1417 = vunpack.c.l.b16 %v112
  %v1418 = vunpack.c.h.b16 %v112
  %v1419 = vunpack.c.l.b16 %v113
  %v1420 = vunpack.c.h.b16 %v113
  %v1421 = vunpack.c.l.b16 %v114
  %v1422 = vunpack.c.h.b16 %v114
  %v1423 = vunpack.c.l.b16 %v115
  %v1424 = vunpack.c.h.b16 %v115
  %v1425 = vunpack.c.l.b16 %v116
  %v1426 = vunpack.c.h.b16 %v116
  %v1427 = vunpack.c.l.b16 %v117
  %v1428 = vunpack.c.h.b16 %v117
  %v1429 = vunpack.c.l.b16 %v118
  %v1430 = vunpack.c.h.b16 %v118
  %v1431 = vunpack.c.l.b16 %v119
  %v1432 = vunpack.c.h.b16 %v119
  %v1433 = vunpack.c.l.b16 %v120
  %v1434 = vunpack.c.h.b16 %v120
  %v1435 = vunpack.c.l.b16 %v121
  %v1436 = vunpack.c.h.b16 %v121
  %v1437 = vunpack.c.l.b16 %v122
  %v1438 = vunpack.c.h.b16 %v122
  %v1439 = vunpack.c.l.b16 %v123
  %v1440 = vunpack.c.h.b16 %v123
  %v1441 = vunpack.c.l.b16 %v124
  %v1442 = vunpack.c.h.b16 %v124
  %v1443 = vunpack.c.l.b16 %v125
  %v1444 = vunpack.c.h.b16 %v125
  %v1445 = vunpack.c.l.b16 %v126
  %v1446 = vunpack.c.h.b16 %v126
  %v1447 = vunpack.c.l.b16 %v127
  %v1448 = vunpack.c.h.b16 %v127
  %v1449 = vunpack.c.l.b16 %v128
  %v1450 = vunpack.c.h.b16 %v128
  %v1451 = vunpack.c.l.b16 %v129
  %v1452 = vunpack.c.h.b16 %v129
  %v1453 = vunpack.c.l.b16 %v130
  %v1454 = vunpack.c.h.b16 %v130
  %v1455 = vunpack.c.l.b16 %v131
  %v1456 = vunpack.c.h.b16 %v131
  %v1457 = vunpack.c.l.b16 %v132
  %v1458 = vunpack.c.h.b16 %v132
  %v1459 = vunpack.c.l.b16 %v133
  %v1460 = vunpack.c.h.b16 %v133
  %v1461 = vunpack.c.l.b16 %v134
  %v1462 = vunpack.c.h.b16 %v134
  %v1463 = vunpack.c.l.b16 %v135
  %v1464 = vunpack.c.h.b16 %v135
  %v1465 = vunpack.c.l.b16 %v136
  %v1466 = vunpack.c.h.b16 %v136
  %v1467 = vunpack.c.l.b16 %v137
  %v1468 = vunpack.c.h.b16 %v137
  %v1469 = vunpack.c.l.b16 %v138
  %v1470 = vunpack.c.h.b16 %v138
  %v1471 = vunpack.c.l.b16 %v139
  %v1472 = vunpack.c.h.b16 %v139
  %v1473 = vunpack.c.l.b16 %v140
  %v1474 = vunpack.c.h.b16 %v140
  %v1475 = vunpack.c.l.b16 %v141
  %v1476 = vunpack.c.h.b16 %v141
  %v1477 = vunpack.c.l.b16 %v142
  %v1478 = vunpack.c.h.b16 %v142
  %v1479 = vunpack.c.l.b16 %v143
  %v1480 = vunpack.c.h.b16 %v143
  %v1481 = vunpack.c.l.b16 %v144
  %v1482 = vunpack.c.h.b16 %v144
  %v1483 = vunpack.c.l.b16 %v145
  %v1484 = vunpack.c.h.b16 %v145
  %v1485 = vunpack.c.l.b16 %v146
  %v1486 = vunpack.c.h.b16 %v146
  %v1487 = vunpack.c.l.b16 %v147
  %v1488 = vunpack.c.h.b16 %v147
  %v1489 = vunpack.c.l.b16 %v148
  %v1490 = vunpack.c.h.b16 %v148
  %v1491 = vunpack.c.l.b16 %v149
  %v1492 = vunpack.c.h.b16 %v149
  %v1493 = vunpack.c.l.b16 %v150
  %v1494 = vunpack.c.h.b16 %v150
  %v1495 = vunpack.c.l.b16 %v151
  %v1496 = vunpack.c.h.b16 %v151
  %v1497 = vunpack.c.l.b16 %v152
  %v1498 = vunpack.c.h.b16 %v152
  %v1499 = vunpack.c.l.b16 %v153
  %v1500 = vunpack.c.h.b16 %v153
  %v1501 = vunpack.c.l.b16 %v154
  %v1502 = vunpack.c.h.b16 %v154
  %v1503 = vunpack.c.l.b16 %v155
  %v1504 = vunpack.c.h.b16 %v155
  %v1505 = vunpack.c.l.b16 %v156
  %v1506 = vunpack.c.h.b16 %v156
  %v1507 = vunpack.c.l.b16 %v157
  %v1508 = vunpack.c.h.b16 %v157
  %v1509 = vunpack.c.l.b16 %v158
  %v1510 = vunpack.c.h.b16 %v158
  %v1511 = vunpack.c.l.b16 %v159
  %v1512 = vunpack.c.h.b16 %v159
  %v1513 = vunpack.c.l.b16 %v160
  %v1514 = vunpack.c.h.b16 %v160
  %v1515 = vunpack.c.l.b16 %v161
  %v1516 = vunpack.c.h.b16 %v161
  %v1517 = vunpack.c.l.b16 %v162
  %v1518 = vunpack.c.h.b16 %v162
  %v1519 = vunpack.c.l.b16 %v163
  %v1520 = vunpack.c.h.b16 %v163
  %v1521 = vunpack.c.l.b16 %v164
  %v1522 = vunpack.c.h.b16 %v164
  %v1523 = vunpack.c.l.b16 %v165
  %v1524 = vunpack.c.h.b16 %v165
  %v1525 = vunpack.c.l.b16 %v166
  %v1526 = vunpack.c.h.b16 %v166
  %v1527 = vunpack.c.l.b16 %v167
  %v1528 = vunpack.c.h.b16 %v167
  %v1529 = vunpack.c.l.b16 %v168
  %v1530 = vunpack.c.h.b16 %v168
  %v1531 = vunpack.c.l.b16 %v169
  %v1532 = vunpack.c.h.b16 %v169
  %v1533 = vunpack.c.l.b16 %v170
  %v1534 = vunpack.c.h.b16 %v170
  %v1535 = vunpack.c.l.b16 %v171
  %v1536 = vunpack.c.h.b16 %v171
  %v1537 = vunpack.c.l.b16 %v172
  %v1538 = vunpack.c.h.b16 %v172
  %v1539 = vunpack.c.l.b16 %v173
  %v1540 = vunpack.c.h.b16 %v173
  %v1541 = vunpack.c.l.b16 %v174
  %v1542 = vunpack.c.h.b16 %v174
  %v1543 = vunpack.c.l.b16 %v175
  %v1544 = vunpack.c.h.b16 %v175
  %v1545 = vunpack.c.l.b16 %v176
  %v1546 = vunpack.c.h.b16 %v176
  %v1547 = vunpack.c.l.b16 %v177
  %v1548 = vunpack.c.h.b16 %v177
  %v1549 = vunpack.c.l.b16 %v178
  %v1550 = vunpack.c.h.b16 %v178
  %v1551 = vunpack.c.l.b16 %v179
  %v1552 = vunpack.c.h.b16 %v179
  %v1553 = vunpack.c.l.b16 %v180
  %v1554 = vunpack.c.h.b16 %v180
  %v1555 = vunpack.c.l.b16 %v181
  %v1556 = vunpack.c.h.b16 %v181
  %v1557 = vunpack.c.l.b16 %v182
  %v1558 = vunpack.c.h.b16 %v182
  %v1559 = vunpack.c.l.b16 %v183
  %v1560 = vunpack.c.h.b16 %v183
  %v1561 = vunpack.c.l.b16 %v184
  %v1562 = vunpack.c.h.b16 %v184
  %v1563 = vunpack.c.l.b16 %v185
  %v1564 = vunpack.c.h.b16 %v185
  %v1565 = vunpack.c.l.b16 %v186
  %v1566 = vunpack.c.h.b16 %v186
  %v1567 = vunpack.c.l.b16 %v187
  %v1568 = vunpack.c.h.b16 %v187
  %v1569 = vunpack.c.l.b16 %v188
  %v1570 = vunpack.c.h.b16 %v188
  %v1571 = vunpack.c.l.b16 %v189
  %v1572 = vunpack.c.h.b16 %v189
  %v1573 = vunpack.c.l.b16 %v190
  %v1574 = vunpack.c.h.b16 %v190
  %v1575 = vunpack.c.l.b16 %v191
  %v1576 = vunpack.c.h.b16 %v191
  %v1577 = vunpack.c.l.b16 %v192
  %v1578 = vunpack.c.h.b16 %v192
  %v1579 = vunpack.c.l.b16 %v193
  %v1580 = vunpack.c.h.b16 %v193
  %v1581 = vunpack.c.l.b16 %v194
  %v1582 = vunpack.c.h.b16 %v194
  %v1583 = vunpack.c.l.b16 %v195
  %v1584 = vunpack.c.h.b16 %v195
  %v1585 = vunpack.c.l.b16 %v196
  %v1586 = vunpack.c.h.b16 %v196
  %v1587 = vunpack.c.l.b16 %v197
  %v1588 = vunpack.c.h.b16 %v197
  %v1589 = vunpack.c.l.b16 %v198
  %v1590 = vunpack.c.h.b16 %v198
  %v1591 = vunpack.c.l.b16 %v199
  %v1592 = vunpack.c.h.b16 %v199
  %v1593 = vunpack.c.l.b16 %v200
  %v1594 = vunpack.c.h.b16 %v200
  %v1595 = vunpack.c.l.b16 %v201
  %v1596 = vunpack.c.h.b16 %v201
  %v1597 = vunpack.c.l.b16 %v202
  %v1598 = vunpack.c.h.b16 %v202
  %v1599 = vunpack.c.l.b16 %v203
  %v1600 = vunpack.c.h.b16 %v203
  %v1601 = vunpack.c.l.b16 %v204
  %v1602 = vunpack.c.h.b16 %v204
  %v1603 = vunpack.c.l.b16 %v205
  %v1604 = vunpack.c.h.b16 %v205
  %v1605 = vunpack.c.l.b16 %v206
  %v1606 = vunpack.c.h.b16 %v206
  %v1607 = vunpack.c.l.b16 %v207
  %v1608 = vunpack.c.h.b16 %v207
  %v1609 = vunpack.c.l.b16 %v208
  %v1610 = vunpack.c.h.b16 %v208
  %v1611 = vunpack.c.l.b16 %v209
  %v1612 = vunpack.c.h.b16 %v209
  %v1613 = vunpack.c.l.b16 %v210
  %v1614 = vunpack.c.h.b16 %v210
  %v1615 = vunpack.c.l.b16 %v211
  %v1616 = vunpack.c.h.b16 %v211
  %v1617 = vunpack.c.l.b16 %v212
  %v1618 = vunpack.c.h.b16 %v212
  %v1619 = vunpack.c.l.b16 %v213
  %v1620 = vunpack.c.h.b16 %v213
  %v1621 = vunpack.c.l.b16 %v214
  %v1622 = vunpack.c.h.b16 %v214
  %v1623 = vunpack.c.l.b16 %v215
  %v1624 = vunpack.c.h.b16 %v215
  %v1625 = vunpack.c.l.b16 %v216
  %v1626 = vunpack.c.h.b16 %v216
  %v1627 = vunpack.c.l.b16 %v217
  %v1628 = vunpack.c.h.b16 %v217
  %v1629 = vunpack.c.l.b16 %v218
  %v1630 = vunpack.c.h.b16 %v218
  %v1631 = vunpack.c.l.b16 %v219
  %v1632 = vunpack.c.h.b16 %v219
  %v1633 = vunpack.c.l.b16 %v220
  %v1634 = vunpack.c.h.b16 %v220
  %v1635 = vunpack.c.l.b16 %v221
  %v1636 = vunpack.c.h.b16 %v221
  %v1637 = vunpack.c.l.b16 %v222
  %v1638 = vunpack.c.h.b16 %v222
  %v1639 = vunpack.c.l.b16 %v223
  %v1640 = vunpack.c.h.b16 %v223
  %v1641 = vunpack.c.l.b16 %v224
  %v1642 = vunpack.c.h.b16 %v224
  %v1643 = vunpack.c.l.b16 %v225
  %v1644 = vunpack.c.h.b16 %v225
  %v1645 = vunpack.c.l.b16 %v226
  %v1646 = vunpack.c.h.b16 %v226
  %v1647 = vunpack.c.l.b16 %v227
  %v1648 = vunpack.c.h.b16 %v227
  %v1649 = vunpack.c.l.b16 %v228
  %v1650 = vunpack.c.h.b16 %v228
  %v1651 = vunpack.c.l.b16 %v229
  %v1652 = vunpack.c.h.b16 %v229
  %v1653 = vunpack.c.l.b16 %v230
  %v1654 = vunpack.c.h.b16 %v230
  %v1655 = vunpack.c.l.b16 %v231
  %v1656 = vunpack.c.h.b16 %v231
  %v1657 = vunpack.c.l.b16 %v232
  %v1658 = vunpack.c.h.b16 %v232
  %v1659 = vunpack.c.l.b16 %v233
  %v1660 = vunpack.c.h.b16 %v233
  %v1661 = vunpack.c.l.b16 %v234
  %v1662 = vunpack.c.h.b16 %v234
  %v1663 = vunpack.c.l.b16 %v235
  %v1664 = vunpack.c.h.b16 %v235
  %v1665 = vunpack.c.l.b16 %v236
  %v1666 = vunpack.c.h.b16 %v236
  %v1667 = vunpack.c.l.b16 %v237
  %v1668 = vunpack.c.h.b16 %v237
  %v1669 = vunpack.c.l.b16 %v238
  %v1670 = vunpack.c.h.b16 %v238
  %v1671 = vunpack.c.l.b16 %v239
  %v1672 = vunpack.c.h.b16 %v239
  %v1673 = vunpack.c.l.b16 %v240
  %v1674 = vunpack.c.h.b16 %v240
  %v1675 = vunpack.c.l.b16 %v241
  %v1676 = vunpack.c.h.b16 %v241
  %v1677 = vunpack.c.l.b16 %v242
  %v1678 = vunpack.c.h.b16 %v242
  %v1679 = vunpack.c.l.b16 %v243
  %v1680 = vunpack.c.h.b16 %v243
  %v1681 = vunpack.c.l.b16 %v244
  %v1682 = vunpack.c.h.b16 %v244
  %v1683 = vunpack.c.l.b16 %v245
  %v1684 = vunpack.c.h.b16 %v245
  %v1685 = vunpack.c.l.b16 %v246
  %v1686 = vunpack.c.h.b16 %v246
  %v1687 = vunpack.c.l.b16 %v247
  %v1688 = vunpack.c.h.b16 %v247
  %v1689 = vunpack.c.l.b16 %v248
  %v1690 = vunpack.c.h.b16 %v248
  %v1691 = vunpack.c.l.b16 %v249
  %v1692 = vunpack.c.h.b16 %v249
  %v1693 = vunpack.c.l.b16 %v250
  %v1694 = vunpack.c.h.b16 %v250
  %v1695 = vunpack.c.l.b16 %v251
  %v1696 = vunpack.c.h.b16 %v251
  %v1697 = vunpack.c.l.b16 %v252
  %v1698 = vunpack.c.h.b16 %v252
  %v1699 = vunpack.c.l.b16 %v253
  %v1700 = vunpack.c.h.b16 %v253
  %v1701 = vunpack.c.l.b16 %v254
  %v1702 = vunpack.c.h.b16 %v254
  %v1703 = vunpack.c.l.b16 %v255
  %v1704 = vunpack.c.h.b16 %v255
  %v1705 = vunpack.c.l.b16 %v256
  %v1706 = vunpack.c.h.b16 %v256
  %v1707 = vunpack.c.l.b16 %v257
  %v1708 = vunpack.c.h.b16 %v257
  %v1709 = vunpack.c.l.b16 %v258
  %v1710 = vunpack.c.h.b16 %v258
  %v1711 = vunpack.c.l.b16 %v259
  %v1712 = vunpack.c.h.b16 %v259
  %v1713 = vunpack.c.l.b16 %v260
  %v1714 = vunpack.c.h.b16 %v260
  %v1715 = vunpack.c.l.b16 %v261
  %v1716 = vunpack.c.h.b16 %v261
  %v1717 = vunpack.c.l.b16 %v262
  %v1718 = vunpack.c.h.b16 %v262
  %v1719 = vunpack.c.l.b16 %v263
  %v1720 = vunpack.c.h.b16 %v263
  %v1721 = vunpack.c.l.b16 %v264
  %v1722 = vunpack.c.h.b16 %v264
  %v1723 = vunpack.c.l.b16 %v265
  %v1724 = vunpack.c.h.b16 %v265
  %v1725 = vunpack.c.l.b16 %v266
  %v1726 = vunpack.c.h.b16 %v266
  %v1727 = vunpack.c.l.b16 %v267
  %v1728 = vunpack.c.h.b16 %v267
  %v1729 = vunpack.c.l.b16 %v268
  %v1730 = vunpack.c.h.b16 %v268
  %v1731 = vunpack.c.l.b16 %v269
  %v1732 = vunpack.c.h.b16 %v269
  %v1733 = vunpack.c.l.b16 %v270
  %v1734 = vunpack.c.h.b16 %v270
  %v1735 = vunpack.c.l.b16 %v271
  %v1736 = vunpack.c.h.b16 %v271
  %v1737 = vunpack.c.l.b16 %v272
  %v1738 = vunpack.c.h.b16 %v272
  %v1739 = vunpack.c.l.b16 %v273
  %v1740 = vunpack.c.h.b16 %v273
  %v1741 = vunpack.c.l.b16 %v274
  %v1742 = vunpack.c.h.b16 %v274
  %v1743 = vunpack.c.l.b16 %v275
  %v1744 = vunpack.c.h.b16 %v275
  %v1745 = vunpack.c.l.b16 %v276
  %v1746 = vunpack.c.h.b16 %v276
  %v1747 = vunpack.c.l.b16 %v277
  %v1748 = vunpack.c.h.b16 %v277
  %v1749 = vunpack.c.l.b16 %v278
  %v1750 = vunpack.c.h.b16 %v278
  %v1751 = vunpack.c.l.b16 %v279
  %v1752 = vunpack.c.h.b16 %v279
  %v1753 = vunpack.c.l.b16 %v280
  %v1754 = vunpack.c.h.b16 %v280
  %v1755 = vunpack.c.l.b16 %v281
  %v1756 = vunpack.c.h.b16 %v281
  %v1757 = vunpack.c.l.b16 %v282
  %v1758 = vunpack.c.h.b16 %v282
  %v1759 = vunpack.c.l.b16 %v283
  %v1760 = vunpack.c.h.b16 %v283
  %v1761 = vunpack.c.l.b16 %v284
  %v1762 = vunpack.c.h.b16 %v284
  %v1763 = vunpack.c.l.b16 %v285
  %v1764 = vunpack.c.h.b16 %v285
  %v1765 = vunpack.c.l.b16 %v286
  %v1766 = vunpack.c.h.b16 %v286
  %v1767 = vunpack.c.l.b16 %v287
  %v1768 = vunpack.c.h.b16 %v287
  %v1769 = vunpack.c.l.b16 %v288
  %v1770 = vunpack.c.h.b16 %v288
  %v1771 = vunpack.c.l.b16 %v289
  %v1772 = vunpack.c.h.b16 %v289
  %v1773 = vunpack.c.l.b16 %v290
  %v1774 = vunpack.c.h.b16 %v290
  %v1775 = vunpack.c.l.b16 %v291
  %v1776 = vunpack.c.h.b16 %v291
  %v1777 = vunpack.c.l.b16 %v292
  %v1778 = vunpack.c.h.b16 %v292
  %v1779 = vunpack.c.l.b16 %v293
  %v1780 = vunpack.c.h.b16 %v293
  %v1781 = vunpack.c.l.b16 %v294
  %v1782 = vunpack.c.h.b16 %v294
  %v1783 = vunpack.c.l.b16 %v295
  %v1784 = vunpack.c.h.b16 %v295
  %v1785 = vunpack.c.l.b16 %v296
  %v1786 = vunpack.c.h.b16 %v296
  %v1787 = vunpack.c.l.b16 %v297
  %v1788 = vunpack.c.h.b16 %v297
  %v1789 = vunpack.c.l.b16 %v298
  %v1790 = vunpack.c.h.b16 %v298
  %v1791 = vunpack.c.l.b16 %v299
  %v1792 = vunpack.c.h.b16 %v299
  %v1793 = vunpack.c.l.b16 %v300
  %v1794 = vunpack.c.h.b16 %v300
  %v1795 = vunpack.c.l.b16 %v301
  %v1796 = vunpack.c.h.b16 %v301
  %v1797 = vunpack.c.l.b16 %v302
  %v1798 = vunpack.c.h.b16 %v302
  %v1799 = vunpack.c.l.b16 %v303
  %v1800 = vunpack.c.h.b16 %v303
  %v1801 = vunpack.c.l.b16 %v304
  %v1802 = vunpack.c.h.b16 %v304
  %v1803 = vunpack.c.l.b16 %v305
  %v1804 = vunpack.c.h.b16 %v305
  %v1805 = vunpack.c.l.b16 %v306
  %v1806 = vunpack.c.h.b16 %v306
  %v1807 = vunpack.c.l.b16 %v307
  %v1808 = vunpack.c.h.b16 %v307
  %v1809 = vunpack.c.l.b16 %v308
  %v1810 = vunpack.c.h.b16 %v308
  %v1811 = vunpack.c.l.b16 %v309
  %v1812 = vunpack.c.h.b16 %v309
  %v1813 = vunpack.c.l.b16 %v310
  %v1814 = vunpack.c.h.b16 %v310
  %v1815 = vunpack.c.l.b16 %v311
  %v1816 = vunpack.c.h.b16 %v311
  %v1817 = vunpack.c.l.b16 %v312
  %v1818 = vunpack.c.h.b16 %v312
  %v1819 = vunpack.c.l.b16 %v313
  %v1820 = vunpack.c.h.b16 %v313
  %v1821 = vunpack.c.l.b16 %v314
  %v1822 = vunpack.c.h.b16 %v314
  %v1823 = vunpack.c.l.b16 %v315
  %v1824 = vunpack.c.h.b16 %v315
  %v1825 = vunpack.c.l.b16 %v316
  %v1826 = vunpack.c.h.b16 %v316
  %v1827 = vunpack.c.l.b16 %v317
  %v1828 = vunpack.c.h.b16 %v317
  %v1829 = vunpack.c.l.b16 %v318
  %v1830 = vunpack.c.h.b16 %v318
  %v1831 = vunpack.c.l.b16 %v319
  %v1832 = vunpack.c.h.b16 %v319
  %v1833 = vunpack.c.l.b16 %v320
  %v1834 = vunpack.c.h.b16 %v320
  %v1835 = vunpack.c.l.b16 %v321
  %v1836 = vunpack.c.h.b16 %v321
  %v1837 = vunpack.c.l.b16 %v322
  %v1838 = vunpack.c.h.b16 %v322
  %v1839 = vunpack.c.l.b16 %v323
  %v1840 = vunpack.c.h.b16 %v323
  %v1841 = vunpack.c.l.b16 %v324
  %v1842 = vunpack.c.h.b16 %v324
  %v1843 = vunpack.c.l.b16 %v325
  %v1844 = vunpack.c.h.b16 %v325
  %v1845 = vunpack.c.l.b16 %v326
  %v1846 = vunpack.c.h.b16 %v326
  %v1847 = vunpack.c.l.b16 %v327
  %v1848 = vunpack.c.h.b16 %v327
  %v1849 = vunpack.c.l.b16 %v328
  %v1850 = vunpack.c.h.b16 %v328
  %v1851 = vunpack.c.l.b16 %v329
  %v1852 = vunpack.c.h.b16 %v329
  %v1853 = vunpack.c.l.b16 %v330
  %v1854 = vunpack.c.h.b16 %v330
  %v1855 = vunpack.c.l.b16 %v331
  %v1856 = vunpack.c.h.b16 %v331
  %v1857 = vunpack.c.l.b16 %v332
  %v1858 = vunpack.c.h.b16 %v332
  %v1859 = vunpack.c.l.b16 %v333
  %v1860 = vunpack.c.h.b16 %v333
  %v1861 = vunpack.c.l.b16 %v334
  %v1862 = vunpack.c.h.b16 %v334
  %v1863 = vunpack.c.l.b16 %v335
  %v1864 = vunpack.c.h.b16 %v335
  %v1865 = vunpack.c.l.b16 %v336
  %v1866 = vunpack.c.h.b16 %v336
  %v1867 = vunpack.c.l.b16 %v337
  %v1868 = vunpack.c.h.b16 %v337
  %v1869 = vunpack.c.l.b16 %v338
  %v1870 = vunpack.c.h.b16 %v338
  %v1871 = vunpack.c.l.b16 %v339
  %v1872 = vunpack.c.h.b16 %v339
  %v1873 = vunpack.c.l.b16 %v340
  %v1874 = vunpack.c.h.b16 %v340
  %v1875 = vunpack.c.l.b16 %v341
  %v1876 = vunpack.c.h.b16 %v341
  %v1877 = vunpack.c.l.b16 %v342
  %v1878 = vunpack.c.h.b16 %v342
  %v1879 = vunpack.c.l.b16 %v343
  %v1880 = vunpack.c.h.b16 %v343
  %v1881 = vunpack.c.l.b16 %v344
  %v1882 = vunpack.c.h.b16 %v344
  %v1883 = vunpack.c.l.b16 %v345
  %v1884 = vunpack.c.h.b16 %v345
  %v1885 = vunpack.c.l.b16 %v346
  %v1886 = vunpack.c.h.b16 %v346
  %v1887 = vunpack.c.l.b16 %v347
  %v1888 = vunpack.c.h.b16 %v347
  %v1889 = vunpack.c.l.b16 %v348
  %v1890 = vunpack.c.h.b16 %v348
  %v1891 = vunpack.c.l.b16 %v349
  %v1892 = vunpack.c.h.b16 %v349
  %v1893 = vunpack.c.l.b16 %v350
  %v1894 = vunpack.c.h.b16 %v350
  %v1895 = vunpack.c.l.b16 %v351
  %v1896 = vunpack.c.h.b16 %v351
  %v1897 = vunpack.c.l.b16 %v352
  %v1898 = vunpack.c.h.b16 %v352
  %v1899 = vunpack.c.l.b16 %v353
  %v1900 = vunpack.c.h.b16 %v353
  %v1901 = vunpack.c.l.b16 %v354
  %v1902 = vunpack.c.h.b16 %v354
  %v1903 = vunpack.c.l.b16 %v355
  %v1904 = vunpack.c.h.b16 %v355
  %v1905 = vunpack.c.l.b16 %v356
  %v1906 = vunpack.c.h.b16 %v356
  %v1907 = vunpack.c.l.b16 %v357
  %v1908 = vunpack.c.h.b16 %v357
  %v1909 = vunpack.c.l.b16 %v358
  %v1910 = vunpack.c.h.b16 %v358
  %v1911 = vunpack.c.l.b16 %v359
  %v1912 = vunpack.c.h.b16 %v359
  %v1913 = vunpack.c.l.b16 %v360
  %v1914 = vunpack.c.h.b16 %v360
  %v1915 = vunpack.c.l.b16 %v361
  %v1916 = vunpack.c.h.b16 %v361
  %v1917 = vunpack.c.l.b16 %v362
  %v1918 = vunpack.c.h.b16 %v362
  %v1919 = vunpack.c.l.b16 %v363
  %v1920 = vunpack.c.h.b16 %v363
  %v1921 = vunpack.c.l.b16 %v364
  %v1922 = vunpack.c.h.b16 %v364
  %v1923 = vunpack.c.l.b16 %v365
  %v1924 = vunpack.c.h.b16 %v365
  %v1925 = vunpack.c.l.b16 %v366
  %v1926 = vunpack.c.h.b16 %v366
  %v1927 = vunpack.c.l.b16 %v367
  %v1928 = vunpack.c.h.b16 %v367
  %v1929 = vunpack.c.l.b16 %v368
  %v1930 = vunpack.c.h.b16 %v368
  %v1931 = vunpack.c.l.b16 %v369
  %v1932 = vunpack.c.h.b16 %v369
  %v1933 = vunpack.c.l.b16 %v370
  %v1934 = vunpack.c.h.b16 %v370
  %v1935 = vunpack.c.l.b16 %v371
  %v1936 = vunpack.c.h.b16 %v371
  %v1937 = vunpack.c.l.b16 %v372
  %v1938 = vunpack.c.h.b16 %v372
  %v1939 = vunpack.c.l.b16 %v373
  %v1940 = vunpack.c.h.b16 %v373
  %v1941 = vunpack.c.l.b16 %v374
  %v1942 = vunpack.c.h.b16 %v374
  %v1943 = vunpack.c.l.b16 %v375
  %v1944 = vunpack.c.h.b16 %v375
  %v1945 = vunpack.c.l.b16 %v376
  %v1946 = vunpack.c.h.b16 %v376
  %v1947 = vunpack.c.l.b16 %v377
  %v1948 = vunpack.c.h.b16 %v377
  %v1949 = vunpack.c.l.b16 %v378
  %v1950 = vunpack.c.h.b16 %v378
  %v1951 = vunpack.c.l.b16 %v379
  %v1952 = vunpack.c.h.b16 %v379
  %v1953 = vunpack.c.l.b16 %v380
  %v1954 = vunpack.c.h.b16 %v380
  %v1955 = vunpack.c.l.b16 %v381
  %v1956 = vunpack.c.h.b16 %v381
  %v1957 = vunpack.c.l.b16 %v382
  %v1958 = vunpack.c.h.b16 %v382
  %v1959 = vunpack.c.l.b16 %v383
  %v1960 = vunpack.c.h.b16 %v383
  %v1961 = vunpack.c.l.b16 %v384
  %v1962 = vunpack.c.h.b16 %v384
  %v1963 = vunpack.c.l.b16 %v385
  %v1964 = vunpack.c.h.b16 %v385
  %v1965 = vunpack.c.l.b16 %v386
  %v1966 = vunpack.c.h.b16 %v386
  %v1967 = vunpack.c.l.b16 %v387
  %v1968 = vunpack.c.h.b16 %v387
  %v1969 = vunpack.c.l.b16 %v388
  %v1970 = vunpack.c.h.b16 %v388
  %v1971 = vunpack.c.l.b16 %v389
  %v1972 = vunpack.c.h.b16 %v389
  %v1973 = vunpack.c.l.b16 %v390
  %v1974 = vunpack.c.h.b16 %v390
  %v1975 = vunpack.c.l.b16 %v391
  %v1976 = vunpack.c.h.b16 %v391
  %v1977 = vunpack.c.l.b16 %v392
  %v1978 = vunpack.c.h.b16 %v392
  %v1979 = vunpack.c.l.b16 %v393
  %v1980 = vunpack.c.h.b16 %v393
  %v1981 = vunpack.c.l.b16 %v394
  %v1982 = vunpack.c.h.b16 %v394
  %v1983 = vunpack.c.l.b16 %v395
  %v1984 = vunpack.c.h.b16 %v395
  %v1985 = vunpack.c.l.b16 %v396
  %v1986 = vunpack.c.h.b16 %v396
  %v1987 = vunpack.c.l.b16 %v397
  %v1988 = vunpack.c.h.b16 %v397
  %v1989 = vunpack.c.l.b16 %v398
  %v1990 = vunpack.c.h.b16 %v398
  %v1991 = vunpack.c.l.b16 %v399
  %v1992 = vunpack.c.h.b16 %v399
  %v1993 = vunpack.c.l.b16 %v400
  %v1994 = vunpack.c.h.b16 %v400
  %v1995 = vunpack.c.l.b16 %v401
  %v1996 = vunpack.c.h.b16 %v401
  %v1997 = vunpack.c.l.b16 %v402
  %v1998 = vunpack.c.h.b16 %v402
  %v1999 = vunpack.c.l.b16 %v403
  %v2000 = vunpack.c.h.b16 %v403
  %v2001 = vunpack.c.l.b16 %v404
  %v2002 = vunpack.c.h.b16 %v404
  %v2003 = vunpack.c.l.b16 %v405
  %v2004 = vunpack.c.h.b16 %v405
  %v2005 = vunpack.c.l.b16 %v406
  %v2006 = vunpack.c.h.b16 %v406
  %v2007 = vunpack.c.l.b16 %v407
  %v2008 = vunpack.c.h.b16 %v407
  %v2009 = vunpack.c.l.b16 %v408
  %v2010 = vunpack.c.h.b16 %v408
  %v2011 = vunpack.c.l.b16 %v409
  %v2012 = vunpack.c.h.b16 %v409
  %v2013 = vunpack.c.l.b16 %v410
  %v2014 = vunpack.c.h.b16 %v410
  %v2015 = vunpack.c.l.b16 %v411
  %v2016 = vunpack.c.h.b16 %v411
  %v2017 = vunpack.c.l.b16 %v412
  %v2018 = vunpack.c.h.b16 %v412
  %v2019 = vunpack.c.l.b16 %v413
  %v2020 = vunpack.c.h.b16 %v413
  %v2021 = vunpack.c.l.b16 %v414
  %v2022 = vunpack.c.h.b16 %v414
  %v2023 = vunpack.c.l.b16 %v415
  %v2024 = vunpack.c.h.b16 %v415
  %v2025 = vunpack.c.l.b16 %v416
  %v2026 = vunpack.c.h.b16 %v416
  %v2027 = vunpack.c.l.b16 %v417
  %v2028 = vunpack.c.h.b16 %v417
  %v2029 = vunpack.c.l.b16 %v418
  %v2030 = vunpack.c.h.b16 %v418
  %v2031 = vunpack.c.l.b16 %v419
  %v2032 = vunpack.c.h.b16 %v419
  %v2033 = vunpack.c.l.b16 %v420
  %v2034 = vunpack.c.h.b16 %v420
  %v2035 = vunpack.c.l.b16 %v421
  %v2036 = vunpack.c.h.b16 %v421
  %v2037 = vunpack.c.l.b16 %v422
  %v2038 = vunpack.c.h.b16 %v422
  %v2039 = vunpack.c.l.b16 %v423
  %v2040 = vunpack.c.h.b16 %v423
  %v2041 = vunpack.c.l.b16 %v424
  %v2042 = vunpack.c.h.b16 %v424
  %v2043 = vunpack.c.l.b16 %v425
  %v2044 = vunpack.c.h.b16 %v425
  %v2045 = vunpack.c.l.b16 %v426
  %v2046 = vunpack.c.h.b16 %v426
  %v2047 = vunpack.c.l.b16 %v427
  %v2048 = vunpack.c.h.b16 %v427
  %v2049 = vunpack.c.l.b16 %v428
  %v2050 = vunpack.c.h.b16 %v428
  %v2051 = vunpack.c.l.b16 %v429
  %v2052 = vunpack.c.h.b16 %v429
  %v2053 = vunpack.c.l.b16 %v430
  %v2054 = vunpack.c.h.b16 %v430
  %v2055 = vunpack.c.l.b16 %v431
  %v2056 = vunpack.c.h.b16 %v431
  %v2057 = vunpack.c.l.b16 %v432
  %v2058 = vunpack.c.h.b16 %v432
  %v2059 = vunpack.c.l.b16 %v433
  %v2060 = vunpack.c.h.b16 %v433
  %v2061 = vunpack.c.l.b16 %v434
  %v2062 = vunpack.c.h.b16 %v434
  %v2063 = vunpack.c.l.b16 %v435
  %v2064 = vunpack.c.h.b16 %v435
  %v2065 = vunpack.c.l.b16 %v436
  %v2066 = vunpack.c.h.b16 %v436
  %v2067 = vunpack.c.l.b16 %v437
  %v2068 = vunpack.c.h.b16 %v437
  %v2069 = vunpack.c.l.b16 %v438
  %v2070 = vunpack.c.h.b16 %v438
  %v2071 = vunpack.c.l.b16 %v439
  %v2072 = vunpack.c.h.b16 %v439
  %v2073 = vunpack.c.l.b16 %v440
  %v2074 = vunpack.c.h.b16 %v440
  %v2075 = vunpack.c.l.b16 %v441
  %v2076 = vunpack.c.h.b16 %v441
  %v2077 = vunpack.c.l.b16 %v442
  %v2078 = vunpack.c.h.b16 %v442
  %v2079 = vunpack.c.l.b16 %v443
  %v2080 = vunpack.c.h.b16 %v443
  %v2081 = vunpack.c.l.b16 %v444
  %v2082 = vunpack.c.h.b16 %v444
  %v2083 = vunpack.c.l.b16 %v445
  %v2084 = vunpack.c.h.b16 %v445
  %v2085 = vunpack.c.l.b16 %v446
  %v2086 = vunpack.c.h.b16 %v446
  %v2087 = vunpack.c.l.b16 %v447
  %v2088 = vunpack.c.h.b16 %v447
  %v2089 = vunpack.c.l.b16 %v448
  %v2090 = vunpack.c.h.b16 %v448
  %v2091 = vunpack.c.l.b16 %v449
  %v2092 = vunpack.c.h.b16 %v449
  %v2093 = vunpack.c.l.b16 %v450
  %v2094 = vunpack.c.h.b16 %v450
  %v2095 = vunpack.c.l.b16 %v451
  %v2096 = vunpack.c.h.b16 %v451
  %v2097 = vunpack.c.l.b16 %v452
  %v2098 = vunpack.c.h.b16 %v452
  %v2099 = vunpack.c.l.b16 %v453
  %v2100 = vunpack.c.h.b16 %v453
  %v2101 = vunpack.c.l.b16 %v454
  %v2102 = vunpack.c.h.b16 %v454
  %v2103 = vunpack.c.l.b16 %v455
  %v2104 = vunpack.c.h.b16 %v455
  %v2105 = vunpack.c.l.b16 %v456
  %v2106 = vunpack.c.h.b16 %v456
  %v2107 = vunpack.c.l.b16 %v457
  %v2108 = vunpack.c.h.b16 %v457
  %v2109 = vunpack.c.l.b16 %v458
  %v2110 = vunpack.c.h.b16 %v458
  %v2111 = vunpack.c.l.b16 %v459
  %v2112 = vunpack.c.h.b16 %v459
  %v2113 = vunpack.c.l.b16 %v460
  %v2114 = vunpack.c.h.b16 %v460
  %v2115 = vunpack.c.l.b16 %v461
  %v2116 = vunpack.c.h.b16 %v461
  %v2117 = vunpack.c.l.b16 %v462
  %v2118 = vunpack.c.h.b16 %v462
  %v2119 = vunpack.c.l.b16 %v463
  %v2120 = vunpack.c.h.b16 %v463
  %v2121 = vunpack.c.l.b16 %v464
  %v2122 = vunpack.c.h.b16 %v464
  %v2123 = vunpack.c.l.b16 %v465
  %v2124 = vunpack.c.h.b16 %v465
  %v2125 = vunpack.c.l.b16 %v466
  %v2126 = vunpack.c.h.b16 %v466
  %v2127 = vunpack.c.l.b16 %v467
  %v2128 = vunpack.c.h.b16 %v467
  %v2129 = vunpack.c.l.b16 %v468
  %v2130 = vunpack.c.h.b16 %v468
  %v2131 = vunpack.c.l.b16 %v469
  %v2132 = vunpack.c.h.b16 %v469
  %v2133 = vunpack.c.l.b16 %v470
  %v2134 = vunpack.c.h.b16 %v470
  %v2135 = vunpack.c.l.b16 %v471
  %v2136 = vunpack.c.h.b16 %v471
  %v2137 = vunpack.c.l.b16 %v472
  %v2138 = vunpack.c.h.b16 %v472
  %v2139 = vunpack.c.l.b16 %v473
  %v2140 = vunpack.c.h.b16 %v473
  %v2141 = vunpack.c.l.b16 %v474
  %v2142 = vunpack.c.h.b16 %v474
  %v2143 = vunpack.c.l.b16 %v475
  %v2144 = vunpack.c.h.b16 %v475
  %v2145 = vunpack.c.l.b16 %v476
  %v2146 = vunpack.c.h.b16 %v476
  %v2147 = vunpack.c.l.b16 %v477
  %v2148 = vunpack.c.h.b16 %v477
  %v2149 = vunpack.c.l.b16 %v478
  %v2150 = vunpack.c.h.b16 %v478
  %v2151 = vunpack.c.l.b16 %v479
  %v2152 = vunpack.c.h.b16 %v479
  %v2153 = vunpack.c.l.b16 %v480
  %v2154 = vunpack.c.h.b16 %v480
  %v2155 = vunpack.c.l.b16 %v481
  %v2156 = vunpack.c.h.b16 %v481
  %v2157 = vunpack.c.l.b16 %v482
  %v2158 = vunpack.c.h.b16 %v482
  %v2159 = vunpack.c.l.b16 %v483
  %v2160 = vunpack.c.h.b16 %v483
  %v2161 = vunpack.c.l.b16 %v484
  %v2162 = vunpack.c.h.b16 %v484
  %v2163 = vunpack.c.l.b16 %v485
  %v2164 = vunpack.c.h.b16 %v485
  %v2165 = vunpack.c.l.b16 %v486
  %v2166 = vunpack.c.h.b16 %v486
  %v2167 = vunpack.c.l.b16 %v487
  %v2168 = vunpack.c.h.b16 %v487
  %v2169 = vunpack.c.l.b16 %v488
  %v2170 = vunpack.c.h.b16 %v488
  %v2171 = vunpack.c.l.b16 %v489
  %v2172 = vunpack.c.h.b16 %v489
  %v2173 = vunpack.c.l.b16 %v490
  %v2174 = vunpack.c.h.b16 %v490
  %v2175 = vunpack.c.l.b16 %v491
  %v2176 = vunpack.c.h.b16 %v491
  %v2177 = vunpack.c.l.b16 %v492
  %v2178 = vunpack.c.h.b16 %v492
  %v2179 = vunpack.c.l.b16 %v493
  %v2180 = vunpack.c.h.b16 %v493
  %v2181 = vunpack.c.l.b16 %v494
  %v2182 = vunpack.c.h.b16 %v494
  %v2183 = vunpack.c.l.b16 %v495
  %v2184 = vunpack.c.h.b16 %v495
  %v2185 = vunpack.c.l.b16 %v496
  %v2186 = vunpack.c.h.b16 %v496
  %v2187 = vunpack.c.l.b16 %v497
  %v2188 = vunpack.c.h.b16 %v497
  %v2189 = vunpack.c.l.b16 %v498
  %v2190 = vunpack.c.h.b16 %v498
  %v2191 = vunpack.c.l.b16 %v499
  %v2192 = vunpack.c.h.b16 %v499
  %v2193 = vunpack.c.l.b16 %v500
  %v2194 = vunpack.c.h.b16 %v500
  %v2195 = vunpack.c.l.b16 %v501
  %v2196 = vunpack.c.h.b16 %v501
  %v2197 = vunpack.c.l.b16 %v502
  %v2198 = vunpack.c.h.b16 %v502
  %v2199 = vunpack.c.l.b16 %v503
  %v2200 = vunpack.c.h.b16 %v503
  %v2201 = vunpack.c.l.b16 %v504
  %v2202 = vunpack.c.h.b16 %v504
  %v2203 = vunpack.c.l.b16 %v505
  %v2204 = vunpack.c.h.b16 %v505
  %v2205 = vunpack.c.l.b16 %v506
  %v2206 = vunpack.c.h.b16 %v506
  %v2207 = vunpack.c.l.b16 %v507
  %v2208 = vunpack.c.h.b16 %v507
  %v2209 = vunpack.c.l.b16 %v508
  %v2210 = vunpack.c.h.b16 %v508
  %v2211 = vunpack.c.l.b16 %v509
  %v2212 = vunpack.c.h.b16 %v509
  %v2213 = vunpack.c.l.b16 %v510
  %v2214 = vunpack.c.h.b16 %v510
  %v2215 = vunpack.c.l.b16 %v511
  %v2216 = vunpack.c.h.b16 %v511
  %v2217 = vunpack.c.l.b16 %v512
  %v2218 = vunpack.c.h.b16 %v512
  %v2219 = vunpack.c.l.b16 %v513
  %v2220 = vunpack.c.h.b16 %v513
  %v2221 = vunpack.c.l.b16 %v514
  %v2222 = vunpack.c.h.b16 %v514
  %v2223 = vunpack.c.l.b16 %v515
  %v2224 = vunpack.c.h.b16 %v515
  %v2225 = vunpack.c.l.b16 %v516
  %v2226 = vunpack.c.h.b16 %v516
  %v2227 = vunpack.c.l.b16 %v517
  %v2228 = vunpack.c.h.b16 %v517
  %v2229 = vunpack.c.l.b16 %v518
  %v2230 = vunpack.c.h.b16 %v518
  %v2231 = vunpack.c.l.b16 %v519
  %v2232 = vunpack.c.h.b16 %v519
  %v2233 = vunpack.c.l.b16 %v520
  %v2234 = vunpack.c.h.b16 %v520
  %v2235 = vunpack.c.l.b16 %v521
  %v2236 = vunpack.c.h.b16 %v521
  %v2237 = vunpack.c.l.b16 %v522
  %v2238 = vunpack.c.h.b16 %v522
  %v2239 = vunpack.c.l.b16 %v523
  %v2240 = vunpack.c.h.b16 %v523
  %v2241 = vunpack.c.l.b16 %v524
  %v2242 = vunpack.c.h.b16 %v524
  %v2243 = vunpack.c.l.b16 %v525
  %v2244 = vunpack.c.h.b16 %v525
  %v2245 = vunpack.c.l.b16 %v526
  %v2246 = vunpack.c.h.b16 %v526
  %v2247 = vunpack.c.l.b16 %v527
  %v2248 = vunpack.c.h.b16 %v527
  %v2249 = vunpack.c.l.b16 %v528
  %v2250 = vunpack.c.h.b16 %v528
  %v2251 = vunpack.c.l.b16 %v529
  %v2252 = vunpack.c.h.b16 %v529
  %v2253 = vunpack.c.l.b16 %v530
  %v2254 = vunpack.c.h.b16 %v530
  %v2255 = vunpack.c.l.b16 %v531
  %v2256 = vunpack.c.h.b16 %v531
  %v2257 = vunpack.c.l.b16 %v532
  %v2258 = vunpack.c.h.b16 %v532
  %v2259 = vunpack.c.l.b16 %v533
  %v2260 = vunpack.c.h.b16 %v533
  %v2261 = vunpack.c.l.b16 %v534
  %v2262 = vunpack.c.h.b16 %v534
  %v2263 = vunpack.c.l.b16 %v535
  %v2264 = vunpack.c.h.b16 %v535
  %v2265 = vunpack.c.l.b16 %v536
  %v2266 = vunpack.c.h.b16 %v536
  %v2267 = vunpack.c.l.b16 %v537
  %v2268 = vunpack.c.h.b16 %v537
  %v2269 = vunpack.c.l.b16 %v538
  %v2270 = vunpack.c.h.b16 %v538
  %v2271 = vunpack.c.l.b16 %v539
  %v2272 = vunpack.c.h.b16 %v539
  %v2273 = vunpack.c.l.b16 %v540
  %v2274 = vunpack.c.h.b16 %v540
  %v2275 = vunpack.c.l.b16 %v541
  %v2276 = vunpack.c.h.b16 %v541
  %v2277 = vunpack.c.l.b16 %v542
  %v2278 = vunpack.c.h.b16 %v542
  %v2279 = vunpack.c.l.b16 %v543
  %v2280 = vunpack.c.h.b16 %v543
  %v2281 = vunpack.c.l.b16 %v544
  %v2282 = vunpack.c.h.b16 %v544
  %v2283 = vunpack.c.l.b16 %v545
  %v2284 = vunpack.c.h.b16 %v545
  %v2285 = vunpack.c.l.b16 %v546
  %v2286 = vunpack.c.h.b16 %v546
  %v2287 = vunpack.c.l.b16 %v547
  %v2288 = vunpack.c.h.b16 %v547
  %v2289 = vunpack.c.l.b16 %v548
  %v2290 = vunpack.c.h.b16 %v548
  %v2291 = vunpack.c.l.b16 %v549
  %v2292 = vunpack.c.h.b16 %v549
  %v2293 = vunpack.c.l.b16 %v550
  %v2294 = vunpack.c.h.b16 %v550
  %v2295 = vunpack.c.l.b16 %v551
  %v2296 = vunpack.c.h.b16 %v551
  %v2297 = vunpack.c.l.b16 %v552
  %v2298 = vunpack.c.h.b16 %v552
  %v2299 = vunpack.c.l.b16 %v553
  %v2300 = vunpack.c.h.b16 %v553
  %v2301 = vunpack.c.l.b16 %v554
  %v2302 = vunpack.c.h.b16 %v554
  %v2303 = vunpack.c.l.b16 %v555
  %v2304 = vunpack.c.h.b16 %v555
  %v2305 = vunpack.c.l.b16 %v556
  %v2306 = vunpack.c.h.b16 %v556
  %v2307 = vunpack.c.l.b16 %v557
  %v2308 = vunpack.c.h.b16 %v557
  %v2309 = vunpack.c.l.b16 %v558
  %v2310 = vunpack.c.h.b16 %v558
  %v2311 = vunpack.c.l.b16 %v559
  %v2312 = vunpack.c.h.b16 %v559
  %v2313 = vunpack.c.l.b16 %v560
  %v2314 = vunpack.c.h.b16 %v560
  %v2315 = vunpack.c.l.b16 %v561
  %v2316 = vunpack.c.h.b16 %v561
  %v2317 = vunpack.c.l.b16 %v562
  %v2318 = vunpack.c.h.b16 %v562
  %v2319 = vunpack.c.l.b16 %v563
  %v2320 = vunpack.c.h.b16 %v563
  %v2321 = vunpack.c.l.b16 %v564
  %v2322 = vunpack.c.h.b16 %v564
  %v2323 = vunpack.c.l.b16 %v565
  %v2324 = vunpack.c.h.b16 %v565
  %v2325 = vunpack.c.l.b16 %v566
  %v2326 = vunpack.c.h.b16 %v566
  %v2327 = vunpack.c.l.b16 %v567
  %v2328 = vunpack.c.h.b16 %v567
  %v2329 = vunpack.c.l.b16 %v568
  %v2330 = vunpack.c.h.b16 %v568
  %v2331 = vunpack.c.l.b16 %v569
  %v2332 = vunpack.c.h.b16 %v569
  %v2333 = vunpack.c.l.b16 %v570
  %v2334 = vunpack.c.h.b16 %v570
  %v2335 = vunpack.c.l.b16 %v571
  %v2336 = vunpack.c.h.b16 %v571
  %v2337 = vunpack.c.l.b16 %v572
  %v2338 = vunpack.c.h.b16 %v572
  %v2339 = vunpack.c.l.b16 %v573
  %v2340 = vunpack.c.h.b16 %v573
  %v2341 = vunpack.c.l.b16 %v574
  %v2342 = vunpack.c.h.b16 %v574
  %v2343 = vunpack.c.l.b16 %v575
  %v2344 = vunpack.c.h.b16 %v575
  %v2345 = vunpack.c.l.b16 %v576
  %v2346 = vunpack.c.h.b16 %v576
  %v2347 = vunpack.c.l.b16 %v577
  %v2348 = vunpack.c.h.b16 %v577
  %v2349 = vunpack.c.l.b16 %v578
  %v2350 = vunpack.c.h.b16 %v578
  %v2351 = vunpack.c.l.b16 %v579
  %v2352 = vunpack.c.h.b16 %v579
  %v2353 = vunpack.c.l.b16 %v580
  %v2354 = vunpack.c.h.b16 %v580
  %v2355 = vunpack.c.l.b16 %v581
  %v2356 = vunpack.c.h.b16 %v581
  %v2357 = vunpack.c.l.b16 %v582
  %v2358 = vunpack.c.h.b16 %v582
  %v2359 = vunpack.c.l.b16 %v583
  %v2360 = vunpack.c.h.b16 %v583
  %v2361 = vunpack.c.l.b16 %v584
  %v2362 = vunpack.c.h.b16 %v584
  %v2363 = vunpack.c.l.b16 %v585
  %v2364 = vunpack.c.h.b16 %v585
  %v2365 = vunpack.c.l.b16 %v586
  %v2366 = vunpack.c.h.b16 %v586
  %v2367 = vunpack.c.l.b16 %v587
  %v2368 = vunpack.c.h.b16 %v587
  %v2369 = vunpack.c.l.b16 %v588
  %v2370 = vunpack.c.h.b16 %v588
  %v2371 = vunpack.c.l.b16 %v589
  %v2372 = vunpack.c.h.b16 %v589
  %v2373 = vunpack.c.l.b16 %v590
  %v2374 = vunpack.c.h.b16 %v590
  %v2375 = vunpack.c.l.b16 %v591
  %v2376 = vunpack.c.h.b16 %v591
  %v2377 = vunpack.c.l.b16 %v592
  %v2378 = vunpack.c.h.b16 %v592
  %v2379 = vunpack.c.l.b16 %v593
  %v2380 = vunpack.c.h.b16 %v593
  %v2381 = vunpack.c.l.b16 %v594
  %v2382 = vunpack.c.h.b16 %v594
  %v2383 = vunpack.c.l.b16 %v595
  %v2384 = vunpack.c.h.b16 %v595
  %v2385 = vunpack.c.l.b16 %v596
  %v2386 = vunpack.c.h.b16 %v596
  %v2387 = vunpack.c.l.b16 %v597
  %v2388 = vunpack.c.h.b16 %v597
  %v2389 = vpack.c.b16 %v1241, %v1237
  %v2390 = vpack.c.b16 %v1242, %v1238
  %v2391 = vpack.c.b16 %v1243, %v1239
  %v2392 = vpack.c.b16 %v1244, %v1240
  %v2393 = vpack.c.b16 %v1249, %v1245
  %v2394 = vpack.c.b16 %v1250, %v1246
  %v2395 = vpack.c.b16 %v1251, %v1247
  %v2396 = vpack.c.b16 %v1252, %v1248
  %v2397 = vpack.c.b16 %v1257, %v1253
  %v2398 = vpack.c.b16 %v1258, %v1254
  %v2399 = vpack.c.b16 %v1259, %v1255
  %v2400 = vpack.c.b16 %v1260, %v1256
  %v2401 = vpack.c.b16 %v1265, %v1261
  %v2402 = vpack.c.b16 %v1266, %v1262
  %v2403 = vpack.c.b16 %v1267, %v1263
  %v2404 = vpack.c.b16 %v1268, %v1264
  %v2405 = vpack.c.b16 %v1273, %v1269
  %v2406 = vpack.c.b16 %v1274, %v1270
  %v2407 = vpack.c.b16 %v1275, %v1271
  %v2408 = vpack.c.b16 %v1276, %v1272
  %v2409 = vpack.c.b16 %v1281, %v1277
  %v2410 = vpack.c.b16 %v1282, %v1278
  %v2411 = vpack.c.b16 %v1283, %v1279
  %v2412 = vpack.c.b16 %v1284, %v1280
  %v2413 = vpack.c.b16 %v1289, %v1285
  %v2414 = vpack.c.b16 %v1290, %v1286
  %v2415 = vpack.c.b16 %v1291, %v1287
  %v2416 = vpack.c.b16 %v1292, %v1288
  %v2417 = vpack.c.b16 %v1297, %v1293
  %v2418 = vpack.c.b16 %v1298, %v1294
  %v2419 = vpack.c.b16 %v1299, %v1295
  %v2420 = vpack.c.b16 %v1300, %v1296
  %v2421 = vpack.c.b16 %v1305, %v1301
  %v2422 = vpack.c.b16 %v1306, %v1302
  %v2423 = vpack.c.b16 %v1307, %v1303
  %v2424 = vpack.c.b16 %v1308, %v1304
  %v2425 = vpack.c.b16 %v1313, %v1309
  %v2426 = vpack.c.b16 %v1314, %v1310
  %v2427 = vpack.c.b16 %v1315, %v1311
  %v2428 = vpack.c.b16 %v1316, %v1312
  %v2429 = vpack.c.b16 %v1321, %v1317
  %v2430 = vpack.c.b16 %v1322, %v1318
  %v2431 = vpack.c.b16 %v1323, %v1319
  %v2432 = vpack.c.b16 %v1324, %v1320
  %v2433 = vpack.c.b16 %v1329, %v1325
  %v2434 = vpack.c.b16 %v1330, %v1326
  %v2435 = vpack.c.b16 %v1331, %v1327
  %v2436 = vpack.c.b16 %v1332, %v1328
  %v2437 = vpack.c.b16 %v1337, %v1333
  %v2438 = vpack.c.b16 %v1338, %v1334
  %v2439 = vpack.c.b16 %v1339, %v1335
  %v2440 = vpack.c.b16 %v1340, %v1336
  %v2441 = vpack.c.b16 %v1345, %v1341
  %v2442 = vpack.c.b16 %v1346, %v1342
  %v2443 = vpack.c.b16 %v1347, %v1343
  %v2444 = vpack.c.b16 %v1348, %v1344
  %v2445 = vpack.c.b16 %v1353, %v1349
  %v2446 = vpack.c.b16 %v1354, %v1350
  %v2447 = vpack.c.b16 %v1355, %v1351
  %v2448 = vpack.c.b16 %v1356, %v1352
  %v2449 = vpack.c.b16 %v1361, %v1357
  %v2450 = vpack.c.b16 %v1362, %v1358
  %v2451 = vpack.c.b16 %v1363, %v1359
  %v2452 = vpack.c.b16 %v1364, %v1360
  %v2453 = vpack.c.b16 %v1369, %v1365
  %v2454 = vpack.c.b16 %v1370, %v1366
  %v2455 = vpack.c.b16 %v1371, %v1367
  %v2456 = vpack.c.b16 %v1372, %v1368
  %v2457 = vpack.c.b16 %v1377, %v1373
  %v2458 = vpack.c.b16 %v1378, %v1374
  %v2459 = vpack.c.b16 %v1379, %v1375
  %v2460 = vpack.c.b16 %v1380, %v1376
  %v2461 = vpack.c.b16 %v1385, %v1381
  %v2462 = vpack.c.b16 %v1386, %v1382
  %v2463 = vpack.c.b16 %v1387, %v1383
  %v2464 = vpack.c.b16 %v1388, %v1384
  %v2465 = vpack.c.b16 %v1393, %v1389
  %v2466 = vpack.c.b16 %v1394, %v1390
  %v2467 = vpack.c.b16 %v1395, %v1391
  %v2468 = vpack.c.b16 %v1396, %v1392
  %v2469 = vpack.c.b16 %v1401, %v1397
  %v2470 = vpack.c.b16 %v1402, %v1398
  %v2471 = vpack.c.b16 %v1403, %v1399
  %v2472 = vpack.c.b16 %v1404, %v1400
  %v2473 = vpack.c.b16 %v1409, %v1405
  %v2474 = vpack.c.b16 %v1410, %v1406
  %v2475 = vpack.c.b16 %v1411, %v1407
  %v2476 = vpack.c.b16 %v1412, %v1408
  %v2477 = vpack.c.b16 %v1417, %v1413
  %v2478 = vpack.c.b16 %v1418, %v1414
  %v2479 = vpack.c.b16 %v1419, %v1415
  %v2480 = vpack.c.b16 %v1420, %v1416
  %v2481 = vpack.c.b16 %v1425, %v1421
  %v2482 = vpack.c.b16 %v1426, %v1422
  %v2483 = vpack.c.b16 %v1427, %v1423
  %v2484 = vpack.c.b16 %v1428, %v1424
  %v2485 = vpack.c.b16 %v1433, %v1429
  %v2486 = vpack.c.b16 %v1434, %v1430
  %v2487 = vpack.c.b16 %v1435, %v1431
  %v2488 = vpack.c.b16 %v1436, %v1432
  %v2489 = vpack.c.b16 %v1441, %v1437
  %v2490 = vpack.c.b16 %v1442, %v1438
  %v2491 = vpack.c.b16 %v1443, %v1439
  %v2492 = vpack.c.b16 %v1444, %v1440
  %v2493 = vpack.c.b16 %v1449, %v1445
  %v2494 = vpack.c.b16 %v1450, %v1446
  %v2495 = vpack.c.b16 %v1451, %v1447
  %v2496 = vpack.c.b16 %v1452, %v1448
  %v2497 = vpack.c.b16 %v1457, %v1453
  %v2498 = vpack.c.b16 %v1458, %v1454
  %v2499 = vpack.c.b16 %v1459, %v1455
  %v2500 = vpack.c.b16 %v1460, %v1456
  %v2501 = vpack.c.b16 %v1465, %v1461
  %v2502 = vpack.c.b16 %v1466, %v1462
  %v2503 = vpack.c.b16 %v1467, %v1463
  %v2504 = vpack.c.b16 %v1468, %v1464
  %v2505 = vpack.c.b16 %v1473, %v1469
  %v2506 = vpack.c.b16 %v1474, %v1470
  %v2507 = vpack.c.b16 %v1475, %v1471
  %v2508 = vpack.c.b16 %v1476, %v1472
  %v2509 = vpack.c.b16 %v1481, %v1477
  %v2510 = vpack.c.b16 %v1482, %v1478
  %v2511 = vpack.c.b16 %v1483, %v1479
  %v2512 = vpack.c.b16 %v1484, %v1480
  %v2513 = vpack.c.b16 %v1489, %v1485
  %v2514 = vpack.c.b16 %v1490, %v1486
  %v2515 = vpack.c.b16 %v1491, %v1487
  %v2516 = vpack.c.b16 %v1492, %v1488
  %v2517 = vpack.c.b16 %v1497, %v1493
  %v2518 = vpack.c.b16 %v1498, %v1494
  %v2519 = vpack.c.b16 %v1499, %v1495
  %v2520 = vpack.c.b16 %v1500, %v1496
  %v2521 = vpack.c.b16 %v1505, %v1501
  %v2522 = vpack.c.b16 %v1506, %v1502
  %v2523 = vpack.c.b16 %v1507, %v1503
  %v2524 = vpack.c.b16 %v1508, %v1504
  %v2525 = vpack.c.b16 %v1513, %v1509
  %v2526 = vpack.c.b16 %v1514, %v1510
  %v2527 = vpack.c.b16 %v1515, %v1511
  %v2528 = vpack.c.b16 %v1516, %v1512
  %v2529 = vpack.c.b16 %v1521, %v1517
  %v2530 = vpack.c.b16 %v1522, %v1518
  %v2531 = vpack.c.b16 %v1523, %v1519
  %v2532 = vpack.c.b16 %v1524, %v1520
  %v2533 = vpack.c.b16 %v1529, %v1525
  %v2534 = vpack.c.b16 %v1530, %v1526
  %v2535 = vpack.c.b16 %v1531, %v1527
  %v2536 = vpack.c.b16 %v1532, %v1528
  %v2537 = vpack.c.b16 %v1537, %v1533
  %v2538 = vpack.c.b16 %v1538, %v1534
  %v2539 = vpack.c.b16 %v1539, %v1535
  %v2540 = vpack.c.b16 %v1540, %v1536
  %v2541 = vpack.c.b16 %v1545, %v1541
  %v2542 = vpack.c.b16 %v1546, %v1542
  %v2543 = vpack.c.b16 %v1547, %v1543
  %v2544 = vpack.c.b16 %v1548, %v1544
  %v2545 = vpack.c.b16 %v1553, %v1549
  %v2546 = vpack.c.b16 %v1554, %v1550
  %v2547 = vpack.c.b16 %v1555, %v1551
  %v2548 = vpack.c.b16 %v1556, %v1552
  %v2549 = vpack.c.b16 %v1561, %v1557
  %v2550 = vpack.c.b16 %v1562, %v1558
  %v2551 = vpack.c.b16 %v1563, %v1559
  %v2552 = vpack.c.b16 %v1564, %v1560
  %v2553 = vpack.c.b16 %v1569, %v1565
  %v2554 = vpack.c.b16 %v1570, %v1566
  %v2555 = vpack.c.b16 %v1571, %v1567
  %v2556 = vpack.c.b16 %v1572, %v1568
  %v2557 = vpack.c.b16 %v1577, %v1573
  %v2558 = vpack.c.b16 %v1578, %v1574
  %v2559 = vpack.c.b16 %v1579, %v1575
  %v2560 = vpack.c.b16 %v1580, %v1576
  %v2561 = vpack.c.b16 %v1585, %v1581
  %v2562 = vpack.c.b16 %v1586, %v1582
  %v2563 = vpack.c.b16 %v1587, %v1583
  %v2564 = vpack.c.b16 %v1588, %v1584
  %v2565 = vpack.c.b16 %v1593, %v1589
  %v2566 = vpack.c.b16 %v1594, %v1590
  %v2567 = vpack.c.b16 %v1595, %v1591
  %v2568 = vpack.c.b16 %v1596, %v1592
  %v2569 = vpack.c.b16 %v1601, %v1597
  %v2570 = vpack.c.b16 %v1602, %v1598
  %v2571 = vpack.c.b16 %v1603, %v1599
  %v2572 = vpack.c.b16 %v1604, %v1600
  %v2573 = vpack.c.b16 %v1609, %v1605
  %v2574 = vpack.c.b16 %v1610, %v1606
  %v2575 = vpack.c.b16 %v1611, %v1607
  %v2576 = vpack.c.b16 %v1612, %v1608
  %v2577 = vpack.c.b16 %v1617, %v1613
  %v2578 = vpack.c.b16 %v1618, %v1614
  %v2579 = vpack.c.b16 %v1619, %v1615
  %v2580 = vpack.c.b16 %v1620, %v1616
  %v2581 = vpack.c.b16 %v1625, %v1621
  %v2582 = vpack.c.b16 %v1626, %v1622
  %v2583 = vpack.c.b16 %v1627, %v1623
  %v2584 = vpack.c.b16 %v1628, %v1624
  %v2585 = vpack.c.b16 %v1633, %v1629
  %v2586 = vpack.c.b16 %v1634, %v1630
  %v2587 = vpack.c.b16 %v1635, %v1631
  %v2588 = vpack.c.b16 %v1636, %v1632
  %v2589 = vpack.c.b16 %v1641, %v1637
  %v2590 = vpack.c.b16 %v1642, %v1638
  %v2591 = vpack.c.b16 %v1643, %v1639
  %v2592 = vpack.c.b16 %v1644, %v1640
  %v2593 = vpack.c.b16 %v1649, %v1645
  %v2594 = vpack.c.b16 %v1650, %v1646
  %v2595 = vpack.c.b16 %v1651, %v1647
  %v2596 = vpack.c.b16 %v1652, %v1648
  %v2597 = vpack.c.b16 %v1657, %v1653
  %v2598 = vpack.c.b16 %v1658, %v1654
  %v2599 = vpack.c.b16 %v1659, %v1655
  %v2600 = vpack.c.b16 %v1660, %v1656
  %v2601 = vpack.c.b16 %v1665, %v1661
  %v2602 = vpack.c.b16 %v1666, %v1662
  %v2603 = vpack.c.b16 %v1667, %v1663
  %v2604 = vpack.c.b16 %v1668, %v1664
  %v2605 = vpack.c.b16 %v1673, %v1669
  %v2606 = vpack.c.b16 %v1674, %v1670
  %v2607 = vpack.c.b16 %v1675, %v1671
  %v2608 = vpack.c.b16 %v1676, %v1672
  %v2609 = vpack.c.b16 %v1681, %v1677
  %v2610 = vpack.c.b16 %v1682, %v1678
  %v2611 = vpack.c.b16 %v1683, %v1679
  %v2612 = vpack.c.b16 %v1684, %v1680
  %v2613 = vpack.c.b16 %v1689, %v1685
  %v2614 = vpack.c.b16 %v1690, %v1686
  %v2615 = vpack.c.b16 %v1691, %v1687
  %v2616 = vpack.c.b16 %v1692, %v1688
  %v2617 = vpack.c.b16 %v1697, %v1693
  %v2618 = vpack.c.b16 %v1698, %v1694
  %v2619 = vpack.c.b16 %v1699, %v1695
  %v2620 = vpack.c.b16 %v1700, %v1696
  %v2621 = vpack.c.b16 %v1705, %v1701
  %v2622 = vpack.c.b16 %v1706, %v1702
  %v2623 = vpack.c.b16 %v1707, %v1703
  %v2624 = vpack.c.b16 %v1708, %v1704
  %v2625 = vpack.c.b16 %v1713, %v1709
  %v2626 = vpack.c.b16 %v1714, %v1710
  %v2627 = vpack.c.b16 %v1715, %v1711
  %v2628 = vpack.c.b16 %v1716, %v1712
  %v2629 = vpack.c.b16 %v1721, %v1717
  %v2630 = vpack.c.b16 %v1722, %v1718
  %v2631 = vpack.c.b16 %v1723, %v1719
  %v2632 = vpack.c.b16 %v1724, %v1720
  %v2633 = vpack.c.b16 %v1729, %v1725
  %v2634 = vpack.c.b16 %v1730, %v1726
  %v2635 = vpack.c.b16 %v1731, %v1727
  %v2636 = vpack.c.b16 %v1732, %v1728
  %v2637 = vpack.c.b16 %v1737, %v1733
  %v2638 = vpack.c.b16 %v1738, %v1734
  %v2639 = vpack.c.b16 %v1739, %v1735
  %v2640 = vpack.c.b16 %v1740, %v1736
  %v2641 = vpack.c.b16 %v1745, %v1741
  %v2642 = vpack.c.b16 %v1746, %v1742
  %v2643 = vpack.c.b16 %v1747, %v1743
  %v2644 = vpack.c.b16 %v1748, %v1744
  %v2645 = vpack.c.b16 %v1753, %v1749
  %v2646 = vpack.c.b16 %v1754, %v1750
  %v2647 = vpack.c.b16 %v1755, %v1751
  %v2648 = vpack.c.b16 %v1756, %v1752
  %v2649 = vpack.c.b16 %v1761, %v1757
  %v2650 = vpack.c.b16 %v1762, %v1758
  %v2651 = vpack.c.b16 %v1763, %v1759
  %v2652 = vpack.c.b16 %v1764, %v1760
  %v2653 = vpack.c.b16 %v1769, %v1765
  %v2654 = vpack.c.b16 %v1770, %v1766
  %v2655 = vpack.c.b16 %v1771, %v1767
  %v2656 = vpack.c.b16 %v1772, %v1768
  %v2657 = vpack.c.b16 %v1777, %v1773
  %v2658 = vpack.c.b16 %v1778, %v1774
  %v2659 = vpack.c.b16 %v1779, %v1775
  %v2660 = vpack.c.b16 %v1780, %v1776
  %v2661 = vpack.c.b16 %v1785, %v1781
  %v2662 = vpack.c.b16 %v1786, %v1782
  %v2663 = vpack.c.b16 %v1787, %v1783
  %v2664 = vpack.c.b16 %v1788, %v1784
  %v2665 = vpack.c.b16 %v1793, %v1789
  %v2666 = vpack.c.b16 %v1794, %v1790
  %v2667 = vpack.c.b16 %v1795, %v1791
  %v2668 = vpack.c.b16 %v1796, %v1792
  %v2669 = vpack.c.b16 %v1801, %v1797
  %v2670 = vpack.c.b16 %v1802, %v1798
  %v2671 = vpack.c.b16 %v1803, %v1799
  %v2672 = vpack.c.b16 %v1804, %v1800
  %v2673 = vpack.c.b16 %v1809, %v1805
  %v2674 = vpack.c.b16 %v1810, %v1806
  %v2675 = vpack.c.b16 %v1811, %v1807
  %v2676 = vpack.c.b16 %v1812, %v1808
  %v2677 = vpack.c.b16 %v1817, %v1813
  %v2678 = vpack.c.b16 %v1818, %v1814
  %v2679 = vpack.c.b16 %v1819, %v1815
  %v2680 = vpack.c.b16 %v1820, %v1816
  %v2681 = vpack.c.b16 %v1825, %v1821
  %v2682 = vpack.c.b16 %v1826, %v1822
  %v2683 = vpack.c.b16 %v1827, %v1823
  %v2684 = vpack.c.b16 %v1828, %v1824
  %v2685 = vpack.c.b16 %v1833, %v1829
  %v2686 = vpack.c.b16 %v1834, %v1830
  %v2687 = vpack.c.b16 %v1835, %v1831
  %v2688 = vpack.c.b16 %v1836, %v1832
  %v2689 = vpack.c.b16 %v1841, %v1837
  %v2690 = vpack.c.b16 %v1842, %v1838
  %v2691 = vpack.c.b16 %v1843, %v1839
  %v2692 = vpack.c.b16 %v1844, %v1840
  %v2693 = vpack.c.b16 %v1849, %v1845
  %v2694 = vpack.c.b16 %v1850, %v1846
  %v2695 = vpack.c.b16 %v1851, %v1847
  %v2696 = vpack.c.b16 %v1852, %v1848
  %v2697 = vpack.c.b16 %v1857, %v1853
  %v2698 = vpack.c.b16 %v1858, %v1854
  %v2699 = vpack.c.b16 %v1859, %v1855
  %v2700 = vpack.c.b16 %v1860, %v1856
  %v2701 = vpack.c.b16 %v1865, %v1861
  %v2702 = vpack.c.b16 %v1866, %v1862
  %v2703 = vpack.c.b16 %v1867, %v1863
  %v2704 = vpack.c.b16 %v1868, %v1864
  %v2705 = vpack.c.b16 %v1873, %v1869
  %v2706 = vpack.c.b16 %v1874, %v1870
  %v2707 = vpack.c.b16 %v1875, %v1871
  %v2708 = vpack.c.b16 %v1876, %v1872
  %v2709 = vpack.c.b16 %v1881, %v1877
  %v2710 = vpack.c.b16 %v1882, %v1878
  %v2711 = vpack.c.b16 %v1883, %v1879
  %v2712 = vpack.c.b16 %v1884, %v1880
  %v2713 = vpack.c.b16 %v1889, %v1885
  %v2714 = vpack.c.b16 %v1890, %v1886
  %v2715 = vpack.c.b16 %v1891, %v1887
  %v2716 = vpack.c.b16 %v1892, %v1888
  %v2717 = vpack.c.b16 %v1897, %v1893
  %v2718 = vpack.c.b16 %v1898, %v1894
  %v2719 = vpack.c.b16 %v1899, %v1895
  %v2720 = vpack.c.b16 %v1900, %v1896
  %v2721 = vpack.c.b16 %v1905, %v1901
  %v2722 = vpack.c.b16 %v1906, %v1902
  %v2723 = vpack.c.b16 %v1907, %v1903
  %v2724 = vpack.c.b16 %v1908, %v1904
  %v2725 = vpack.c.b16 %v1913, %v1909
  %v2726 = vpack.c.b16 %v1914, %v1910
  %v2727 = vpack.c.b16 %v1915, %v1911
  %v2728 = vpack.c.b16 %v1916, %v1912
  %v2729 = vpack.c.b16 %v1921, %v1917
  %v2730 = vpack.c.b16 %v1922, %v1918
  %v2731 = vpack.c.b16 %v1923, %v1919
  %v2732 = vpack.c.b16 %v1924, %v1920
  %v2733 = vpack.c.b16 %v1929, %v1925
  %v2734 = vpack.c.b16 %v1930, %v1926
  %v2735 = vpack.c.b16 %v1931, %v1927
  %v2736 = vpack.c.b16 %v1932, %v1928
  %v2737 = vpack.c.b16 %v1937, %v1933
  %v2738 = vpack.c.b16 %v1938, %v1934
  %v2739 = vpack.c.b16 %v1939, %v1935
  %v2740 = vpack.c.b16 %v1940, %v1936
  %v2741 = vpack.c.b16 %v1945, %v1941
  %v2742 = vpack.c.b16 %v1946, %v1942
  %v2743 = vpack.c.b16 %v1947, %v1943
  %v2744 = vpack.c.b16 %v1948, %v1944
  %v2745 = vpack.c.b16 %v1953, %v1949
  %v2746 = vpack.c.b16 %v1954, %v1950
  %v2747 = vpack.c.b16 %v1955, %v1951
  %v2748 = vpack.c.b16 %v1956, %v1952
  %v2749 = vpack.c.b16 %v1961, %v1957
  %v2750 = vpack.c.b16 %v1962, %v1958
  %v2751 = vpack.c.b16 %v1963, %v1959
  %v2752 = vpack.c.b16 %v1964, %v1960
  %v2753 = vpack.c.b16 %v1969, %v1965
  %v2754 = vpack.c.b16 %v1970, %v1966
  %v2755 = vpack.c.b16 %v1971, %v1967
  %v2756 = vpack.c.b16 %v1972, %v1968
  %v2757 = vpack.c.b16 %v1977, %v1973
  %v2758 = vpack.c.b16 %v1978, %v1974
  %v2759 = vpack.c.b16 %v1979, %v1975
  %v2760 = vpack.c.b16 %v1980, %v1976
  %v2761 = vpack.c.b16 %v1985, %v1981
  %v2762 = vpack.c.b16 %v1986, %v1982
  %v2763 = vpack.c.b16 %v1987, %v1983
  %v2764 = vpack.c.b16 %v1988, %v1984
  %v2765 = vpack.c.b16 %v1993, %v1989
  %v2766 = vpack.c.b16 %v1994, %v1990
  %v2767 = vpack.c.b16 %v1995, %v1991
  %v2768 = vpack.c.b16 %v1996, %v1992
  %v2769 = vpack.c.b16 %v2001, %v1997
  %v2770 = vpack.c.b16 %v2002, %v1998
  %v2771 = vpack.c.b16 %v2003, %v1999
  %v2772 = vpack.c.b16 %v2004, %v2000
  %v2773 = vpack.c.b16 %v2009, %v2005
  %v2774 = vpack.c.b16 %v2010, %v2006
  %v2775 = vpack.c.b16 %v2011, %v2007
  %v2776 = vpack.c.b16 %v2012, %v2008
  %v2777 = vpack.c.b16 %v2017, %v2013
  %v2778 = vpack.c.b16 %v2018, %v2014
  %v2779 = vpack.c.b16 %v2019, %v2015
  %v2780 = vpack.c.b16 %v2020, %v2016
  %v2781 = vpack.c.b16 %v2025, %v2021
  %v2782 = vpack.c.b16 %v2026, %v2022
  %v2783 = vpack.c.b16 %v2027, %v2023
  %v2784 = vpack.c.b16 %v2028, %v2024
  %v2785 = vpack.c.b16 %v2033, %v2029
  %v2786 = vpack.c.b16 %v2034, %v2030
  %v2787 = vpack.c.b16 %v2035, %v2031
  %v2788 = vpack.c.b16 %v2036, %v2032
  %v2789 = vpack.c.b16 %v2041, %v2037
  %v2790 = vpack.c.b16 %v2042, %v2038
  %v2791 = vpack.c.b16 %v2043, %v2039
  %v2792 = vpack.c.b16 %v2044, %v2040
  %v2793 = vpack.c.b16 %v2049, %v2045
  %v2794 = vpack.c.b16 %v2050, %v2046
  %v2795 = vpack.c.b16 %v2051, %v2047
  %v2796 = vpack.c.b16 %v2052, %v2048
  %v2797 = vpack.c.b16 %v2057, %v2053
  %v2798 = vpack.c.b16 %v2058, %v2054
  %v2799 = vpack.c.b16 %v2059, %v2055
  %v2800 = vpack.c.b16 %v2060, %v2056
  %v2801 = vpack.c.b16 %v2065, %v2061
  %v2802 = vpack.c.b16 %v2066, %v2062
  %v2803 = vpack.c.b16 %v2067, %v2063
  %v2804 = vpack.c.b16 %v2068, %v2064
  %v2805 = vpack.c.b16 %v2073, %v2069
  %v2806 = vpack.c.b16 %v2074, %v2070
  %v2807 = vpack.c.b16 %v2075, %v2071
  %v2808 = vpack.c.b16 %v2076, %v2072
  %v2809 = vpack.c.b16 %v2081, %v2077
  %v2810 = vpack.c.b16 %v2082, %v2078
  %v2811 = vpack.c.b16 %v2083, %v2079
  %v2812 = vpack.c.b16 %v2084, %v2080
  %v2813 = vpack.c.b16 %v2089, %v2085
  %v2814 = vpack.c.b16 %v2090, %v2086
  %v2815 = vpack.c.b16 %v2091, %v2087
  %v2816 = vpack.c.b16 %v2092, %v2088
  %v2817 = vpack.c.b16 %v2097, %v2093
  %v2818 = vpack.c.b16 %v2098, %v2094
  %v2819 = vpack.c.b16 %v2099, %v2095
  %v2820 = vpack.c.b16 %v2100, %v2096
  %v2821 = vpack.c.b16 %v2105, %v2101
  %v2822 = vpack.c.b16 %v2106, %v2102
  %v2823 = vpack.c.b16 %v2107, %v2103
  %v2824 = vpack.c.b16 %v2108, %v2104
  %v2825 = vpack.c.b16 %v2113, %v2109
  %v2826 = vpack.c.b16 %v2114, %v2110
  %v2827 = vpack.c.b16 %v2115, %v2111
  %v2828 = vpack.c.b16 %v2116, %v2112
  %v2829 = vpack.c.b16 %v2121, %v2117
  %v2830 = vpack.c.b16 %v2122, %v2118
  %v2831 = vpack.c.b16 %v2123, %v2119
  %v2832 = vpack.c.b16 %v2124, %v2120
  %v2833 = vpack.c.b16 %v2129, %v2125
  %v2834 = vpack.c.b16 %v2130, %v2126
  %v2835 = vpack.c.b16 %v2131, %v2127
  %v2836 = vpack.c.b16 %v2132, %v2128
  %v2837 = vpack.c.b16 %v2137, %v2133
  %v2838 = vpack.c.b16 %v2138, %v2134
  %v2839 = vpack.c.b16 %v2139, %v2135
  %v2840 = vpack.c.b16 %v2140, %v2136
  %v2841 = vpack.c.b16 %v2145, %v2141
  %v2842 = vpack.c.b16 %v2146, %v2142
  %v2843 = vpack.c.b16 %v2147, %v2143
  %v2844 = vpack.c.b16 %v2148, %v2144
  %v2845 = vpack.c.b16 %v2153, %v2149
  %v2846 = vpack.c.b16 %v2154, %v2150
  %v2847 = vpack.c.b16 %v2155, %v2151
  %v2848 = vpack.c.b16 %v2156, %v2152
  %v2849 = vpack.c.b16 %v2161, %v2157
  %v2850 = vpack.c.b16 %v2162, %v2158
  %v2851 = vpack.c.b16 %v2163, %v2159
  %v2852 = vpack.c.b16 %v2164, %v2160
  %v2853 = vpack.c.b16 %v2169, %v2165
  %v2854 = vpack.c.b16 %v2170, %v2166
  %v2855 = vpack.c.b16 %v2171, %v2167
  %v2856 = vpack.c.b16 %v2172, %v2168
  %v2857 = vpack.c.b16 %v2177, %v2173
  %v2858 = vpack.c.b16 %v2178, %v2174
  %v2859 = vpack.c.b16 %v2179, %v2175
  %v2860 = vpack.c.b16 %v2180, %v2176
  %v2861 = vpack.c.b16 %v2185, %v2181
  %v2862 = vpack.c.b16 %v2186, %v2182
  %v2863 = vpack.c.b16 %v2187, %v2183
  %v2864 = vpack.c.b16 %v2188, %v2184
  %v2865 = vpack.c.b16 %v2193, %v2189
  %v2866 = vpack.c.b16 %v2194, %v2190
  %v2867 = vpack.c.b16 %v2195, %v2191
  %v2868 = vpack.c.b16 %v2196, %v2192
  %v2869 = vpack.c.b16 %v2201, %v2197
  %v2870 = vpack.c.b16 %v2202, %v2198
  %v2871 = vpack.c.b16 %v2203, %v2199
  %v2872 = vpack.c.b16 %v2204, %v2200
  %v2873 = vpack.c.b16 %v2209, %v2205
  %v2874 = vpack.c.b16 %v2210, %v2206
  %v2875 = vpack.c.b16 %v2211, %v2207
  %v2876 = vpack.c.b16 %v2212, %v2208
  %v2877 = vpack.c.b16 %v2217, %v2213
  %v2878 = vpack.c.b16 %v2218, %v2214
  %v2879 = vpack.c.b16 %v2219, %v2215
  %v2880 = vpack.c.b16 %v2220, %v2216
  %v2881 = vpack.c.b16 %v2225, %v2221
  %v2882 = vpack.c.b16 %v2226, %v2222
  %v2883 = vpack.c.b16 %v2227, %v2223
  %v2884 = vpack.c.b16 %v2228, %v2224
  %v2885 = vpack.c.b16 %v2233, %v2229
  %v2886 = vpack.c.b16 %v2234, %v2230
  %v2887 = vpack.c.b16 %v2235, %v2231
  %v2888 = vpack.c.b16 %v2236, %v2232
  %v2889 = vpack.c.b16 %v2241, %v2237
  %v2890 = vpack.c.b16 %v2242, %v2238
  %v2891 = vpack.c.b16 %v2243, %v2239
  %v2892 = vpack.c.b16 %v2244, %v2240
  %v2893 = vpack.c.b16 %v2249, %v2245
  %v2894 = vpack.c.b16 %v2250, %v2246
  %v2895 = vpack.c.b16 %v2251, %v2247
  %v2896 = vpack.c.b16 %v2252, %v2248
  %v2897 = vpack.c.b16 %v2257, %v2253
  %v2898 = vpack.c.b16 %v2258, %v2254
  %v2899 = vpack.c.b16 %v2259, %v2255
  %v2900 = vpack.c.b16 %v2260, %v2256
  %v2901 = vpack.c.b16 %v2265, %v2261
  %v2902 = vpack.c.b16 %v2266, %v2262
  %v2903 = vpack.c.b16 %v2267, %v2263
  %v2904 = vpack.c.b16 %v2268, %v2264
  %v2905 = vpack.c.b16 %v2273, %v2269
  %v2906 = vpack.c.b16 %v2274, %v2270
  %v2907 = vpack.c.b16 %v2275, %v2271
  %v2908 = vpack.c.b16 %v2276, %v2272
  %v2909 = vpack.c.b16 %v2281, %v2277
  %v2910 = vpack.c.b16 %v2282, %v2278
  %v2911 = vpack.c.b16 %v2283, %v2279
  %v2912 = vpack.c.b16 %v2284, %v2280
  %v2913 = vpack.c.b16 %v2289, %v2285
  %v2914 = vpack.c.b16 %v2290, %v2286
  %v2915 = vpack.c.b16 %v2291, %v2287
  %v2916 = vpack.c.b16 %v2292, %v2288
  %v2917 = vpack.c.b16 %v2297, %v2293
  %v2918 = vpack.c.b16 %v2298, %v2294
  %v2919 = vpack.c.b16 %v2299, %v2295
  %v2920 = vpack.c.b16 %v2300, %v2296
  %v2921 = vpack.c.b16 %v2305, %v2301
  %v2922 = vpack.c.b16 %v2306, %v2302
  %v2923 = vpack.c.b16 %v2307, %v2303
  %v2924 = vpack.c.b16 %v2308, %v2304
  %v2925 = vpack.c.b16 %v2313, %v2309
  %v2926 = vpack.c.b16 %v2314, %v2310
  %v2927 = vpack.c.b16 %v2315, %v2311
  %v2928 = vpack.c.b16 %v2316, %v2312
  %v2929 = vpack.c.b16 %v2321, %v2317
  %v2930 = vpack.c.b16 %v2322, %v2318
  %v2931 = vpack.c.b16 %v2323, %v2319
  %v2932 = vpack.c.b16 %v2324, %v2320
  %v2933 = vpack.c.b16 %v2329, %v2325
  %v2934 = vpack.c.b16 %v2330, %v2326
  %v2935 = vpack.c.b16 %v2331, %v2327
  %v2936 = vpack.c.b16 %v2332, %v2328
  %v2937 = vpack.c.b16 %v2337, %v2333
  %v2938 = vpack.c.b16 %v2338, %v2334
  %v2939 = vpack.c.b16 %v2339, %v2335
  %v2940 = vpack.c.b16 %v2340, %v2336
  %v2941 = vpack.c.b16 %v2345, %v2341
  %v2942 = vpack.c.b16 %v2346, %v2342
  %v2943 = vpack.c.b16 %v2347, %v2343
  %v2944 = vpack.c.b16 %v2348, %v2344
  %v2945 = vpack.c.b16 %v2353, %v2349
  %v2946 = vpack.c.b16 %v2354, %v2350
  %v2947 = vpack.c.b16 %v2355, %v2351
  %v2948 = vpack.c.b16 %v2356, %v2352
  %v2949 = vpack.c.b16 %v2361, %v2357
  %v2950 = vpack.c.b16 %v2362, %v2358
  %v2951 = vpack.c.b16 %v2363, %v2359
  %v2952 = vpack.c.b16 %v2364, %v2360
  %v2953 = vpack.c.b16 %v2369, %v2365
  %v2954 = vpack.c.b16 %v2370, %v2366
  %v2955 = vpack.c.b16 %v2371, %v2367
  %v2956 = vpack.c.b16 %v2372, %v2368
  %v2957 = vpack.c.b16 %v2377, %v2373
  %v2958 = vpack.c.b16 %v2378, %v2374
  %v2959 = vpack.c.b16 %v2379, %v2375
  %v2960 = vpack.c.b16 %v2380, %v2376
  %v2961 = vpack.c.b16 %v2385, %v2381
  %v2962 = vpack.c.b16 %v2386, %v2382
  %v2963 = vpack.c.b16 %v2387, %v2383
  %v2964 = vpack.c.b16 %v2388, %v2384
  %3541 = vmatprep.subr.bf16.mxu0 %v2390
  %3542 = vmatpush1.bf16.msra.mxu0 %v2389
  %3543 = vmatprep.subr.bf16.mxu0 %v2394
  %3544 = vmatpush1.bf16.msra.mxu0 %v2393
  %3545 = vmatprep.subr.bf16.mxu0 %v2398
  %3546 = vmatpush1.bf16.msra.mxu0 %v2397
  %3547 = vmatprep.subr.bf16.mxu0 %v2402
  %3548 = vmatpush1.bf16.msra.mxu0 %v2401
  %3549 = vmatprep.subr.bf16.mxu0 %v2406
  %3550 = vmatpush1.bf16.msra.mxu0 %v2405
  %3551 = vmatprep.subr.bf16.mxu0 %v2410
  %3552 = vmatpush1.bf16.msra.mxu0 %v2409
  %3553 = vmatprep.subr.bf16.mxu0 %v2414
  %3554 = vmatpush1.bf16.msra.mxu0 %v2413
  %3555 = vmatprep.subr.bf16.mxu0 %v2418
  %3556 = vmatpush1.bf16.msra.mxu0 %v2417
  %3557 = vmatprep.subr.bf16.mxu0 %v2422
  %3558 = vmatpush1.bf16.msra.mxu0 %v2421
  %3559 = vmatprep.subr.bf16.mxu0 %v2426
  %3560 = vmatpush1.bf16.msra.mxu0 %v2425
  %3561 = vmatprep.subr.bf16.mxu0 %v2430
  %3562 = vmatpush1.bf16.msra.mxu0 %v2429
  %3563 = vmatprep.subr.bf16.mxu0 %v2434
  %3564 = vmatpush1.bf16.msra.mxu0 %v2433
  %3565 = vmatprep.subr.bf16.mxu0 %v2438
  %3566 = vmatpush1.bf16.msra.mxu0 %v2437
  %3567 = vmatprep.subr.bf16.mxu0 %v2442
  %3568 = vmatpush1.bf16.msra.mxu0 %v2441
  %3569 = vmatprep.subr.bf16.mxu0 %v2446
  %3570 = vmatpush1.bf16.msra.mxu0 %v2445
  %3571 = vmatprep.subr.bf16.mxu0 %v2450
  %3572 = vmatpush1.bf16.msra.mxu0 %v2449
  %3573 = vmatprep.mubr.bf16.mxu0 %v626
  %3574 = vmatmul.mubr.bf16.gmra.mrb[0].mxu0 %v625
  %v3575 = vpop.f32.mrb[0].mxu0
  %v3576 = vadd.f32 0.0, %v3575
  %v3577 = vpop.f32.mrb[0].mxu0
  %v3578 = vadd.f32 0.0, %v3577
  %v3579 = vpop.f32.mrb[0].mxu0
  %v3580 = vpop.f32.mrb[0].mxu0
  %3581 = vdwg.mxu0
  %3582 = vmatprep.subr.bf16.mxu0 %v2454
  %3583 = vmatpush1.bf16.msra.mxu0 %v2453
  %3584 = vmatprep.subr.bf16.mxu0 %v2458
  %3585 = vmatpush1.bf16.msra.mxu0 %v2457
  %3586 = vmatprep.subr.bf16.mxu0 %v2462
  %3587 = vmatpush1.bf16.msra.mxu0 %v2461
  %3588 = vmatprep.subr.bf16.mxu0 %v2466
  %3589 = vmatpush1.bf16.msra.mxu0 %v2465
  %3590 = vmatprep.subr.bf16.mxu0 %v2470
  %3591 = vmatpush1.bf16.msra.mxu0 %v2469
  %3592 = vmatprep.subr.bf16.mxu0 %v2474
  %3593 = vmatpush1.bf16.msra.mxu0 %v2473
  %3594 = vmatprep.subr.bf16.mxu0 %v2478
  %3595 = vmatpush1.bf16.msra.mxu0 %v2477
  %3596 = vmatprep.subr.bf16.mxu0 %v2482
  %3597 = vmatpush1.bf16.msra.mxu0 %v2481
  %3598 = vmatprep.subr.bf16.mxu0 %v2486
  %3599 = vmatpush1.bf16.msra.mxu0 %v2485
  %3600 = vmatprep.subr.bf16.mxu0 %v2490
  %3601 = vmatpush1.bf16.msra.mxu0 %v2489
  %3602 = vmatprep.subr.bf16.mxu0 %v2494
  %3603 = vmatpush1.bf16.msra.mxu0 %v2493
  %3604 = vmatprep.subr.bf16.mxu0 %v2498
  %3605 = vmatpush1.bf16.msra.mxu0 %v2497
  %3606 = vmatprep.subr.bf16.mxu0 %v2502
  %3607 = vmatpush1.bf16.msra.mxu0 %v2501
  %3608 = vmatprep.subr.bf16.mxu0 %v2506
  %3609 = vmatpush1.bf16.msra.mxu0 %v2505
  %3610 = vmatprep.subr.bf16.mxu0 %v2510
  %3611 = vmatpush1.bf16.msra.mxu0 %v2509
  %3612 = vmatprep.subr.bf16.mxu0 %v2514
  %3613 = vmatpush1.bf16.msra.mxu0 %v2513
  %3614 = vmatprep.mubr.bf16.mxu0 %v628
  %3615 = vmatmul.mubr.bf16.gmra.mrb[0].mxu0 %v627
  %v3616 = vpop.f32.mrb[0].mxu0
  %v3617 = vadd.f32 %v3576, %v3616
  %v3618 = vpop.f32.mrb[0].mxu0
  %v3619 = vadd.f32 %v3578, %v3618
  %v3620 = vpop.f32.mrb[0].mxu0
  %v3621 = vpop.f32.mrb[0].mxu0
  %3622 = vdwg.mxu0
  %3623 = vmatprep.subr.bf16.mxu0 %v2518
  %3624 = vmatpush1.bf16.msra.mxu0 %v2517
  %3625 = vmatprep.subr.bf16.mxu0 %v2522
  %3626 = vmatpush1.bf16.msra.mxu0 %v2521
  %3627 = vmatprep.subr.bf16.mxu0 %v2526
  %3628 = vmatpush1.bf16.msra.mxu0 %v2525
  %3629 = vmatprep.subr.bf16.mxu0 %v2530
  %3630 = vmatpush1.bf16.msra.mxu0 %v2529
  %3631 = vmatprep.subr.bf16.mxu0 %v2534
  %3632 = vmatpush1.bf16.msra.mxu0 %v2533
  %3633 = vmatprep.subr.bf16.mxu0 %v2538
  %3634 = vmatpush1.bf16.msra.mxu0 %v2537
  %3635 = vmatprep.subr.bf16.mxu0 %v2542
  %3636 = vmatpush1.bf16.msra.mxu0 %v2541
  %3637 = vmatprep.subr.bf16.mxu0 %v2546
  %3638 = vmatpush1.bf16.msra.mxu0 %v2545
  %3639 = vmatprep.subr.bf16.mxu0 %v2550
  %3640 = vmatpush1.bf16.msra.mxu0 %v2549
  %3641 = vmatprep.subr.bf16.mxu0 %v2554
  %3642 = vmatpush1.bf16.msra.mxu0 %v2553
  %3643 = vmatprep.subr.bf16.mxu0 %v2558
  %3644 = vmatpush1.bf16.msra.mxu0 %v2557
  %3645 = vmatprep.subr.bf16.mxu0 %v2562
  %3646 = vmatpush1.bf16.msra.mxu0 %v2561
  %3647 = vmatprep.subr.bf16.mxu0 %v2566
  %3648 = vmatpush1.bf16.msra.mxu0 %v2565
  %3649 = vmatprep.subr.bf16.mxu0 %v2570
  %3650 = vmatpush1.bf16.msra.mxu0 %v2569
  %3651 = vmatprep.subr.bf16.mxu0 %v2574
  %3652 = vmatpush1.bf16.msra.mxu0 %v2573
  %3653 = vmatprep.subr.bf16.mxu0 %v2578
  %3654 = vmatpush1.bf16.msra.mxu0 %v2577
  %3655 = vmatprep.mubr.bf16.mxu0 %v630
  %3656 = vmatmul.mubr.bf16.gmra.mrb[0].mxu0 %v629
  %v3657 = vpop.f32.mrb[0].mxu0
  %v3658 = vadd.f32 %v3617, %v3657
  %v3659 = vpop.f32.mrb[0].mxu0
  %v3660 = vadd.f32 %v3619, %v3659
  %v3661 = vpop.f32.mrb[0].mxu0
  %v3662 = vpop.f32.mrb[0].mxu0
  %3663 = vdwg.mxu0
  %3664 = vmatprep.subr.bf16.mxu0 %v2582
  %3665 = vmatpush1.bf16.msra.mxu0 %v2581
  %3666 = vmatprep.subr.bf16.mxu0 %v2586
  %3667 = vmatpush1.bf16.msra.mxu0 %v2585
  %3668 = vmatprep.subr.bf16.mxu0 %v2590
  %3669 = vmatpush1.bf16.msra.mxu0 %v2589
  %3670 = vmatprep.subr.bf16.mxu0 %v2594
  %3671 = vmatpush1.bf16.msra.mxu0 %v2593
  %3672 = vmatprep.subr.bf16.mxu0 %v2598
  %3673 = vmatpush1.bf16.msra.mxu0 %v2597
  %3674 = vmatprep.subr.bf16.mxu0 %v2602
  %3675 = vmatpush1.bf16.msra.mxu0 %v2601
  %3676 = vmatprep.subr.bf16.mxu0 %v2606
  %3677 = vmatpush1.bf16.msra.mxu0 %v2605
  %3678 = vmatprep.subr.bf16.mxu0 %v2610
  %3679 = vmatpush1.bf16.msra.mxu0 %v2609
  %3680 = vmatprep.subr.bf16.mxu0 %v2614
  %3681 = vmatpush1.bf16.msra.mxu0 %v2613
  %3682 = vmatprep.subr.bf16.mxu0 %v2618
  %3683 = vmatpush1.bf16.msra.mxu0 %v2617
  %3684 = vmatprep.subr.bf16.mxu0 %v2622
  %3685 = vmatpush1.bf16.msra.mxu0 %v2621
  %3686 = vmatprep.subr.bf16.mxu0 %v2626
  %3687 = vmatpush1.bf16.msra.mxu0 %v2625
  %3688 = vmatprep.subr.bf16.mxu0 %v2630
  %3689 = vmatpush1.bf16.msra.mxu0 %v2629
  %3690 = vmatprep.subr.bf16.mxu0 %v2634
  %3691 = vmatpush1.bf16.msra.mxu0 %v2633
  %3692 = vmatprep.subr.bf16.mxu0 %v2638
  %3693 = vmatpush1.bf16.msra.mxu0 %v2637
  %3694 = vmatprep.subr.bf16.mxu0 %v2642
  %3695 = vmatpush1.bf16.msra.mxu0 %v2641
  %3696 = vmatprep.mubr.bf16.mxu0 %v632
  %3697 = vmatmul.mubr.bf16.gmra.mrb[0].mxu0 %v631
  %v3698 = vpop.f32.mrb[0].mxu0
  %v3699 = vadd.f32 %v3658, %v3698
  %v3700 = vpop.f32.mrb[0].mxu0
  %v3701 = vadd.f32 %v3660, %v3700
  %v3702 = vpop.f32.mrb[0].mxu0
  %v3703 = vpop.f32.mrb[0].mxu0
  %3704 = vdwg.mxu0
  %3705 = vmatprep.subr.bf16.mxu0 %v2646
  %3706 = vmatpush1.bf16.msra.mxu0 %v2645
  %3707 = vmatprep.subr.bf16.mxu0 %v2650
  %3708 = vmatpush1.bf16.msra.mxu0 %v2649
  %3709 = vmatprep.subr.bf16.mxu0 %v2654
  %3710 = vmatpush1.bf16.msra.mxu0 %v2653
  %3711 = vmatprep.subr.bf16.mxu0 %v2658
  %3712 = vmatpush1.bf16.msra.mxu0 %v2657
  %3713 = vmatprep.subr.bf16.mxu0 %v2662
  %3714 = vmatpush1.bf16.msra.mxu0 %v2661
  %3715 = vmatprep.subr.bf16.mxu0 %v2666
  %3716 = vmatpush1.bf16.msra.mxu0 %v2665
  %3717 = vmatprep.subr.bf16.mxu0 %v2670
  %3718 = vmatpush1.bf16.msra.mxu0 %v2669
  %3719 = vmatprep.subr.bf16.mxu0 %v2674
  %3720 = vmatpush1.bf16.msra.mxu0 %v2673
  %3721 = vmatprep.subr.bf16.mxu0 %v2678
  %3722 = vmatpush1.bf16.msra.mxu0 %v2677
  %3723 = vmatprep.subr.bf16.mxu0 %v2682
  %3724 = vmatpush1.bf16.msra.mxu0 %v2681
  %3725 = vmatprep.subr.bf16.mxu0 %v2686
  %3726 = vmatpush1.bf16.msra.mxu0 %v2685
  %3727 = vmatprep.subr.bf16.mxu0 %v2690
  %3728 = vmatpush1.bf16.msra.mxu0 %v2689
  %3729 = vmatprep.subr.bf16.mxu0 %v2694
  %3730 = vmatpush1.bf16.msra.mxu0 %v2693
  %3731 = vmatprep.subr.bf16.mxu0 %v2698
  %3732 = vmatpush1.bf16.msra.mxu0 %v2697
  %3733 = vmatprep.subr.bf16.mxu0 %v2702
  %3734 = vmatpush1.bf16.msra.mxu0 %v2701
  %3735 = vmatprep.subr.bf16.mxu0 %v2706
  %3736 = vmatpush1.bf16.msra.mxu0 %v2705
  %3737 = vmatprep.mubr.bf16.mxu0 %v634
  %3738 = vmatmul.mubr.bf16.gmra.mrb[0].mxu0 %v633
  %v3739 = vpop.f32.mrb[0].mxu0
  %v3740 = vadd.f32 %v3699, %v3739
  %v3741 = vpop.f32.mrb[0].mxu0
  %v3742 = vadd.f32 %v3701, %v3741
  %v3743 = vpop.f32.mrb[0].mxu0
  %v3744 = vpop.f32.mrb[0].mxu0
  %3745 = vdwg.mxu0
  %3746 = vmatprep.subr.bf16.mxu0 %v2710
  %3747 = vmatpush1.bf16.msra.mxu0 %v2709
  %3748 = vmatprep.subr.bf16.mxu0 %v2714
  %3749 = vmatpush1.bf16.msra.mxu0 %v2713
  %3750 = vmatprep.subr.bf16.mxu0 %v2718
  %3751 = vmatpush1.bf16.msra.mxu0 %v2717
  %3752 = vmatprep.subr.bf16.mxu0 %v2722
  %3753 = vmatpush1.bf16.msra.mxu0 %v2721
  %3754 = vmatprep.subr.bf16.mxu0 %v2726
  %3755 = vmatpush1.bf16.msra.mxu0 %v2725
  %3756 = vmatprep.subr.bf16.mxu0 %v2730
  %3757 = vmatpush1.bf16.msra.mxu0 %v2729
  %3758 = vmatprep.subr.bf16.mxu0 %v2734
  %3759 = vmatpush1.bf16.msra.mxu0 %v2733
  %3760 = vmatprep.subr.bf16.mxu0 %v2738
  %3761 = vmatpush1.bf16.msra.mxu0 %v2737
  %3762 = vmatprep.subr.bf16.mxu0 %v2742
  %3763 = vmatpush1.bf16.msra.mxu0 %v2741
  %3764 = vmatprep.subr.bf16.mxu0 %v2746
  %3765 = vmatpush1.bf16.msra.mxu0 %v2745
  %3766 = vmatprep.subr.bf16.mxu0 %v2750
  %3767 = vmatpush1.bf16.msra.mxu0 %v2749
  %3768 = vmatprep.subr.bf16.mxu0 %v2754
  %3769 = vmatpush1.bf16.msra.mxu0 %v2753
  %3770 = vmatprep.subr.bf16.mxu0 %v2758
  %3771 = vmatpush1.bf16.msra.mxu0 %v2757
  %3772 = vmatprep.subr.bf16.mxu0 %v2762
  %3773 = vmatpush1.bf16.msra.mxu0 %v2761
  %3774 = vmatprep.subr.bf16.mxu0 %v2766
  %3775 = vmatpush1.bf16.msra.mxu0 %v2765
  %3776 = vmatprep.subr.bf16.mxu0 %v2770
  %3777 = vmatpush1.bf16.msra.mxu0 %v2769
  %3778 = vmatprep.mubr.bf16.mxu0 %v636
  %3779 = vmatmul.mubr.bf16.gmra.mrb[0].mxu0 %v635
  %v3780 = vpop.f32.mrb[0].mxu0
  %v3781 = vadd.f32 %v3740, %v3780
  %v3782 = vpop.f32.mrb[0].mxu0
  %v3783 = vadd.f32 %v3742, %v3782
  %v3784 = vpop.f32.mrb[0].mxu0
  %v3785 = vpop.f32.mrb[0].mxu0
  %3786 = vdwg.mxu0
  %3787 = vmatprep.subr.bf16.mxu0 %v2774
  %3788 = vmatpush1.bf16.msra.mxu0 %v2773
  %3789 = vmatprep.subr.bf16.mxu0 %v2778
  %3790 = vmatpush1.bf16.msra.mxu0 %v2777
  %3791 = vmatprep.subr.bf16.mxu0 %v2782
  %3792 = vmatpush1.bf16.msra.mxu0 %v2781
  %3793 = vmatprep.subr.bf16.mxu0 %v2786
  %3794 = vmatpush1.bf16.msra.mxu0 %v2785
  %3795 = vmatprep.subr.bf16.mxu0 %v2790
  %3796 = vmatpush1.bf16.msra.mxu0 %v2789
  %3797 = vmatprep.subr.bf16.mxu0 %v2794
  %3798 = vmatpush1.bf16.msra.mxu0 %v2793
  %3799 = vmatprep.subr.bf16.mxu0 %v2798
  %3800 = vmatpush1.bf16.msra.mxu0 %v2797
  %3801 = vmatprep.subr.bf16.mxu0 %v2802
  %3802 = vmatpush1.bf16.msra.mxu0 %v2801
  %3803 = vmatprep.subr.bf16.mxu0 %v2806
  %3804 = vmatpush1.bf16.msra.mxu0 %v2805
  %3805 = vmatprep.subr.bf16.mxu0 %v2810
  %3806 = vmatpush1.bf16.msra.mxu0 %v2809
  %3807 = vmatprep.subr.bf16.mxu0 %v2814
  %3808 = vmatpush1.bf16.msra.mxu0 %v2813
  %3809 = vmatprep.subr.bf16.mxu0 %v2818
  %3810 = vmatpush1.bf16.msra.mxu0 %v2817
  %3811 = vmatprep.subr.bf16.mxu0 %v2822
  %3812 = vmatpush1.bf16.msra.mxu0 %v2821
  %3813 = vmatprep.subr.bf16.mxu0 %v2826
  %3814 = vmatpush1.bf16.msra.mxu0 %v2825
  %3815 = vmatprep.subr.bf16.mxu0 %v2830
  %3816 = vmatpush1.bf16.msra.mxu0 %v2829
  %3817 = vmatprep.subr.bf16.mxu0 %v2834
  %3818 = vmatpush1.bf16.msra.mxu0 %v2833
  %3819 = vmatprep.mubr.bf16.mxu0 %v638
  %3820 = vmatmul.mubr.bf16.gmra.mrb[0].mxu0 %v637
  %v3821 = vpop.f32.mrb[0].mxu0
  %v3822 = vadd.f32 %v3781, %v3821
  %v3823 = vpop.f32.mrb[0].mxu0
  %v3824 = vadd.f32 %v3783, %v3823
  %v3825 = vpop.f32.mrb[0].mxu0
  %v3826 = vpop.f32.mrb[0].mxu0
  %3827 = vdwg.mxu0
  %3828 = vmatprep.subr.bf16.mxu0 %v2838
  %3829 = vmatpush1.bf16.msra.mxu0 %v2837
  %3830 = vmatprep.subr.bf16.mxu0 %v2842
  %3831 = vmatpush1.bf16.msra.mxu0 %v2841
  %3832 = vmatprep.subr.bf16.mxu0 %v2846
  %3833 = vmatpush1.bf16.msra.mxu0 %v2845
  %3834 = vmatprep.subr.bf16.mxu0 %v2850
  %3835 = vmatpush1.bf16.msra.mxu0 %v2849
  %3836 = vmatprep.subr.bf16.mxu0 %v2854
  %3837 = vmatpush1.bf16.msra.mxu0 %v2853
  %3838 = vmatprep.subr.bf16.mxu0 %v2858
  %3839 = vmatpush1.bf16.msra.mxu0 %v2857
  %3840 = vmatprep.subr.bf16.mxu0 %v2862
  %3841 = vmatpush1.bf16.msra.mxu0 %v2861
  %3842 = vmatprep.subr.bf16.mxu0 %v2866
  %3843 = vmatpush1.bf16.msra.mxu0 %v2865
  %3844 = vmatprep.subr.bf16.mxu0 %v2870
  %3845 = vmatpush1.bf16.msra.mxu0 %v2869
  %3846 = vmatprep.subr.bf16.mxu0 %v2874
  %3847 = vmatpush1.bf16.msra.mxu0 %v2873
  %3848 = vmatprep.subr.bf16.mxu0 %v2878
  %3849 = vmatpush1.bf16.msra.mxu0 %v2877
  %3850 = vmatprep.subr.bf16.mxu0 %v2882
  %3851 = vmatpush1.bf16.msra.mxu0 %v2881
  %3852 = vmatprep.subr.bf16.mxu0 %v2886
  %3853 = vmatpush1.bf16.msra.mxu0 %v2885
  %3854 = vmatprep.subr.bf16.mxu0 %v2890
  %3855 = vmatpush1.bf16.msra.mxu0 %v2889
  %3856 = vmatprep.subr.bf16.mxu0 %v2894
  %3857 = vmatpush1.bf16.msra.mxu0 %v2893
  %3858 = vmatprep.subr.bf16.mxu0 %v2898
  %3859 = vmatpush1.bf16.msra.mxu0 %v2897
  %3860 = vmatprep.mubr.bf16.mxu0 %v640
  %3861 = vmatmul.mubr.bf16.gmra.mrb[0].mxu0 %v639
  %v3862 = vpop.f32.mrb[0].mxu0
  %v3863 = vadd.f32 %v3822, %v3862
  %v3864 = vpop.f32.mrb[0].mxu0
  %v3865 = vadd.f32 %v3824, %v3864
  %v3866 = vpop.f32.mrb[0].mxu0
  %v3867 = vpop.f32.mrb[0].mxu0
  %3868 = vdwg.mxu0
  %3869 = vmatprep.subr.bf16.mxu0 %v2902
  %3870 = vmatpush1.bf16.msra.mxu0 %v2901
  %3871 = vmatprep.subr.bf16.mxu0 %v2906
  %3872 = vmatpush1.bf16.msra.mxu0 %v2905
  %3873 = vmatprep.subr.bf16.mxu0 %v2910
  %3874 = vmatpush1.bf16.msra.mxu0 %v2909
  %3875 = vmatprep.subr.bf16.mxu0 %v2914
  %3876 = vmatpush1.bf16.msra.mxu0 %v2913
  %3877 = vmatprep.subr.bf16.mxu0 %v2918
  %3878 = vmatpush1.bf16.msra.mxu0 %v2917
  %3879 = vmatprep.subr.bf16.mxu0 %v2922
  %3880 = vmatpush1.bf16.msra.mxu0 %v2921
  %3881 = vmatprep.subr.bf16.mxu0 %v2926
  %3882 = vmatpush1.bf16.msra.mxu0 %v2925
  %3883 = vmatprep.subr.bf16.mxu0 %v2930
  %3884 = vmatpush1.bf16.msra.mxu0 %v2929
  %3885 = vmatprep.subr.bf16.mxu0 %v2934
  %3886 = vmatpush1.bf16.msra.mxu0 %v2933
  %3887 = vmatprep.subr.bf16.mxu0 %v2938
  %3888 = vmatpush1.bf16.msra.mxu0 %v2937
  %3889 = vmatprep.subr.bf16.mxu0 %v2942
  %3890 = vmatpush1.bf16.msra.mxu0 %v2941
  %3891 = vmatprep.subr.bf16.mxu0 %v2946
  %3892 = vmatpush1.bf16.msra.mxu0 %v2945
  %3893 = vmatprep.subr.bf16.mxu0 %v2950
  %3894 = vmatpush1.bf16.msra.mxu0 %v2949
  %3895 = vmatprep.subr.bf16.mxu0 %v2954
  %3896 = vmatpush1.bf16.msra.mxu0 %v2953
  %3897 = vmatprep.subr.bf16.mxu0 %v2958
  %3898 = vmatpush1.bf16.msra.mxu0 %v2957
  %3899 = vmatprep.subr.bf16.mxu0 %v2962
  %3900 = vmatpush1.bf16.msra.mxu0 %v2961
  %3901 = vmatprep.mubr.bf16.mxu0 %v642
  %3902 = vmatmul.mubr.bf16.gmra.mrb[0].mxu0 %v641
  %v3903 = vpop.f32.mrb[0].mxu0
  %v3904 = vadd.f32 %v3863, %v3903
  %v3905 = vpop.f32.mrb[0].mxu0
  %v3906 = vadd.f32 %v3865, %v3905
  %v3907 = vpop.f32.mrb[0].mxu0
  %v3908 = vpop.f32.mrb[0].mxu0
  %3909 = vdwg.mxu0
  %3910 = vmatprep.subr.bf16.mxu0 %v2392
  %3911 = vmatpush1.bf16.msra.mxu0 %v2391
  %3912 = vmatprep.subr.bf16.mxu0 %v2396
  %3913 = vmatpush1.bf16.msra.mxu0 %v2395
  %3914 = vmatprep.subr.bf16.mxu0 %v2400
  %3915 = vmatpush1.bf16.msra.mxu0 %v2399
  %3916 = vmatprep.subr.bf16.mxu0 %v2404
  %3917 = vmatpush1.bf16.msra.mxu0 %v2403
  %3918 = vmatprep.subr.bf16.mxu0 %v2408
  %3919 = vmatpush1.bf16.msra.mxu0 %v2407
  %3920 = vmatprep.subr.bf16.mxu0 %v2412
  %3921 = vmatpush1.bf16.msra.mxu0 %v2411
  %3922 = vmatprep.subr.bf16.mxu0 %v2416
  %3923 = vmatpush1.bf16.msra.mxu0 %v2415
  %3924 = vmatprep.subr.bf16.mxu0 %v2420
  %3925 = vmatpush1.bf16.msra.mxu0 %v2419
  %3926 = vmatprep.subr.bf16.mxu0 %v2424
  %3927 = vmatpush1.bf16.msra.mxu0 %v2423
  %3928 = vmatprep.subr.bf16.mxu0 %v2428
  %3929 = vmatpush1.bf16.msra.mxu0 %v2427
  %3930 = vmatprep.subr.bf16.mxu0 %v2432
  %3931 = vmatpush1.bf16.msra.mxu0 %v2431
  %3932 = vmatprep.subr.bf16.mxu0 %v2436
  %3933 = vmatpush1.bf16.msra.mxu0 %v2435
  %3934 = vmatprep.subr.bf16.mxu0 %v2440
  %3935 = vmatpush1.bf16.msra.mxu0 %v2439
  %3936 = vmatprep.subr.bf16.mxu0 %v2444
  %3937 = vmatpush1.bf16.msra.mxu0 %v2443
  %3938 = vmatprep.subr.bf16.mxu0 %v2448
  %3939 = vmatpush1.bf16.msra.mxu0 %v2447
  %3940 = vmatprep.subr.bf16.mxu0 %v2452
  %3941 = vmatpush1.bf16.msra.mxu0 %v2451
  %3942 = vmatprep.mubr.bf16.mxu0 %v626
  %3943 = vmatmul.mubr.bf16.gmra.mrb[0].mxu0 %v625
  %v3944 = vpop.f32.mrb[0].mxu0
  %v3945 = vadd.f32 0.0, %v3944
  %v3946 = vpop.f32.mrb[0].mxu0
  %v3947 = vadd.f32 0.0, %v3946
  %v3948 = vpop.f32.mrb[0].mxu0
  %v3949 = vpop.f32.mrb[0].mxu0
  %3950 = vdwg.mxu0
  %3951 = vmatprep.subr.bf16.mxu0 %v2456
  %3952 = vmatpush1.bf16.msra.mxu0 %v2455
  %3953 = vmatprep.subr.bf16.mxu0 %v2460
  %3954 = vmatpush1.bf16.msra.mxu0 %v2459
  %3955 = vmatprep.subr.bf16.mxu0 %v2464
  %3956 = vmatpush1.bf16.msra.mxu0 %v2463
  %3957 = vmatprep.subr.bf16.mxu0 %v2468
  %3958 = vmatpush1.bf16.msra.mxu0 %v2467
  %3959 = vmatprep.subr.bf16.mxu0 %v2472
  %3960 = vmatpush1.bf16.msra.mxu0 %v2471
  %3961 = vmatprep.subr.bf16.mxu0 %v2476
  %3962 = vmatpush1.bf16.msra.mxu0 %v2475
  %3963 = vmatprep.subr.bf16.mxu0 %v2480
  %3964 = vmatpush1.bf16.msra.mxu0 %v2479
  %3965 = vmatprep.subr.bf16.mxu0 %v2484
  %3966 = vmatpush1.bf16.msra.mxu0 %v2483
  %3967 = vmatprep.subr.bf16.mxu0 %v2488
  %3968 = vmatpush1.bf16.msra.mxu0 %v2487
  %3969 = vmatprep.subr.bf16.mxu0 %v2492
  %3970 = vmatpush1.bf16.msra.mxu0 %v2491
  %3971 = vmatprep.subr.bf16.mxu0 %v2496
  %3972 = vmatpush1.bf16.msra.mxu0 %v2495
  %3973 = vmatprep.subr.bf16.mxu0 %v2500
  %3974 = vmatpush1.bf16.msra.mxu0 %v2499
  %3975 = vmatprep.subr.bf16.mxu0 %v2504
  %3976 = vmatpush1.bf16.msra.mxu0 %v2503
  %3977 = vmatprep.subr.bf16.mxu0 %v2508
  %3978 = vmatpush1.bf16.msra.mxu0 %v2507
  %3979 = vmatprep.subr.bf16.mxu0 %v2512
  %3980 = vmatpush1.bf16.msra.mxu0 %v2511
  %3981 = vmatprep.subr.bf16.mxu0 %v2516
  %3982 = vmatpush1.bf16.msra.mxu0 %v2515
  %3983 = vmatprep.mubr.bf16.mxu0 %v628
  %3984 = vmatmul.mubr.bf16.gmra.mrb[0].mxu0 %v627
  %v3985 = vpop.f32.mrb[0].mxu0
  %v3986 = vadd.f32 %v3945, %v3985
  %v3987 = vpop.f32.mrb[0].mxu0
  %v3988 = vadd.f32 %v3947, %v3987
  %v3989 = vpop.f32.mrb[0].mxu0
  %v3990 = vpop.f32.mrb[0].mxu0
  %3991 = vdwg.mxu0
  %3992 = vmatprep.subr.bf16.mxu0 %v2520
  %3993 = vmatpush1.bf16.msra.mxu0 %v2519
  %3994 = vmatprep.subr.bf16.mxu0 %v2524
  %3995 = vmatpush1.bf16.msra.mxu0 %v2523
  %3996 = vmatprep.subr.bf16.mxu0 %v2528
  %3997 = vmatpush1.bf16.msra.mxu0 %v2527
  %3998 = vmatprep.subr.bf16.mxu0 %v2532
  %3999 = vmatpush1.bf16.msra.mxu0 %v2531
  %4000 = vmatprep.subr.bf16.mxu0 %v2536
  %4001 = vmatpush1.bf16.msra.mxu0 %v2535
  %4002 = vmatprep.subr.bf16.mxu0 %v2540
  %4003 = vmatpush1.bf16.msra.mxu0 %v2539
  %4004 = vmatprep.subr.bf16.mxu0 %v2544
  %4005 = vmatpush1.bf16.msra.mxu0 %v2543
  %4006 = vmatprep.subr.bf16.mxu0 %v2548
  %4007 = vmatpush1.bf16.msra.mxu0 %v2547
  %4008 = vmatprep.subr.bf16.mxu0 %v2552
  %4009 = vmatpush1.bf16.msra.mxu0 %v2551
  %4010 = vmatprep.subr.bf16.mxu0 %v2556
  %4011 = vmatpush1.bf16.msra.mxu0 %v2555
  %4012 = vmatprep.subr.bf16.mxu0 %v2560
  %4013 = vmatpush1.bf16.msra.mxu0 %v2559
  %4014 = vmatprep.subr.bf16.mxu0 %v2564
  %4015 = vmatpush1.bf16.msra.mxu0 %v2563
  %4016 = vmatprep.subr.bf16.mxu0 %v2568
  %4017 = vmatpush1.bf16.msra.mxu0 %v2567
  %4018 = vmatprep.subr.bf16.mxu0 %v2572
  %4019 = vmatpush1.bf16.msra.mxu0 %v2571
  %4020 = vmatprep.subr.bf16.mxu0 %v2576
  %4021 = vmatpush1.bf16.msra.mxu0 %v2575
  %4022 = vmatprep.subr.bf16.mxu0 %v2580
  %4023 = vmatpush1.bf16.msra.mxu0 %v2579
  %4024 = vmatprep.mubr.bf16.mxu0 %v630
  %4025 = vmatmul.mubr.bf16.gmra.mrb[0].mxu0 %v629
  %v4026 = vpop.f32.mrb[0].mxu0
  %v4027 = vadd.f32 %v3986, %v4026
  %v4028 = vpop.f32.mrb[0].mxu0
  %v4029 = vadd.f32 %v3988, %v4028
  %v4030 = vpop.f32.mrb[0].mxu0
  %v4031 = vpop.f32.mrb[0].mxu0
  %4032 = vdwg.mxu0
  %4033 = vmatprep.subr.bf16.mxu0 %v2584
  %4034 = vmatpush1.bf16.msra.mxu0 %v2583
  %4035 = vmatprep.subr.bf16.mxu0 %v2588
  %4036 = vmatpush1.bf16.msra.mxu0 %v2587
  %4037 = vmatprep.subr.bf16.mxu0 %v2592
  %4038 = vmatpush1.bf16.msra.mxu0 %v2591
  %4039 = vmatprep.subr.bf16.mxu0 %v2596
  %4040 = vmatpush1.bf16.msra.mxu0 %v2595
  %4041 = vmatprep.subr.bf16.mxu0 %v2600
  %4042 = vmatpush1.bf16.msra.mxu0 %v2599
  %4043 = vmatprep.subr.bf16.mxu0 %v2604
  %4044 = vmatpush1.bf16.msra.mxu0 %v2603
  %4045 = vmatprep.subr.bf16.mxu0 %v2608
  %4046 = vmatpush1.bf16.msra.mxu0 %v2607
  %4047 = vmatprep.subr.bf16.mxu0 %v2612
  %4048 = vmatpush1.bf16.msra.mxu0 %v2611
  %4049 = vmatprep.subr.bf16.mxu0 %v2616
  %4050 = vmatpush1.bf16.msra.mxu0 %v2615
  %4051 = vmatprep.subr.bf16.mxu0 %v2620
  %4052 = vmatpush1.bf16.msra.mxu0 %v2619
  %4053 = vmatprep.subr.bf16.mxu0 %v2624
  %4054 = vmatpush1.bf16.msra.mxu0 %v2623
  %4055 = vmatprep.subr.bf16.mxu0 %v2628
  %4056 = vmatpush1.bf16.msra.mxu0 %v2627
  %4057 = vmatprep.subr.bf16.mxu0 %v2632
  %4058 = vmatpush1.bf16.msra.mxu0 %v2631
  %4059 = vmatprep.subr.bf16.mxu0 %v2636
  %4060 = vmatpush1.bf16.msra.mxu0 %v2635
  %4061 = vmatprep.subr.bf16.mxu0 %v2640
  %4062 = vmatpush1.bf16.msra.mxu0 %v2639
  %4063 = vmatprep.subr.bf16.mxu0 %v2644
  %4064 = vmatpush1.bf16.msra.mxu0 %v2643
  %4065 = vmatprep.mubr.bf16.mxu0 %v632
  %4066 = vmatmul.mubr.bf16.gmra.mrb[0].mxu0 %v631
  %v4067 = vpop.f32.mrb[0].mxu0
  %v4068 = vadd.f32 %v4027, %v4067
  %v4069 = vpop.f32.mrb[0].mxu0
  %v4070 = vadd.f32 %v4029, %v4069
  %v4071 = vpop.f32.mrb[0].mxu0
  %v4072 = vpop.f32.mrb[0].mxu0
  %4073 = vdwg.mxu0
  %4074 = vmatprep.subr.bf16.mxu0 %v2648
  %4075 = vmatpush1.bf16.msra.mxu0 %v2647
  %4076 = vmatprep.subr.bf16.mxu0 %v2652
  %4077 = vmatpush1.bf16.msra.mxu0 %v2651
  %4078 = vmatprep.subr.bf16.mxu0 %v2656
  %4079 = vmatpush1.bf16.msra.mxu0 %v2655
  %4080 = vmatprep.subr.bf16.mxu0 %v2660
  %4081 = vmatpush1.bf16.msra.mxu0 %v2659
  %4082 = vmatprep.subr.bf16.mxu0 %v2664
  %4083 = vmatpush1.bf16.msra.mxu0 %v2663
  %4084 = vmatprep.subr.bf16.mxu0 %v2668
  %4085 = vmatpush1.bf16.msra.mxu0 %v2667
  %4086 = vmatprep.subr.bf16.mxu0 %v2672
  %4087 = vmatpush1.bf16.msra.mxu0 %v2671
  %4088 = vmatprep.subr.bf16.mxu0 %v2676
  %4089 = vmatpush1.bf16.msra.mxu0 %v2675
  %4090 = vmatprep.subr.bf16.mxu0 %v2680
  %4091 = vmatpush1.bf16.msra.mxu0 %v2679
  %4092 = vmatprep.subr.bf16.mxu0 %v2684
  %4093 = vmatpush1.bf16.msra.mxu0 %v2683
  %4094 = vmatprep.subr.bf16.mxu0 %v2688
  %4095 = vmatpush1.bf16.msra.mxu0 %v2687
  %4096 = vmatprep.subr.bf16.mxu0 %v2692
  %4097 = vmatpush1.bf16.msra.mxu0 %v2691
  %4098 = vmatprep.subr.bf16.mxu0 %v2696
  %4099 = vmatpush1.bf16.msra.mxu0 %v2695
  %4100 = vmatprep.subr.bf16.mxu0 %v2700
  %4101 = vmatpush1.bf16.msra.mxu0 %v2699
  %4102 = vmatprep.subr.bf16.mxu0 %v2704
  %4103 = vmatpush1.bf16.msra.mxu0 %v2703
  %4104 = vmatprep.subr.bf16.mxu0 %v2708
  %4105 = vmatpush1.bf16.msra.mxu0 %v2707
  %4106 = vmatprep.mubr.bf16.mxu0 %v634
  %4107 = vmatmul.mubr.bf16.gmra.mrb[0].mxu0 %v633
  %v4108 = vpop.f32.mrb[0].mxu0
  %v4109 = vadd.f32 %v4068, %v4108
  %v4110 = vpop.f32.mrb[0].mxu0
  %v4111 = vadd.f32 %v4070, %v4110
  %v4112 = vpop.f32.mrb[0].mxu0
  %v4113 = vpop.f32.mrb[0].mxu0
  %4114 = vdwg.mxu0
  %4115 = vmatprep.subr.bf16.mxu0 %v2712
  %4116 = vmatpush1.bf16.msra.mxu0 %v2711
  %4117 = vmatprep.subr.bf16.mxu0 %v2716
  %4118 = vmatpush1.bf16.msra.mxu0 %v2715
  %4119 = vmatprep.subr.bf16.mxu0 %v2720
  %4120 = vmatpush1.bf16.msra.mxu0 %v2719
  %4121 = vmatprep.subr.bf16.mxu0 %v2724
  %4122 = vmatpush1.bf16.msra.mxu0 %v2723
  %4123 = vmatprep.subr.bf16.mxu0 %v2728
  %4124 = vmatpush1.bf16.msra.mxu0 %v2727
  %4125 = vmatprep.subr.bf16.mxu0 %v2732
  %4126 = vmatpush1.bf16.msra.mxu0 %v2731
  %4127 = vmatprep.subr.bf16.mxu0 %v2736
  %4128 = vmatpush1.bf16.msra.mxu0 %v2735
  %4129 = vmatprep.subr.bf16.mxu0 %v2740
  %4130 = vmatpush1.bf16.msra.mxu0 %v2739
  %4131 = vmatprep.subr.bf16.mxu0 %v2744
  %4132 = vmatpush1.bf16.msra.mxu0 %v2743
  %4133 = vmatprep.subr.bf16.mxu0 %v2748
  %4134 = vmatpush1.bf16.msra.mxu0 %v2747
  %4135 = vmatprep.subr.bf16.mxu0 %v2752
  %4136 = vmatpush1.bf16.msra.mxu0 %v2751
  %4137 = vmatprep.subr.bf16.mxu0 %v2756
  %4138 = vmatpush1.bf16.msra.mxu0 %v2755
  %4139 = vmatprep.subr.bf16.mxu0 %v2760
  %4140 = vmatpush1.bf16.msra.mxu0 %v2759
  %4141 = vmatprep.subr.bf16.mxu0 %v2764
  %4142 = vmatpush1.bf16.msra.mxu0 %v2763
  %4143 = vmatprep.subr.bf16.mxu0 %v2768
  %4144 = vmatpush1.bf16.msra.mxu0 %v2767
  %4145 = vmatprep.subr.bf16.mxu0 %v2772
  %4146 = vmatpush1.bf16.msra.mxu0 %v2771
  %4147 = vmatprep.mubr.bf16.mxu0 %v636
  %4148 = vmatmul.mubr.bf16.gmra.mrb[0].mxu0 %v635
  %v4149 = vpop.f32.mrb[0].mxu0
  %v4150 = vadd.f32 %v4109, %v4149
  %v4151 = vpop.f32.mrb[0].mxu0
  %v4152 = vadd.f32 %v4111, %v4151
  %v4153 = vpop.f32.mrb[0].mxu0
  %v4154 = vpop.f32.mrb[0].mxu0
  %4155 = vdwg.mxu0
  %4156 = vmatprep.subr.bf16.mxu0 %v2776
  %4157 = vmatpush1.bf16.msra.mxu0 %v2775
  %4158 = vmatprep.subr.bf16.mxu0 %v2780
  %4159 = vmatpush1.bf16.msra.mxu0 %v2779
  %4160 = vmatprep.subr.bf16.mxu0 %v2784
  %4161 = vmatpush1.bf16.msra.mxu0 %v2783
  %4162 = vmatprep.subr.bf16.mxu0 %v2788
  %4163 = vmatpush1.bf16.msra.mxu0 %v2787
  %4164 = vmatprep.subr.bf16.mxu0 %v2792
  %4165 = vmatpush1.bf16.msra.mxu0 %v2791
  %4166 = vmatprep.subr.bf16.mxu0 %v2796
  %4167 = vmatpush1.bf16.msra.mxu0 %v2795
  %4168 = vmatprep.subr.bf16.mxu0 %v2800
  %4169 = vmatpush1.bf16.msra.mxu0 %v2799
  %4170 = vmatprep.subr.bf16.mxu0 %v2804
  %4171 = vmatpush1.bf16.msra.mxu0 %v2803
  %4172 = vmatprep.subr.bf16.mxu0 %v2808
  %4173 = vmatpush1.bf16.msra.mxu0 %v2807
  %4174 = vmatprep.subr.bf16.mxu0 %v2812
  %4175 = vmatpush1.bf16.msra.mxu0 %v2811
  %4176 = vmatprep.subr.bf16.mxu0 %v2816
  %4177 = vmatpush1.bf16.msra.mxu0 %v2815
  %4178 = vmatprep.subr.bf16.mxu0 %v2820
  %4179 = vmatpush1.bf16.msra.mxu0 %v2819
  %4180 = vmatprep.subr.bf16.mxu0 %v2824
  %4181 = vmatpush1.bf16.msra.mxu0 %v2823
  %4182 = vmatprep.subr.bf16.mxu0 %v2828
  %4183 = vmatpush1.bf16.msra.mxu0 %v2827
  %4184 = vmatprep.subr.bf16.mxu0 %v2832
  %4185 = vmatpush1.bf16.msra.mxu0 %v2831
  %4186 = vmatprep.subr.bf16.mxu0 %v2836
  %4187 = vmatpush1.bf16.msra.mxu0 %v2835
  %4188 = vmatprep.mubr.bf16.mxu0 %v638
  %4189 = vmatmul.mubr.bf16.gmra.mrb[0].mxu0 %v637
  %v4190 = vpop.f32.mrb[0].mxu0
  %v4191 = vadd.f32 %v4150, %v4190
  %v4192 = vpop.f32.mrb[0].mxu0
  %v4193 = vadd.f32 %v4152, %v4192
  %v4194 = vpop.f32.mrb[0].mxu0
  %v4195 = vpop.f32.mrb[0].mxu0
  %4196 = vdwg.mxu0
  %4197 = vmatprep.subr.bf16.mxu0 %v2840
  %4198 = vmatpush1.bf16.msra.mxu0 %v2839
  %4199 = vmatprep.subr.bf16.mxu0 %v2844
  %4200 = vmatpush1.bf16.msra.mxu0 %v2843
  %4201 = vmatprep.subr.bf16.mxu0 %v2848
  %4202 = vmatpush1.bf16.msra.mxu0 %v2847
  %4203 = vmatprep.subr.bf16.mxu0 %v2852
  %4204 = vmatpush1.bf16.msra.mxu0 %v2851
  %4205 = vmatprep.subr.bf16.mxu0 %v2856
  %4206 = vmatpush1.bf16.msra.mxu0 %v2855
  %4207 = vmatprep.subr.bf16.mxu0 %v2860
  %4208 = vmatpush1.bf16.msra.mxu0 %v2859
  %4209 = vmatprep.subr.bf16.mxu0 %v2864
  %4210 = vmatpush1.bf16.msra.mxu0 %v2863
  %4211 = vmatprep.subr.bf16.mxu0 %v2868
  %4212 = vmatpush1.bf16.msra.mxu0 %v2867
  %4213 = vmatprep.subr.bf16.mxu0 %v2872
  %4214 = vmatpush1.bf16.msra.mxu0 %v2871
  %4215 = vmatprep.subr.bf16.mxu0 %v2876
  %4216 = vmatpush1.bf16.msra.mxu0 %v2875
  %4217 = vmatprep.subr.bf16.mxu0 %v2880
  %4218 = vmatpush1.bf16.msra.mxu0 %v2879
  %4219 = vmatprep.subr.bf16.mxu0 %v2884
  %4220 = vmatpush1.bf16.msra.mxu0 %v2883
  %4221 = vmatprep.subr.bf16.mxu0 %v2888
  %4222 = vmatpush1.bf16.msra.mxu0 %v2887
  %4223 = vmatprep.subr.bf16.mxu0 %v2892
  %4224 = vmatpush1.bf16.msra.mxu0 %v2891
  %4225 = vmatprep.subr.bf16.mxu0 %v2896
  %4226 = vmatpush1.bf16.msra.mxu0 %v2895
  %4227 = vmatprep.subr.bf16.mxu0 %v2900
  %4228 = vmatpush1.bf16.msra.mxu0 %v2899
  %4229 = vmatprep.mubr.bf16.mxu0 %v640
  %4230 = vmatmul.mubr.bf16.gmra.mrb[0].mxu0 %v639
  %v4231 = vpop.f32.mrb[0].mxu0
  %v4232 = vadd.f32 %v4191, %v4231
  %v4233 = vpop.f32.mrb[0].mxu0
  %v4234 = vadd.f32 %v4193, %v4233
  %v4235 = vpop.f32.mrb[0].mxu0
  %v4236 = vpop.f32.mrb[0].mxu0
  %4237 = vdwg.mxu0
  %4238 = vmatprep.subr.bf16.mxu0 %v2904
  %4239 = vmatpush1.bf16.msra.mxu0 %v2903
  %4240 = vmatprep.subr.bf16.mxu0 %v2908
  %4241 = vmatpush1.bf16.msra.mxu0 %v2907
  %4242 = vmatprep.subr.bf16.mxu0 %v2912
  %4243 = vmatpush1.bf16.msra.mxu0 %v2911
  %4244 = vmatprep.subr.bf16.mxu0 %v2916
  %4245 = vmatpush1.bf16.msra.mxu0 %v2915
  %4246 = vmatprep.subr.bf16.mxu0 %v2920
  %4247 = vmatpush1.bf16.msra.mxu0 %v2919
  %4248 = vmatprep.subr.bf16.mxu0 %v2924
  %4249 = vmatpush1.bf16.msra.mxu0 %v2923
  %4250 = vmatprep.subr.bf16.mxu0 %v2928
  %4251 = vmatpush1.bf16.msra.mxu0 %v2927
  %4252 = vmatprep.subr.bf16.mxu0 %v2932
  %4253 = vmatpush1.bf16.msra.mxu0 %v2931
  %4254 = vmatprep.subr.bf16.mxu0 %v2936
  %4255 = vmatpush1.bf16.msra.mxu0 %v2935
  %4256 = vmatprep.subr.bf16.mxu0 %v2940
  %4257 = vmatpush1.bf16.msra.mxu0 %v2939
  %4258 = vmatprep.subr.bf16.mxu0 %v2944
  %4259 = vmatpush1.bf16.msra.mxu0 %v2943
  %4260 = vmatprep.subr.bf16.mxu0 %v2948
  %4261 = vmatpush1.bf16.msra.mxu0 %v2947
  %4262 = vmatprep.subr.bf16.mxu0 %v2952
  %4263 = vmatpush1.bf16.msra.mxu0 %v2951
  %4264 = vmatprep.subr.bf16.mxu0 %v2956
  %4265 = vmatpush1.bf16.msra.mxu0 %v2955
  %4266 = vmatprep.subr.bf16.mxu0 %v2960
  %4267 = vmatpush1.bf16.msra.mxu0 %v2959
  %4268 = vmatprep.subr.bf16.mxu0 %v2964
  %4269 = vmatpush1.bf16.msra.mxu0 %v2963
  %4270 = vmatprep.mubr.bf16.mxu0 %v642
  %4271 = vmatmul.mubr.bf16.gmra.mrb[0].mxu0 %v641
  %v4272 = vpop.f32.mrb[0].mxu0
  %v4273 = vadd.f32 %v4232, %v4272
  %v4274 = vpop.f32.mrb[0].mxu0
  %v4275 = vadd.f32 %v4234, %v4274
  %v4276 = vpop.f32.mrb[0].mxu0
  %v4277 = vpop.f32.mrb[0].mxu0
  %4278 = vdwg.mxu0
  %4279 = vst [vmem:[%s2] sm:$0xff] %v3904
  %4280 = vst [vmem:[%s2 + $0x8] sm:$0xff] %v3906
  %4281 = vst [vmem:[%s2 + $0x10] sm:$0xff] %v4273
  %4282 = vst [vmem:[%s2 + $0x18] sm:$0xff] %v4275
  %v4283 = vrot.slane %v3904, 4
  %v4284 = vadd.f32 %v3904, %v4283
  %v4285 = vrot.slane %v4284, 2
  %v4286 = vadd.f32 %v4284, %v4285
  %v4287 = vrot.slane %v4286, 1
  %v4288 = vadd.f32 %v4286, %v4287
  %v4289 = vrot.slane %v3906, 4
  %v4290 = vadd.f32 %v3906, %v4289
  %v4291 = vrot.slane %v4290, 2
  %v4292 = vadd.f32 %v4290, %v4291
  %v4293 = vrot.slane %v4292, 1
  %v4294 = vadd.f32 %v4292, %v4293
  %v4295 = vrot.slane %v4273, 4
  %v4296 = vadd.f32 %v4273, %v4295
  %v4297 = vrot.slane %v4296, 2
  %v4298 = vadd.f32 %v4296, %v4297
  %v4299 = vrot.slane %v4298, 1
  %v4300 = vadd.f32 %v4298, %v4299
  %v4301 = vrot.slane %v4275, 4
  %v4302 = vadd.f32 %v4275, %v4301
  %v4303 = vrot.slane %v4302, 2
  %v4304 = vadd.f32 %v4302, %v4303
  %v4305 = vrot.slane %v4304, 1
  %v4306 = vadd.f32 %v4304, %v4305
  %v4307 = vmul.f32 %v3904, %v3904
  %v4308 = vmul.f32 %v3906, %v3906
  %v4309 = vmul.f32 %v4273, %v4273
  %v4310 = vmul.f32 %v4275, %v4275
  %v4311 = vrot.slane %v4307, 4
  %v4312 = vadd.f32 %v4307, %v4311
  %v4313 = vrot.slane %v4312, 2
  %v4314 = vadd.f32 %v4312, %v4313
  %v4315 = vrot.slane %v4314, 1
  %v4316 = vadd.f32 %v4314, %v4315
  %v4317 = vrot.slane %v4308, 4
  %v4318 = vadd.f32 %v4308, %v4317
  %v4319 = vrot.slane %v4318, 2
  %v4320 = vadd.f32 %v4318, %v4319
  %v4321 = vrot.slane %v4320, 1
  %v4322 = vadd.f32 %v4320, %v4321
  %v4323 = vrot.slane %v4309, 4
  %v4324 = vadd.f32 %v4309, %v4323
  %v4325 = vrot.slane %v4324, 2
  %v4326 = vadd.f32 %v4324, %v4325
  %v4327 = vrot.slane %v4326, 1
  %v4328 = vadd.f32 %v4326, %v4327
  %v4329 = vrot.slane %v4310, 4
  %v4330 = vadd.f32 %v4310, %v4329
  %v4331 = vrot.slane %v4330, 2
  %v4332 = vadd.f32 %v4330, %v4331
  %v4333 = vrot.slane %v4332, 1
  %v4334 = vadd.f32 %v4332, %v4333
  %vm4335 = vcmask 1040384
  %v4336 = vsel %vm4335, %v4288, %v4316
  %v4337 = vsel %vm4335, %v4294, %v4322
  %v4338 = vsel %vm4335, %v4300, %v4328
  %v4339 = vsel %vm4335, %v4306, %v4334
  %v4344 = vcombine.low %v4336, %v4337
  %v4345 = vcombine.low %v4338, %v4339
  %v4347 = vunpack.c.l.s4 1983009808
  %v4348 = vunpack.c.0.s8 %v4347
  %v4349 = vlaneseq
  %v4350 = vshrl.u32 %v4349, 7
  %v4351 = vsub.s32 %v4348, %v4350
  %v4352 = vrot.slane %v4344, %v4351
  %v4354 = vunpack.c.l.s4 1983009808
  %v4355 = vunpack.c.0.s8 %v4354
  %v4356 = vlaneseq
  %v4357 = vshrl.u32 %v4356, 7
  %v4358 = vsub.s32 %v4355, %v4357
  %v4359 = vrot.slane %v4345, %v4358
  %v4360 = vcombine.low %v4352, %v4359
  %4362 = vst [vmem:[%s3] sm:$0xff] %v4360
  // Predicated region
  $region10: #{transition_pruner_forward.19} parent=0 // pred_check
    _
  $region11: #{transition_pruner_forward.19} parent=0 // pred_check_branch
    %4364 = sbr.rel (0) target = $region13
  $region12: #{transition_pruner_forward.19} parent=0 // pred_region
    _
  $region13: #{transition_pruner_forward.19} parent=0 // pred_fallthru
    _
  // Predicated region
  $region14: #{transition_pruner_forward.19} parent=0 // pred_check
    _
  $region15: #{transition_pruner_forward.19} parent=0 // pred_check_branch
    %4366 = sbr.rel (0) target = $region17
  $region16: #{transition_pruner_forward.19} parent=0 // pred_region
    _
  $region17: #{transition_pruner_forward.19} parent=0 // pred_fallthru
    _
  // Predicated region
  $region18: #{transition_pruner_forward.19} parent=0 // pred_check
    _
  $region19: #{transition_pruner_forward.19} parent=0 // pred_check_branch
    %4368 = sbr.rel (0) target = $region21
  $region20: #{transition_pruner_forward.19} parent=0 // pred_region
    _
  $region21: #{transition_pruner_forward.19} parent=0 // pred_fallthru
    _
  // Predicated region
  $region22: #{transition_pruner_forward.19} parent=0 // pred_check
    _
  $region23: #{transition_pruner_forward.19} parent=0 // pred_check_branch
    %4370 = sbr.rel (0) target = $region25
  $region24: #{transition_pruner_forward.19} parent=0 // pred_region
    _
  $region25: #{transition_pruner_forward.19} parent=0 // pred_fallthru
    _

// kernel: transition_pruner_forward.24
$region0: #{transition_pruner_forward.24}
  #allocation0 [shape = 'u32[]', space=smem, size = 0x4, offset = 0x4, fixed_abs, tag = 'smem constant byte address 0x4 - core index']
  #allocation1 [shape = 'u32[144,128]{1,0:T(1,128)}', space=vmem, size = 0x12000, scoped, tag = 'internal scratch']
  %s0 = inlined_call_operand.vmem [shape: bf16[4,128,256], index: 0, kind: input, shape index: {}]
  %s1 = inlined_call_operand.vmem [shape: bf16[4,256,128], index: 1, kind: input, shape index: {}]
  %s2 = inlined_call_operand.vmem [shape: f32[4,1,128], index: 2, kind: input, shape index: {}]
  %s3 = inlined_call_operand.vmem [shape: f32[4,128,128], index: 3, kind: output, shape index: {}]
  %s4 = sld [smem:[#allocation0]]
  $region45: #{transition_pruner_forward.24} parent=0
    _
  %s6 = ssub.s32 1, %s4
  %s7 = scalar_select 0, %s6, %s4
  loop: start=0, step=1, limit=6
  $region2: #{transition_pruner_forward.24} parent=0 // loop_pre_header
    _
  $region3: #{transition_pruner_forward.24} parent=0 // loop_header
    %s9 = sphi 0, %s13
    %p10 = scmp.ge.s32.totalorder %s9, 6
    %s16 = sphi 0, %s28
    %s17 = sphi 0, %s24
    %s18 = sphi 0, %s16
    %s19 = sphi 0, %s17
    %s20 = sphi 0, %s18
    %s21 = sphi 0, %s19
    %s33 = sphi 0, %s35
    %s36 = sphi 0, %s33
    %s37 = sphi 0, %s36
    %s53 = sphi 0, %s37
    %s59 = sphi 0, %s61
    %s62 = sphi 0, %s59
    %s63 = sphi 0, %s62
    %s79 = sphi 0, %s63
    %s85 = sphi 0, %s87
    %s88 = sphi 0, %s85
    %s89 = sphi 0, %s88
    %s105 = sphi 0, %s89
    %s113 = sphi 0, %s115
    %s116 = sphi 0, %s113
    %s117 = sphi 0, %s116
    %s133 = sphi 0, %s117
  $region4: #{transition_pruner_forward.24} parent=0 // loop_header_branch
    %12 = sbr.rel (%p10) target = $region8
  $region5: #{transition_pruner_forward.24} parent=0 // loop_body
    %s14 = ssub.s32 %s9, 1
    %s15 = ssub.s32 %s9, 2
    %s22 = sadd.s32 1, %s17
    %p23 = scmp.ge.s32.totalorder %s22, 1
    %s24 = scalar_select %p23, 0, %s22
    %s25 = sadd.s32 1, %s16
    %s26 = scalar_select %p23, %s25, %s16
    %p27 = scmp.ge.s32.totalorder %s26, 4
    %s28 = scalar_select %p27, 0, %s26
    %s29 = ssub.s32 %s16, %s28
    %s30 = ssub.s32 %s17, %s24
    %s31 = sor.u32 %s29, %s30
    %p32 = scmp.eq.s32.totalorder %s31, 0
    %s34 = sadd.s32 %s33, 1
    %s35 = scalar_select %p32, %s33, %s34
    %p38 = pneg %p32
    %p39 = scmp.eq.s32.totalorder %s9, 3
    %p40 = por %p38, %p39
    %p41 = scmp.ne.s32.totalorder %s33, %s36
    %p42 = scmp.eq.s32.totalorder %s9, 0
    %p43 = por %p41, %p42
    %p44 = scmp.ne.s32.totalorder %s33, %s36
    %p45 = scmp.eq.s32.totalorder %s14, 3
    %p46 = por %p44, %p45
    %p47 = scmp.ne.s32.totalorder %s36, %s37
    %p48 = scmp.eq.s32.totalorder %s14, 0
    %p49 = por %p47, %p48
    %p50 = scmp.ne.s32.totalorder %s36, %s37
    %p51 = scmp.eq.s32.totalorder %s15, 3
    %p52 = por %p50, %p51
    %p54 = scmp.ne.s32.totalorder %s37, %s53
    %p55 = scmp.eq.s32.totalorder %s15, 0
    %p56 = por %p54, %p55
    %s57 = ssub.s32 %s16, %s28
    %p58 = scmp.eq.s32.totalorder %s57, 0
    %s60 = sadd.s32 %s59, 1
    %s61 = scalar_select %p58, %s59, %s60
    %p64 = pneg %p58
    %p65 = scmp.eq.s32.totalorder %s9, 3
    %p66 = por %p64, %p65
    %p67 = scmp.ne.s32.totalorder %s59, %s62
    %p68 = scmp.eq.s32.totalorder %s9, 0
    %p69 = por %p67, %p68
    %p70 = scmp.ne.s32.totalorder %s59, %s62
    %p71 = scmp.eq.s32.totalorder %s14, 3
    %p72 = por %p70, %p71
    %p73 = scmp.ne.s32.totalorder %s62, %s63
    %p74 = scmp.eq.s32.totalorder %s14, 0
    %p75 = por %p73, %p74
    %p76 = scmp.ne.s32.totalorder %s62, %s63
    %p77 = scmp.eq.s32.totalorder %s15, 3
    %p78 = por %p76, %p77
    %p80 = scmp.ne.s32.totalorder %s63, %s79
    %p81 = scmp.eq.s32.totalorder %s15, 0
    %p82 = por %p80, %p81
    %s83 = ssub.s32 %s16, %s28
    %p84 = scmp.eq.s32.totalorder %s83, 0
    %s86 = sadd.s32 %s85, 1
    %s87 = scalar_select %p84, %s85, %s86
    %p90 = pneg %p84
    %p91 = scmp.eq.s32.totalorder %s9, 3
    %p92 = por %p90, %p91
    %p93 = scmp.ne.s32.totalorder %s85, %s88
    %p94 = scmp.eq.s32.totalorder %s9, 0
    %p95 = por %p93, %p94
    %p96 = scmp.ne.s32.totalorder %s85, %s88
    %p97 = scmp.eq.s32.totalorder %s14, 3
    %p98 = por %p96, %p97
    %p99 = scmp.ne.s32.totalorder %s88, %s89
    %p100 = scmp.eq.s32.totalorder %s14, 0
    %p101 = por %p99, %p100
    %p102 = scmp.ne.s32.totalorder %s88, %s89
    %p103 = scmp.eq.s32.totalorder %s15, 3
    %p104 = por %p102, %p103
    %p106 = scmp.ne.s32.totalorder %s89, %s105
    %p107 = scmp.eq.s32.totalorder %s15, 0
    %p108 = por %p106, %p107
    %s109 = ssub.s32 %s16, %s28
    %s110 = ssub.s32 %s17, %s24
    %s111 = sor.u32 %s109, %s110
    %p112 = scmp.eq.s32.totalorder %s111, 0
    %s114 = sadd.s32 %s113, 1
    %s115 = scalar_select %p112, %s113, %s114
    %p118 = pneg %p112
    %p119 = scmp.eq.s32.totalorder %s9, 3
    %p120 = por %p118, %p119
    %p121 = scmp.ne.s32.totalorder %s113, %s116
    %p122 = scmp.eq.s32.totalorder %s9, 0
    %p123 = por %p121, %p122
    %p124 = scmp.ne.s32.totalorder %s113, %s116
    %p125 = scmp.eq.s32.totalorder %s14, 3
    %p126 = por %p124, %p125
    %p127 = scmp.ne.s32.totalorder %s116, %s117
    %p128 = scmp.eq.s32.totalorder %s14, 0
    %p129 = por %p127, %p128
    %p130 = scmp.ne.s32.totalorder %s116, %s117
    %p131 = scmp.eq.s32.totalorder %s15, 3
    %p132 = por %p130, %p131
    %p134 = scmp.ne.s32.totalorder %s117, %s133
    %p135 = scmp.eq.s32.totalorder %s15, 0
    %p136 = por %p134, %p135
    %p137 = scmp.le.s32.totalorder 1, %s9
    %p138 = scmp.lt.s32.totalorder %s9, 5
    %p139 = pnand %p137, %p138
    %p140 = pneg %p139
    // Predicated region
    $region9: #{transition_pruner_forward.24} parent=5 // pred_check
      _
    $region10: #{transition_pruner_forward.24} parent=5 // pred_check_branch
      %142 = sbr.rel (%p139) target = $region12
    $region11: #{transition_pruner_forward.24} parent=5 // pred_region
      %s143 = ssub.s32 %s9, 1
    $region12: #{transition_pruner_forward.24} parent=5 // pred_fallthru
      _
    %p144 = scmp.lt.s32.totalorder %s9, 4
    // Predicated region
    $region13: #{transition_pruner_forward.24} parent=5 // pred_check
      %p145 = pneg %p144
    $region14: #{transition_pruner_forward.24} parent=5 // pred_check_branch
      %147 = sbr.rel (%p145) target = $region16
    $region15: #{transition_pruner_forward.24} parent=5 // pred_region
      // Predicated region
      $region17: #{transition_pruner_forward.24} parent=15 // pred_check
        %p148 = pneg %p43
      $region18: #{transition_pruner_forward.24} parent=15 // pred_check_branch
        %150 = sbr.rel (%p148) target = $region20
      $region19: #{transition_pruner_forward.24} parent=15 // pred_region
        %s151 = smul.u32 16, %s17
        %p152 = scmp.lt.s32.totalorder %s16, 3
        %s153 = scalar_select %p152, %s16, 3
        %p154 = scmp.lt.s32.totalorder %s151, 15
        %s155 = scalar_select %p154, %s151, 15
        %s156 = smul.addr %s155, 2
        %s157 = smul.addr %s153, 32
        %s158 = sadd.s32 %s156, %s157
        %s159 = smul.addr %s158, 4
        %s160 = scalar_lea.vmem %s0, %s159
        %s161 = smul.u32 16, %s17
      $region20: #{transition_pruner_forward.24} parent=15 // pred_fallthru
        _
      // Predicated region
      $region21: #{transition_pruner_forward.24} parent=15 // pred_check
        %p162 = pneg %p69
      $region22: #{transition_pruner_forward.24} parent=15 // pred_check_branch
        %164 = sbr.rel (%p162) target = $region24
      $region23: #{transition_pruner_forward.24} parent=15 // pred_region
        %p165 = scmp.lt.s32.totalorder %s16, 3
        %s166 = scalar_select %p165, %s16, 3
        %s167 = smul.addr %s166, 32
        %s168 = smul.addr %s167, 4
        %s169 = scalar_lea.vmem %s1, %s168
      $region24: #{transition_pruner_forward.24} parent=15 // pred_fallthru
        _
      // Predicated region
      $region25: #{transition_pruner_forward.24} parent=15 // pred_check
        %p170 = pneg %p95
      $region26: #{transition_pruner_forward.24} parent=15 // pred_check_branch
        %172 = sbr.rel (%p170) target = $region28
      $region27: #{transition_pruner_forward.24} parent=15 // pred_region
        %p173 = scmp.lt.s32.totalorder %s16, 3
        %s174 = scalar_select %p173, %s16, 3
        %s175 = scalar_lea.vmem %s2, %s174
      $region28: #{transition_pruner_forward.24} parent=15 // pred_fallthru
        _
    $region16: #{transition_pruner_forward.24} parent=5 // pred_fallthru
      _
    %p176 = scmp.le.s32.totalorder 1, %s9
    %p177 = scmp.lt.s32.totalorder %s9, 5
    %p178 = pnand %p176, %p177
    %p179 = pneg %p178
    // Predicated region
    $region29: #{transition_pruner_forward.24} parent=5 // pred_check
      _
    $region30: #{transition_pruner_forward.24} parent=5 // pred_check_branch
      %181 = sbr.rel (%p178) target = $region32
    $region31: #{transition_pruner_forward.24} parent=5 // pred_region
      %s182 = ssub.s32 %s9, 1
      %s183 = smul.u32 16, %s19
      %p184 = scmp.lt.s32.totalorder %s18, 3
      %s185 = scalar_select %p184, %s18, 3
      %p186 = scmp.lt.s32.totalorder %s183, 15
      %s187 = scalar_select %p186, %s183, 15
      %s188 = smul.addr %s187, 2
      %s189 = smul.addr %s185, 32
      %s190 = sadd.s32 %s188, %s189
      %s191 = smul.addr %s190, 4
      %s192 = scalar_lea.vmem %s0, %s191
      %p193 = pneg %p49
      %p194 = pneg %p46
      %p195 = scmp.lt.s32.totalorder %s18, 3
      %s196 = scalar_select %p195, %s18, 3
      %s197 = smul.addr %s196, 32
      %s198 = smul.addr %s197, 4
      %s199 = scalar_lea.vmem %s1, %s198
      %p200 = pneg %p75
      %p201 = pneg %p72
      %p202 = scmp.lt.s32.totalorder %s18, 3
      %s203 = scalar_select %p202, %s18, 3
      %s204 = scalar_lea.vmem %s2, %s203
      %p205 = pneg %p101
      %p206 = pneg %p98
      %p207 = pneg %p129
      %p208 = pneg %p126
      %s209 = smul.u32 16, %s19
      %p210 = scmp.lt.s32.totalorder %s18, 3
      %s211 = scalar_select %p210, %s18, 3
      %p212 = scmp.lt.s32.totalorder %s209, 15
      %s213 = scalar_select %p212, %s209, 15
      %s214 = smul.addr %s211, 16
      %s215 = sadd.s32 %s213, %s214
      %s216 = smul.addr %s215, 8
      %s217 = scalar_lea.vmem %s3, %s216
      %s218 = smul.u32 16, %s19
      %p219 = scmp.lt.s32.totalorder %s18, 3
      %s220 = scalar_select %p219, %s18, 3
      %p221 = scmp.lt.s32.totalorder %s218, 15
      %s222 = scalar_select %p221, %s218, 15
      %s223 = smul.addr %s222, 2
      %s224 = smul.addr %s220, 32
      %s225 = sadd.s32 %s223, %s224
      %s226 = smul.addr %s225, 4
      %s227 = scalar_lea.vmem %s0, %s226
      %s228 = smul.u32 16, %s19
      %p229 = scmp.lt.s32.totalorder %s18, 3
      %s230 = scalar_select %p229, %s18, 3
      %s231 = smul.addr %s230, 32
      %s232 = smul.addr %s231, 4
      %s233 = scalar_lea.vmem %s1, %s232
      %p234 = scmp.lt.s32.totalorder %s18, 3
      %s235 = scalar_select %p234, %s18, 3
      %s236 = scalar_lea.vmem %s2, %s235
      %s237 = smul.u32 16, %s19
      %p238 = scmp.lt.s32.totalorder %s18, 3
      %s239 = scalar_select %p238, %s18, 3
      %p240 = scmp.lt.s32.totalorder %s237, 15
      %s241 = scalar_select %p240, %s237, 15
      %s242 = smul.addr %s239, 16
      %s243 = sadd.s32 %s241, %s242
      %s244 = smul.addr %s243, 8
      %s245 = scalar_lea.vmem %s3, %s244
      %s246 = smul.u32 16, %s19
      %v248 = vld [vmem:[%s227] sm:$0xff]
      %v249 = vld [vmem:[%s227 + $0x8] sm:$0xff]
      %v250 = vld [vmem:[%s227 + $0x10] sm:$0xff]
      %v251 = vld [vmem:[%s227 + $0x18] sm:$0xff]
      %v252 = vld [vmem:[%s227 + $0x20] sm:$0xff]
      %v253 = vld [vmem:[%s227 + $0x28] sm:$0xff]
      %v254 = vld [vmem:[%s227 + $0x30] sm:$0xff]
      %v255 = vld [vmem:[%s227 + $0x38] sm:$0xff]
      %v256 = vld [vmem:[%s227 + $0x40] sm:$0xff]
      %v257 = vld [vmem:[%s227 + $0x48] sm:$0xff]
      %v258 = vld [vmem:[%s227 + $0x50] sm:$0xff]
      %v259 = vld [vmem:[%s227 + $0x58] sm:$0xff]
      %v260 = vld [vmem:[%s227 + $0x60] sm:$0xff]
      %v261 = vld [vmem:[%s227 + $0x68] sm:$0xff]
      %v262 = vld [vmem:[%s227 + $0x70] sm:$0xff]
      %v263 = vld [vmem:[%s227 + $0x78] sm:$0xff]
      %v264 = vld [vmem:[%s233] sm:$0xf]
      %v265 = vld [vmem:[%s233 + $0x4] sm:$0xf]
      %v266 = vld [vmem:[%s233 + $0x8] sm:$0xf]
      %v267 = vld [vmem:[%s233 + $0xc] sm:$0xf]
      %v268 = vld [vmem:[%s233 + $0x10] sm:$0xf]
      %v269 = vld [vmem:[%s233 + $0x14] sm:$0xf]
      %v270 = vld [vmem:[%s233 + $0x18] sm:$0xf]
      %v271 = vld [vmem:[%s233 + $0x1c] sm:$0xf]
      %v272 = vld [vmem:[%s233 + $0x20] sm:$0xf]
      %v273 = vld [vmem:[%s233 + $0x24] sm:$0xf]
      %v274 = vld [vmem:[%s233 + $0x28] sm:$0xf]
      %v275 = vld [vmem:[%s233 + $0x2c] sm:$0xf]
      %v276 = vld [vmem:[%s233 + $0x30] sm:$0xf]
      %v277 = vld [vmem:[%s233 + $0x34] sm:$0xf]
      %v278 = vld [vmem:[%s233 + $0x38] sm:$0xf]
      %v279 = vld [vmem:[%s233 + $0x3c] sm:$0xf]
      %v280 = vld [vmem:[%s233 + $0x40] sm:$0xf]
      %v281 = vld [vmem:[%s233 + $0x44] sm:$0xf]
      %v282 = vld [vmem:[%s233 + $0x48] sm:$0xf]
      %v283 = vld [vmem:[%s233 + $0x4c] sm:$0xf]
      %v284 = vld [vmem:[%s233 + $0x50] sm:$0xf]
      %v285 = vld [vmem:[%s233 + $0x54] sm:$0xf]
      %v286 = vld [vmem:[%s233 + $0x58] sm:$0xf]
      %v287 = vld [vmem:[%s233 + $0x5c] sm:$0xf]
      %v288 = vld [vmem:[%s233 + $0x60] sm:$0xf]
      %v289 = vld [vmem:[%s233 + $0x64] sm:$0xf]
      %v290 = vld [vmem:[%s233 + $0x68] sm:$0xf]
      %v291 = vld [vmem:[%s233 + $0x6c] sm:$0xf]
      %v292 = vld [vmem:[%s233 + $0x70] sm:$0xf]
      %v293 = vld [vmem:[%s233 + $0x74] sm:$0xf]
      %v294 = vld [vmem:[%s233 + $0x78] sm:$0xf]
      %v295 = vld [vmem:[%s233 + $0x7c] sm:$0xf]
      %v296 = vld [vmem:[%s236] sm:$0x1]
      %v298 = vlaneseq
      %v299 = vshrl.u32 %v298, 7
      %v300 = vsub.s32 0, %v299
      %v301 = vrot.slane %v296, %v300
      %v319 = vunpack.c.l.b16 %v248
      %v320 = vunpack.c.h.b16 %v248
      %v321 = vunpack.c.l.b16 %v249
      %v322 = vunpack.c.h.b16 %v249
      %v323 = vunpack.c.l.b16 %v250
      %v324 = vunpack.c.h.b16 %v250
      %v325 = vunpack.c.l.b16 %v251
      %v326 = vunpack.c.h.b16 %v251
      %v327 = vunpack.c.l.b16 %v252
      %v328 = vunpack.c.h.b16 %v252
      %v329 = vunpack.c.l.b16 %v253
      %v330 = vunpack.c.h.b16 %v253
      %v331 = vunpack.c.l.b16 %v254
      %v332 = vunpack.c.h.b16 %v254
      %v333 = vunpack.c.l.b16 %v255
      %v334 = vunpack.c.h.b16 %v255
      %v335 = vunpack.c.l.b16 %v256
      %v336 = vunpack.c.h.b16 %v256
      %v337 = vunpack.c.l.b16 %v257
      %v338 = vunpack.c.h.b16 %v257
      %v339 = vunpack.c.l.b16 %v258
      %v340 = vunpack.c.h.b16 %v258
      %v341 = vunpack.c.l.b16 %v259
      %v342 = vunpack.c.h.b16 %v259
      %v343 = vunpack.c.l.b16 %v260
      %v344 = vunpack.c.h.b16 %v260
      %v345 = vunpack.c.l.b16 %v261
      %v346 = vunpack.c.h.b16 %v261
      %v347 = vunpack.c.l.b16 %v262
      %v348 = vunpack.c.h.b16 %v262
      %v349 = vunpack.c.l.b16 %v263
      %v350 = vunpack.c.h.b16 %v263
      %v351 = vpack.c.b16 %v321, %v319
      %v352 = vpack.c.b16 %v322, %v320
      %v353 = vpack.c.b16 %v325, %v323
      %v354 = vpack.c.b16 %v326, %v324
      %v355 = vpack.c.b16 %v329, %v327
      %v356 = vpack.c.b16 %v330, %v328
      %v357 = vpack.c.b16 %v333, %v331
      %v358 = vpack.c.b16 %v334, %v332
      %v359 = vpack.c.b16 %v337, %v335
      %v360 = vpack.c.b16 %v338, %v336
      %v361 = vpack.c.b16 %v341, %v339
      %v362 = vpack.c.b16 %v342, %v340
      %v363 = vpack.c.b16 %v345, %v343
      %v364 = vpack.c.b16 %v346, %v344
      %v365 = vpack.c.b16 %v349, %v347
      %v366 = vpack.c.b16 %v350, %v348
      %v415 = vunpack.c.l.b16 %v264
      %v416 = vunpack.c.l.b16 %v265
      %v417 = vunpack.c.l.b16 %v266
      %v418 = vunpack.c.l.b16 %v267
      %v419 = vunpack.c.l.b16 %v268
      %v420 = vunpack.c.l.b16 %v269
      %v421 = vunpack.c.l.b16 %v270
      %v422 = vunpack.c.l.b16 %v271
      %v423 = vunpack.c.l.b16 %v272
      %v424 = vunpack.c.l.b16 %v273
      %v425 = vunpack.c.l.b16 %v274
      %v426 = vunpack.c.l.b16 %v275
      %v427 = vunpack.c.l.b16 %v276
      %v428 = vunpack.c.l.b16 %v277
      %v429 = vunpack.c.l.b16 %v278
      %v430 = vunpack.c.l.b16 %v279
      %v431 = vunpack.c.l.b16 %v280
      %v432 = vunpack.c.l.b16 %v281
      %v433 = vunpack.c.l.b16 %v282
      %v434 = vunpack.c.l.b16 %v283
      %v435 = vunpack.c.l.b16 %v284
      %v436 = vunpack.c.l.b16 %v285
      %v437 = vunpack.c.l.b16 %v286
      %v438 = vunpack.c.l.b16 %v287
      %v439 = vunpack.c.l.b16 %v288
      %v440 = vunpack.c.l.b16 %v289
      %v441 = vunpack.c.l.b16 %v290
      %v442 = vunpack.c.l.b16 %v291
      %v443 = vunpack.c.l.b16 %v292
      %v444 = vunpack.c.l.b16 %v293
      %v445 = vunpack.c.l.b16 %v294
      %v446 = vunpack.c.l.b16 %v295
      %v447 = vpack.c.b16 %v416, %v415
      %v448 = vpack.c.b16 %v418, %v417
      %v449 = vpack.c.b16 %v420, %v419
      %v450 = vpack.c.b16 %v422, %v421
      %v451 = vpack.c.b16 %v424, %v423
      %v452 = vpack.c.b16 %v426, %v425
      %v453 = vpack.c.b16 %v428, %v427
      %v454 = vpack.c.b16 %v430, %v429
      %v455 = vpack.c.b16 %v432, %v431
      %v456 = vpack.c.b16 %v434, %v433
      %v457 = vpack.c.b16 %v436, %v435
      %v458 = vpack.c.b16 %v438, %v437
      %v459 = vpack.c.b16 %v440, %v439
      %v460 = vpack.c.b16 %v442, %v441
      %v461 = vpack.c.b16 %v444, %v443
      %v462 = vpack.c.b16 %v446, %v445
      %479 = vmatprep.subr.bf16.mxu0 0
      %480 = vmatpush1.bf16.msra.mxu0 %v447
      %481 = vmatprep.subr.bf16.mxu0 0
      %482 = vmatpush1.bf16.msra.mxu0 %v448
      %483 = vmatprep.subr.bf16.mxu0 0
      %484 = vmatpush1.bf16.msra.mxu0 %v449
      %485 = vmatprep.subr.bf16.mxu0 0
      %486 = vmatpush1.bf16.msra.mxu0 %v450
      %487 = vmatprep.subr.bf16.mxu0 0
      %488 = vmatpush1.bf16.msra.mxu0 %v451
      %489 = vmatprep.subr.bf16.mxu0 0
      %490 = vmatpush1.bf16.msra.mxu0 %v452
      %491 = vmatprep.subr.bf16.mxu0 0
      %492 = vmatpush1.bf16.msra.mxu0 %v453
      %493 = vmatprep.subr.bf16.mxu0 0
      %494 = vmatpush1.bf16.msra.mxu0 %v454
      %495 = vmatprep.subr.bf16.mxu0 0
      %496 = vmatpush1.bf16.msra.mxu0 %v455
      %497 = vmatprep.subr.bf16.mxu0 0
      %498 = vmatpush1.bf16.msra.mxu0 %v456
      %499 = vmatprep.subr.bf16.mxu0 0
      %500 = vmatpush1.bf16.msra.mxu0 %v457
      %501 = vmatprep.subr.bf16.mxu0 0
      %502 = vmatpush1.bf16.msra.mxu0 %v458
      %503 = vmatprep.subr.bf16.mxu0 0
      %504 = vmatpush1.bf16.msra.mxu0 %v459
      %505 = vmatprep.subr.bf16.mxu0 0
      %506 = vmatpush1.bf16.msra.mxu0 %v460
      %507 = vmatprep.subr.bf16.mxu0 0
      %508 = vmatpush1.bf16.msra.mxu0 %v461
      %509 = vmatprep.subr.bf16.mxu0 0
      %510 = vmatpush1.bf16.msra.mxu0 %v462
      %511 = vmatprep.mubr.bf16.mxu0 %v352
      %512 = vmatmul.mubr.bf16.gmra.mrb[0].mxu0 %v351
      %v513 = vpop.f32.mrb[0].mxu0
      %v514 = vadd.f32 %v301, %v513
      %v515 = vpop.f32.mrb[0].mxu0
      %v516 = vpop.f32.mrb[0].mxu0
      %v517 = vadd.f32 %v301, %v516
      %v518 = vpop.f32.mrb[0].mxu0
      %519 = vmatprep.mubr.bf16.mxu0 %v354
      %520 = vmatmul.mubr.bf16.gmra.mrb[0].mxu0 %v353
      %v521 = vpop.f32.mrb[0].mxu0
      %v522 = vadd.f32 %v301, %v521
      %v523 = vpop.f32.mrb[0].mxu0
      %v524 = vpop.f32.mrb[0].mxu0
      %v525 = vadd.f32 %v301, %v524
      %v526 = vpop.f32.mrb[0].mxu0
      %527 = vmatprep.mubr.bf16.mxu0 %v356
      %528 = vmatmul.mubr.bf16.gmra.mrb[0].mxu0 %v355
      %v529 = vpop.f32.mrb[0].mxu0
      %v530 = vadd.f32 %v301, %v529
      %v531 = vpop.f32.mrb[0].mxu0
      %v532 = vpop.f32.mrb[0].mxu0
      %v533 = vadd.f32 %v301, %v532
      %v534 = vpop.f32.mrb[0].mxu0
      %535 = vmatprep.mubr.bf16.mxu0 %v358
      %536 = vmatmul.mubr.bf16.gmra.mrb[0].mxu0 %v357
      %v537 = vpop.f32.mrb[0].mxu0
      %v538 = vadd.f32 %v301, %v537
      %v539 = vpop.f32.mrb[0].mxu0
      %v540 = vpop.f32.mrb[0].mxu0
      %v541 = vadd.f32 %v301, %v540
      %v542 = vpop.f32.mrb[0].mxu0
      %543 = vmatprep.mubr.bf16.mxu0 %v360
      %544 = vmatmul.mubr.bf16.gmra.mrb[0].mxu0 %v359
      %v545 = vpop.f32.mrb[0].mxu0
      %v546 = vadd.f32 %v301, %v545
      %v547 = vpop.f32.mrb[0].mxu0
      %v548 = vpop.f32.mrb[0].mxu0
      %v549 = vadd.f32 %v301, %v548
      %v550 = vpop.f32.mrb[0].mxu0
      %551 = vmatprep.mubr.bf16.mxu0 %v362
      %552 = vmatmul.mubr.bf16.gmra.mrb[0].mxu0 %v361
      %v553 = vpop.f32.mrb[0].mxu0
      %v554 = vadd.f32 %v301, %v553
      %v555 = vpop.f32.mrb[0].mxu0
      %v556 = vpop.f32.mrb[0].mxu0
      %v557 = vadd.f32 %v301, %v556
      %v558 = vpop.f32.mrb[0].mxu0
      %559 = vmatprep.mubr.bf16.mxu0 %v364
      %560 = vmatmul.mubr.bf16.gmra.mrb[0].mxu0 %v363
      %v561 = vpop.f32.mrb[0].mxu0
      %v562 = vadd.f32 %v301, %v561
      %v563 = vpop.f32.mrb[0].mxu0
      %v564 = vpop.f32.mrb[0].mxu0
      %v565 = vadd.f32 %v301, %v564
      %v566 = vpop.f32.mrb[0].mxu0
      %567 = vmatprep.mubr.bf16.mxu0 %v366
      %568 = vmatmul.mubr.bf16.gmra.mrb[0].mxu0 %v365
      %v569 = vpop.f32.mrb[0].mxu0
      %v570 = vadd.f32 %v301, %v569
      %v571 = vpop.f32.mrb[0].mxu0
      %v572 = vpop.f32.mrb[0].mxu0
      %v573 = vadd.f32 %v301, %v572
      %v574 = vpop.f32.mrb[0].mxu0
      %575 = vdwg.mxu0
      %v576 = vmul.f32 %v514, 0.1
      %v577 = vmul.f32 %v517, 0.1
      %v578 = vmul.f32 %v522, 0.1
      %v579 = vmul.f32 %v525, 0.1
      %v580 = vmul.f32 %v530, 0.1
      %v581 = vmul.f32 %v533, 0.1
      %v582 = vmul.f32 %v538, 0.1
      %v583 = vmul.f32 %v541, 0.1
      %v584 = vmul.f32 %v546, 0.1
      %v585 = vmul.f32 %v549, 0.1
      %v586 = vmul.f32 %v554, 0.1
      %v587 = vmul.f32 %v557, 0.1
      %v588 = vmul.f32 %v562, 0.1
      %v589 = vmul.f32 %v565, 0.1
      %v590 = vmul.f32 %v570, 0.1
      %v591 = vmul.f32 %v573, 0.1
      %v592 = vmax.f32 %v514, %v576
      %v593 = vmax.f32 %v517, %v577
      %v594 = vmax.f32 %v522, %v578
      %v595 = vmax.f32 %v525, %v579
      %v596 = vmax.f32 %v530, %v580
      %v597 = vmax.f32 %v533, %v581
      %v598 = vmax.f32 %v538, %v582
      %v599 = vmax.f32 %v541, %v583
      %v600 = vmax.f32 %v546, %v584
      %v601 = vmax.f32 %v549, %v585
      %v602 = vmax.f32 %v554, %v586
      %v603 = vmax.f32 %v557, %v587
      %v604 = vmax.f32 %v562, %v588
      %v605 = vmax.f32 %v565, %v589
      %v606 = vmax.f32 %v570, %v590
      %v607 = vmax.f32 %v573, %v591
      %608 = vst [vmem:[%s245] sm:$0xff] %v592
      %609 = vst [vmem:[%s245 + $0x8] sm:$0xff] %v593
      %610 = vst [vmem:[%s245 + $0x10] sm:$0xff] %v594
      %611 = vst [vmem:[%s245 + $0x18] sm:$0xff] %v595
      %612 = vst [vmem:[%s245 + $0x20] sm:$0xff] %v596
      %613 = vst [vmem:[%s245 + $0x28] sm:$0xff] %v597
      %614 = vst [vmem:[%s245 + $0x30] sm:$0xff] %v598
      %615 = vst [vmem:[%s245 + $0x38] sm:$0xff] %v599
      %616 = vst [vmem:[%s245 + $0x40] sm:$0xff] %v600
      %617 = vst [vmem:[%s245 + $0x48] sm:$0xff] %v601
      %618 = vst [vmem:[%s245 + $0x50] sm:$0xff] %v602
      %619 = vst [vmem:[%s245 + $0x58] sm:$0xff] %v603
      %620 = vst [vmem:[%s245 + $0x60] sm:$0xff] %v604
      %621 = vst [vmem:[%s245 + $0x68] sm:$0xff] %v605
      %622 = vst [vmem:[%s245 + $0x70] sm:$0xff] %v606
      %623 = vst [vmem:[%s245 + $0x78] sm:$0xff] %v607
      %s624 = smul.u32 16, %s19
      %p625 = scmp.lt.s32.totalorder %s18, 3
      %s626 = scalar_select %p625, %s18, 3
      %p627 = scmp.lt.s32.totalorder %s624, 15
      %s628 = scalar_select %p627, %s624, 15
      %s629 = smul.addr %s626, 16
      %s630 = sadd.s32 %s628, %s629
      %s631 = smul.addr %s630, 8
      %s632 = scalar_lea.vmem %s3, %s631
      // Predicated region
      $region33: #{transition_pruner_forward.24} parent=31 // pred_check
        %p633 = pneg %p126
      $region34: #{transition_pruner_forward.24} parent=31 // pred_check_branch
        %635 = sbr.rel (%p633) target = $region36
      $region35: #{transition_pruner_forward.24} parent=31 // pred_region
        %s636 = smul.u32 16, %s19
      $region36: #{transition_pruner_forward.24} parent=31 // pred_fallthru
        _
    $region32: #{transition_pruner_forward.24} parent=5 // pred_fallthru
      _
    %p637 = scmp.le.s32.totalorder 2, %s9
    // Predicated region
    $region37: #{transition_pruner_forward.24} parent=5 // pred_check
      %p638 = pneg %p637
    $region38: #{transition_pruner_forward.24} parent=5 // pred_check_branch
      %640 = sbr.rel (%p638) target = $region40
    $region39: #{transition_pruner_forward.24} parent=5 // pred_region
      %s641 = ssub.s32 %s9, 2
      // Predicated region
      $region41: #{transition_pruner_forward.24} parent=39 // pred_check
        %p642 = pneg %p132
      $region42: #{transition_pruner_forward.24} parent=39 // pred_check_branch
        %644 = sbr.rel (%p642) target = $region44
      $region43: #{transition_pruner_forward.24} parent=39 // pred_region
        %s645 = smul.u32 16, %s21
        %p646 = scmp.lt.s32.totalorder %s20, 3
        %s647 = scalar_select %p646, %s20, 3
        %p648 = scmp.lt.s32.totalorder %s645, 15
        %s649 = scalar_select %p648, %s645, 15
        %s650 = smul.addr %s647, 16
        %s651 = sadd.s32 %s649, %s650
        %s652 = smul.addr %s651, 8
        %s653 = scalar_lea.vmem %s3, %s652
      $region44: #{transition_pruner_forward.24} parent=39 // pred_fallthru
        _
    $region40: #{transition_pruner_forward.24} parent=5 // pred_fallthru
      _
  $region6: #{transition_pruner_forward.24} parent=0 // loop_footer
    %s13 = sadd.s32 1, %s9
  $region7: #{transition_pruner_forward.24} parent=0 // loop_footer_branch
    %8 = sbr.rel target = $region3
  $region8: #{transition_pruner_forward.24} parent=0 // loop_exit
    _

// kernel: transition_pruner_forward.25
$region0: #{transition_pruner_forward.25}
  #allocation0 [shape = 'u32[]', space=smem, size = 0x4, offset = 0x4, fixed_abs, tag = 'smem constant byte address 0x4 - core index']
  #allocation1 [shape = 'u32[144,128]{1,0:T(1,128)}', space=vmem, size = 0x12000, scoped, tag = 'internal scratch']
  %s0 = inlined_call_operand.vmem [shape: bf16[1,512,384], index: 0, kind: input, shape index: {}]
  %s1 = inlined_call_operand.vmem [shape: bf16[1,384,128], index: 1, kind: input, shape index: {}]
  %s2 = inlined_call_operand.vmem [shape: f32[1,1,128], index: 2, kind: input, shape index: {}]
  %s3 = inlined_call_operand.vmem [shape: f32[1,512,128], index: 3, kind: output, shape index: {}]
  %s4 = sld [smem:[#allocation0]]
  $region22: #{transition_pruner_forward.25} parent=0
    _
  %s6 = ssub.s32 1, %s4
  %s7 = scalar_select 0, %s6, %s4
  // Predicated region
  $region2: #{transition_pruner_forward.25} parent=0 // pred_check
    _
  $region3: #{transition_pruner_forward.25} parent=0 // pred_check_branch
    %9 = sbr.rel (0) target = $region5
  $region4: #{transition_pruner_forward.25} parent=0 // pred_region
    _
  $region5: #{transition_pruner_forward.25} parent=0 // pred_fallthru
    _
  // Predicated region
  $region6: #{transition_pruner_forward.25} parent=0 // pred_check
    _
  $region7: #{transition_pruner_forward.25} parent=0 // pred_check_branch
    %11 = sbr.rel (0) target = $region9
  $region8: #{transition_pruner_forward.25} parent=0 // pred_region
    _
  $region9: #{transition_pruner_forward.25} parent=0 // pred_fallthru
    _
  // Predicated region
  $region10: #{transition_pruner_forward.25} parent=0 // pred_check
    _
  $region11: #{transition_pruner_forward.25} parent=0 // pred_check_branch
    %13 = sbr.rel (0) target = $region13
  $region12: #{transition_pruner_forward.25} parent=0 // pred_region
    _
  $region13: #{transition_pruner_forward.25} parent=0 // pred_fallthru
    _
  %v15 = vld [vmem:[%s0] sm:$0xff]
  %v16 = vld [vmem:[%s0 + $0x8] sm:$0xf]
  %v17 = vld [vmem:[%s0 + $0xc] sm:$0xff]
  %v18 = vld [vmem:[%s0 + $0x14] sm:$0xf]
  %v19 = vld [vmem:[%s0 + $0x18] sm:$0xff]
  %v20 = vld [vmem:[%s0 + $0x20] sm:$0xf]
  %v21 = vld [vmem:[%s0 + $0x24] sm:$0xff]
  %v22 = vld [vmem:[%s0 + $0x2c] sm:$0xf]
  %v23 = vld [vmem:[%s0 + $0x30] sm:$0xff]
  %v24 = vld [vmem:[%s0 + $0x38] sm:$0xf]
  %v25 = vld [vmem:[%s0 + $0x3c] sm:$0xff]
  %v26 = vld [vmem:[%s0 + $0x44] sm:$0xf]
  %v27 = vld [vmem:[%s0 + $0x48] sm:$0xff]
  %v28 = vld [vmem:[%s0 + $0x50] sm:$0xf]
  %v29 = vld [vmem:[%s0 + $0x54] sm:$0xff]
  %v30 = vld [vmem:[%s0 + $0x5c] sm:$0xf]
  %v31 = vld [vmem:[%s0 + $0x60] sm:$0xff]
  %v32 = vld [vmem:[%s0 + $0x68] sm:$0xf]
  %v33 = vld [vmem:[%s0 + $0x6c] sm:$0xff]
  %v34 = vld [vmem:[%s0 + $0x74] sm:$0xf]
  %v35 = vld [vmem:[%s0 + $0x78] sm:$0xff]
  %v36 = vld [vmem:[%s0 + $0x80] sm:$0xf]
  %v37 = vld [vmem:[%s0 + $0x84] sm:$0xff]
  %v38 = vld [vmem:[%s0 + $0x8c] sm:$0xf]
  %v39 = vld [vmem:[%s0 + $0x90] sm:$0xff]
  %v40 = vld [vmem:[%s0 + $0x98] sm:$0xf]
  %v41 = vld [vmem:[%s0 + $0x9c] sm:$0xff]
  %v42 = vld [vmem:[%s0 + $0xa4] sm:$0xf]
  %v43 = vld [vmem:[%s0 + $0xa8] sm:$0xff]
  %v44 = vld [vmem:[%s0 + $0xb0] sm:$0xf]
  %v45 = vld [vmem:[%s0 + $0xb4] sm:$0xff]
  %v46 = vld [vmem:[%s0 + $0xbc] sm:$0xf]
  %v47 = vld [vmem:[%s0 + $0xc0] sm:$0xff]
  %v48 = vld [vmem:[%s0 + $0xc8] sm:$0xf]
  %v49 = vld [vmem:[%s0 + $0xcc] sm:$0xff]
  %v50 = vld [vmem:[%s0 + $0xd4] sm:$0xf]
  %v51 = vld [vmem:[%s0 + $0xd8] sm:$0xff]
  %v52 = vld [vmem:[%s0 + $0xe0] sm:$0xf]
  %v53 = vld [vmem:[%s0 + $0xe4] sm:$0xff]
  %v54 = vld [vmem:[%s0 + $0xec] sm:$0xf]
  %v55 = vld [vmem:[%s0 + $0xf0] sm:$0xff]
  %v56 = vld [vmem:[%s0 + $0xf8] sm:$0xf]
  %v57 = vld [vmem:[%s0 + $0xfc] sm:$0xff]
  %v58 = vld [vmem:[%s0 + $0x104] sm:$0xf]
  %v59 = vld [vmem:[%s0 + $0x108] sm:$0xff]
  %v60 = vld [vmem:[%s0 + $0x110] sm:$0xf]
  %v61 = vld [vmem:[%s0 + $0x114] sm:$0xff]
  %v62 = vld [vmem:[%s0 + $0x11c] sm:$0xf]
  %v63 = vld [vmem:[%s0 + $0x120] sm:$0xff]
  %v64 = vld [vmem:[%s0 + $0x128] sm:$0xf]
  %v65 = vld [vmem:[%s0 + $0x12c] sm:$0xff]
  %v66 = vld [vmem:[%s0 + $0x134] sm:$0xf]
  %v67 = vld [vmem:[%s0 + $0x138] sm:$0xff]
  %v68 = vld [vmem:[%s0 + $0x140] sm:$0xf]
  %v69 = vld [vmem:[%s0 + $0x144] sm:$0xff]
  %v70 = vld [vmem:[%s0 + $0x14c] sm:$0xf]
  %v71 = vld [vmem:[%s0 + $0x150] sm:$0xff]
  %v72 = vld [vmem:[%s0 + $0x158] sm:$0xf]
  %v73 = vld [vmem:[%s0 + $0x15c] sm:$0xff]
  %v74 = vld [vmem:[%s0 + $0x164] sm:$0xf]
  %v75 = vld [vmem:[%s0 + $0x168] sm:$0xff]
  %v76 = vld [vmem:[%s0 + $0x170] sm:$0xf]
  %v77 = vld [vmem:[%s0 + $0x174] sm:$0xff]
  %v78 = vld [vmem:[%s0 + $0x17c] sm:$0xf]
  %v79 = vld [vmem:[%s0 + $0x180] sm:$0xff]
  %v80 = vld [vmem:[%s0 + $0x188] sm:$0xf]
  %v81 = vld [vmem:[%s0 + $0x18c] sm:$0xff]
  %v82 = vld [vmem:[%s0 + $0x194] sm:$0xf]
  %v83 = vld [vmem:[%s0 + $0x198] sm:$0xff]
  %v84 = vld [vmem:[%s0 + $0x1a0] sm:$0xf]
  %v85 = vld [vmem:[%s0 + $0x1a4] sm:$0xff]
  %v86 = vld [vmem:[%s0 + $0x1ac] sm:$0xf]
  %v87 = vld [vmem:[%s0 + $0x1b0] sm:$0xff]
  %v88 = vld [vmem:[%s0 + $0x1b8] sm:$0xf]
  %v89 = vld [vmem:[%s0 + $0x1bc] sm:$0xff]
  %v90 = vld [vmem:[%s0 + $0x1c4] sm:$0xf]
  %v91 = vld [vmem:[%s0 + $0x1c8] sm:$0xff]
  %v92 = vld [vmem:[%s0 + $0x1d0] sm:$0xf]
  %v93 = vld [vmem:[%s0 + $0x1d4] sm:$0xff]
  %v94 = vld [vmem:[%s0 + $0x1dc] sm:$0xf]
  %v95 = vld [vmem:[%s0 + $0x1e0] sm:$0xff]
  %v96 = vld [vmem:[%s0 + $0x1e8] sm:$0xf]
  %v97 = vld [vmem:[%s0 + $0x1ec] sm:$0xff]
  %v98 = vld [vmem:[%s0 + $0x1f4] sm:$0xf]
  %v99 = vld [vmem:[%s0 + $0x1f8] sm:$0xff]
  %v100 = vld [vmem:[%s0 + $0x200] sm:$0xf]
  %v101 = vld [vmem:[%s0 + $0x204] sm:$0xff]
  %v102 = vld [vmem:[%s0 + $0x20c] sm:$0xf]
  %v103 = vld [vmem:[%s0 + $0x210] sm:$0xff]
  %v104 = vld [vmem:[%s0 + $0x218] sm:$0xf]
  %v105 = vld [vmem:[%s0 + $0x21c] sm:$0xff]
  %v106 = vld [vmem:[%s0 + $0x224] sm:$0xf]
  %v107 = vld [vmem:[%s0 + $0x228] sm:$0xff]
  %v108 = vld [vmem:[%s0 + $0x230] sm:$0xf]
  %v109 = vld [vmem:[%s0 + $0x234] sm:$0xff]
  %v110 = vld [vmem:[%s0 + $0x23c] sm:$0xf]
  %v111 = vld [vmem:[%s0 + $0x240] sm:$0xff]
  %v112 = vld [vmem:[%s0 + $0x248] sm:$0xf]
  %v113 = vld [vmem:[%s0 + $0x24c] sm:$0xff]
  %v114 = vld [vmem:[%s0 + $0x254] sm:$0xf]
  %v115 = vld [vmem:[%s0 + $0x258] sm:$0xff]
  %v116 = vld [vmem:[%s0 + $0x260] sm:$0xf]
  %v117 = vld [vmem:[%s0 + $0x264] sm:$0xff]
  %v118 = vld [vmem:[%s0 + $0x26c] sm:$0xf]
  %v119 = vld [vmem:[%s0 + $0x270] sm:$0xff]
  %v120 = vld [vmem:[%s0 + $0x278] sm:$0xf]
  %v121 = vld [vmem:[%s0 + $0x27c] sm:$0xff]
  %v122 = vld [vmem:[%s0 + $0x284] sm:$0xf]
  %v123 = vld [vmem:[%s0 + $0x288] sm:$0xff]
  %v124 = vld [vmem:[%s0 + $0x290] sm:$0xf]
  %v125 = vld [vmem:[%s0 + $0x294] sm:$0xff]
  %v126 = vld [vmem:[%s0 + $0x29c] sm:$0xf]
  %v127 = vld [vmem:[%s0 + $0x2a0] sm:$0xff]
  %v128 = vld [vmem:[%s0 + $0x2a8] sm:$0xf]
  %v129 = vld [vmem:[%s0 + $0x2ac] sm:$0xff]
  %v130 = vld [vmem:[%s0 + $0x2b4] sm:$0xf]
  %v131 = vld [vmem:[%s0 + $0x2b8] sm:$0xff]
  %v132 = vld [vmem:[%s0 + $0x2c0] sm:$0xf]
  %v133 = vld [vmem:[%s0 + $0x2c4] sm:$0xff]
  %v134 = vld [vmem:[%s0 + $0x2cc] sm:$0xf]
  %v135 = vld [vmem:[%s0 + $0x2d0] sm:$0xff]
  %v136 = vld [vmem:[%s0 + $0x2d8] sm:$0xf]
  %v137 = vld [vmem:[%s0 + $0x2dc] sm:$0xff]
  %v138 = vld [vmem:[%s0 + $0x2e4] sm:$0xf]
  %v139 = vld [vmem:[%s0 + $0x2e8] sm:$0xff]
  %v140 = vld [vmem:[%s0 + $0x2f0] sm:$0xf]
  %v141 = vld [vmem:[%s0 + $0x2f4] sm:$0xff]
  %v142 = vld [vmem:[%s0 + $0x2fc] sm:$0xf]
  %v143 = vld [vmem:[%s1] sm:$0xf]
  %v144 = vld [vmem:[%s1 + $0x4] sm:$0xf]
  %v145 = vld [vmem:[%s1 + $0x8] sm:$0xf]
  %v146 = vld [vmem:[%s1 + $0xc] sm:$0xf]
  %v147 = vld [vmem:[%s1 + $0x10] sm:$0xf]
  %v148 = vld [vmem:[%s1 + $0x14] sm:$0xf]
  %v149 = vld [vmem:[%s1 + $0x18] sm:$0xf]
  %v150 = vld [vmem:[%s1 + $0x1c] sm:$0xf]
  %v151 = vld [vmem:[%s1 + $0x20] sm:$0xf]
  %v152 = vld [vmem:[%s1 + $0x24] sm:$0xf]
  %v153 = vld [vmem:[%s1 + $0x28] sm:$0xf]
  %v154 = vld [vmem:[%s1 + $0x2c] sm:$0xf]
  %v155 = vld [vmem:[%s1 + $0x30] sm:$0xf]
  %v156 = vld [vmem:[%s1 + $0x34] sm:$0xf]
  %v157 = vld [vmem:[%s1 + $0x38] sm:$0xf]
  %v158 = vld [vmem:[%s1 + $0x3c] sm:$0xf]
  %v159 = vld [vmem:[%s1 + $0x40] sm:$0xf]
  %v160 = vld [vmem:[%s1 + $0x44] sm:$0xf]
  %v161 = vld [vmem:[%s1 + $0x48] sm:$0xf]
  %v162 = vld [vmem:[%s1 + $0x4c] sm:$0xf]
  %v163 = vld [vmem:[%s1 + $0x50] sm:$0xf]
  %v164 = vld [vmem:[%s1 + $0x54] sm:$0xf]
  %v165 = vld [vmem:[%s1 + $0x58] sm:$0xf]
  %v166 = vld [vmem:[%s1 + $0x5c] sm:$0xf]
  %v167 = vld [vmem:[%s1 + $0x60] sm:$0xf]
  %v168 = vld [vmem:[%s1 + $0x64] sm:$0xf]
  %v169 = vld [vmem:[%s1 + $0x68] sm:$0xf]
  %v170 = vld [vmem:[%s1 + $0x6c] sm:$0xf]
  %v171 = vld [vmem:[%s1 + $0x70] sm:$0xf]
  %v172 = vld [vmem:[%s1 + $0x74] sm:$0xf]
  %v173 = vld [vmem:[%s1 + $0x78] sm:$0xf]
  %v174 = vld [vmem:[%s1 + $0x7c] sm:$0xf]
  %v175 = vld [vmem:[%s1 + $0x80] sm:$0xf]
  %v176 = vld [vmem:[%s1 + $0x84] sm:$0xf]
  %v177 = vld [vmem:[%s1 + $0x88] sm:$0xf]
  %v178 = vld [vmem:[%s1 + $0x8c] sm:$0xf]
  %v179 = vld [vmem:[%s1 + $0x90] sm:$0xf]
  %v180 = vld [vmem:[%s1 + $0x94] sm:$0xf]
  %v181 = vld [vmem:[%s1 + $0x98] sm:$0xf]
  %v182 = vld [vmem:[%s1 + $0x9c] sm:$0xf]
  %v183 = vld [vmem:[%s1 + $0xa0] sm:$0xf]
  %v184 = vld [vmem:[%s1 + $0xa4] sm:$0xf]
  %v185 = vld [vmem:[%s1 + $0xa8] sm:$0xf]
  %v186 = vld [vmem:[%s1 + $0xac] sm:$0xf]
  %v187 = vld [vmem:[%s1 + $0xb0] sm:$0xf]
  %v188 = vld [vmem:[%s1 + $0xb4] sm:$0xf]
  %v189 = vld [vmem:[%s1 + $0xb8] sm:$0xf]
  %v190 = vld [vmem:[%s1 + $0xbc] sm:$0xf]
  %v191 = vld [vmem:[%s2] sm:$0x1]
  %v193 = vlaneseq
  %v194 = vshrl.u32 %v193, 7
  %v195 = vsub.s32 0, %v194
  %v196 = vrot.slane %v191, %v195
  %v326 = vunpack.c.l.b16 %v15
  %v327 = vunpack.c.h.b16 %v15
  %v328 = vunpack.c.l.b16 %v16
  %v329 = vunpack.c.l.b16 %v17
  %v330 = vunpack.c.h.b16 %v17
  %v331 = vunpack.c.l.b16 %v18
  %v332 = vunpack.c.l.b16 %v19
  %v333 = vunpack.c.h.b16 %v19
  %v334 = vunpack.c.l.b16 %v20
  %v335 = vunpack.c.l.b16 %v21
  %v336 = vunpack.c.h.b16 %v21
  %v337 = vunpack.c.l.b16 %v22
  %v338 = vunpack.c.l.b16 %v23
  %v339 = vunpack.c.h.b16 %v23
  %v340 = vunpack.c.l.b16 %v24
  %v341 = vunpack.c.l.b16 %v25
  %v342 = vunpack.c.h.b16 %v25
  %v343 = vunpack.c.l.b16 %v26
  %v344 = vunpack.c.l.b16 %v27
  %v345 = vunpack.c.h.b16 %v27
  %v346 = vunpack.c.l.b16 %v28
  %v347 = vunpack.c.l.b16 %v29
  %v348 = vunpack.c.h.b16 %v29
  %v349 = vunpack.c.l.b16 %v30
  %v350 = vunpack.c.l.b16 %v31
  %v351 = vunpack.c.h.b16 %v31
  %v352 = vunpack.c.l.b16 %v32
  %v353 = vunpack.c.l.b16 %v33
  %v354 = vunpack.c.h.b16 %v33
  %v355 = vunpack.c.l.b16 %v34
  %v356 = vunpack.c.l.b16 %v35
  %v357 = vunpack.c.h.b16 %v35
  %v358 = vunpack.c.l.b16 %v36
  %v359 = vunpack.c.l.b16 %v37
  %v360 = vunpack.c.h.b16 %v37
  %v361 = vunpack.c.l.b16 %v38
  %v362 = vunpack.c.l.b16 %v39
  %v363 = vunpack.c.h.b16 %v39
  %v364 = vunpack.c.l.b16 %v40
  %v365 = vunpack.c.l.b16 %v41
  %v366 = vunpack.c.h.b16 %v41
  %v367 = vunpack.c.l.b16 %v42
  %v368 = vunpack.c.l.b16 %v43
  %v369 = vunpack.c.h.b16 %v43
  %v370 = vunpack.c.l.b16 %v44
  %v371 = vunpack.c.l.b16 %v45
  %v372 = vunpack.c.h.b16 %v45
  %v373 = vunpack.c.l.b16 %v46
  %v374 = vunpack.c.l.b16 %v47
  %v375 = vunpack.c.h.b16 %v47
  %v376 = vunpack.c.l.b16 %v48
  %v377 = vunpack.c.l.b16 %v49
  %v378 = vunpack.c.h.b16 %v49
  %v379 = vunpack.c.l.b16 %v50
  %v380 = vunpack.c.l.b16 %v51
  %v381 = vunpack.c.h.b16 %v51
  %v382 = vunpack.c.l.b16 %v52
  %v383 = vunpack.c.l.b16 %v53
  %v384 = vunpack.c.h.b16 %v53
  %v385 = vunpack.c.l.b16 %v54
  %v386 = vunpack.c.l.b16 %v55
  %v387 = vunpack.c.h.b16 %v55
  %v388 = vunpack.c.l.b16 %v56
  %v389 = vunpack.c.l.b16 %v57
  %v390 = vunpack.c.h.b16 %v57
  %v391 = vunpack.c.l.b16 %v58
  %v392 = vunpack.c.l.b16 %v59
  %v393 = vunpack.c.h.b16 %v59
  %v394 = vunpack.c.l.b16 %v60
  %v395 = vunpack.c.l.b16 %v61
  %v396 = vunpack.c.h.b16 %v61
  %v397 = vunpack.c.l.b16 %v62
  %v398 = vunpack.c.l.b16 %v63
  %v399 = vunpack.c.h.b16 %v63
  %v400 = vunpack.c.l.b16 %v64
  %v401 = vunpack.c.l.b16 %v65
  %v402 = vunpack.c.h.b16 %v65
  %v403 = vunpack.c.l.b16 %v66
  %v404 = vunpack.c.l.b16 %v67
  %v405 = vunpack.c.h.b16 %v67
  %v406 = vunpack.c.l.b16 %v68
  %v407 = vunpack.c.l.b16 %v69
  %v408 = vunpack.c.h.b16 %v69
  %v409 = vunpack.c.l.b16 %v70
  %v410 = vunpack.c.l.b16 %v71
  %v411 = vunpack.c.h.b16 %v71
  %v412 = vunpack.c.l.b16 %v72
  %v413 = vunpack.c.l.b16 %v73
  %v414 = vunpack.c.h.b16 %v73
  %v415 = vunpack.c.l.b16 %v74
  %v416 = vunpack.c.l.b16 %v75
  %v417 = vunpack.c.h.b16 %v75
  %v418 = vunpack.c.l.b16 %v76
  %v419 = vunpack.c.l.b16 %v77
  %v420 = vunpack.c.h.b16 %v77
  %v421 = vunpack.c.l.b16 %v78
  %v422 = vunpack.c.l.b16 %v79
  %v423 = vunpack.c.h.b16 %v79
  %v424 = vunpack.c.l.b16 %v80
  %v425 = vunpack.c.l.b16 %v81
  %v426 = vunpack.c.h.b16 %v81
  %v427 = vunpack.c.l.b16 %v82
  %v428 = vunpack.c.l.b16 %v83
  %v429 = vunpack.c.h.b16 %v83
  %v430 = vunpack.c.l.b16 %v84
  %v431 = vunpack.c.l.b16 %v85
  %v432 = vunpack.c.h.b16 %v85
  %v433 = vunpack.c.l.b16 %v86
  %v434 = vunpack.c.l.b16 %v87
  %v435 = vunpack.c.h.b16 %v87
  %v436 = vunpack.c.l.b16 %v88
  %v437 = vunpack.c.l.b16 %v89
  %v438 = vunpack.c.h.b16 %v89
  %v439 = vunpack.c.l.b16 %v90
  %v440 = vunpack.c.l.b16 %v91
  %v441 = vunpack.c.h.b16 %v91
  %v442 = vunpack.c.l.b16 %v92
  %v443 = vunpack.c.l.b16 %v93
  %v444 = vunpack.c.h.b16 %v93
  %v445 = vunpack.c.l.b16 %v94
  %v446 = vunpack.c.l.b16 %v95
  %v447 = vunpack.c.h.b16 %v95
  %v448 = vunpack.c.l.b16 %v96
  %v449 = vunpack.c.l.b16 %v97
  %v450 = vunpack.c.h.b16 %v97
  %v451 = vunpack.c.l.b16 %v98
  %v452 = vunpack.c.l.b16 %v99
  %v453 = vunpack.c.h.b16 %v99
  %v454 = vunpack.c.l.b16 %v100
  %v455 = vunpack.c.l.b16 %v101
  %v456 = vunpack.c.h.b16 %v101
  %v457 = vunpack.c.l.b16 %v102
  %v458 = vunpack.c.l.b16 %v103
  %v459 = vunpack.c.h.b16 %v103
  %v460 = vunpack.c.l.b16 %v104
  %v461 = vunpack.c.l.b16 %v105
  %v462 = vunpack.c.h.b16 %v105
  %v463 = vunpack.c.l.b16 %v106
  %v464 = vunpack.c.l.b16 %v107
  %v465 = vunpack.c.h.b16 %v107
  %v466 = vunpack.c.l.b16 %v108
  %v467 = vunpack.c.l.b16 %v109
  %v468 = vunpack.c.h.b16 %v109
  %v469 = vunpack.c.l.b16 %v110
  %v470 = vunpack.c.l.b16 %v111
  %v471 = vunpack.c.h.b16 %v111
  %v472 = vunpack.c.l.b16 %v112
  %v473 = vunpack.c.l.b16 %v113
  %v474 = vunpack.c.h.b16 %v113
  %v475 = vunpack.c.l.b16 %v114
  %v476 = vunpack.c.l.b16 %v115
  %v477 = vunpack.c.h.b16 %v115
  %v478 = vunpack.c.l.b16 %v116
  %v479 = vunpack.c.l.b16 %v117
  %v480 = vunpack.c.h.b16 %v117
  %v481 = vunpack.c.l.b16 %v118
  %v482 = vunpack.c.l.b16 %v119
  %v483 = vunpack.c.h.b16 %v119
  %v484 = vunpack.c.l.b16 %v120
  %v485 = vunpack.c.l.b16 %v121
  %v486 = vunpack.c.h.b16 %v121
  %v487 = vunpack.c.l.b16 %v122
  %v488 = vunpack.c.l.b16 %v123
  %v489 = vunpack.c.h.b16 %v123
  %v490 = vunpack.c.l.b16 %v124
  %v491 = vunpack.c.l.b16 %v125
  %v492 = vunpack.c.h.b16 %v125
  %v493 = vunpack.c.l.b16 %v126
  %v494 = vunpack.c.l.b16 %v127
  %v495 = vunpack.c.h.b16 %v127
  %v496 = vunpack.c.l.b16 %v128
  %v497 = vunpack.c.l.b16 %v129
  %v498 = vunpack.c.h.b16 %v129
  %v499 = vunpack.c.l.b16 %v130
  %v500 = vunpack.c.l.b16 %v131
  %v501 = vunpack.c.h.b16 %v131
  %v502 = vunpack.c.l.b16 %v132
  %v503 = vunpack.c.l.b16 %v133
  %v504 = vunpack.c.h.b16 %v133
  %v505 = vunpack.c.l.b16 %v134
  %v506 = vunpack.c.l.b16 %v135
  %v507 = vunpack.c.h.b16 %v135
  %v508 = vunpack.c.l.b16 %v136
  %v509 = vunpack.c.l.b16 %v137
  %v510 = vunpack.c.h.b16 %v137
  %v511 = vunpack.c.l.b16 %v138
  %v512 = vunpack.c.l.b16 %v139
  %v513 = vunpack.c.h.b16 %v139
  %v514 = vunpack.c.l.b16 %v140
  %v515 = vunpack.c.l.b16 %v141
  %v516 = vunpack.c.h.b16 %v141
  %v517 = vunpack.c.l.b16 %v142
  %v518 = vpack.c.b16 %v329, %v326
  %v519 = vpack.c.b16 %v330, %v327
  %v520 = vpack.c.b16 %v331, %v328
  %v521 = vpack.c.b16 %v335, %v332
  %v522 = vpack.c.b16 %v336, %v333
  %v523 = vpack.c.b16 %v337, %v334
  %v524 = vpack.c.b16 %v341, %v338
  %v525 = vpack.c.b16 %v342, %v339
  %v526 = vpack.c.b16 %v343, %v340
  %v527 = vpack.c.b16 %v347, %v344
  %v528 = vpack.c.b16 %v348, %v345
  %v529 = vpack.c.b16 %v349, %v346
  %v530 = vpack.c.b16 %v353, %v350
  %v531 = vpack.c.b16 %v354, %v351
  %v532 = vpack.c.b16 %v355, %v352
  %v533 = vpack.c.b16 %v359, %v356
  %v534 = vpack.c.b16 %v360, %v357
  %v535 = vpack.c.b16 %v361, %v358
  %v536 = vpack.c.b16 %v365, %v362
  %v537 = vpack.c.b16 %v366, %v363
  %v538 = vpack.c.b16 %v367, %v364
  %v539 = vpack.c.b16 %v371, %v368
  %v540 = vpack.c.b16 %v372, %v369
  %v541 = vpack.c.b16 %v373, %v370
  %v542 = vpack.c.b16 %v377, %v374
  %v543 = vpack.c.b16 %v378, %v375
  %v544 = vpack.c.b16 %v379, %v376
  %v545 = vpack.c.b16 %v383, %v380
  %v546 = vpack.c.b16 %v384, %v381
  %v547 = vpack.c.b16 %v385, %v382
  %v548 = vpack.c.b16 %v389, %v386
  %v549 = vpack.c.b16 %v390, %v387
  %v550 = vpack.c.b16 %v391, %v388
  %v551 = vpack.c.b16 %v395, %v392
  %v552 = vpack.c.b16 %v396, %v393
  %v553 = vpack.c.b16 %v397, %v394
  %v554 = vpack.c.b16 %v401, %v398
  %v555 = vpack.c.b16 %v402, %v399
  %v556 = vpack.c.b16 %v403, %v400
  %v557 = vpack.c.b16 %v407, %v404
  %v558 = vpack.c.b16 %v408, %v405
  %v559 = vpack.c.b16 %v409, %v406
  %v560 = vpack.c.b16 %v413, %v410
  %v561 = vpack.c.b16 %v414, %v411
  %v562 = vpack.c.b16 %v415, %v412
  %v563 = vpack.c.b16 %v419, %v416
  %v564 = vpack.c.b16 %v420, %v417
  %v565 = vpack.c.b16 %v421, %v418
  %v566 = vpack.c.b16 %v425, %v422
  %v567 = vpack.c.b16 %v426, %v423
  %v568 = vpack.c.b16 %v427, %v424
  %v569 = vpack.c.b16 %v431, %v428
  %v570 = vpack.c.b16 %v432, %v429
  %v571 = vpack.c.b16 %v433, %v430
  %v572 = vpack.c.b16 %v437, %v434
  %v573 = vpack.c.b16 %v438, %v435
  %v574 = vpack.c.b16 %v439, %v436
  %v575 = vpack.c.b16 %v443, %v440
  %v576 = vpack.c.b16 %v444, %v441
  %v577 = vpack.c.b16 %v445, %v442
  %v578 = vpack.c.b16 %v449, %v446
  %v579 = vpack.c.b16 %v450, %v447
  %v580 = vpack.c.b16 %v451, %v448
  %v581 = vpack.c.b16 %v455, %v452
  %v582 = vpack.c.b16 %v456, %v453
  %v583 = vpack.c.b16 %v457, %v454
  %v584 = vpack.c.b16 %v461, %v458
  %v585 = vpack.c.b16 %v462, %v459
  %v586 = vpack.c.b16 %v463, %v460
  %v587 = vpack.c.b16 %v467, %v464
  %v588 = vpack.c.b16 %v468, %v465
  %v589 = vpack.c.b16 %v469, %v466
  %v590 = vpack.c.b16 %v473, %v470
  %v591 = vpack.c.b16 %v474, %v471
  %v592 = vpack.c.b16 %v475, %v472
  %v593 = vpack.c.b16 %v479, %v476
  %v594 = vpack.c.b16 %v480, %v477
  %v595 = vpack.c.b16 %v481, %v478
  %v596 = vpack.c.b16 %v485, %v482
  %v597 = vpack.c.b16 %v486, %v483
  %v598 = vpack.c.b16 %v487, %v484
  %v599 = vpack.c.b16 %v491, %v488
  %v600 = vpack.c.b16 %v492, %v489
  %v601 = vpack.c.b16 %v493, %v490
  %v602 = vpack.c.b16 %v497, %v494
  %v603 = vpack.c.b16 %v498, %v495
  %v604 = vpack.c.b16 %v499, %v496
  %v605 = vpack.c.b16 %v503, %v500
  %v606 = vpack.c.b16 %v504, %v501
  %v607 = vpack.c.b16 %v505, %v502
  %v608 = vpack.c.b16 %v509, %v506
  %v609 = vpack.c.b16 %v510, %v507
  %v610 = vpack.c.b16 %v511, %v508
  %v611 = vpack.c.b16 %v515, %v512
  %v612 = vpack.c.b16 %v516, %v513
  %v613 = vpack.c.b16 %v517, %v514
  %v758 = vunpack.c.l.b16 %v143
  %v759 = vunpack.c.l.b16 %v144
  %v760 = vunpack.c.l.b16 %v145
  %v761 = vunpack.c.l.b16 %v146
  %v762 = vunpack.c.l.b16 %v147
  %v763 = vunpack.c.l.b16 %v148
  %v764 = vunpack.c.l.b16 %v149
  %v765 = vunpack.c.l.b16 %v150
  %v766 = vunpack.c.l.b16 %v151
  %v767 = vunpack.c.l.b16 %v152
  %v768 = vunpack.c.l.b16 %v153
  %v769 = vunpack.c.l.b16 %v154
  %v770 = vunpack.c.l.b16 %v155
  %v771 = vunpack.c.l.b16 %v156
  %v772 = vunpack.c.l.b16 %v157
  %v773 = vunpack.c.l.b16 %v158
  %v774 = vunpack.c.l.b16 %v159
  %v775 = vunpack.c.l.b16 %v160
  %v776 = vunpack.c.l.b16 %v161
  %v777 = vunpack.c.l.b16 %v162
  %v778 = vunpack.c.l.b16 %v163
  %v779 = vunpack.c.l.b16 %v164
  %v780 = vunpack.c.l.b16 %v165
  %v781 = vunpack.c.l.b16 %v166
  %v782 = vunpack.c.l.b16 %v167
  %v783 = vunpack.c.l.b16 %v168
  %v784 = vunpack.c.l.b16 %v169
  %v785 = vunpack.c.l.b16 %v170
  %v786 = vunpack.c.l.b16 %v171
  %v787 = vunpack.c.l.b16 %v172
  %v788 = vunpack.c.l.b16 %v173
  %v789 = vunpack.c.l.b16 %v174
  %v790 = vunpack.c.l.b16 %v175
  %v791 = vunpack.c.l.b16 %v176
  %v792 = vunpack.c.l.b16 %v177
  %v793 = vunpack.c.l.b16 %v178
  %v794 = vunpack.c.l.b16 %v179
  %v795 = vunpack.c.l.b16 %v180
  %v796 = vunpack.c.l.b16 %v181
  %v797 = vunpack.c.l.b16 %v182
  %v798 = vunpack.c.l.b16 %v183
  %v799 = vunpack.c.l.b16 %v184
  %v800 = vunpack.c.l.b16 %v185
  %v801 = vunpack.c.l.b16 %v186
  %v802 = vunpack.c.l.b16 %v187
  %v803 = vunpack.c.l.b16 %v188
  %v804 = vunpack.c.l.b16 %v189
  %v805 = vunpack.c.l.b16 %v190
  %v806 = vpack.c.b16 %v759, %v758
  %v807 = vpack.c.b16 %v761, %v760
  %v808 = vpack.c.b16 %v763, %v762
  %v809 = vpack.c.b16 %v765, %v764
  %v810 = vpack.c.b16 %v767, %v766
  %v811 = vpack.c.b16 %v769, %v768
  %v812 = vpack.c.b16 %v771, %v770
  %v813 = vpack.c.b16 %v773, %v772
  %v814 = vpack.c.b16 %v775, %v774
  %v815 = vpack.c.b16 %v777, %v776
  %v816 = vpack.c.b16 %v779, %v778
  %v817 = vpack.c.b16 %v781, %v780
  %v818 = vpack.c.b16 %v783, %v782
  %v819 = vpack.c.b16 %v785, %v784
  %v820 = vpack.c.b16 %v787, %v786
  %v821 = vpack.c.b16 %v789, %v788
  %v822 = vpack.c.b16 %v791, %v790
  %v823 = vpack.c.b16 %v793, %v792
  %v824 = vpack.c.b16 %v795, %v794
  %v825 = vpack.c.b16 %v797, %v796
  %v826 = vpack.c.b16 %v799, %v798
  %v827 = vpack.c.b16 %v801, %v800
  %v828 = vpack.c.b16 %v803, %v802
  %v829 = vpack.c.b16 %v805, %v804
  %854 = vmatprep.subr.bf16.mxu0 0
  %855 = vmatpush1.bf16.msra.mxu0 %v806
  %856 = vmatprep.subr.bf16.mxu0 0
  %857 = vmatpush1.bf16.msra.mxu0 %v807
  %858 = vmatprep.subr.bf16.mxu0 0
  %859 = vmatpush1.bf16.msra.mxu0 %v808
  %860 = vmatprep.subr.bf16.mxu0 0
  %861 = vmatpush1.bf16.msra.mxu0 %v809
  %862 = vmatprep.subr.bf16.mxu0 0
  %863 = vmatpush1.bf16.msra.mxu0 %v810
  %864 = vmatprep.subr.bf16.mxu0 0
  %865 = vmatpush1.bf16.msra.mxu0 %v811
  %866 = vmatprep.subr.bf16.mxu0 0
  %867 = vmatpush1.bf16.msra.mxu0 %v812
  %868 = vmatprep.subr.bf16.mxu0 0
  %869 = vmatpush1.bf16.msra.mxu0 %v813
  %870 = vmatprep.subr.bf16.mxu0 0
  %871 = vmatpush1.bf16.msra.mxu0 %v814
  %872 = vmatprep.subr.bf16.mxu0 0
  %873 = vmatpush1.bf16.msra.mxu0 %v815
  %874 = vmatprep.subr.bf16.mxu0 0
  %875 = vmatpush1.bf16.msra.mxu0 %v816
  %876 = vmatprep.subr.bf16.mxu0 0
  %877 = vmatpush1.bf16.msra.mxu0 %v817
  %878 = vmatprep.subr.bf16.mxu0 0
  %879 = vmatpush1.bf16.msra.mxu0 %v818
  %880 = vmatprep.subr.bf16.mxu0 0
  %881 = vmatpush1.bf16.msra.mxu0 %v819
  %882 = vmatprep.subr.bf16.mxu0 0
  %883 = vmatpush1.bf16.msra.mxu0 %v820
  %884 = vmatprep.subr.bf16.mxu0 0
  %885 = vmatpush1.bf16.msra.mxu0 %v821
  %886 = vmatprep.mubr.bf16.mxu0 %v519
  %887 = vmatmul.mubr.bf16.gmra.mrb[0].mxu0 %v518
  %v888 = vpop.f32.mrb[0].mxu0
  %v889 = vadd.f32 %v196, %v888
  %v890 = vpop.f32.mrb[0].mxu0
  %v891 = vpop.f32.mrb[0].mxu0
  %v892 = vadd.f32 %v196, %v891
  %v893 = vpop.f32.mrb[0].mxu0
  %894 = vmatprep.mubr.bf16.mxu0 %v522
  %895 = vmatmul.mubr.bf16.gmra.mrb[0].mxu0 %v521
  %v896 = vpop.f32.mrb[0].mxu0
  %v897 = vadd.f32 %v196, %v896
  %v898 = vpop.f32.mrb[0].mxu0
  %v899 = vpop.f32.mrb[0].mxu0
  %v900 = vadd.f32 %v196, %v899
  %v901 = vpop.f32.mrb[0].mxu0
  %902 = vmatprep.mubr.bf16.mxu0 %v525
  %903 = vmatmul.mubr.bf16.gmra.mrb[0].mxu0 %v524
  %v904 = vpop.f32.mrb[0].mxu0
  %v905 = vadd.f32 %v196, %v904
  %v906 = vpop.f32.mrb[0].mxu0
  %v907 = vpop.f32.mrb[0].mxu0
  %v908 = vadd.f32 %v196, %v907
  %v909 = vpop.f32.mrb[0].mxu0
  %910 = vmatprep.mubr.bf16.mxu0 %v528
  %911 = vmatmul.mubr.bf16.gmra.mrb[0].mxu0 %v527
  %v912 = vpop.f32.mrb[0].mxu0
  %v913 = vadd.f32 %v196, %v912
  %v914 = vpop.f32.mrb[0].mxu0
  %v915 = vpop.f32.mrb[0].mxu0
  %v916 = vadd.f32 %v196, %v915
  %v917 = vpop.f32.mrb[0].mxu0
  %918 = vmatprep.mubr.bf16.mxu0 %v531
  %919 = vmatmul.mubr.bf16.gmra.mrb[0].mxu0 %v530
  %v920 = vpop.f32.mrb[0].mxu0
  %v921 = vadd.f32 %v196, %v920
  %v922 = vpop.f32.mrb[0].mxu0
  %v923 = vpop.f32.mrb[0].mxu0
  %v924 = vadd.f32 %v196, %v923
  %v925 = vpop.f32.mrb[0].mxu0
  %926 = vmatprep.mubr.bf16.mxu0 %v534
  %927 = vmatmul.mubr.bf16.gmra.mrb[0].mxu0 %v533
  %v928 = vpop.f32.mrb[0].mxu0
  %v929 = vadd.f32 %v196, %v928
  %v930 = vpop.f32.mrb[0].mxu0
  %v931 = vpop.f32.mrb[0].mxu0
  %v932 = vadd.f32 %v196, %v931
  %v933 = vpop.f32.mrb[0].mxu0
  %934 = vmatprep.mubr.bf16.mxu0 %v537
  %935 = vmatmul.mubr.bf16.gmra.mrb[0].mxu0 %v536
  %v936 = vpop.f32.mrb[0].mxu0
  %v937 = vadd.f32 %v196, %v936
  %v938 = vpop.f32.mrb[0].mxu0
  %v939 = vpop.f32.mrb[0].mxu0
  %v940 = vadd.f32 %v196, %v939
  %v941 = vpop.f32.mrb[0].mxu0
  %942 = vmatprep.mubr.bf16.mxu0 %v540
  %943 = vmatmul.mubr.bf16.gmra.mrb[0].mxu0 %v539
  %v944 = vpop.f32.mrb[0].mxu0
  %v945 = vadd.f32 %v196, %v944
  %v946 = vpop.f32.mrb[0].mxu0
  %v947 = vpop.f32.mrb[0].mxu0
  %v948 = vadd.f32 %v196, %v947
  %v949 = vpop.f32.mrb[0].mxu0
  %950 = vmatprep.mubr.bf16.mxu0 %v543
  %951 = vmatmul.mubr.bf16.gmra.mrb[0].mxu0 %v542
  %v952 = vpop.f32.mrb[0].mxu0
  %v953 = vadd.f32 %v196, %v952
  %v954 = vpop.f32.mrb[0].mxu0
  %v955 = vpop.f32.mrb[0].mxu0
  %v956 = vadd.f32 %v196, %v955
  %v957 = vpop.f32.mrb[0].mxu0
  %958 = vmatprep.mubr.bf16.mxu0 %v546
  %959 = vmatmul.mubr.bf16.gmra.mrb[0].mxu0 %v545
  %v960 = vpop.f32.mrb[0].mxu0
  %v961 = vadd.f32 %v196, %v960
  %v962 = vpop.f32.mrb[0].mxu0
  %v963 = vpop.f32.mrb[0].mxu0
  %v964 = vadd.f32 %v196, %v963
  %v965 = vpop.f32.mrb[0].mxu0
  %966 = vmatprep.mubr.bf16.mxu0 %v549
  %967 = vmatmul.mubr.bf16.gmra.mrb[0].mxu0 %v548
  %v968 = vpop.f32.mrb[0].mxu0
  %v969 = vadd.f32 %v196, %v968
  %v970 = vpop.f32.mrb[0].mxu0
  %v971 = vpop.f32.mrb[0].mxu0
  %v972 = vadd.f32 %v196, %v971
  %v973 = vpop.f32.mrb[0].mxu0
  %974 = vmatprep.mubr.bf16.mxu0 %v552
  %975 = vmatmul.mubr.bf16.gmra.mrb[0].mxu0 %v551
  %v976 = vpop.f32.mrb[0].mxu0
  %v977 = vadd.f32 %v196, %v976
  %v978 = vpop.f32.mrb[0].mxu0
  %v979 = vpop.f32.mrb[0].mxu0
  %v980 = vadd.f32 %v196, %v979
  %v981 = vpop.f32.mrb[0].mxu0
  %982 = vmatprep.mubr.bf16.mxu0 %v555
  %983 = vmatmul.mubr.bf16.gmra.mrb[0].mxu0 %v554
  %v984 = vpop.f32.mrb[0].mxu0
  %v985 = vadd.f32 %v196, %v984
  %v986 = vpop.f32.mrb[0].mxu0
  %v987 = vpop.f32.mrb[0].mxu0
  %v988 = vadd.f32 %v196, %v987
  %v989 = vpop.f32.mrb[0].mxu0
  %990 = vmatprep.mubr.bf16.mxu0 %v558
  %991 = vmatmul.mubr.bf16.gmra.mrb[0].mxu0 %v557
  %v992 = vpop.f32.mrb[0].mxu0
  %v993 = vadd.f32 %v196, %v992
  %v994 = vpop.f32.mrb[0].mxu0
  %v995 = vpop.f32.mrb[0].mxu0
  %v996 = vadd.f32 %v196, %v995
  %v997 = vpop.f32.mrb[0].mxu0
  %998 = vmatprep.mubr.bf16.mxu0 %v561
  %999 = vmatmul.mubr.bf16.gmra.mrb[0].mxu0 %v560
  %v1000 = vpop.f32.mrb[0].mxu0
  %v1001 = vadd.f32 %v196, %v1000
  %v1002 = vpop.f32.mrb[0].mxu0
  %v1003 = vpop.f32.mrb[0].mxu0
  %v1004 = vadd.f32 %v196, %v1003
  %v1005 = vpop.f32.mrb[0].mxu0
  %1006 = vmatprep.mubr.bf16.mxu0 %v564
  %1007 = vmatmul.mubr.bf16.gmra.mrb[0].mxu0 %v563
  %v1008 = vpop.f32.mrb[0].mxu0
  %v1009 = vadd.f32 %v196, %v1008
  %v1010 = vpop.f32.mrb[0].mxu0
  %v1011 = vpop.f32.mrb[0].mxu0
  %v1012 = vadd.f32 %v196, %v1011
  %v1013 = vpop.f32.mrb[0].mxu0
  %1014 = vmatprep.mubr.bf16.mxu0 %v567
  %1015 = vmatmul.mubr.bf16.gmra.mrb[0].mxu0 %v566
  %v1016 = vpop.f32.mrb[0].mxu0
  %v1017 = vadd.f32 %v196, %v1016
  %v1018 = vpop.f32.mrb[0].mxu0
  %v1019 = vpop.f32.mrb[0].mxu0
  %v1020 = vadd.f32 %v196, %v1019
  %v1021 = vpop.f32.mrb[0].mxu0
  %1022 = vmatprep.mubr.bf16.mxu0 %v570
  %1023 = vmatmul.mubr.bf16.gmra.mrb[0].mxu0 %v569
  %v1024 = vpop.f32.mrb[0].mxu0
  %v1025 = vadd.f32 %v196, %v1024
  %v1026 = vpop.f32.mrb[0].mxu0
  %v1027 = vpop.f32.mrb[0].mxu0
  %v1028 = vadd.f32 %v196, %v1027
  %v1029 = vpop.f32.mrb[0].mxu0
  %1030 = vmatprep.mubr.bf16.mxu0 %v573
  %1031 = vmatmul.mubr.bf16.gmra.mrb[0].mxu0 %v572
  %v1032 = vpop.f32.mrb[0].mxu0
  %v1033 = vadd.f32 %v196, %v1032
  %v1034 = vpop.f32.mrb[0].mxu0
  %v1035 = vpop.f32.mrb[0].mxu0
  %v1036 = vadd.f32 %v196, %v1035
  %v1037 = vpop.f32.mrb[0].mxu0
  %1038 = vmatprep.mubr.bf16.mxu0 %v576
  %1039 = vmatmul.mubr.bf16.gmra.mrb[0].mxu0 %v575
  %v1040 = vpop.f32.mrb[0].mxu0
  %v1041 = vadd.f32 %v196, %v1040
  %v1042 = vpop.f32.mrb[0].mxu0
  %v1043 = vpop.f32.mrb[0].mxu0
  %v1044 = vadd.f32 %v196, %v1043
  %v1045 = vpop.f32.mrb[0].mxu0
  %1046 = vmatprep.mubr.bf16.mxu0 %v579
  %1047 = vmatmul.mubr.bf16.gmra.mrb[0].mxu0 %v578
  %v1048 = vpop.f32.mrb[0].mxu0
  %v1049 = vadd.f32 %v196, %v1048
  %v1050 = vpop.f32.mrb[0].mxu0
  %v1051 = vpop.f32.mrb[0].mxu0
  %v1052 = vadd.f32 %v196, %v1051
  %v1053 = vpop.f32.mrb[0].mxu0
  %1054 = vmatprep.mubr.bf16.mxu0 %v582
  %1055 = vmatmul.mubr.bf16.gmra.mrb[0].mxu0 %v581
  %v1056 = vpop.f32.mrb[0].mxu0
  %v1057 = vadd.f32 %v196, %v1056
  %v1058 = vpop.f32.mrb[0].mxu0
  %v1059 = vpop.f32.mrb[0].mxu0
  %v1060 = vadd.f32 %v196, %v1059
  %v1061 = vpop.f32.mrb[0].mxu0
  %1062 = vmatprep.mubr.bf16.mxu0 %v585
  %1063 = vmatmul.mubr.bf16.gmra.mrb[0].mxu0 %v584
  %v1064 = vpop.f32.mrb[0].mxu0
  %v1065 = vadd.f32 %v196, %v1064
  %v1066 = vpop.f32.mrb[0].mxu0
  %v1067 = vpop.f32.mrb[0].mxu0
  %v1068 = vadd.f32 %v196, %v1067
  %v1069 = vpop.f32.mrb[0].mxu0
  %1070 = vmatprep.mubr.bf16.mxu0 %v588
  %1071 = vmatmul.mubr.bf16.gmra.mrb[0].mxu0 %v587
  %v1072 = vpop.f32.mrb[0].mxu0
  %v1073 = vadd.f32 %v196, %v1072
  %v1074 = vpop.f32.mrb[0].mxu0
  %v1075 = vpop.f32.mrb[0].mxu0
  %v1076 = vadd.f32 %v196, %v1075
  %v1077 = vpop.f32.mrb[0].mxu0
  %1078 = vmatprep.mubr.bf16.mxu0 %v591
  %1079 = vmatmul.mubr.bf16.gmra.mrb[0].mxu0 %v590
  %v1080 = vpop.f32.mrb[0].mxu0
  %v1081 = vadd.f32 %v196, %v1080
  %v1082 = vpop.f32.mrb[0].mxu0
  %v1083 = vpop.f32.mrb[0].mxu0
  %v1084 = vadd.f32 %v196, %v1083
  %v1085 = vpop.f32.mrb[0].mxu0
  %1086 = vmatprep.mubr.bf16.mxu0 %v594
  %1087 = vmatmul.mubr.bf16.gmra.mrb[0].mxu0 %v593
  %v1088 = vpop.f32.mrb[0].mxu0
  %v1089 = vadd.f32 %v196, %v1088
  %v1090 = vpop.f32.mrb[0].mxu0
  %v1091 = vpop.f32.mrb[0].mxu0
  %v1092 = vadd.f32 %v196, %v1091
  %v1093 = vpop.f32.mrb[0].mxu0
  %1094 = vmatprep.mubr.bf16.mxu0 %v597
  %1095 = vmatmul.mubr.bf16.gmra.mrb[0].mxu0 %v596
  %v1096 = vpop.f32.mrb[0].mxu0
  %v1097 = vadd.f32 %v196, %v1096
  %v1098 = vpop.f32.mrb[0].mxu0
  %v1099 = vpop.f32.mrb[0].mxu0
  %v1100 = vadd.f32 %v196, %v1099
  %v1101 = vpop.f32.mrb[0].mxu0
  %1102 = vmatprep.mubr.bf16.mxu0 %v600
  %1103 = vmatmul.mubr.bf16.gmra.mrb[0].mxu0 %v599
  %v1104 = vpop.f32.mrb[0].mxu0
  %v1105 = vadd.f32 %v196, %v1104
  %v1106 = vpop.f32.mrb[0].mxu0
  %v1107 = vpop.f32.mrb[0].mxu0
  %v1108 = vadd.f32 %v196, %v1107
  %v1109 = vpop.f32.mrb[0].mxu0
  %1110 = vmatprep.mubr.bf16.mxu0 %v603
  %1111 = vmatmul.mubr.bf16.gmra.mrb[0].mxu0 %v602
  %v1112 = vpop.f32.mrb[0].mxu0
  %v1113 = vadd.f32 %v196, %v1112
  %v1114 = vpop.f32.mrb[0].mxu0
  %v1115 = vpop.f32.mrb[0].mxu0
  %v1116 = vadd.f32 %v196, %v1115
  %v1117 = vpop.f32.mrb[0].mxu0
  %1118 = vmatprep.mubr.bf16.mxu0 %v606
  %1119 = vmatmul.mubr.bf16.gmra.mrb[0].mxu0 %v605
  %v1120 = vpop.f32.mrb[0].mxu0
  %v1121 = vadd.f32 %v196, %v1120
  %v1122 = vpop.f32.mrb[0].mxu0
  %v1123 = vpop.f32.mrb[0].mxu0
  %v1124 = vadd.f32 %v196, %v1123
  %v1125 = vpop.f32.mrb[0].mxu0
  %1126 = vmatprep.mubr.bf16.mxu0 %v609
  %1127 = vmatmul.mubr.bf16.gmra.mrb[0].mxu0 %v608
  %v1128 = vpop.f32.mrb[0].mxu0
  %v1129 = vadd.f32 %v196, %v1128
  %v1130 = vpop.f32.mrb[0].mxu0
  %v1131 = vpop.f32.mrb[0].mxu0
  %v1132 = vadd.f32 %v196, %v1131
  %v1133 = vpop.f32.mrb[0].mxu0
  %1134 = vmatprep.mubr.bf16.mxu0 %v612
  %1135 = vmatmul.mubr.bf16.gmra.mrb[0].mxu0 %v611
  %v1136 = vpop.f32.mrb[0].mxu0
  %v1137 = vadd.f32 %v196, %v1136
  %v1138 = vpop.f32.mrb[0].mxu0
  %v1139 = vpop.f32.mrb[0].mxu0
  %v1140 = vadd.f32 %v196, %v1139
  %v1141 = vpop.f32.mrb[0].mxu0
  %1142 = vdwg.mxu0
  %1143 = vmatprep.subr.bf16.mxu0 0
  %1144 = vmatpush1.bf16.msra.mxu0 %v822
  %1145 = vmatprep.subr.bf16.mxu0 0
  %1146 = vmatpush1.bf16.msra.mxu0 %v823
  %1147 = vmatprep.subr.bf16.mxu0 0
  %1148 = vmatpush1.bf16.msra.mxu0 %v824
  %1149 = vmatprep.subr.bf16.mxu0 0
  %1150 = vmatpush1.bf16.msra.mxu0 %v825
  %1151 = vmatprep.subr.bf16.mxu0 0
  %1152 = vmatpush1.bf16.msra.mxu0 %v826
  %1153 = vmatprep.subr.bf16.mxu0 0
  %1154 = vmatpush1.bf16.msra.mxu0 %v827
  %1155 = vmatprep.subr.bf16.mxu0 0
  %1156 = vmatpush1.bf16.msra.mxu0 %v828
  %1157 = vmatprep.subr.bf16.mxu0 0
  %1158 = vmatpush1.bf16.msra.mxu0 %v829
  %1159 = vmatprep.subr.bf16.mxu0 0
  %1160 = vmatpush1.bf16.msra.mxu0 0
  %1161 = vmatprep.subr.bf16.mxu0 0
  %1162 = vmatpush1.bf16.msra.mxu0 0
  %1163 = vmatprep.subr.bf16.mxu0 0
  %1164 = vmatpush1.bf16.msra.mxu0 0
  %1165 = vmatprep.subr.bf16.mxu0 0
  %1166 = vmatpush1.bf16.msra.mxu0 0
  %1167 = vmatprep.subr.bf16.mxu0 0
  %1168 = vmatpush1.bf16.msra.mxu0 0
  %1169 = vmatprep.subr.bf16.mxu0 0
  %1170 = vmatpush1.bf16.msra.mxu0 0
  %1171 = vmatprep.subr.bf16.mxu0 0
  %1172 = vmatpush1.bf16.msra.mxu0 0
  %1173 = vmatprep.subr.bf16.mxu0 0
  %1174 = vmatpush1.bf16.msra.mxu0 0
  %1175 = vmatprep.mubr.bf16.mxu0 0
  %1176 = vmatmul.mubr.bf16.gmra.mrb[0].mxu0 %v520
  %v1177 = vpop.f32.mrb[0].mxu0
  %v1178 = vadd.f32 %v889, %v1177
  %v1179 = vpop.f32.mrb[0].mxu0
  %v1180 = vpop.f32.mrb[0].mxu0
  %v1181 = vadd.f32 %v892, %v1180
  %v1182 = vpop.f32.mrb[0].mxu0
  %1183 = vmatprep.mubr.bf16.mxu0 0
  %1184 = vmatmul.mubr.bf16.gmra.mrb[0].mxu0 %v523
  %v1185 = vpop.f32.mrb[0].mxu0
  %v1186 = vadd.f32 %v897, %v1185
  %v1187 = vpop.f32.mrb[0].mxu0
  %v1188 = vpop.f32.mrb[0].mxu0
  %v1189 = vadd.f32 %v900, %v1188
  %v1190 = vpop.f32.mrb[0].mxu0
  %1191 = vmatprep.mubr.bf16.mxu0 0
  %1192 = vmatmul.mubr.bf16.gmra.mrb[0].mxu0 %v526
  %v1193 = vpop.f32.mrb[0].mxu0
  %v1194 = vadd.f32 %v905, %v1193
  %v1195 = vpop.f32.mrb[0].mxu0
  %v1196 = vpop.f32.mrb[0].mxu0
  %v1197 = vadd.f32 %v908, %v1196
  %v1198 = vpop.f32.mrb[0].mxu0
  %1199 = vmatprep.mubr.bf16.mxu0 0
  %1200 = vmatmul.mubr.bf16.gmra.mrb[0].mxu0 %v529
  %v1201 = vpop.f32.mrb[0].mxu0
  %v1202 = vadd.f32 %v913, %v1201
  %v1203 = vpop.f32.mrb[0].mxu0
  %v1204 = vpop.f32.mrb[0].mxu0
  %v1205 = vadd.f32 %v916, %v1204
  %v1206 = vpop.f32.mrb[0].mxu0
  %1207 = vmatprep.mubr.bf16.mxu0 0
  %1208 = vmatmul.mubr.bf16.gmra.mrb[0].mxu0 %v532
  %v1209 = vpop.f32.mrb[0].mxu0
  %v1210 = vadd.f32 %v921, %v1209
  %v1211 = vpop.f32.mrb[0].mxu0
  %v1212 = vpop.f32.mrb[0].mxu0
  %v1213 = vadd.f32 %v924, %v1212
  %v1214 = vpop.f32.mrb[0].mxu0
  %1215 = vmatprep.mubr.bf16.mxu0 0
  %1216 = vmatmul.mubr.bf16.gmra.mrb[0].mxu0 %v535
  %v1217 = vpop.f32.mrb[0].mxu0
  %v1218 = vadd.f32 %v929, %v1217
  %v1219 = vpop.f32.mrb[0].mxu0
  %v1220 = vpop.f32.mrb[0].mxu0
  %v1221 = vadd.f32 %v932, %v1220
  %v1222 = vpop.f32.mrb[0].mxu0
  %1223 = vmatprep.mubr.bf16.mxu0 0
  %1224 = vmatmul.mubr.bf16.gmra.mrb[0].mxu0 %v538
  %v1225 = vpop.f32.mrb[0].mxu0
  %v1226 = vadd.f32 %v937, %v1225
  %v1227 = vpop.f32.mrb[0].mxu0
  %v1228 = vpop.f32.mrb[0].mxu0
  %v1229 = vadd.f32 %v940, %v1228
  %v1230 = vpop.f32.mrb[0].mxu0
  %1231 = vmatprep.mubr.bf16.mxu0 0
  %1232 = vmatmul.mubr.bf16.gmra.mrb[0].mxu0 %v541
  %v1233 = vpop.f32.mrb[0].mxu0
  %v1234 = vadd.f32 %v945, %v1233
  %v1235 = vpop.f32.mrb[0].mxu0
  %v1236 = vpop.f32.mrb[0].mxu0
  %v1237 = vadd.f32 %v948, %v1236
  %v1238 = vpop.f32.mrb[0].mxu0
  %1239 = vmatprep.mubr.bf16.mxu0 0
  %1240 = vmatmul.mubr.bf16.gmra.mrb[0].mxu0 %v544
  %v1241 = vpop.f32.mrb[0].mxu0
  %v1242 = vadd.f32 %v953, %v1241
  %v1243 = vpop.f32.mrb[0].mxu0
  %v1244 = vpop.f32.mrb[0].mxu0
  %v1245 = vadd.f32 %v956, %v1244
  %v1246 = vpop.f32.mrb[0].mxu0
  %1247 = vmatprep.mubr.bf16.mxu0 0
  %1248 = vmatmul.mubr.bf16.gmra.mrb[0].mxu0 %v547
  %v1249 = vpop.f32.mrb[0].mxu0
  %v1250 = vadd.f32 %v961, %v1249
  %v1251 = vpop.f32.mrb[0].mxu0
  %v1252 = vpop.f32.mrb[0].mxu0
  %v1253 = vadd.f32 %v964, %v1252
  %v1254 = vpop.f32.mrb[0].mxu0
  %1255 = vmatprep.mubr.bf16.mxu0 0
  %1256 = vmatmul.mubr.bf16.gmra.mrb[0].mxu0 %v550
  %v1257 = vpop.f32.mrb[0].mxu0
  %v1258 = vadd.f32 %v969, %v1257
  %v1259 = vpop.f32.mrb[0].mxu0
  %v1260 = vpop.f32.mrb[0].mxu0
  %v1261 = vadd.f32 %v972, %v1260
  %v1262 = vpop.f32.mrb[0].mxu0
  %1263 = vmatprep.mubr.bf16.mxu0 0
  %1264 = vmatmul.mubr.bf16.gmra.mrb[0].mxu0 %v553
  %v1265 = vpop.f32.mrb[0].mxu0
  %v1266 = vadd.f32 %v977, %v1265
  %v1267 = vpop.f32.mrb[0].mxu0
  %v1268 = vpop.f32.mrb[0].mxu0
  %v1269 = vadd.f32 %v980, %v1268
  %v1270 = vpop.f32.mrb[0].mxu0
  %1271 = vmatprep.mubr.bf16.mxu0 0
  %1272 = vmatmul.mubr.bf16.gmra.mrb[0].mxu0 %v556
  %v1273 = vpop.f32.mrb[0].mxu0
  %v1274 = vadd.f32 %v985, %v1273
  %v1275 = vpop.f32.mrb[0].mxu0
  %v1276 = vpop.f32.mrb[0].mxu0
  %v1277 = vadd.f32 %v988, %v1276
  %v1278 = vpop.f32.mrb[0].mxu0
  %1279 = vmatprep.mubr.bf16.mxu0 0
  %1280 = vmatmul.mubr.bf16.gmra.mrb[0].mxu0 %v559
  %v1281 = vpop.f32.mrb[0].mxu0
  %v1282 = vadd.f32 %v993, %v1281
  %v1283 = vpop.f32.mrb[0].mxu0
  %v1284 = vpop.f32.mrb[0].mxu0
  %v1285 = vadd.f32 %v996, %v1284
  %v1286 = vpop.f32.mrb[0].mxu0
  %1287 = vmatprep.mubr.bf16.mxu0 0
  %1288 = vmatmul.mubr.bf16.gmra.mrb[0].mxu0 %v562
  %v1289 = vpop.f32.mrb[0].mxu0
  %v1290 = vadd.f32 %v1001, %v1289
  %v1291 = vpop.f32.mrb[0].mxu0
  %v1292 = vpop.f32.mrb[0].mxu0
  %v1293 = vadd.f32 %v1004, %v1292
  %v1294 = vpop.f32.mrb[0].mxu0
  %1295 = vmatprep.mubr.bf16.mxu0 0
  %1296 = vmatmul.mubr.bf16.gmra.mrb[0].mxu0 %v565
  %v1297 = vpop.f32.mrb[0].mxu0
  %v1298 = vadd.f32 %v1009, %v1297
  %v1299 = vpop.f32.mrb[0].mxu0
  %v1300 = vpop.f32.mrb[0].mxu0
  %v1301 = vadd.f32 %v1012, %v1300
  %v1302 = vpop.f32.mrb[0].mxu0
  %1303 = vmatprep.mubr.bf16.mxu0 0
  %1304 = vmatmul.mubr.bf16.gmra.mrb[0].mxu0 %v568
  %v1305 = vpop.f32.mrb[0].mxu0
  %v1306 = vadd.f32 %v1017, %v1305
  %v1307 = vpop.f32.mrb[0].mxu0
  %v1308 = vpop.f32.mrb[0].mxu0
  %v1309 = vadd.f32 %v1020, %v1308
  %v1310 = vpop.f32.mrb[0].mxu0
  %1311 = vmatprep.mubr.bf16.mxu0 0
  %1312 = vmatmul.mubr.bf16.gmra.mrb[0].mxu0 %v571
  %v1313 = vpop.f32.mrb[0].mxu0
  %v1314 = vadd.f32 %v1025, %v1313
  %v1315 = vpop.f32.mrb[0].mxu0
  %v1316 = vpop.f32.mrb[0].mxu0
  %v1317 = vadd.f32 %v1028, %v1316
  %v1318 = vpop.f32.mrb[0].mxu0
  %1319 = vmatprep.mubr.bf16.mxu0 0
  %1320 = vmatmul.mubr.bf16.gmra.mrb[0].mxu0 %v574
  %v1321 = vpop.f32.mrb[0].mxu0
  %v1322 = vadd.f32 %v1033, %v1321
  %v1323 = vpop.f32.mrb[0].mxu0
  %v1324 = vpop.f32.mrb[0].mxu0
  %v1325 = vadd.f32 %v1036, %v1324
  %v1326 = vpop.f32.mrb[0].mxu0
  %1327 = vmatprep.mubr.bf16.mxu0 0
  %1328 = vmatmul.mubr.bf16.gmra.mrb[0].mxu0 %v577
  %v1329 = vpop.f32.mrb[0].mxu0
  %v1330 = vadd.f32 %v1041, %v1329
  %v1331 = vpop.f32.mrb[0].mxu0
  %v1332 = vpop.f32.mrb[0].mxu0
  %v1333 = vadd.f32 %v1044, %v1332
  %v1334 = vpop.f32.mrb[0].mxu0
  %1335 = vmatprep.mubr.bf16.mxu0 0
  %1336 = vmatmul.mubr.bf16.gmra.mrb[0].mxu0 %v580
  %v1337 = vpop.f32.mrb[0].mxu0
  %v1338 = vadd.f32 %v1049, %v1337
  %v1339 = vpop.f32.mrb[0].mxu0
  %v1340 = vpop.f32.mrb[0].mxu0
  %v1341 = vadd.f32 %v1052, %v1340
  %v1342 = vpop.f32.mrb[0].mxu0
  %1343 = vmatprep.mubr.bf16.mxu0 0
  %1344 = vmatmul.mubr.bf16.gmra.mrb[0].mxu0 %v583
  %v1345 = vpop.f32.mrb[0].mxu0
  %v1346 = vadd.f32 %v1057, %v1345
  %v1347 = vpop.f32.mrb[0].mxu0
  %v1348 = vpop.f32.mrb[0].mxu0
  %v1349 = vadd.f32 %v1060, %v1348
  %v1350 = vpop.f32.mrb[0].mxu0
  %1351 = vmatprep.mubr.bf16.mxu0 0
  %1352 = vmatmul.mubr.bf16.gmra.mrb[0].mxu0 %v586
  %v1353 = vpop.f32.mrb[0].mxu0
  %v1354 = vadd.f32 %v1065, %v1353
  %v1355 = vpop.f32.mrb[0].mxu0
  %v1356 = vpop.f32.mrb[0].mxu0
  %v1357 = vadd.f32 %v1068, %v1356
  %v1358 = vpop.f32.mrb[0].mxu0
  %1359 = vmatprep.mubr.bf16.mxu0 0
  %1360 = vmatmul.mubr.bf16.gmra.mrb[0].mxu0 %v589
  %v1361 = vpop.f32.mrb[0].mxu0
  %v1362 = vadd.f32 %v1073, %v1361
  %v1363 = vpop.f32.mrb[0].mxu0
  %v1364 = vpop.f32.mrb[0].mxu0
  %v1365 = vadd.f32 %v1076, %v1364
  %v1366 = vpop.f32.mrb[0].mxu0
  %1367 = vmatprep.mubr.bf16.mxu0 0
  %1368 = vmatmul.mubr.bf16.gmra.mrb[0].mxu0 %v592
  %v1369 = vpop.f32.mrb[0].mxu0
  %v1370 = vadd.f32 %v1081, %v1369
  %v1371 = vpop.f32.mrb[0].mxu0
  %v1372 = vpop.f32.mrb[0].mxu0
  %v1373 = vadd.f32 %v1084, %v1372
  %v1374 = vpop.f32.mrb[0].mxu0
  %1375 = vmatprep.mubr.bf16.mxu0 0
  %1376 = vmatmul.mubr.bf16.gmra.mrb[0].mxu0 %v595
  %v1377 = vpop.f32.mrb[0].mxu0
  %v1378 = vadd.f32 %v1089, %v1377
  %v1379 = vpop.f32.mrb[0].mxu0
  %v1380 = vpop.f32.mrb[0].mxu0
  %v1381 = vadd.f32 %v1092, %v1380
  %v1382 = vpop.f32.mrb[0].mxu0
  %1383 = vmatprep.mubr.bf16.mxu0 0
  %1384 = vmatmul.mubr.bf16.gmra.mrb[0].mxu0 %v598
  %v1385 = vpop.f32.mrb[0].mxu0
  %v1386 = vadd.f32 %v1097, %v1385
  %v1387 = vpop.f32.mrb[0].mxu0
  %v1388 = vpop.f32.mrb[0].mxu0
  %v1389 = vadd.f32 %v1100, %v1388
  %v1390 = vpop.f32.mrb[0].mxu0
  %1391 = vmatprep.mubr.bf16.mxu0 0
  %1392 = vmatmul.mubr.bf16.gmra.mrb[0].mxu0 %v601
  %v1393 = vpop.f32.mrb[0].mxu0
  %v1394 = vadd.f32 %v1105, %v1393
  %v1395 = vpop.f32.mrb[0].mxu0
  %v1396 = vpop.f32.mrb[0].mxu0
  %v1397 = vadd.f32 %v1108, %v1396
  %v1398 = vpop.f32.mrb[0].mxu0
  %1399 = vmatprep.mubr.bf16.mxu0 0
  %1400 = vmatmul.mubr.bf16.gmra.mrb[0].mxu0 %v604
  %v1401 = vpop.f32.mrb[0].mxu0
  %v1402 = vadd.f32 %v1113, %v1401
  %v1403 = vpop.f32.mrb[0].mxu0
  %v1404 = vpop.f32.mrb[0].mxu0
  %v1405 = vadd.f32 %v1116, %v1404
  %v1406 = vpop.f32.mrb[0].mxu0
  %1407 = vmatprep.mubr.bf16.mxu0 0
  %1408 = vmatmul.mubr.bf16.gmra.mrb[0].mxu0 %v607
  %v1409 = vpop.f32.mrb[0].mxu0
  %v1410 = vadd.f32 %v1121, %v1409
  %v1411 = vpop.f32.mrb[0].mxu0
  %v1412 = vpop.f32.mrb[0].mxu0
  %v1413 = vadd.f32 %v1124, %v1412
  %v1414 = vpop.f32.mrb[0].mxu0
  %1415 = vmatprep.mubr.bf16.mxu0 0
  %1416 = vmatmul.mubr.bf16.gmra.mrb[0].mxu0 %v610
  %v1417 = vpop.f32.mrb[0].mxu0
  %v1418 = vadd.f32 %v1129, %v1417
  %v1419 = vpop.f32.mrb[0].mxu0
  %v1420 = vpop.f32.mrb[0].mxu0
  %v1421 = vadd.f32 %v1132, %v1420
  %v1422 = vpop.f32.mrb[0].mxu0
  %1423 = vmatprep.mubr.bf16.mxu0 0
  %1424 = vmatmul.mubr.bf16.gmra.mrb[0].mxu0 %v613
  %v1425 = vpop.f32.mrb[0].mxu0
  %v1426 = vadd.f32 %v1137, %v1425
  %v1427 = vpop.f32.mrb[0].mxu0
  %v1428 = vpop.f32.mrb[0].mxu0
  %v1429 = vadd.f32 %v1140, %v1428
  %v1430 = vpop.f32.mrb[0].mxu0
  %1431 = vdwg.mxu0
  %1432 = vst [vmem:[%s3] sm:$0xff] %v1178
  %1433 = vst [vmem:[%s3 + $0x8] sm:$0xff] %v1181
  %1434 = vst [vmem:[%s3 + $0x10] sm:$0xff] %v1186
  %1435 = vst [vmem:[%s3 + $0x18] sm:$0xff] %v1189
  %1436 = vst [vmem:[%s3 + $0x20] sm:$0xff] %v1194
  %1437 = vst [vmem:[%s3 + $0x28] sm:$0xff] %v1197
  %1438 = vst [vmem:[%s3 + $0x30] sm:$0xff] %v1202
  %1439 = vst [vmem:[%s3 + $0x38] sm:$0xff] %v1205
  %1440 = vst [vmem:[%s3 + $0x40] sm:$0xff] %v1210
  %1441 = vst [vmem:[%s3 + $0x48] sm:$0xff] %v1213
  %1442 = vst [vmem:[%s3 + $0x50] sm:$0xff] %v1218
  %1443 = vst [vmem:[%s3 + $0x58] sm:$0xff] %v1221
  %1444 = vst [vmem:[%s3 + $0x60] sm:$0xff] %v1226
  %1445 = vst [vmem:[%s3 + $0x68] sm:$0xff] %v1229
  %1446 = vst [vmem:[%s3 + $0x70] sm:$0xff] %v1234
  %1447 = vst [vmem:[%s3 + $0x78] sm:$0xff] %v1237
  %1448 = vst [vmem:[%s3 + $0x80] sm:$0xff] %v1242
  %1449 = vst [vmem:[%s3 + $0x88] sm:$0xff] %v1245
  %1450 = vst [vmem:[%s3 + $0x90] sm:$0xff] %v1250
  %1451 = vst [vmem:[%s3 + $0x98] sm:$0xff] %v1253
  %1452 = vst [vmem:[%s3 + $0xa0] sm:$0xff] %v1258
  %1453 = vst [vmem:[%s3 + $0xa8] sm:$0xff] %v1261
  %1454 = vst [vmem:[%s3 + $0xb0] sm:$0xff] %v1266
  %1455 = vst [vmem:[%s3 + $0xb8] sm:$0xff] %v1269
  %1456 = vst [vmem:[%s3 + $0xc0] sm:$0xff] %v1274
  %1457 = vst [vmem:[%s3 + $0xc8] sm:$0xff] %v1277
  %1458 = vst [vmem:[%s3 + $0xd0] sm:$0xff] %v1282
  %1459 = vst [vmem:[%s3 + $0xd8] sm:$0xff] %v1285
  %1460 = vst [vmem:[%s3 + $0xe0] sm:$0xff] %v1290
  %1461 = vst [vmem:[%s3 + $0xe8] sm:$0xff] %v1293
  %1462 = vst [vmem:[%s3 + $0xf0] sm:$0xff] %v1298
  %1463 = vst [vmem:[%s3 + $0xf8] sm:$0xff] %v1301
  %1464 = vst [vmem:[%s3 + $0x100] sm:$0xff] %v1306
  %1465 = vst [vmem:[%s3 + $0x108] sm:$0xff] %v1309
  %1466 = vst [vmem:[%s3 + $0x110] sm:$0xff] %v1314
  %1467 = vst [vmem:[%s3 + $0x118] sm:$0xff] %v1317
  %1468 = vst [vmem:[%s3 + $0x120] sm:$0xff] %v1322
  %1469 = vst [vmem:[%s3 + $0x128] sm:$0xff] %v1325
  %1470 = vst [vmem:[%s3 + $0x130] sm:$0xff] %v1330
  %1471 = vst [vmem:[%s3 + $0x138] sm:$0xff] %v1333
  %1472 = vst [vmem:[%s3 + $0x140] sm:$0xff] %v1338
  %1473 = vst [vmem:[%s3 + $0x148] sm:$0xff] %v1341
  %1474 = vst [vmem:[%s3 + $0x150] sm:$0xff] %v1346
  %1475 = vst [vmem:[%s3 + $0x158] sm:$0xff] %v1349
  %1476 = vst [vmem:[%s3 + $0x160] sm:$0xff] %v1354
  %1477 = vst [vmem:[%s3 + $0x168] sm:$0xff] %v1357
  %1478 = vst [vmem:[%s3 + $0x170] sm:$0xff] %v1362
  %1479 = vst [vmem:[%s3 + $0x178] sm:$0xff] %v1365
  %1480 = vst [vmem:[%s3 + $0x180] sm:$0xff] %v1370
  %1481 = vst [vmem:[%s3 + $0x188] sm:$0xff] %v1373
  %1482 = vst [vmem:[%s3 + $0x190] sm:$0xff] %v1378
  %1483 = vst [vmem:[%s3 + $0x198] sm:$0xff] %v1381
  %1484 = vst [vmem:[%s3 + $0x1a0] sm:$0xff] %v1386
  %1485 = vst [vmem:[%s3 + $0x1a8] sm:$0xff] %v1389
  %1486 = vst [vmem:[%s3 + $0x1b0] sm:$0xff] %v1394
  %1487 = vst [vmem:[%s3 + $0x1b8] sm:$0xff] %v1397
  %1488 = vst [vmem:[%s3 + $0x1c0] sm:$0xff] %v1402
  %1489 = vst [vmem:[%s3 + $0x1c8] sm:$0xff] %v1405
  %1490 = vst [vmem:[%s3 + $0x1d0] sm:$0xff] %v1410
  %1491 = vst [vmem:[%s3 + $0x1d8] sm:$0xff] %v1413
  %1492 = vst [vmem:[%s3 + $0x1e0] sm:$0xff] %v1418
  %1493 = vst [vmem:[%s3 + $0x1e8] sm:$0xff] %v1421
  %1494 = vst [vmem:[%s3 + $0x1f0] sm:$0xff] %v1426
  %1495 = vst [vmem:[%s3 + $0x1f8] sm:$0xff] %v1429
  // Predicated region
  $region14: #{transition_pruner_forward.25} parent=0 // pred_check
    _
  $region15: #{transition_pruner_forward.25} parent=0 // pred_check_branch
    %1497 = sbr.rel (0) target = $region17
  $region16: #{transition_pruner_forward.25} parent=0 // pred_region
    _
  $region17: #{transition_pruner_forward.25} parent=0 // pred_fallthru
    _
  // Predicated region
  $region18: #{transition_pruner_forward.25} parent=0 // pred_check
    _
  $region19: #{transition_pruner_forward.25} parent=0 // pred_check_branch
    %1499 = sbr.rel (0) target = $region21
  $region20: #{transition_pruner_forward.25} parent=0 // pred_region
    _
  $region21: #{transition_pruner_forward.25} parent=0 // pred_fallthru
    _

</llo_original>
